<compile_context>
chip_gen: v7x
topology: tpu7x:2x2x1
jax: 0.10.0
libtpu: 0.0.40
codegen_flags: <defaults>
</compile_context>

<pallas_src>
import functools

import numpy as np
import jax
import jax.numpy as jnp
from jax.experimental import pallas as pl
from jax.experimental.pallas import tpu as pltpu

EPS = 1e-5


# ----------------------------------------------------------------------------
# Fused whole-network kernel.
# Activation row layout throughout the conv stage: row = p*B + b  (p = h*W+w),
# column = channel.  Conv taps are row-shifts of this layout; the flatten for
# fc1 is 42 contiguous (B, 128) chunks lane-concatenated into a (B, 5376) slab.
# ----------------------------------------------------------------------------
def _dqn_kernel(x0_ref, mask_ref,
                w1c_ref, b1c_ref, w2c_ref, b2c_ref, w3c_ref, b3c_ref,
                w1f_hbm, b1f_ref, w2f_ref, b2f_ref, w3f_ref, b3f_ref,
                w4f_ref, b4f_ref,
                out_ref,
                w1f_vmem, w1f_sem,
                *, batch, rows, cols):
    f32, bf16 = jnp.float32, jnp.bfloat16
    hw = rows * cols

    # Start the big fc1-weight DMA (5376x512 bf16 ~ 5.25 MiB) immediately so
    # it overlaps the whole conv stage; the kernel is weight-DMA bound at B=2.
    w1f_copy = pltpu.make_async_copy(w1f_hbm, w1f_vmem, w1f_sem)
    w1f_copy.start()

    # conv1 (+ folded BN1) + ReLU: pre-im2col'd raw input (HW*B, 9) @ (9, 32).
    x = jnp.dot(x0_ref[...].astype(bf16), w1c_ref[...],
                preferred_element_type=f32)
    x = jnp.maximum(x + b1c_ref[...], 0.0)                      # (HW*B, 32) f32

    # Per-tap spatial-validity masks (HW*B, 1), loaded once, reused by both
    # conv layers.
    masks = [mask_ref[k] for k in range(9)]

    # out[r] = v[r + delta] with zero-fill at array ends; interior (h, w)
    # boundaries are handled by the masks.  Pure slice/concat — no MXU.
    def shift_rows(v, delta):
        if delta == 0:
            return v
        pad = jnp.zeros((abs(delta), v.shape[1]), v.dtype)
        if delta > 0:
            return jnp.concatenate([v[delta:, :], pad], axis=0)
        return jnp.concatenate([pad, v[:delta, :]], axis=0)

    # conv2 / conv3 (+ folded BN) + ReLU: build the (HW*B, 9*Cin) im2col slab
    # from shifted+masked copies, then ONE MXU dot per layer (K = 288 / 576).
    def conv3x3(v, w_ref, b_ref):
        taps = []
        for k in range(9):
            kh, kw = k // 3, k % 3
            delta = ((kh - 1) * cols + (kw - 1)) * batch
            taps.append(shift_rows(v, delta) * masks[k])        # (HW*B, Cin) f32
        slab = jnp.concatenate(taps, axis=1).astype(bf16)       # (HW*B, 9*Cin)
        y = jnp.dot(slab, w_ref[...], preferred_element_type=f32)
        return jnp.maximum(y + b_ref[...], 0.0)

    x = conv3x3(x, w2c_ref, b2c_ref)                            # (HW*B, 64)
    x = conv3x3(x, w3c_ref, b3c_ref)                            # (HW*B, 128)

    # Flatten (NCHW permutation folded into w1f): restage to a lane-dense
    # (B, HW*128) slab — 42 contiguous (B, 128) chunks side by side.
    pieces = [x[p * batch:(p + 1) * batch, :] for p in range(hw)]
    slab = jnp.concatenate(pieces, axis=1).astype(bf16)         # (B, 5376)

    # fc1 (+BN4) + ReLU: single (B, 5376) @ (5376, 512) dot.
    w1f_copy.wait()
    h = jnp.dot(slab, w1f_vmem[...], preferred_element_type=f32)
    h = jnp.maximum(h + b1f_ref[...], 0.0)                      # (B, 512)
    # TODO(synk): dropout = identity (inference mode).

    # fc2 (+BN5) + ReLU, fc3 (+BN6) + ReLU, fc4 (plain linear).
    h = jnp.maximum(
        jnp.dot(h.astype(bf16), w2f_ref[...], preferred_element_type=f32)
        + b2f_ref[...], 0.0)                                    # (B, 256)
    h = jnp.maximum(
        jnp.dot(h.astype(bf16), w3f_ref[...], preferred_element_type=f32)
        + b3f_ref[...], 0.0)                                    # (B, 128)
    q = jnp.dot(h.astype(bf16), w4f_ref[...], preferred_element_type=f32) \
        + b4f_ref[...]                                          # (B, A)
    out_ref[...] = q.astype(out_ref.dtype)


# ----------------------------------------------------------------------------
# One-time parameter preparation (outside the forward pass):
#   - fold inference BatchNorm scale into weights, keep only a shift,
#   - conv weights laid out as flat (9*Cin, Cout) im2col matrices,
#   - fc weights pre-transposed; fc1 gets the NCHW flatten permutation folded
#     in and is stored flat (HW*128, 512),
#   - all weights bf16 (shifts stay f32).
# ----------------------------------------------------------------------------
def prepare_params(p, input_shape=(6, 7)):
    rows, cols = input_shape
    HW = rows * cols
    bf16, f32 = jnp.bfloat16, jnp.float32

    def fold(bn, bias):
        s = bn["gamma"] / jnp.sqrt(bn["var"] + EPS)
        t = s * bias + bn["beta"] - s * bn["mean"]
        return s, t

    out = {}

    # conv1: im2col'd input path -> weight matrix (9, 32)
    s1, t1 = fold(p["bn1"], p["conv1_b"])
    w1 = jnp.transpose(p["conv1_w"], (2, 3, 1, 0)).reshape(9, 32)  # (kh,kw,ci=1,co)
    out["w1c"] = (w1 * s1[None, :]).astype(bf16)
    out["b1c"] = t1.reshape(1, -1).astype(f32)

    # conv2 / conv3: flat (9*Cin, Cout), row = (kh*3+kw)*Cin + ci
    for idx, wkey, bkey, bnkey in ((2, "conv2_w", "conv2_b", "bn2"),
                                   (3, "conv3_w", "conv3_b", "bn3")):
        s, t = fold(p[bnkey], p[bkey])
        cw = p[wkey]                                   # (Cout, Cin, 3, 3)
        cout, cin = cw.shape[0], cw.shape[1]
        wm = jnp.transpose(cw, (2, 3, 1, 0)).reshape(9 * cin, cout)
        out[f"w{idx}c"] = (wm * s[None, :]).astype(bf16)
        out[f"b{idx}c"] = t.reshape(1, -1).astype(f32)

    # fc1: fold BN4 scale + flatten permutation -> flat (HW*128, 512),
    # row = p*128 + c, matching the in-kernel (B, HW*128) activation slab.
    s4, t4 = fold(p["bn4"], p["fc1_b"])
    C = 128
    w1f = ((p["fc1_w"] * s4[:, None])      # (512, C*HW), col = c*HW + p
           .reshape(512, C, HW)            # [n, c, p]
           .transpose(2, 1, 0)             # [p, c, n]
           .reshape(HW * C, 512))          # row = p*C + c
    out["w1f"] = w1f.astype(bf16)
    out["b1f"] = t4.reshape(1, -1).astype(f32)

    # fc2 / fc3: pre-transposed, BN scale folded
    for idx, wkey, bkey, bnkey in ((2, "fc2_w", "fc2_b", "bn5"),
                                   (3, "fc3_w", "fc3_b", "bn6")):
        s, t = fold(p[bnkey], p[bkey])
        out[f"w{idx}f"] = (p[wkey].T * s[None, :]).astype(bf16)
        out[f"b{idx}f"] = t.reshape(1, -1).astype(f32)

    # fc4: plain linear
    out["w4f"] = p["fc4_w"].T.astype(bf16)
    out["b4f"] = p["fc4_b"].reshape(1, -1).astype(f32)
    return out


# ----------------------------------------------------------------------------
# Per-tap spatial-validity masks for 3x3 / stride 1 / pad 1 conv, in the
# row = p*B + b layout.  ~3 KiB of real data; built once at trace time.
# ----------------------------------------------------------------------------
def build_masks(H, W, B):
    HW = H * W
    m = np.zeros((9, HW * B, 1), np.float32)
    for kh in range(3):
        for kw in range(3):
            k = kh * 3 + kw
            for h in range(H):
                hi = h + kh - 1
                for w in range(W):
                    wi = w + kw - 1
                    if 0 <= hi < H and 0 <= wi < W:
                        p = h * W + w
                        m[k, p * B:(p + 1) * B, 0] = 1.0
    return jnp.asarray(m)


def _full_spec(arr):
    nd = arr.ndim
    return pl.BlockSpec(arr.shape, lambda i, _nd=nd: (0,) * _nd)


# ----------------------------------------------------------------------------
# Forward pass (inference semantics: BN uses running stats, dropout = id).
# ----------------------------------------------------------------------------
def dqn_forward(prepped, x, input_shape=(6, 7), num_actions=7):
    rows, cols = input_shape
    HW = rows * cols

    # PyTorch forward: squeeze 5D -> 4D, unsqueeze 3D -> (B, 1, H, W).
    if x.ndim == 5:
        x = jnp.squeeze(x, axis=2)
    if x.ndim == 3:
        x = x[:, None, :, :]
    B = x.shape[0]
    xb = x.reshape(B, rows, cols).astype(jnp.float32)

    # Tiny im2col of the raw 1-channel input only (HW*B x 9 floats).
    xpad = jnp.pad(xb, ((0, 0), (1, 1), (1, 1)))
    taps = [xpad[:, kh:kh + rows, kw:kw + cols]
            for kh in range(3) for kw in range(3)]
    x0p = (jnp.stack(taps, axis=-1)                  # (B, H, W, 9)
           .reshape(B, HW, 9)
           .transpose(1, 0, 2)
           .reshape(HW * B, 9))                      # row = p*B + b

    masks = build_masks(rows, cols, B)               # (9, HW*B, 1) f32

    inputs = [x0p, masks,
              prepped["w1c"], prepped["b1c"],
              prepped["w2c"], prepped["b2c"],
              prepped["w3c"], prepped["b3c"],
              prepped["w1f"], prepped["b1f"],
              prepped["w2f"], prepped["b2f"],
              prepped["w3f"], prepped["b3f"],
              prepped["w4f"], prepped["b4f"]]

    # w1f stays in HBM (pl.ANY) and is DMA'd manually inside the kernel so the
    # transfer overlaps the conv stage; everything else is auto-DMA'd whole.
    in_specs = [pl.BlockSpec(memory_space=pl.ANY) if a is prepped["w1f"]
                else _full_spec(a) for a in inputs]

    return pl.pallas_call(
        functools.partial(_dqn_kernel, batch=B, rows=rows, cols=cols),
        out_shape=jax.ShapeDtypeStruct((B, num_actions), jnp.float32),
        grid=(1,),
        in_specs=in_specs,
        out_specs=pl.BlockSpec((B, num_actions), lambda i: (0, 0)),
        scratch_shapes=[pltpu.VMEM((HW * 128, 512), jnp.bfloat16),   # w1f buffer
                        pltpu.SemaphoreType.DMA(())],
        compiler_params=pltpu.CompilerParams(
            dimension_semantics=("arbitrary",),
            vmem_limit_bytes=32 * 1024 * 1024),
    )(*inputs)


# ----------------------------------------------------------------------------
# Deterministic parameter initialization (synthetic, shapes from __init__).
# ----------------------------------------------------------------------------
def init_params(key, input_shape=(6, 7), num_actions=7):
    rows, cols = input_shape
    flattened = 128 * rows * cols

    def nrm(k, shape, s=0.05):
        return s * jax.random.normal(k, shape, dtype=jnp.float32)

    keys = jax.random.split(key, 48)
    ki = iter(keys)
    p = {}

    def bn(n):
        return dict(
            gamma=1.0 + 0.1 * jax.random.normal(next(ki), (n,), jnp.float32),
            beta=0.05 * jax.random.normal(next(ki), (n,), jnp.float32),
            mean=0.05 * jax.random.normal(next(ki), (n,), jnp.float32),
            var=1.0 + 0.1 * jnp.abs(jax.random.normal(next(ki), (n,), jnp.float32)),
        )

    # convs: (Cout, Cin, 3, 3) like PyTorch
    p["conv1_w"] = nrm(next(ki), (32, 1, 3, 3));    p["conv1_b"] = nrm(next(ki), (32,))
    p["bn1"] = bn(32)
    p["conv2_w"] = nrm(next(ki), (64, 32, 3, 3));   p["conv2_b"] = nrm(next(ki), (64,))
    p["bn2"] = bn(64)
    p["conv3_w"] = nrm(next(ki), (128, 64, 3, 3));  p["conv3_b"] = nrm(next(ki), (128,))
    p["bn3"] = bn(128)

    # fcs: PyTorch Linear weight is (out, in)
    p["fc1_w"] = nrm(next(ki), (512, flattened));   p["fc1_b"] = nrm(next(ki), (512,))
    p["bn4"] = bn(512)
    p["fc2_w"] = nrm(next(ki), (256, 512));         p["fc2_b"] = nrm(next(ki), (256,))
    p["bn5"] = bn(256)
    p["fc3_w"] = nrm(next(ki), (128, 256));         p["fc3_b"] = nrm(next(ki), (128,))
    p["bn6"] = bn(128)
    p["fc4_w"] = nrm(next(ki), (num_actions, 128)); p["fc4_b"] = nrm(next(ki), (num_actions,))
    return p


if __name__ == "__main__":
    key = jax.random.PRNGKey(0)
    kp, kx = jax.random.split(key)

    params = init_params(kp, input_shape=(6, 7), num_actions=7)
    prepped = prepare_params(params, input_shape=(6, 7))   # one-time weight prep

    # Connect-4 board values in {-1, 0, 1}, batch of 2, shape [B, rows, cols].
    x = jax.random.randint(kx, (2, 6, 7), -1, 2).astype(jnp.float32)

    fwd = jax.jit(functools.partial(dqn_forward, input_shape=(6, 7), num_actions=7))
    q = fwd(prepped, x)
    q = jax.block_until_ready(q)

    assert q.shape == (2, 7), q.shape
    assert q.dtype == jnp.float32
    assert bool(jnp.all(jnp.isfinite(q)))
    print("KERNEL_OK")
</pallas_src>

<mosaic_0001>
module attributes {stable_mosaic.version = 11 : i64} {
  func.func @_dqn_kernel(%arg0: i32, %arg1: memref<84x9xf32, #tpu.memory_space<vmem>>, %arg2: memref<9x84x1xf32, #tpu.memory_space<vmem>>, %arg3: memref<9x32xbf16, #tpu.memory_space<vmem>>, %arg4: memref<1x32xf32, #tpu.memory_space<vmem>>, %arg5: memref<288x64xbf16, #tpu.memory_space<vmem>>, %arg6: memref<1x64xf32, #tpu.memory_space<vmem>>, %arg7: memref<576x128xbf16, #tpu.memory_space<vmem>>, %arg8: memref<1x128xf32, #tpu.memory_space<vmem>>, %arg9: memref<5376x512xbf16, #tpu.memory_space<any>>, %arg10: memref<1x512xf32, #tpu.memory_space<vmem>>, %arg11: memref<512x256xbf16, #tpu.memory_space<vmem>>, %arg12: memref<1x256xf32, #tpu.memory_space<vmem>>, %arg13: memref<256x128xbf16, #tpu.memory_space<vmem>>, %arg14: memref<1x128xf32, #tpu.memory_space<vmem>>, %arg15: memref<128x7xbf16, #tpu.memory_space<vmem>>, %arg16: memref<1x7xf32, #tpu.memory_space<vmem>>, %arg17: memref<2x7xf32, #tpu.memory_space<vmem>>, %arg18: memref<5376x512xbf16, #tpu.memory_space<vmem>>, %arg19: memref<!tpu.dma_semaphore, #tpu.memory_space<semaphore_mem>>) attributes {dimension_semantics = [#tpu.dimension_semantics<arbitrary>], iteration_bounds = array<i64: 1>, scalar_prefetch = 0 : i64, scratch_operands = 2 : i64, tpu.core_type = #tpu.core_type<tc>, window_params = [{pipeline_mode = #tpu.pipeline_mode<synchronous>, transform_indices = @transform_0, window_bounds = array<i64: 84, 9>}, {pipeline_mode = #tpu.pipeline_mode<synchronous>, transform_indices = @transform_1, window_bounds = array<i64: 9, 84, 1>}, {pipeline_mode = #tpu.pipeline_mode<synchronous>, transform_indices = @transform_2, window_bounds = array<i64: 9, 32>}, {pipeline_mode = #tpu.pipeline_mode<synchronous>, transform_indices = @transform_3, window_bounds = array<i64: 1, 32>}, {pipeline_mode = #tpu.pipeline_mode<synchronous>, transform_indices = @transform_4, window_bounds = array<i64: 288, 64>}, {pipeline_mode = #tpu.pipeline_mode<synchronous>, transform_indices = @transform_5, window_bounds = array<i64: 1, 64>}, {pipeline_mode = #tpu.pipeline_mode<synchronous>, transform_indices = @transform_6, window_bounds = array<i64: 576, 128>}, {pipeline_mode = #tpu.pipeline_mode<synchronous>, transform_indices = @transform_7, window_bounds = array<i64: 1, 128>}, {}, {pipeline_mode = #tpu.pipeline_mode<synchronous>, transform_indices = @transform_9, window_bounds = array<i64: 1, 512>}, {pipeline_mode = #tpu.pipeline_mode<synchronous>, transform_indices = @transform_10, window_bounds = array<i64: 512, 256>}, {pipeline_mode = #tpu.pipeline_mode<synchronous>, transform_indices = @transform_11, window_bounds = array<i64: 1, 256>}, {pipeline_mode = #tpu.pipeline_mode<synchronous>, transform_indices = @transform_12, window_bounds = array<i64: 256, 128>}, {pipeline_mode = #tpu.pipeline_mode<synchronous>, transform_indices = @transform_13, window_bounds = array<i64: 1, 128>}, {pipeline_mode = #tpu.pipeline_mode<synchronous>, transform_indices = @transform_14, window_bounds = array<i64: 128, 7>}, {pipeline_mode = #tpu.pipeline_mode<synchronous>, transform_indices = @transform_15, window_bounds = array<i64: 1, 7>}, {pipeline_mode = #tpu.pipeline_mode<synchronous>, transform_indices = @transform_16, window_bounds = array<i64: 2, 7>}]} {
    tpu.enqueue_dma source(%arg9 : memref<5376x512xbf16, #tpu.memory_space<any>>) target(%arg18 : memref<5376x512xbf16, #tpu.memory_space<vmem>>) target_semaphore(%arg19 : memref<!tpu.dma_semaphore, #tpu.memory_space<semaphore_mem>>)
    %c0 = arith.constant 0 : index
    %c0_0 = arith.constant 0 : index
    %0 = vector.load %arg1[%c0, %c0_0] : memref<84x9xf32, #tpu.memory_space<vmem>>, vector<84x9xf32>
    %1 = arith.truncf %0 : vector<84x9xf32> to vector<84x9xbf16>
    %c0_1 = arith.constant 0 : index
    %c0_2 = arith.constant 0 : index
    %2 = vector.load %arg3[%c0_1, %c0_2] : memref<9x32xbf16, #tpu.memory_space<vmem>>, vector<9x32xbf16>
    %cst = arith.constant dense<0.000000e+00> : vector<84x32xf32>
    %3 = tpu.matmul %1, %2, %cst {dimension_numbers = #tpu.dot_dimension_numbers<[1], [0], [0], [1], [0, 0, 1, 1], [], []>} : vector<84x9xbf16>, vector<9x32xbf16>, vector<84x32xf32> -> vector<84x32xf32>
    %c0_3 = arith.constant 0 : index
    %c0_4 = arith.constant 0 : index
    %4 = vector.load %arg4[%c0_3, %c0_4] : memref<1x32xf32, #tpu.memory_space<vmem>>, vector<1x32xf32>
    %5 = vector.broadcast %4 : vector<1x32xf32> to vector<84x32xf32>
    %6 = arith.addf %3, %5 : vector<84x32xf32>
    %cst_5 = arith.constant 0.000000e+00 : f32
    %7 = vector.broadcast %cst_5 : f32 to vector<84x32xf32>
    %8 = arith.maximumf %6, %7 : vector<84x32xf32>
    %c0_6 = arith.constant 0 : index
    %c0_7 = arith.constant 0 : index
    %c0_8 = arith.constant 0 : index
    %9 = vector.load %arg2[%c0_6, %c0_7, %c0_8] : memref<9x84x1xf32, #tpu.memory_space<vmem>>, vector<1x84x1xf32>
    %10 = vector.shape_cast %9 : vector<1x84x1xf32> to vector<84x1xf32>
    %c1 = arith.constant 1 : index
    %c0_9 = arith.constant 0 : index
    %c0_10 = arith.constant 0 : index
    %11 = vector.load %arg2[%c1, %c0_9, %c0_10] : memref<9x84x1xf32, #tpu.memory_space<vmem>>, vector<1x84x1xf32>
    %12 = vector.shape_cast %11 : vector<1x84x1xf32> to vector<84x1xf32>
    %c2 = arith.constant 2 : index
    %c0_11 = arith.constant 0 : index
    %c0_12 = arith.constant 0 : index
    %13 = vector.load %arg2[%c2, %c0_11, %c0_12] : memref<9x84x1xf32, #tpu.memory_space<vmem>>, vector<1x84x1xf32>
    %14 = vector.shape_cast %13 : vector<1x84x1xf32> to vector<84x1xf32>
    %c3 = arith.constant 3 : index
    %c0_13 = arith.constant 0 : index
    %c0_14 = arith.constant 0 : index
    %15 = vector.load %arg2[%c3, %c0_13, %c0_14] : memref<9x84x1xf32, #tpu.memory_space<vmem>>, vector<1x84x1xf32>
    %16 = vector.shape_cast %15 : vector<1x84x1xf32> to vector<84x1xf32>
    %c4 = arith.constant 4 : index
    %c0_15 = arith.constant 0 : index
    %c0_16 = arith.constant 0 : index
    %17 = vector.load %arg2[%c4, %c0_15, %c0_16] : memref<9x84x1xf32, #tpu.memory_space<vmem>>, vector<1x84x1xf32>
    %18 = vector.shape_cast %17 : vector<1x84x1xf32> to vector<84x1xf32>
    %c5 = arith.constant 5 : index
    %c0_17 = arith.constant 0 : index
    %c0_18 = arith.constant 0 : index
    %19 = vector.load %arg2[%c5, %c0_17, %c0_18] : memref<9x84x1xf32, #tpu.memory_space<vmem>>, vector<1x84x1xf32>
    %20 = vector.shape_cast %19 : vector<1x84x1xf32> to vector<84x1xf32>
    %c6 = arith.constant 6 : index
    %c0_19 = arith.constant 0 : index
    %c0_20 = arith.constant 0 : index
    %21 = vector.load %arg2[%c6, %c0_19, %c0_20] : memref<9x84x1xf32, #tpu.memory_space<vmem>>, vector<1x84x1xf32>
    %22 = vector.shape_cast %21 : vector<1x84x1xf32> to vector<84x1xf32>
    %c7 = arith.constant 7 : index
    %c0_21 = arith.constant 0 : index
    %c0_22 = arith.constant 0 : index
    %23 = vector.load %arg2[%c7, %c0_21, %c0_22] : memref<9x84x1xf32, #tpu.memory_space<vmem>>, vector<1x84x1xf32>
    %24 = vector.shape_cast %23 : vector<1x84x1xf32> to vector<84x1xf32>
    %c8 = arith.constant 8 : index
    %c0_23 = arith.constant 0 : index
    %c0_24 = arith.constant 0 : index
    %25 = vector.load %arg2[%c8, %c0_23, %c0_24] : memref<9x84x1xf32, #tpu.memory_space<vmem>>, vector<1x84x1xf32>
    %26 = vector.shape_cast %25 : vector<1x84x1xf32> to vector<84x1xf32>
    %cst_25 = arith.constant 0.000000e+00 : f32
    %27 = vector.broadcast %cst_25 : f32 to vector<16x32xf32>
    %28 = vector.extract_strided_slice %8 {offsets = [0, 0], sizes = [68, 32], strides = [1, 1]} : vector<84x32xf32> to vector<68x32xf32>
    %29 = tpu.concatenate %27, %28 in 0 : vector<16x32xf32>, vector<68x32xf32> -> vector<84x32xf32>
    %30 = vector.broadcast %10 : vector<84x1xf32> to vector<84x32xf32>
    %31 = arith.mulf %29, %30 : vector<84x32xf32>
    %cst_26 = arith.constant 0.000000e+00 : f32
    %32 = vector.broadcast %cst_26 : f32 to vector<14x32xf32>
    %33 = vector.extract_strided_slice %8 {offsets = [0, 0], sizes = [70, 32], strides = [1, 1]} : vector<84x32xf32> to vector<70x32xf32>
    %34 = tpu.concatenate %32, %33 in 0 : vector<14x32xf32>, vector<70x32xf32> -> vector<84x32xf32>
    %35 = vector.broadcast %12 : vector<84x1xf32> to vector<84x32xf32>
    %36 = arith.mulf %34, %35 : vector<84x32xf32>
    %cst_27 = arith.constant 0.000000e+00 : f32
    %37 = vector.broadcast %cst_27 : f32 to vector<12x32xf32>
    %38 = vector.extract_strided_slice %8 {offsets = [0, 0], sizes = [72, 32], strides = [1, 1]} : vector<84x32xf32> to vector<72x32xf32>
    %39 = tpu.concatenate %37, %38 in 0 : vector<12x32xf32>, vector<72x32xf32> -> vector<84x32xf32>
    %40 = vector.broadcast %14 : vector<84x1xf32> to vector<84x32xf32>
    %41 = arith.mulf %39, %40 : vector<84x32xf32>
    %cst_28 = arith.constant 0.000000e+00 : f32
    %42 = vector.broadcast %cst_28 : f32 to vector<2x32xf32>
    %43 = vector.extract_strided_slice %8 {offsets = [0, 0], sizes = [82, 32], strides = [1, 1]} : vector<84x32xf32> to vector<82x32xf32>
    %44 = tpu.concatenate %42, %43 in 0 : vector<2x32xf32>, vector<82x32xf32> -> vector<84x32xf32>
    %45 = vector.broadcast %16 : vector<84x1xf32> to vector<84x32xf32>
    %46 = arith.mulf %44, %45 : vector<84x32xf32>
    %47 = vector.broadcast %18 : vector<84x1xf32> to vector<84x32xf32>
    %48 = arith.mulf %8, %47 : vector<84x32xf32>
    %cst_29 = arith.constant 0.000000e+00 : f32
    %49 = vector.broadcast %cst_29 : f32 to vector<2x32xf32>
    %50 = vector.extract_strided_slice %8 {offsets = [2, 0], sizes = [82, 32], strides = [1, 1]} : vector<84x32xf32> to vector<82x32xf32>
    %51 = tpu.concatenate %50, %49 in 0 : vector<82x32xf32>, vector<2x32xf32> -> vector<84x32xf32>
    %52 = vector.broadcast %20 : vector<84x1xf32> to vector<84x32xf32>
    %53 = arith.mulf %51, %52 : vector<84x32xf32>
    %cst_30 = arith.constant 0.000000e+00 : f32
    %54 = vector.broadcast %cst_30 : f32 to vector<12x32xf32>
    %55 = vector.extract_strided_slice %8 {offsets = [12, 0], sizes = [72, 32], strides = [1, 1]} : vector<84x32xf32> to vector<72x32xf32>
    %56 = tpu.concatenate %55, %54 in 0 : vector<72x32xf32>, vector<12x32xf32> -> vector<84x32xf32>
    %57 = vector.broadcast %22 : vector<84x1xf32> to vector<84x32xf32>
    %58 = arith.mulf %56, %57 : vector<84x32xf32>
    %cst_31 = arith.constant 0.000000e+00 : f32
    %59 = vector.broadcast %cst_31 : f32 to vector<14x32xf32>
    %60 = vector.extract_strided_slice %8 {offsets = [14, 0], sizes = [70, 32], strides = [1, 1]} : vector<84x32xf32> to vector<70x32xf32>
    %61 = tpu.concatenate %60, %59 in 0 : vector<70x32xf32>, vector<14x32xf32> -> vector<84x32xf32>
    %62 = vector.broadcast %24 : vector<84x1xf32> to vector<84x32xf32>
    %63 = arith.mulf %61, %62 : vector<84x32xf32>
    %cst_32 = arith.constant 0.000000e+00 : f32
    %64 = vector.broadcast %cst_32 : f32 to vector<16x32xf32>
    %65 = vector.extract_strided_slice %8 {offsets = [16, 0], sizes = [68, 32], strides = [1, 1]} : vector<84x32xf32> to vector<68x32xf32>
    %66 = tpu.concatenate %65, %64 in 0 : vector<68x32xf32>, vector<16x32xf32> -> vector<84x32xf32>
    %67 = vector.broadcast %26 : vector<84x1xf32> to vector<84x32xf32>
    %68 = arith.mulf %66, %67 : vector<84x32xf32>
    %69 = tpu.concatenate %31, %36, %41, %46, %48, %53, %58, %63, %68 in 1 : vector<84x32xf32>, vector<84x32xf32>, vector<84x32xf32>, vector<84x32xf32>, vector<84x32xf32>, vector<84x32xf32>, vector<84x32xf32>, vector<84x32xf32>, vector<84x32xf32> -> vector<84x288xf32>
    %70 = arith.truncf %69 : vector<84x288xf32> to vector<84x288xbf16>
    %c0_33 = arith.constant 0 : index
    %c0_34 = arith.constant 0 : index
    %71 = vector.load %arg5[%c0_33, %c0_34] : memref<288x64xbf16, #tpu.memory_space<vmem>>, vector<288x64xbf16>
    %cst_35 = arith.constant dense<0.000000e+00> : vector<84x64xf32>
    %72 = tpu.matmul %70, %71, %cst_35 {dimension_numbers = #tpu.dot_dimension_numbers<[1], [0], [0], [1], [0, 0, 1, 1], [], []>} : vector<84x288xbf16>, vector<288x64xbf16>, vector<84x64xf32> -> vector<84x64xf32>
    %c0_36 = arith.constant 0 : index
    %c0_37 = arith.constant 0 : index
    %73 = vector.load %arg6[%c0_36, %c0_37] : memref<1x64xf32, #tpu.memory_space<vmem>>, vector<1x64xf32>
    %74 = vector.broadcast %73 : vector<1x64xf32> to vector<84x64xf32>
    %75 = arith.addf %72, %74 : vector<84x64xf32>
    %cst_38 = arith.constant 0.000000e+00 : f32
    %76 = vector.broadcast %cst_38 : f32 to vector<84x64xf32>
    %77 = arith.maximumf %75, %76 : vector<84x64xf32>
    %cst_39 = arith.constant 0.000000e+00 : f32
    %78 = vector.broadcast %cst_39 : f32 to vector<16x64xf32>
    %79 = vector.extract_strided_slice %77 {offsets = [0, 0], sizes = [68, 64], strides = [1, 1]} : vector<84x64xf32> to vector<68x64xf32>
    %80 = tpu.concatenate %78, %79 in 0 : vector<16x64xf32>, vector<68x64xf32> -> vector<84x64xf32>
    %81 = vector.broadcast %10 : vector<84x1xf32> to vector<84x64xf32>
    %82 = arith.mulf %80, %81 : vector<84x64xf32>
    %cst_40 = arith.constant 0.000000e+00 : f32
    %83 = vector.broadcast %cst_40 : f32 to vector<14x64xf32>
    %84 = vector.extract_strided_slice %77 {offsets = [0, 0], sizes = [70, 64], strides = [1, 1]} : vector<84x64xf32> to vector<70x64xf32>
    %85 = tpu.concatenate %83, %84 in 0 : vector<14x64xf32>, vector<70x64xf32> -> vector<84x64xf32>
    %86 = vector.broadcast %12 : vector<84x1xf32> to vector<84x64xf32>
    %87 = arith.mulf %85, %86 : vector<84x64xf32>
    %cst_41 = arith.constant 0.000000e+00 : f32
    %88 = vector.broadcast %cst_41 : f32 to vector<12x64xf32>
    %89 = vector.extract_strided_slice %77 {offsets = [0, 0], sizes = [72, 64], strides = [1, 1]} : vector<84x64xf32> to vector<72x64xf32>
    %90 = tpu.concatenate %88, %89 in 0 : vector<12x64xf32>, vector<72x64xf32> -> vector<84x64xf32>
    %91 = vector.broadcast %14 : vector<84x1xf32> to vector<84x64xf32>
    %92 = arith.mulf %90, %91 : vector<84x64xf32>
    %cst_42 = arith.constant 0.000000e+00 : f32
    %93 = vector.broadcast %cst_42 : f32 to vector<2x64xf32>
    %94 = vector.extract_strided_slice %77 {offsets = [0, 0], sizes = [82, 64], strides = [1, 1]} : vector<84x64xf32> to vector<82x64xf32>
    %95 = tpu.concatenate %93, %94 in 0 : vector<2x64xf32>, vector<82x64xf32> -> vector<84x64xf32>
    %96 = vector.broadcast %16 : vector<84x1xf32> to vector<84x64xf32>
    %97 = arith.mulf %95, %96 : vector<84x64xf32>
    %98 = vector.broadcast %18 : vector<84x1xf32> to vector<84x64xf32>
    %99 = arith.mulf %77, %98 : vector<84x64xf32>
    %cst_43 = arith.constant 0.000000e+00 : f32
    %100 = vector.broadcast %cst_43 : f32 to vector<2x64xf32>
    %101 = vector.extract_strided_slice %77 {offsets = [2, 0], sizes = [82, 64], strides = [1, 1]} : vector<84x64xf32> to vector<82x64xf32>
    %102 = tpu.concatenate %101, %100 in 0 : vector<82x64xf32>, vector<2x64xf32> -> vector<84x64xf32>
    %103 = vector.broadcast %20 : vector<84x1xf32> to vector<84x64xf32>
    %104 = arith.mulf %102, %103 : vector<84x64xf32>
    %cst_44 = arith.constant 0.000000e+00 : f32
    %105 = vector.broadcast %cst_44 : f32 to vector<12x64xf32>
    %106 = vector.extract_strided_slice %77 {offsets = [12, 0], sizes = [72, 64], strides = [1, 1]} : vector<84x64xf32> to vector<72x64xf32>
    %107 = tpu.concatenate %106, %105 in 0 : vector<72x64xf32>, vector<12x64xf32> -> vector<84x64xf32>
    %108 = vector.broadcast %22 : vector<84x1xf32> to vector<84x64xf32>
    %109 = arith.mulf %107, %108 : vector<84x64xf32>
    %cst_45 = arith.constant 0.000000e+00 : f32
    %110 = vector.broadcast %cst_45 : f32 to vector<14x64xf32>
    %111 = vector.extract_strided_slice %77 {offsets = [14, 0], sizes = [70, 64], strides = [1, 1]} : vector<84x64xf32> to vector<70x64xf32>
    %112 = tpu.concatenate %111, %110 in 0 : vector<70x64xf32>, vector<14x64xf32> -> vector<84x64xf32>
    %113 = vector.broadcast %24 : vector<84x1xf32> to vector<84x64xf32>
    %114 = arith.mulf %112, %113 : vector<84x64xf32>
    %cst_46 = arith.constant 0.000000e+00 : f32
    %115 = vector.broadcast %cst_46 : f32 to vector<16x64xf32>
    %116 = vector.extract_strided_slice %77 {offsets = [16, 0], sizes = [68, 64], strides = [1, 1]} : vector<84x64xf32> to vector<68x64xf32>
    %117 = tpu.concatenate %116, %115 in 0 : vector<68x64xf32>, vector<16x64xf32> -> vector<84x64xf32>
    %118 = vector.broadcast %26 : vector<84x1xf32> to vector<84x64xf32>
    %119 = arith.mulf %117, %118 : vector<84x64xf32>
    %120 = tpu.concatenate %82, %87, %92, %97, %99, %104, %109, %114, %119 in 1 : vector<84x64xf32>, vector<84x64xf32>, vector<84x64xf32>, vector<84x64xf32>, vector<84x64xf32>, vector<84x64xf32>, vector<84x64xf32>, vector<84x64xf32>, vector<84x64xf32> -> vector<84x576xf32>
    %121 = arith.truncf %120 : vector<84x576xf32> to vector<84x576xbf16>
    %c0_47 = arith.constant 0 : index
    %c0_48 = arith.constant 0 : index
    %122 = vector.load %arg7[%c0_47, %c0_48] : memref<576x128xbf16, #tpu.memory_space<vmem>>, vector<576x128xbf16>
    %cst_49 = arith.constant dense<0.000000e+00> : vector<84x128xf32>
    %123 = tpu.matmul %121, %122, %cst_49 {dimension_numbers = #tpu.dot_dimension_numbers<[1], [0], [0], [1], [0, 0, 1, 1], [], []>} : vector<84x576xbf16>, vector<576x128xbf16>, vector<84x128xf32> -> vector<84x128xf32>
    %c0_50 = arith.constant 0 : index
    %c0_51 = arith.constant 0 : index
    %124 = vector.load %arg8[%c0_50, %c0_51] : memref<1x128xf32, #tpu.memory_space<vmem>>, vector<1x128xf32>
    %125 = vector.broadcast %124 : vector<1x128xf32> to vector<84x128xf32>
    %126 = arith.addf %123, %125 : vector<84x128xf32>
    %cst_52 = arith.constant 0.000000e+00 : f32
    %127 = vector.broadcast %cst_52 : f32 to vector<84x128xf32>
    %128 = arith.maximumf %126, %127 : vector<84x128xf32>
    %129 = vector.extract_strided_slice %128 {offsets = [0, 0], sizes = [2, 128], strides = [1, 1]} : vector<84x128xf32> to vector<2x128xf32>
    %130 = vector.extract_strided_slice %128 {offsets = [2, 0], sizes = [2, 128], strides = [1, 1]} : vector<84x128xf32> to vector<2x128xf32>
    %131 = vector.extract_strided_slice %128 {offsets = [4, 0], sizes = [2, 128], strides = [1, 1]} : vector<84x128xf32> to vector<2x128xf32>
    %132 = vector.extract_strided_slice %128 {offsets = [6, 0], sizes = [2, 128], strides = [1, 1]} : vector<84x128xf32> to vector<2x128xf32>
    %133 = vector.extract_strided_slice %128 {offsets = [8, 0], sizes = [2, 128], strides = [1, 1]} : vector<84x128xf32> to vector<2x128xf32>
    %134 = vector.extract_strided_slice %128 {offsets = [10, 0], sizes = [2, 128], strides = [1, 1]} : vector<84x128xf32> to vector<2x128xf32>
    %135 = vector.extract_strided_slice %128 {offsets = [12, 0], sizes = [2, 128], strides = [1, 1]} : vector<84x128xf32> to vector<2x128xf32>
    %136 = vector.extract_strided_slice %128 {offsets = [14, 0], sizes = [2, 128], strides = [1, 1]} : vector<84x128xf32> to vector<2x128xf32>
    %137 = vector.extract_strided_slice %128 {offsets = [16, 0], sizes = [2, 128], strides = [1, 1]} : vector<84x128xf32> to vector<2x128xf32>
    %138 = vector.extract_strided_slice %128 {offsets = [18, 0], sizes = [2, 128], strides = [1, 1]} : vector<84x128xf32> to vector<2x128xf32>
    %139 = vector.extract_strided_slice %128 {offsets = [20, 0], sizes = [2, 128], strides = [1, 1]} : vector<84x128xf32> to vector<2x128xf32>
    %140 = vector.extract_strided_slice %128 {offsets = [22, 0], sizes = [2, 128], strides = [1, 1]} : vector<84x128xf32> to vector<2x128xf32>
    %141 = vector.extract_strided_slice %128 {offsets = [24, 0], sizes = [2, 128], strides = [1, 1]} : vector<84x128xf32> to vector<2x128xf32>
    %142 = vector.extract_strided_slice %128 {offsets = [26, 0], sizes = [2, 128], strides = [1, 1]} : vector<84x128xf32> to vector<2x128xf32>
    %143 = vector.extract_strided_slice %128 {offsets = [28, 0], sizes = [2, 128], strides = [1, 1]} : vector<84x128xf32> to vector<2x128xf32>
    %144 = vector.extract_strided_slice %128 {offsets = [30, 0], sizes = [2, 128], strides = [1, 1]} : vector<84x128xf32> to vector<2x128xf32>
    %145 = vector.extract_strided_slice %128 {offsets = [32, 0], sizes = [2, 128], strides = [1, 1]} : vector<84x128xf32> to vector<2x128xf32>
    %146 = vector.extract_strided_slice %128 {offsets = [34, 0], sizes = [2, 128], strides = [1, 1]} : vector<84x128xf32> to vector<2x128xf32>
    %147 = vector.extract_strided_slice %128 {offsets = [36, 0], sizes = [2, 128], strides = [1, 1]} : vector<84x128xf32> to vector<2x128xf32>
    %148 = vector.extract_strided_slice %128 {offsets = [38, 0], sizes = [2, 128], strides = [1, 1]} : vector<84x128xf32> to vector<2x128xf32>
    %149 = vector.extract_strided_slice %128 {offsets = [40, 0], sizes = [2, 128], strides = [1, 1]} : vector<84x128xf32> to vector<2x128xf32>
    %150 = vector.extract_strided_slice %128 {offsets = [42, 0], sizes = [2, 128], strides = [1, 1]} : vector<84x128xf32> to vector<2x128xf32>
    %151 = vector.extract_strided_slice %128 {offsets = [44, 0], sizes = [2, 128], strides = [1, 1]} : vector<84x128xf32> to vector<2x128xf32>
    %152 = vector.extract_strided_slice %128 {offsets = [46, 0], sizes = [2, 128], strides = [1, 1]} : vector<84x128xf32> to vector<2x128xf32>
    %153 = vector.extract_strided_slice %128 {offsets = [48, 0], sizes = [2, 128], strides = [1, 1]} : vector<84x128xf32> to vector<2x128xf32>
    %154 = vector.extract_strided_slice %128 {offsets = [50, 0], sizes = [2, 128], strides = [1, 1]} : vector<84x128xf32> to vector<2x128xf32>
    %155 = vector.extract_strided_slice %128 {offsets = [52, 0], sizes = [2, 128], strides = [1, 1]} : vector<84x128xf32> to vector<2x128xf32>
    %156 = vector.extract_strided_slice %128 {offsets = [54, 0], sizes = [2, 128], strides = [1, 1]} : vector<84x128xf32> to vector<2x128xf32>
    %157 = vector.extract_strided_slice %128 {offsets = [56, 0], sizes = [2, 128], strides = [1, 1]} : vector<84x128xf32> to vector<2x128xf32>
    %158 = vector.extract_strided_slice %128 {offsets = [58, 0], sizes = [2, 128], strides = [1, 1]} : vector<84x128xf32> to vector<2x128xf32>
    %159 = vector.extract_strided_slice %128 {offsets = [60, 0], sizes = [2, 128], strides = [1, 1]} : vector<84x128xf32> to vector<2x128xf32>
    %160 = vector.extract_strided_slice %128 {offsets = [62, 0], sizes = [2, 128], strides = [1, 1]} : vector<84x128xf32> to vector<2x128xf32>
    %161 = vector.extract_strided_slice %128 {offsets = [64, 0], sizes = [2, 128], strides = [1, 1]} : vector<84x128xf32> to vector<2x128xf32>
    %162 = vector.extract_strided_slice %128 {offsets = [66, 0], sizes = [2, 128], strides = [1, 1]} : vector<84x128xf32> to vector<2x128xf32>
    %163 = vector.extract_strided_slice %128 {offsets = [68, 0], sizes = [2, 128], strides = [1, 1]} : vector<84x128xf32> to vector<2x128xf32>
    %164 = vector.extract_strided_slice %128 {offsets = [70, 0], sizes = [2, 128], strides = [1, 1]} : vector<84x128xf32> to vector<2x128xf32>
    %165 = vector.extract_strided_slice %128 {offsets = [72, 0], sizes = [2, 128], strides = [1, 1]} : vector<84x128xf32> to vector<2x128xf32>
    %166 = vector.extract_strided_slice %128 {offsets = [74, 0], sizes = [2, 128], strides = [1, 1]} : vector<84x128xf32> to vector<2x128xf32>
    %167 = vector.extract_strided_slice %128 {offsets = [76, 0], sizes = [2, 128], strides = [1, 1]} : vector<84x128xf32> to vector<2x128xf32>
    %168 = vector.extract_strided_slice %128 {offsets = [78, 0], sizes = [2, 128], strides = [1, 1]} : vector<84x128xf32> to vector<2x128xf32>
    %169 = vector.extract_strided_slice %128 {offsets = [80, 0], sizes = [2, 128], strides = [1, 1]} : vector<84x128xf32> to vector<2x128xf32>
    %170 = vector.extract_strided_slice %128 {offsets = [82, 0], sizes = [2, 128], strides = [1, 1]} : vector<84x128xf32> to vector<2x128xf32>
    %171 = tpu.concatenate %129, %130, %131, %132, %133, %134, %135, %136, %137, %138, %139, %140, %141, %142, %143, %144 in 1 : vector<2x128xf32>, vector<2x128xf32>, vector<2x128xf32>, vector<2x128xf32>, vector<2x128xf32>, vector<2x128xf32>, vector<2x128xf32>, vector<2x128xf32>, vector<2x128xf32>, vector<2x128xf32>, vector<2x128xf32>, vector<2x128xf32>, vector<2x128xf32>, vector<2x128xf32>, vector<2x128xf32>, vector<2x128xf32> -> vector<2x2048xf32>
    %172 = tpu.concatenate %145, %146, %147, %148, %149, %150, %151, %152, %153, %154, %155, %156, %157, %158, %159, %160 in 1 : vector<2x128xf32>, vector<2x128xf32>, vector<2x128xf32>, vector<2x128xf32>, vector<2x128xf32>, vector<2x128xf32>, vector<2x128xf32>, vector<2x128xf32>, vector<2x128xf32>, vector<2x128xf32>, vector<2x128xf32>, vector<2x128xf32>, vector<2x128xf32>, vector<2x128xf32>, vector<2x128xf32>, vector<2x128xf32> -> vector<2x2048xf32>
    %173 = tpu.concatenate %161, %162, %163, %164, %165, %166, %167, %168, %169, %170 in 1 : vector<2x128xf32>, vector<2x128xf32>, vector<2x128xf32>, vector<2x128xf32>, vector<2x128xf32>, vector<2x128xf32>, vector<2x128xf32>, vector<2x128xf32>, vector<2x128xf32>, vector<2x128xf32> -> vector<2x1280xf32>
    %174 = tpu.concatenate %171, %172, %173 in 1 : vector<2x2048xf32>, vector<2x2048xf32>, vector<2x1280xf32> -> vector<2x5376xf32>
    %175 = arith.truncf %174 : vector<2x5376xf32> to vector<2x5376xbf16>
    tpu.wait_dma2 semaphore(%arg19 : memref<!tpu.dma_semaphore, #tpu.memory_space<semaphore_mem>>) src(%arg9 : memref<5376x512xbf16, #tpu.memory_space<any>>) dst(%arg18 : memref<5376x512xbf16, #tpu.memory_space<vmem>>)
    %c0_53 = arith.constant 0 : index
    %c0_54 = arith.constant 0 : index
    %176 = vector.load %arg18[%c0_53, %c0_54] : memref<5376x512xbf16, #tpu.memory_space<vmem>>, vector<5376x512xbf16>
    %cst_55 = arith.constant dense<0.000000e+00> : vector<2x512xf32>
    %177 = tpu.matmul %175, %176, %cst_55 {dimension_numbers = #tpu.dot_dimension_numbers<[1], [0], [0], [1], [0, 0, 1, 1], [], []>} : vector<2x5376xbf16>, vector<5376x512xbf16>, vector<2x512xf32> -> vector<2x512xf32>
    %c0_56 = arith.constant 0 : index
    %c0_57 = arith.constant 0 : index
    %178 = vector.load %arg10[%c0_56, %c0_57] : memref<1x512xf32, #tpu.memory_space<vmem>>, vector<1x512xf32>
    %179 = vector.broadcast %178 : vector<1x512xf32> to vector<2x512xf32>
    %180 = arith.addf %177, %179 : vector<2x512xf32>
    %cst_58 = arith.constant 0.000000e+00 : f32
    %181 = vector.broadcast %cst_58 : f32 to vector<2x512xf32>
    %182 = arith.maximumf %180, %181 : vector<2x512xf32>
    %183 = arith.truncf %182 : vector<2x512xf32> to vector<2x512xbf16>
    %c0_59 = arith.constant 0 : index
    %c0_60 = arith.constant 0 : index
    %184 = vector.load %arg11[%c0_59, %c0_60] : memref<512x256xbf16, #tpu.memory_space<vmem>>, vector<512x256xbf16>
    %cst_61 = arith.constant dense<0.000000e+00> : vector<2x256xf32>
    %185 = tpu.matmul %183, %184, %cst_61 {dimension_numbers = #tpu.dot_dimension_numbers<[1], [0], [0], [1], [0, 0, 1, 1], [], []>} : vector<2x512xbf16>, vector<512x256xbf16>, vector<2x256xf32> -> vector<2x256xf32>
    %c0_62 = arith.constant 0 : index
    %c0_63 = arith.constant 0 : index
    %186 = vector.load %arg12[%c0_62, %c0_63] : memref<1x256xf32, #tpu.memory_space<vmem>>, vector<1x256xf32>
    %187 = vector.broadcast %186 : vector<1x256xf32> to vector<2x256xf32>
    %188 = arith.addf %185, %187 : vector<2x256xf32>
    %cst_64 = arith.constant 0.000000e+00 : f32
    %189 = vector.broadcast %cst_64 : f32 to vector<2x256xf32>
    %190 = arith.maximumf %188, %189 : vector<2x256xf32>
    %191 = arith.truncf %190 : vector<2x256xf32> to vector<2x256xbf16>
    %c0_65 = arith.constant 0 : index
    %c0_66 = arith.constant 0 : index
    %192 = vector.load %arg13[%c0_65, %c0_66] : memref<256x128xbf16, #tpu.memory_space<vmem>>, vector<256x128xbf16>
    %cst_67 = arith.constant dense<0.000000e+00> : vector<2x128xf32>
    %193 = tpu.matmul %191, %192, %cst_67 {dimension_numbers = #tpu.dot_dimension_numbers<[1], [0], [0], [1], [0, 0, 1, 1], [], []>} : vector<2x256xbf16>, vector<256x128xbf16>, vector<2x128xf32> -> vector<2x128xf32>
    %c0_68 = arith.constant 0 : index
    %c0_69 = arith.constant 0 : index
    %194 = vector.load %arg14[%c0_68, %c0_69] : memref<1x128xf32, #tpu.memory_space<vmem>>, vector<1x128xf32>
    %195 = vector.broadcast %194 : vector<1x128xf32> to vector<2x128xf32>
    %196 = arith.addf %193, %195 : vector<2x128xf32>
    %cst_70 = arith.constant 0.000000e+00 : f32
    %197 = vector.broadcast %cst_70 : f32 to vector<2x128xf32>
    %198 = arith.maximumf %196, %197 : vector<2x128xf32>
    %199 = arith.truncf %198 : vector<2x128xf32> to vector<2x128xbf16>
    %c0_71 = arith.constant 0 : index
    %c0_72 = arith.constant 0 : index
    %200 = vector.load %arg15[%c0_71, %c0_72] : memref<128x7xbf16, #tpu.memory_space<vmem>>, vector<128x7xbf16>
    %cst_73 = arith.constant dense<0.000000e+00> : vector<2x7xf32>
    %201 = tpu.matmul %199, %200, %cst_73 {dimension_numbers = #tpu.dot_dimension_numbers<[1], [0], [0], [1], [0, 0, 1, 1], [], []>} : vector<2x128xbf16>, vector<128x7xbf16>, vector<2x7xf32> -> vector<2x7xf32>
    %c0_74 = arith.constant 0 : index
    %c0_75 = arith.constant 0 : index
    %202 = vector.load %arg16[%c0_74, %c0_75] : memref<1x7xf32, #tpu.memory_space<vmem>>, vector<1x7xf32>
    %203 = vector.broadcast %202 : vector<1x7xf32> to vector<2x7xf32>
    %204 = arith.addf %201, %203 : vector<2x7xf32>
    %c0_76 = arith.constant 0 : index
    %c0_77 = arith.constant 0 : index
    %205 = vector.load %arg17[%c0_76, %c0_77] : memref<2x7xf32, #tpu.memory_space<vmem>>, vector<2x7xf32>
    tpu.vector_store %arg17[%c0_76, %c0_77], %204 {strides = array<i32>} : memref<2x7xf32, #tpu.memory_space<vmem>>, vector<2x7xf32>,
    return
  }
  func.func @transform_0(%arg0: i32) -> (i32, i32) {
    %c0_i32 = arith.constant 0 : i32
    %c0_i32_0 = arith.constant 0 : i32
    %c0_i32_1 = arith.constant 0 : i32
    return %c0_i32, %c0_i32_0 : i32, i32
  }
  func.func @transform_1(%arg0: i32) -> (i32, i32, i32) {
    %c0_i32 = arith.constant 0 : i32
    %c0_i32_0 = arith.constant 0 : i32
    %c0_i32_1 = arith.constant 0 : i32
    %c0_i32_2 = arith.constant 0 : i32
    return %c0_i32, %c0_i32_0, %c0_i32_1 : i32, i32, i32
  }
  func.func @transform_2(%arg0: i32) -> (i32, i32) {
    %c0_i32 = arith.constant 0 : i32
    %c0_i32_0 = arith.constant 0 : i32
    %c0_i32_1 = arith.constant 0 : i32
    return %c0_i32, %c0_i32_0 : i32, i32
  }
  func.func @transform_3(%arg0: i32) -> (i32, i32) {
    %c0_i32 = arith.constant 0 : i32
    %c0_i32_0 = arith.constant 0 : i32
    %c0_i32_1 = arith.constant 0 : i32
    return %c0_i32, %c0_i32_0 : i32, i32
  }
  func.func @transform_4(%arg0: i32) -> (i32, i32) {
    %c0_i32 = arith.constant 0 : i32
    %c0_i32_0 = arith.constant 0 : i32
    %c0_i32_1 = arith.constant 0 : i32
    return %c0_i32, %c0_i32_0 : i32, i32
  }
  func.func @transform_5(%arg0: i32) -> (i32, i32) {
    %c0_i32 = arith.constant 0 : i32
    %c0_i32_0 = arith.constant 0 : i32
    %c0_i32_1 = arith.constant 0 : i32
    return %c0_i32, %c0_i32_0 : i32, i32
  }
  func.func @transform_6(%arg0: i32) -> (i32, i32) {
    %c0_i32 = arith.constant 0 : i32
    %c0_i32_0 = arith.constant 0 : i32
    %c0_i32_1 = arith.constant 0 : i32
    return %c0_i32, %c0_i32_0 : i32, i32
  }
  func.func @transform_7(%arg0: i32) -> (i32, i32) {
    %c0_i32 = arith.constant 0 : i32
    %c0_i32_0 = arith.constant 0 : i32
    %c0_i32_1 = arith.constant 0 : i32
    return %c0_i32, %c0_i32_0 : i32, i32
  }
  func.func @transform_9(%arg0: i32) -> (i32, i32) {
    %c0_i32 = arith.constant 0 : i32
    %c0_i32_0 = arith.constant 0 : i32
    %c0_i32_1 = arith.constant 0 : i32
    return %c0_i32, %c0_i32_0 : i32, i32
  }
  func.func @transform_10(%arg0: i32) -> (i32, i32) {
    %c0_i32 = arith.constant 0 : i32
    %c0_i32_0 = arith.constant 0 : i32
    %c0_i32_1 = arith.constant 0 : i32
    return %c0_i32, %c0_i32_0 : i32, i32
  }
  func.func @transform_11(%arg0: i32) -> (i32, i32) {
    %c0_i32 = arith.constant 0 : i32
    %c0_i32_0 = arith.constant 0 : i32
    %c0_i32_1 = arith.constant 0 : i32
    return %c0_i32, %c0_i32_0 : i32, i32
  }
  func.func @transform_12(%arg0: i32) -> (i32, i32) {
    %c0_i32 = arith.constant 0 : i32
    %c0_i32_0 = arith.constant 0 : i32
    %c0_i32_1 = arith.constant 0 : i32
    return %c0_i32, %c0_i32_0 : i32, i32
  }
  func.func @transform_13(%arg0: i32) -> (i32, i32) {
    %c0_i32 = arith.constant 0 : i32
    %c0_i32_0 = arith.constant 0 : i32
    %c0_i32_1 = arith.constant 0 : i32
    return %c0_i32, %c0_i32_0 : i32, i32
  }
  func.func @transform_14(%arg0: i32) -> (i32, i32) {
    %c0_i32 = arith.constant 0 : i32
    %c0_i32_0 = arith.constant 0 : i32
    %c0_i32_1 = arith.constant 0 : i32
    return %c0_i32, %c0_i32_0 : i32, i32
  }
  func.func @transform_15(%arg0: i32) -> (i32, i32) {
    %c0_i32 = arith.constant 0 : i32
    %c0_i32_0 = arith.constant 0 : i32
    %c0_i32_1 = arith.constant 0 : i32
    return %c0_i32, %c0_i32_0 : i32, i32
  }
  func.func @transform_16(%arg0: i32) -> (i32, i32) {
    %c0_i32 = arith.constant 0 : i32
    %c0_i32_0 = arith.constant 0 : i32
    %c0_i32_1 = arith.constant 0 : i32
    return %c0_i32, %c0_i32_0 : i32, i32
  }
}

</mosaic_0001>

<llo_original>
// kernel: dqn_forward.1
$region0: #{dqn_forward.1}
  #allocation0 [shape = 'u32[]', space=smem, size = 0x4, offset = 0x4, fixed_abs, tag = 'smem constant byte address 0x4 - core index']
  #allocation1 [shape = 'u32[144,128]{1,0:T(1,128)}', space=vmem, size = 0x12000, scoped, tag = 'internal scratch']
  #allocation2 [shape = 'bf16[5376,512]{1,0:T(16,128)(2,1)}', space=vmem, size = 0x540000, scoped, tag = 'scratch operand']
  #allocation3 [shape = 's32[1]{0}', space=sflag, size = 0x4, scoped, tag = 'scratch operand']
  #allocation25 [shape = 's32[]', space=sflag, size = 0x4, offset = 0, fixed_abs, tag = 'sflag constant byte address 0x0 - dummy sync flag']
  %s0 = inlined_call_operand.vmem [shape: f32[84,9], index: 0, kind: input, shape index: {}]
  %s1 = inlined_call_operand.hbm [shape: f32[9,84,1], index: 1, kind: input, shape index: {}]
  %s2 = inlined_call_operand.hbm [shape: bf16[9,32], index: 2, kind: input, shape index: {}]
  %s3 = inlined_call_operand.hbm [shape: f32[1,32], index: 3, kind: input, shape index: {}]
  %s4 = inlined_call_operand.vmem [shape: bf16[288,64], index: 4, kind: input, shape index: {}]
  %s5 = inlined_call_operand.hbm [shape: f32[1,64], index: 5, kind: input, shape index: {}]
  %s6 = inlined_call_operand.hbm [shape: bf16[576,128], index: 6, kind: input, shape index: {}]
  %s7 = inlined_call_operand.hbm [shape: f32[1,128], index: 7, kind: input, shape index: {}]
  %s8 = inlined_call_operand.hbm [shape: bf16[5376,512], index: 8, kind: input, shape index: {}]
  %s9 = inlined_call_operand.hbm [shape: f32[1,512], index: 9, kind: input, shape index: {}]
  %s10 = inlined_call_operand.hbm [shape: bf16[512,256], index: 10, kind: input, shape index: {}]
  %s11 = inlined_call_operand.hbm [shape: f32[1,256], index: 11, kind: input, shape index: {}]
  %s12 = inlined_call_operand.hbm [shape: bf16[256,128], index: 12, kind: input, shape index: {}]
  %s13 = inlined_call_operand.hbm [shape: f32[1,128], index: 13, kind: input, shape index: {}]
  %s14 = inlined_call_operand.vmem [shape: bf16[128,7], index: 14, kind: input, shape index: {}]
  %s15 = inlined_call_operand.hbm [shape: f32[1,7], index: 15, kind: input, shape index: {}]
  %s16 = inlined_call_operand.hbm [shape: f32[2,7], index: 16, kind: output, shape index: {}]
  %s17 = sld [smem:[#allocation0]]
  $region118: #{dqn_forward.1} parent=0
    _
  %s19 = ssub.s32 1, %s17
  %s20 = scalar_select 0, %s19, %s17
  $region1: #{dqn_forward.1} parent=0
    #allocation4 [shape = 'u8[405504]{0}', space=vmem, size = 0x63000, scoped, tag = 'input window, operand 1, single buffered']
    #allocation5 [shape = 's32[1]{0}', space=sflag, size = 0x4, scoped, tag = 'scoped memory for dqn_forward.1']
    #allocation6 [shape = 's32[1]{0}', space=sflag, size = 0x4, scoped, tag = 'scoped memory for dqn_forward.1']
    #allocation7 [shape = 'u8[4096]{0}', space=vmem, size = 0x1000, scoped, tag = 'input window, operand 2, single buffered']
    #allocation8 [shape = 's32[1]{0}', space=sflag, size = 0x4, scoped, tag = 'scoped memory for dqn_forward.1']
    #allocation9 [shape = 'u8[512]{0}', space=vmem, size = 0x400, scoped, tag = 'input window, operand 3, single buffered']
    #allocation10 [shape = 'u8[512]{0}', space=vmem, size = 0x400, scoped, tag = 'input window, operand 5, single buffered']
    #allocation11 [shape = 's32[1]{0}', space=sflag, size = 0x4, scoped, tag = 'scoped memory for dqn_forward.1']
    #allocation12 [shape = 'u8[147456]{0}', space=vmem, size = 0x24000, scoped, tag = 'input window, operand 6, single buffered']
    #allocation13 [shape = 'u8[512]{0}', space=vmem, size = 0x400, scoped, tag = 'input window, operand 7, single buffered']
    #allocation14 [shape = 's32[1]{0}', space=sflag, size = 0x4, scoped, tag = 'scoped memory for dqn_forward.1']
    #allocation15 [shape = 'u8[2048]{0}', space=vmem, size = 0x800, scoped, tag = 'input window, operand 9, single buffered']
    #allocation16 [shape = 'u8[262144]{0}', space=vmem, size = 0x40000, scoped, tag = 'input window, operand 10, single buffered']
    #allocation17 [shape = 's32[1]{0}', space=sflag, size = 0x4, scoped, tag = 'scoped memory for dqn_forward.1']
    #allocation18 [shape = 'u8[1024]{0}', space=vmem, size = 0x400, scoped, tag = 'input window, operand 11, single buffered']
    #allocation19 [shape = 'u8[65536]{0}', space=vmem, size = 0x10000, scoped, tag = 'input window, operand 12, single buffered']
    #allocation20 [shape = 's32[1]{0}', space=sflag, size = 0x4, scoped, tag = 'scoped memory for dqn_forward.1']
    #allocation21 [shape = 'u8[512]{0}', space=vmem, size = 0x400, scoped, tag = 'input window, operand 13, single buffered']
    #allocation22 [shape = 'u8[512]{0}', space=vmem, size = 0x400, scoped, tag = 'input window, operand 15, single buffered']
    #allocation23 [shape = 's32[1]{0}', space=sflag, size = 0x4, scoped, tag = 'scoped memory for dqn_forward.1']
    #allocation24 [shape = 'u8[1024]{0}', space=vmem, size = 0x400, scoped, tag = 'output window, operand 0, single buffered']
    #allocation26 [shape = 'u32[9]{0}', space=smem, size = 0x24, scoped, tag = 'DMA stride descriptor']
    %21 = vsyncpa [#allocation5], 0
    %22 = vsyncpa [#allocation8], 0
    %23 = vsyncpa [#allocation11], 0
    %24 = vsyncpa [#allocation14], 0
    %25 = vsyncpa [#allocation17], 0
    %26 = vsyncpa [#allocation20], 0
    %27 = vsyncpa [#allocation23], 0
    %28 = vsyncpa [#allocation6], 0
    // Predicated region
    $region2: #{dqn_forward.1} parent=1 // pred_check
      _
    $region3: #{dqn_forward.1} parent=1 // pred_check_branch
      %30 = sbr.rel (0) target = $region5
    $region4: #{dqn_forward.1} parent=1 // pred_region
      _
    $region5: #{dqn_forward.1} parent=1 // pred_fallthru
      _
    // Predicated region
    $region6: #{dqn_forward.1} parent=1 // pred_check
      _
    $region7: #{dqn_forward.1} parent=1 // pred_check_branch
      %32 = sbr.rel (0) target = $region9
    $region8: #{dqn_forward.1} parent=1 // pred_region
      %s34 = ssub.s32 12672, 12672
      %35 = vsyncadd [#allocation5], %s34
      %s36 = sshll.u32 [#allocation4], 4
      %s37 = int_to_ptr.vmem [resolvable:$true] %s36
      %42 = dma.hbm_to_vmem [thread:$0]  %s1, 12672, %s37, [#allocation5], 128, 128, 8
    $region9: #{dqn_forward.1} parent=1 // pred_fallthru
      _
    // Predicated region
    $region10: #{dqn_forward.1} parent=1 // pred_check
      _
    $region11: #{dqn_forward.1} parent=1 // pred_check_branch
      %44 = sbr.rel (0) target = $region13
    $region12: #{dqn_forward.1} parent=1 // pred_region
      %s46 = ssub.s32 128, 128
      %47 = vsyncadd [#allocation8], %s46
      %s48 = sshll.u32 [#allocation7], 4
      %s49 = int_to_ptr.vmem [resolvable:$true] %s48
      %54 = dma.hbm_to_vmem [thread:$0]  %s2, 128, %s49, [#allocation8], 64, 64, 4
    $region13: #{dqn_forward.1} parent=1 // pred_fallthru
      _
    // Predicated region
    $region14: #{dqn_forward.1} parent=1 // pred_check
      _
    $region15: #{dqn_forward.1} parent=1 // pred_check_branch
      %56 = sbr.rel (0) target = $region17
    $region16: #{dqn_forward.1} parent=1 // pred_region
      %s58 = ssub.s32 16, 16
      %59 = vsyncadd [#allocation8], %s58
      %s61 = sshll.u32 [#allocation9], 4
      %s62 = int_to_ptr.vmem [resolvable:$true] %s61
      %64 = dma.hbm_to_vmem [thread:$0]  %s3, 16, %s62, [#allocation8]
    $region17: #{dqn_forward.1} parent=1 // pred_fallthru
      _
    // Predicated region
    $region18: #{dqn_forward.1} parent=1 // pred_check
      _
    $region19: #{dqn_forward.1} parent=1 // pred_check_branch
      %66 = sbr.rel (0) target = $region21
    $region20: #{dqn_forward.1} parent=1 // pred_region
      _
    $region21: #{dqn_forward.1} parent=1 // pred_fallthru
      _
    // Predicated region
    $region22: #{dqn_forward.1} parent=1 // pred_check
      _
    $region23: #{dqn_forward.1} parent=1 // pred_check_branch
      %68 = sbr.rel (0) target = $region25
    $region24: #{dqn_forward.1} parent=1 // pred_region
      %s70 = ssub.s32 16, 16
      %71 = vsyncadd [#allocation11], %s70
      %s73 = sshll.u32 [#allocation10], 4
      %s74 = int_to_ptr.vmem [resolvable:$true] %s73
      %76 = dma.hbm_to_vmem [thread:$0]  %s5, 16, %s74, [#allocation11]
    $region25: #{dqn_forward.1} parent=1 // pred_fallthru
      _
    // Predicated region
    $region26: #{dqn_forward.1} parent=1 // pred_check
      _
    $region27: #{dqn_forward.1} parent=1 // pred_check_branch
      %78 = sbr.rel (0) target = $region29
    $region28: #{dqn_forward.1} parent=1 // pred_region
      %s80 = ssub.s32 4608, 4608
      %81 = vsyncadd [#allocation11], %s80
      %s82 = sshll.u32 [#allocation12], 4
      %s83 = int_to_ptr.vmem [resolvable:$true] %s82
      %88 = dma.hbm_to_vmem [thread:$0]  %s6, 4608, %s83, [#allocation11], 64, 64, 4
    $region29: #{dqn_forward.1} parent=1 // pred_fallthru
      _
    // Predicated region
    $region30: #{dqn_forward.1} parent=1 // pred_check
      _
    $region31: #{dqn_forward.1} parent=1 // pred_check_branch
      %90 = sbr.rel (0) target = $region33
    $region32: #{dqn_forward.1} parent=1 // pred_region
      %s92 = ssub.s32 16, 16
      %93 = vsyncadd [#allocation14], %s92
      %s95 = sshll.u32 [#allocation13], 4
      %s96 = int_to_ptr.vmem [resolvable:$true] %s95
      %98 = dma.hbm_to_vmem [thread:$0]  %s7, 16, %s96, [#allocation14]
    $region33: #{dqn_forward.1} parent=1 // pred_fallthru
      _
    // Predicated region
    $region34: #{dqn_forward.1} parent=1 // pred_check
      _
    $region35: #{dqn_forward.1} parent=1 // pred_check_branch
      %100 = sbr.rel (0) target = $region37
    $region36: #{dqn_forward.1} parent=1 // pred_region
      %s102 = ssub.s32 64, 64
      %103 = vsyncadd [#allocation14], %s102
      %s105 = sshll.u32 [#allocation15], 4
      %s106 = int_to_ptr.vmem [resolvable:$true] %s105
      %108 = dma.hbm_to_vmem [thread:$0]  %s9, 64, %s106, [#allocation14]
    $region37: #{dqn_forward.1} parent=1 // pred_fallthru
      _
    // Predicated region
    $region38: #{dqn_forward.1} parent=1 // pred_check
      _
    $region39: #{dqn_forward.1} parent=1 // pred_check_branch
      %110 = sbr.rel (0) target = $region41
    $region40: #{dqn_forward.1} parent=1 // pred_region
      %s112 = ssub.s32 8192, 8192
      %113 = vsyncadd [#allocation17], %s112
      %s114 = sshll.u32 [#allocation16], 4
      %s115 = int_to_ptr.vmem [resolvable:$true] %s114
      %120 = dma.hbm_to_vmem [thread:$0]  %s10, 8192, %s115, [#allocation17], 128, 128, 8
    $region41: #{dqn_forward.1} parent=1 // pred_fallthru
      _
    // Predicated region
    $region42: #{dqn_forward.1} parent=1 // pred_check
      _
    $region43: #{dqn_forward.1} parent=1 // pred_check_branch
      %122 = sbr.rel (0) target = $region45
    $region44: #{dqn_forward.1} parent=1 // pred_region
      %s124 = ssub.s32 32, 32
      %125 = vsyncadd [#allocation17], %s124
      %s127 = sshll.u32 [#allocation18], 4
      %s128 = int_to_ptr.vmem [resolvable:$true] %s127
      %130 = dma.hbm_to_vmem [thread:$0]  %s11, 32, %s128, [#allocation17]
    $region45: #{dqn_forward.1} parent=1 // pred_fallthru
      _
    // Predicated region
    $region46: #{dqn_forward.1} parent=1 // pred_check
      _
    $region47: #{dqn_forward.1} parent=1 // pred_check_branch
      %132 = sbr.rel (0) target = $region49
    $region48: #{dqn_forward.1} parent=1 // pred_region
      %s134 = ssub.s32 2048, 2048
      %135 = vsyncadd [#allocation20], %s134
      %s136 = sshll.u32 [#allocation19], 4
      %s137 = int_to_ptr.vmem [resolvable:$true] %s136
      %142 = dma.hbm_to_vmem [thread:$0]  %s12, 2048, %s137, [#allocation20], 64, 64, 4
    $region49: #{dqn_forward.1} parent=1 // pred_fallthru
      _
    // Predicated region
    $region50: #{dqn_forward.1} parent=1 // pred_check
      _
    $region51: #{dqn_forward.1} parent=1 // pred_check_branch
      %144 = sbr.rel (0) target = $region53
    $region52: #{dqn_forward.1} parent=1 // pred_region
      %s146 = ssub.s32 16, 16
      %147 = vsyncadd [#allocation20], %s146
      %s149 = sshll.u32 [#allocation21], 4
      %s150 = int_to_ptr.vmem [resolvable:$true] %s149
      %152 = dma.hbm_to_vmem [thread:$0]  %s13, 16, %s150, [#allocation20]
    $region53: #{dqn_forward.1} parent=1 // pred_fallthru
      _
    // Predicated region
    $region54: #{dqn_forward.1} parent=1 // pred_check
      _
    $region55: #{dqn_forward.1} parent=1 // pred_check_branch
      %154 = sbr.rel (0) target = $region57
    $region56: #{dqn_forward.1} parent=1 // pred_region
      _
    $region57: #{dqn_forward.1} parent=1 // pred_fallthru
      _
    // Predicated region
    $region58: #{dqn_forward.1} parent=1 // pred_check
      _
    $region59: #{dqn_forward.1} parent=1 // pred_check_branch
      %156 = sbr.rel (0) target = $region61
    $region60: #{dqn_forward.1} parent=1 // pred_region
      %s158 = ssub.s32 16, 16
      %159 = vsyncadd [#allocation23], %s158
      %s161 = sshll.u32 [#allocation22], 4
      %s162 = int_to_ptr.vmem [resolvable:$true] %s161
      %164 = dma.hbm_to_vmem [thread:$0]  %s15, 16, %s162, [#allocation23]
    $region61: #{dqn_forward.1} parent=1 // pred_fallthru
      _
    // Predicated region
    $region62: #{dqn_forward.1} parent=1 // pred_check
      _
    $region63: #{dqn_forward.1} parent=1 // pred_check_branch
      %166 = sbr.rel (0) target = $region65
    $region64: #{dqn_forward.1} parent=1 // pred_region
      %167 = dma.done [#allocation5], 12672
    $region65: #{dqn_forward.1} parent=1 // pred_fallthru
      _
    // Predicated region
    $region66: #{dqn_forward.1} parent=1 // pred_check
      _
    $region67: #{dqn_forward.1} parent=1 // pred_check_branch
      %169 = sbr.rel (0) target = $region69
    $region68: #{dqn_forward.1} parent=1 // pred_region
      %170 = dma.done [#allocation8], 128
    $region69: #{dqn_forward.1} parent=1 // pred_fallthru
      _
    // Predicated region
    $region70: #{dqn_forward.1} parent=1 // pred_check
      _
    $region71: #{dqn_forward.1} parent=1 // pred_check_branch
      %172 = sbr.rel (0) target = $region73
    $region72: #{dqn_forward.1} parent=1 // pred_region
      %173 = dma.done [#allocation8], 16
    $region73: #{dqn_forward.1} parent=1 // pred_fallthru
      _
    // Predicated region
    $region74: #{dqn_forward.1} parent=1 // pred_check
      _
    $region75: #{dqn_forward.1} parent=1 // pred_check_branch
      %175 = sbr.rel (0) target = $region77
    $region76: #{dqn_forward.1} parent=1 // pred_region
      %176 = dma.done [#allocation11], 16
    $region77: #{dqn_forward.1} parent=1 // pred_fallthru
      _
    // Predicated region
    $region78: #{dqn_forward.1} parent=1 // pred_check
      _
    $region79: #{dqn_forward.1} parent=1 // pred_check_branch
      %178 = sbr.rel (0) target = $region81
    $region80: #{dqn_forward.1} parent=1 // pred_region
      %179 = dma.done [#allocation11], 4608
    $region81: #{dqn_forward.1} parent=1 // pred_fallthru
      _
    // Predicated region
    $region82: #{dqn_forward.1} parent=1 // pred_check
      _
    $region83: #{dqn_forward.1} parent=1 // pred_check_branch
      %181 = sbr.rel (0) target = $region85
    $region84: #{dqn_forward.1} parent=1 // pred_region
      %182 = dma.done [#allocation14], 16
    $region85: #{dqn_forward.1} parent=1 // pred_fallthru
      _
    // Predicated region
    $region86: #{dqn_forward.1} parent=1 // pred_check
      _
    $region87: #{dqn_forward.1} parent=1 // pred_check_branch
      %184 = sbr.rel (0) target = $region89
    $region88: #{dqn_forward.1} parent=1 // pred_region
      %185 = dma.done [#allocation14], 64
    $region89: #{dqn_forward.1} parent=1 // pred_fallthru
      _
    // Predicated region
    $region90: #{dqn_forward.1} parent=1 // pred_check
      _
    $region91: #{dqn_forward.1} parent=1 // pred_check_branch
      %187 = sbr.rel (0) target = $region93
    $region92: #{dqn_forward.1} parent=1 // pred_region
      %188 = dma.done [#allocation17], 8192
    $region93: #{dqn_forward.1} parent=1 // pred_fallthru
      _
    // Predicated region
    $region94: #{dqn_forward.1} parent=1 // pred_check
      _
    $region95: #{dqn_forward.1} parent=1 // pred_check_branch
      %190 = sbr.rel (0) target = $region97
    $region96: #{dqn_forward.1} parent=1 // pred_region
      %191 = dma.done [#allocation17], 32
    $region97: #{dqn_forward.1} parent=1 // pred_fallthru
      _
    // Predicated region
    $region98: #{dqn_forward.1} parent=1 // pred_check
      _
    $region99: #{dqn_forward.1} parent=1 // pred_check_branch
      %193 = sbr.rel (0) target = $region101
    $region100: #{dqn_forward.1} parent=1 // pred_region
      %194 = dma.done [#allocation20], 2048
    $region101: #{dqn_forward.1} parent=1 // pred_fallthru
      _
    // Predicated region
    $region102: #{dqn_forward.1} parent=1 // pred_check
      _
    $region103: #{dqn_forward.1} parent=1 // pred_check_branch
      %196 = sbr.rel (0) target = $region105
    $region104: #{dqn_forward.1} parent=1 // pred_region
      %197 = dma.done [#allocation20], 16
    $region105: #{dqn_forward.1} parent=1 // pred_fallthru
      _
    // Predicated region
    $region106: #{dqn_forward.1} parent=1 // pred_check
      _
    $region107: #{dqn_forward.1} parent=1 // pred_check_branch
      %199 = sbr.rel (0) target = $region109
    $region108: #{dqn_forward.1} parent=1 // pred_region
      %200 = dma.done [#allocation23], 16
    $region109: #{dqn_forward.1} parent=1 // pred_fallthru
      _
    %s203 = sshll.u32 1, 14
    %s204 = sxor.u32 4294967295, %s203
    %s206 = sld [smem:[#allocation0]]
    %s207 = sadd.s32 2, %s206
    %s209 = sshll.u32 7, 26
    %s210 = sxor.u32 4294967295, %s209
    %s211 = sand.u32 0, %s210
    %s212 = sshll.u32 %s207, 26
    %s213 = sor.u32 %s211, %s212
    %s214 = sshll.u32 [#allocation2], 4
    %s215 = int_to_ptr.vmem [resolvable:$true] %s214
    %218 = sst [smem:[#allocation26]] 512
    %s219 = scalar_lea.smem [#allocation26], 1
    %220 = sst [smem:[%s219]] 512
    %s221 = scalar_lea.smem [#allocation26], 2
    %222 = sst [smem:[%s221]] 4
    %s223 = scalar_lea.smem [#allocation26], 3
    %224 = sst [smem:[%s223]] 64
    %s225 = scalar_lea.smem [#allocation26], 4
    %226 = sst [smem:[%s225]] 128
    %s227 = scalar_lea.smem [#allocation26], 5
    %228 = sst [smem:[%s227]] 2
    %s229 = scalar_lea.smem [#allocation26], 6
    %230 = sst [smem:[%s229]] 256
    %s231 = scalar_lea.smem [#allocation26], 7
    %232 = sst [smem:[%s231]] 64
    %s233 = scalar_lea.smem [#allocation26], 8
    %234 = sst [smem:[%s233]] 4
    %236 = dma.general %s8, 172032, %s215, [#allocation3], [#allocation25], [#allocation26], %s213, 0
    %v237 = vld [vmem:[%s0] sm:$0xff]
    %v238 = vld [vmem:[%s0 + $0x8] sm:$0xff]
    %v239 = vld [vmem:[%s0 + $0x10] sm:$0xff]
    %v240 = vld [vmem:[%s0 + $0x18] sm:$0xff]
    %v241 = vld [vmem:[%s0 + $0x20] sm:$0xff]
    %v242 = vld [vmem:[%s0 + $0x28] sm:$0xff]
    %v243 = vld [vmem:[%s0 + $0x30] sm:$0xff]
    %v244 = vld [vmem:[%s0 + $0x38] sm:$0xff]
    %v245 = vld [vmem:[%s0 + $0x40] sm:$0xff]
    %v246 = vld [vmem:[%s0 + $0x48] sm:$0xff]
    %v247 = vld [vmem:[%s0 + $0x50] sm:$0xf]
    %v248 = vpack.c.bf16 %v238, %v237
    %v249 = vpack.c.bf16 %v240, %v239
    %v250 = vpack.c.bf16 %v242, %v241
    %v251 = vpack.c.bf16 %v244, %v243
    %v252 = vpack.c.bf16 %v246, %v245
    %v253 = vpack.c.bf16 %v247, %v247
    %v254 = vld [vmem:[#allocation7] sm:$0xf]
    %v255 = vld [vmem:[#allocation7 + $0x4] sm:$0x1]
    %v256 = vld [vmem:[#allocation9] sm:$0x1]
    %v258 = vlaneseq
    %v259 = vshrl.u32 %v258, 7
    %v260 = vsub.s32 0, %v259
    %v261 = vrot.slane %v256, %v260
    %v265 = vunpack.c.l.b16 %v254
    %v266 = vunpack.c.l.b16 %v255
    %v267 = vpack.c.b16 %v266, %v265
    %vm268 = vcmask 72704
    %v270 = vsel %vm268, %v248, 0
    %v273 = vsel %vm268, %v249, 0
    %v276 = vsel %vm268, %v250, 0
    %v279 = vsel %vm268, %v251, 0
    %v282 = vsel %vm268, %v252, 0
    %v285 = vsel %vm268, %v253, 0
    %vm287 = vcmask 1043456
    %vm288 = vcmask 1044480
    %v289 = vsel %vm287, 4294967295, 65535
    %v290 = vsel %vm288, %v289, 0
    %v292 = vand.u32 %v267, %v290
    %294 = vmatprep.subr.bf16.mxu0 0
    %295 = vmatpush1.bf16.msra.mxu0 %v292
    %296 = vmatprep.subr.bf16.mxu0 0
    %297 = vmatpush1.bf16.msra.mxu0 0
    %298 = vmatprep.subr.bf16.mxu0 0
    %299 = vmatpush1.bf16.msra.mxu0 0
    %300 = vmatprep.subr.bf16.mxu0 0
    %301 = vmatpush1.bf16.msra.mxu0 0
    %302 = vmatprep.subr.bf16.mxu0 0
    %303 = vmatpush1.bf16.msra.mxu0 0
    %304 = vmatprep.subr.bf16.mxu0 0
    %305 = vmatpush1.bf16.msra.mxu0 0
    %306 = vmatprep.subr.bf16.mxu0 0
    %307 = vmatpush1.bf16.msra.mxu0 0
    %308 = vmatprep.subr.bf16.mxu0 0
    %309 = vmatpush1.bf16.msra.mxu0 0
    %310 = vmatprep.subr.bf16.mxu0 0
    %311 = vmatpush1.bf16.msra.mxu0 0
    %312 = vmatprep.subr.bf16.mxu0 0
    %313 = vmatpush1.bf16.msra.mxu0 0
    %314 = vmatprep.subr.bf16.mxu0 0
    %315 = vmatpush1.bf16.msra.mxu0 0
    %316 = vmatprep.subr.bf16.mxu0 0
    %317 = vmatpush1.bf16.msra.mxu0 0
    %318 = vmatprep.subr.bf16.mxu0 0
    %319 = vmatpush1.bf16.msra.mxu0 0
    %320 = vmatprep.subr.bf16.mxu0 0
    %321 = vmatpush1.bf16.msra.mxu0 0
    %322 = vmatprep.subr.bf16.mxu0 0
    %323 = vmatpush1.bf16.msra.mxu0 0
    %324 = vmatprep.subr.bf16.mxu0 0
    %325 = vmatpush1.bf16.msra.mxu0 0
    %326 = vmatprep.mubr.bf16.mxu0 0
    %327 = vmatmul.mubr.bf16.gmra.mrb[0].mxu0 %v270
    %v328 = vpop.f32.mrb[0].mxu0
    %v329 = vadd.f32 %v261, %v328
    %v330 = vpop.f32.mrb[0].mxu0
    %v331 = vpop.f32.mrb[0].mxu0
    %v332 = vadd.f32 %v261, %v331
    %v333 = vpop.f32.mrb[0].mxu0
    %334 = vmatprep.mubr.bf16.mxu0 0
    %335 = vmatmul.mubr.bf16.gmra.mrb[0].mxu0 %v273
    %v336 = vpop.f32.mrb[0].mxu0
    %v337 = vadd.f32 %v261, %v336
    %v338 = vpop.f32.mrb[0].mxu0
    %v339 = vpop.f32.mrb[0].mxu0
    %v340 = vadd.f32 %v261, %v339
    %v341 = vpop.f32.mrb[0].mxu0
    %342 = vmatprep.mubr.bf16.mxu0 0
    %343 = vmatmul.mubr.bf16.gmra.mrb[0].mxu0 %v276
    %v344 = vpop.f32.mrb[0].mxu0
    %v345 = vadd.f32 %v261, %v344
    %v346 = vpop.f32.mrb[0].mxu0
    %v347 = vpop.f32.mrb[0].mxu0
    %v348 = vadd.f32 %v261, %v347
    %v349 = vpop.f32.mrb[0].mxu0
    %350 = vmatprep.mubr.bf16.mxu0 0
    %351 = vmatmul.mubr.bf16.gmra.mrb[0].mxu0 %v279
    %v352 = vpop.f32.mrb[0].mxu0
    %v353 = vadd.f32 %v261, %v352
    %v354 = vpop.f32.mrb[0].mxu0
    %v355 = vpop.f32.mrb[0].mxu0
    %v356 = vadd.f32 %v261, %v355
    %v357 = vpop.f32.mrb[0].mxu0
    %358 = vmatprep.mubr.bf16.mxu0 0
    %359 = vmatmul.mubr.bf16.gmra.mrb[0].mxu0 %v282
    %v360 = vpop.f32.mrb[0].mxu0
    %v361 = vadd.f32 %v261, %v360
    %v362 = vpop.f32.mrb[0].mxu0
    %v363 = vpop.f32.mrb[0].mxu0
    %v364 = vadd.f32 %v261, %v363
    %v365 = vpop.f32.mrb[0].mxu0
    %366 = vmatprep.mubr.bf16.mxu0 0
    %367 = vmatmul.mubr.bf16.gmra.mrb[0].mxu0 %v285
    %v368 = vpop.f32.mrb[0].mxu0
    %v369 = vadd.f32 %v261, %v368
    %v370 = vpop.f32.mrb[0].mxu0
    %v371 = vpop.f32.mrb[0].mxu0
    %v372 = vpop.f32.mrb[0].mxu0
    %373 = vdwg.mxu0
    %v374 = vmax.f32 %v329, 0.0
    %v375 = vmax.f32 %v332, 0.0
    %v376 = vmax.f32 %v337, 0.0
    %v377 = vmax.f32 %v340, 0.0
    %v378 = vmax.f32 %v345, 0.0
    %v379 = vmax.f32 %v348, 0.0
    %v380 = vmax.f32 %v353, 0.0
    %v381 = vmax.f32 %v356, 0.0
    %v382 = vmax.f32 %v361, 0.0
    %v383 = vmax.f32 %v364, 0.0
    %v384 = vmax.f32 %v369, 0.0
    %v385 = vld [vmem:[#allocation4] sm:$0xff]
    %v386 = vld [vmem:[#allocation4 + $0x8] sm:$0xff]
    %v387 = vld [vmem:[#allocation4 + $0x10] sm:$0xff]
    %v388 = vld [vmem:[#allocation4 + $0x18] sm:$0xff]
    %v389 = vld [vmem:[#allocation4 + $0x20] sm:$0xff]
    %v390 = vld [vmem:[#allocation4 + $0x28] sm:$0xff]
    %v391 = vld [vmem:[#allocation4 + $0x30] sm:$0xff]
    %v392 = vld [vmem:[#allocation4 + $0x38] sm:$0xff]
    %v393 = vld [vmem:[#allocation4 + $0x40] sm:$0xff]
    %v394 = vld [vmem:[#allocation4 + $0x48] sm:$0xff]
    %v395 = vld [vmem:[#allocation4 + $0x50] sm:$0xf]
    %s396 = scalar_lea.vmem [#allocation4], 88
    %v397 = vld [vmem:[%s396] sm:$0xff]
    %v398 = vld [vmem:[%s396 + $0x8] sm:$0xff]
    %v399 = vld [vmem:[%s396 + $0x10] sm:$0xff]
    %v400 = vld [vmem:[%s396 + $0x18] sm:$0xff]
    %v401 = vld [vmem:[%s396 + $0x20] sm:$0xff]
    %v402 = vld [vmem:[%s396 + $0x28] sm:$0xff]
    %v403 = vld [vmem:[%s396 + $0x30] sm:$0xff]
    %v404 = vld [vmem:[%s396 + $0x38] sm:$0xff]
    %v405 = vld [vmem:[%s396 + $0x40] sm:$0xff]
    %v406 = vld [vmem:[%s396 + $0x48] sm:$0xff]
    %v407 = vld [vmem:[%s396 + $0x50] sm:$0xf]
    %s408 = scalar_lea.vmem [#allocation4], 176
    %v409 = vld [vmem:[%s408] sm:$0xff]
    %v410 = vld [vmem:[%s408 + $0x8] sm:$0xff]
    %v411 = vld [vmem:[%s408 + $0x10] sm:$0xff]
    %v412 = vld [vmem:[%s408 + $0x18] sm:$0xff]
    %v413 = vld [vmem:[%s408 + $0x20] sm:$0xff]
    %v414 = vld [vmem:[%s408 + $0x28] sm:$0xff]
    %v415 = vld [vmem:[%s408 + $0x30] sm:$0xff]
    %v416 = vld [vmem:[%s408 + $0x38] sm:$0xff]
    %v417 = vld [vmem:[%s408 + $0x40] sm:$0xff]
    %v418 = vld [vmem:[%s408 + $0x48] sm:$0xff]
    %v419 = vld [vmem:[%s408 + $0x50] sm:$0xf]
    %s420 = scalar_lea.vmem [#allocation4], 264
    %v421 = vld [vmem:[%s420] sm:$0xff]
    %v422 = vld [vmem:[%s420 + $0x8] sm:$0xff]
    %v423 = vld [vmem:[%s420 + $0x10] sm:$0xff]
    %v424 = vld [vmem:[%s420 + $0x18] sm:$0xff]
    %v425 = vld [vmem:[%s420 + $0x20] sm:$0xff]
    %v426 = vld [vmem:[%s420 + $0x28] sm:$0xff]
    %v427 = vld [vmem:[%s420 + $0x30] sm:$0xff]
    %v428 = vld [vmem:[%s420 + $0x38] sm:$0xff]
    %v429 = vld [vmem:[%s420 + $0x40] sm:$0xff]
    %v430 = vld [vmem:[%s420 + $0x48] sm:$0xff]
    %v431 = vld [vmem:[%s420 + $0x50] sm:$0xf]
    %s432 = scalar_lea.vmem [#allocation4], 352
    %v433 = vld [vmem:[%s432] sm:$0xff]
    %v434 = vld [vmem:[%s432 + $0x8] sm:$0xff]
    %v435 = vld [vmem:[%s432 + $0x10] sm:$0xff]
    %v436 = vld [vmem:[%s432 + $0x18] sm:$0xff]
    %v437 = vld [vmem:[%s432 + $0x20] sm:$0xff]
    %v438 = vld [vmem:[%s432 + $0x28] sm:$0xff]
    %v439 = vld [vmem:[%s432 + $0x30] sm:$0xff]
    %v440 = vld [vmem:[%s432 + $0x38] sm:$0xff]
    %v441 = vld [vmem:[%s432 + $0x40] sm:$0xff]
    %v442 = vld [vmem:[%s432 + $0x48] sm:$0xff]
    %v443 = vld [vmem:[%s432 + $0x50] sm:$0xf]
    %s444 = scalar_lea.vmem [#allocation4], 440
    %v445 = vld [vmem:[%s444] sm:$0xff]
    %v446 = vld [vmem:[%s444 + $0x8] sm:$0xff]
    %v447 = vld [vmem:[%s444 + $0x10] sm:$0xff]
    %v448 = vld [vmem:[%s444 + $0x18] sm:$0xff]
    %v449 = vld [vmem:[%s444 + $0x20] sm:$0xff]
    %v450 = vld [vmem:[%s444 + $0x28] sm:$0xff]
    %v451 = vld [vmem:[%s444 + $0x30] sm:$0xff]
    %v452 = vld [vmem:[%s444 + $0x38] sm:$0xff]
    %v453 = vld [vmem:[%s444 + $0x40] sm:$0xff]
    %v454 = vld [vmem:[%s444 + $0x48] sm:$0xff]
    %v455 = vld [vmem:[%s444 + $0x50] sm:$0xf]
    %s456 = scalar_lea.vmem [#allocation4], 528
    %v457 = vld [vmem:[%s456] sm:$0xff]
    %v458 = vld [vmem:[%s456 + $0x8] sm:$0xff]
    %v459 = vld [vmem:[%s456 + $0x10] sm:$0xff]
    %v460 = vld [vmem:[%s456 + $0x18] sm:$0xff]
    %v461 = vld [vmem:[%s456 + $0x20] sm:$0xff]
    %v462 = vld [vmem:[%s456 + $0x28] sm:$0xff]
    %v463 = vld [vmem:[%s456 + $0x30] sm:$0xff]
    %v464 = vld [vmem:[%s456 + $0x38] sm:$0xff]
    %v465 = vld [vmem:[%s456 + $0x40] sm:$0xff]
    %v466 = vld [vmem:[%s456 + $0x48] sm:$0xff]
    %v467 = vld [vmem:[%s456 + $0x50] sm:$0xf]
    %s468 = scalar_lea.vmem [#allocation4], 616
    %v469 = vld [vmem:[%s468] sm:$0xff]
    %v470 = vld [vmem:[%s468 + $0x8] sm:$0xff]
    %v471 = vld [vmem:[%s468 + $0x10] sm:$0xff]
    %v472 = vld [vmem:[%s468 + $0x18] sm:$0xff]
    %v473 = vld [vmem:[%s468 + $0x20] sm:$0xff]
    %v474 = vld [vmem:[%s468 + $0x28] sm:$0xff]
    %v475 = vld [vmem:[%s468 + $0x30] sm:$0xff]
    %v476 = vld [vmem:[%s468 + $0x38] sm:$0xff]
    %v477 = vld [vmem:[%s468 + $0x40] sm:$0xff]
    %v478 = vld [vmem:[%s468 + $0x48] sm:$0xff]
    %v479 = vld [vmem:[%s468 + $0x50] sm:$0xf]
    %s480 = scalar_lea.vmem [#allocation4], 704
    %v481 = vld [vmem:[%s480] sm:$0xff]
    %v482 = vld [vmem:[%s480 + $0x8] sm:$0xff]
    %v483 = vld [vmem:[%s480 + $0x10] sm:$0xff]
    %v484 = vld [vmem:[%s480 + $0x18] sm:$0xff]
    %v485 = vld [vmem:[%s480 + $0x20] sm:$0xff]
    %v486 = vld [vmem:[%s480 + $0x28] sm:$0xff]
    %v487 = vld [vmem:[%s480 + $0x30] sm:$0xff]
    %v488 = vld [vmem:[%s480 + $0x38] sm:$0xff]
    %v489 = vld [vmem:[%s480 + $0x40] sm:$0xff]
    %v490 = vld [vmem:[%s480 + $0x48] sm:$0xff]
    %v491 = vld [vmem:[%s480 + $0x50] sm:$0xf]
    %493 = vset.pattern.permute.xlu0 0
    %494 = vperm.xlu0 %493, %v385
    %v495 = vpop.permute.xlu0 %494
    %498 = vset.pattern.permute.xlu0 0
    %499 = vperm.xlu0 %498, %v386
    %v500 = vpop.permute.xlu0 %499
    %503 = vset.pattern.permute.xlu0 0
    %504 = vperm.xlu0 %503, %v387
    %v505 = vpop.permute.xlu0 %504
    %508 = vset.pattern.permute.xlu0 0
    %509 = vperm.xlu0 %508, %v388
    %v510 = vpop.permute.xlu0 %509
    %513 = vset.pattern.permute.xlu0 0
    %514 = vperm.xlu0 %513, %v389
    %v515 = vpop.permute.xlu0 %514
    %518 = vset.pattern.permute.xlu0 0
    %519 = vperm.xlu0 %518, %v390
    %v520 = vpop.permute.xlu0 %519
    %523 = vset.pattern.permute.xlu0 0
    %524 = vperm.xlu0 %523, %v391
    %v525 = vpop.permute.xlu0 %524
    %528 = vset.pattern.permute.xlu0 0
    %529 = vperm.xlu0 %528, %v392
    %v530 = vpop.permute.xlu0 %529
    %533 = vset.pattern.permute.xlu0 0
    %534 = vperm.xlu0 %533, %v393
    %v535 = vpop.permute.xlu0 %534
    %538 = vset.pattern.permute.xlu0 0
    %539 = vperm.xlu0 %538, %v394
    %v540 = vpop.permute.xlu0 %539
    %543 = vset.pattern.permute.xlu0 0
    %544 = vperm.xlu0 %543, %v395
    %v545 = vpop.permute.xlu0 %544
    %v547 = vmul.f32 %v495, 0.0
    %v548 = vmul.f32 %v500, 0.0
    %v549 = vmul.f32 %v374, %v505
    %v550 = vmul.f32 %v375, %v510
    %v551 = vmul.f32 %v376, %v515
    %v552 = vmul.f32 %v377, %v520
    %v553 = vmul.f32 %v378, %v525
    %v554 = vmul.f32 %v379, %v530
    %v555 = vmul.f32 %v380, %v535
    %v556 = vmul.f32 %v381, %v540
    %v557 = vmul.f32 %v382, %v545
    %vm567 = vcmask 1045504
    %v568 = vrot.slane %v374, 2
    %v569 = vrot.slane %v375, 2
    %v570 = vsel %vm567, %v568, %v569
    %v571 = vrot.slane %v376, 2
    %v572 = vsel %vm567, %v569, %v571
    %v573 = vrot.slane %v377, 2
    %v574 = vsel %vm567, %v571, %v573
    %v575 = vrot.slane %v378, 2
    %v576 = vsel %vm567, %v573, %v575
    %v577 = vrot.slane %v379, 2
    %v578 = vsel %vm567, %v575, %v577
    %v579 = vrot.slane %v380, 2
    %v580 = vsel %vm567, %v577, %v579
    %v581 = vrot.slane %v381, 2
    %v582 = vsel %vm567, %v579, %v581
    %v583 = vrot.slane %v382, 2
    %v584 = vsel %vm567, %v581, %v583
    %v595 = vsel %vm567, 0.0, %v568
    %597 = vset.pattern.permute.xlu0 0
    %598 = vperm.xlu0 %597, %v397
    %v599 = vpop.permute.xlu0 %598
    %602 = vset.pattern.permute.xlu0 0
    %603 = vperm.xlu0 %602, %v398
    %v604 = vpop.permute.xlu0 %603
    %607 = vset.pattern.permute.xlu0 0
    %608 = vperm.xlu0 %607, %v399
    %v609 = vpop.permute.xlu0 %608
    %612 = vset.pattern.permute.xlu0 0
    %613 = vperm.xlu0 %612, %v400
    %v614 = vpop.permute.xlu0 %613
    %617 = vset.pattern.permute.xlu0 0
    %618 = vperm.xlu0 %617, %v401
    %v619 = vpop.permute.xlu0 %618
    %622 = vset.pattern.permute.xlu0 0
    %623 = vperm.xlu0 %622, %v402
    %v624 = vpop.permute.xlu0 %623
    %627 = vset.pattern.permute.xlu0 0
    %628 = vperm.xlu0 %627, %v403
    %v629 = vpop.permute.xlu0 %628
    %632 = vset.pattern.permute.xlu0 0
    %633 = vperm.xlu0 %632, %v404
    %v634 = vpop.permute.xlu0 %633
    %637 = vset.pattern.permute.xlu0 0
    %638 = vperm.xlu0 %637, %v405
    %v639 = vpop.permute.xlu0 %638
    %642 = vset.pattern.permute.xlu0 0
    %643 = vperm.xlu0 %642, %v406
    %v644 = vpop.permute.xlu0 %643
    %647 = vset.pattern.permute.xlu0 0
    %648 = vperm.xlu0 %647, %v407
    %v649 = vpop.permute.xlu0 %648
    %v651 = vmul.f32 %v599, 0.0
    %v652 = vmul.f32 %v595, %v604
    %v653 = vmul.f32 %v570, %v609
    %v654 = vmul.f32 %v572, %v614
    %v655 = vmul.f32 %v574, %v619
    %v656 = vmul.f32 %v576, %v624
    %v657 = vmul.f32 %v578, %v629
    %v658 = vmul.f32 %v580, %v634
    %v659 = vmul.f32 %v582, %v639
    %v660 = vmul.f32 %v584, %v644
    %v661 = vmul.f32 %v583, %v649
    %v662 = vrot.slane %v374, 4
    %v663 = vrot.slane %v375, 4
    %v664 = vsel %vm287, %v662, %v663
    %v665 = vrot.slane %v376, 4
    %v666 = vsel %vm287, %v663, %v665
    %v667 = vrot.slane %v377, 4
    %v668 = vsel %vm287, %v665, %v667
    %v669 = vrot.slane %v378, 4
    %v670 = vsel %vm287, %v667, %v669
    %v671 = vrot.slane %v379, 4
    %v672 = vsel %vm287, %v669, %v671
    %v673 = vrot.slane %v380, 4
    %v674 = vsel %vm287, %v671, %v673
    %v675 = vrot.slane %v381, 4
    %v676 = vsel %vm287, %v673, %v675
    %v677 = vrot.slane %v382, 4
    %v678 = vsel %vm287, %v675, %v677
    %v689 = vsel %vm287, 0.0, %v662
    %691 = vset.pattern.permute.xlu0 0
    %692 = vperm.xlu0 %691, %v409
    %v693 = vpop.permute.xlu0 %692
    %696 = vset.pattern.permute.xlu0 0
    %697 = vperm.xlu0 %696, %v410
    %v698 = vpop.permute.xlu0 %697
    %701 = vset.pattern.permute.xlu0 0
    %702 = vperm.xlu0 %701, %v411
    %v703 = vpop.permute.xlu0 %702
    %706 = vset.pattern.permute.xlu0 0
    %707 = vperm.xlu0 %706, %v412
    %v708 = vpop.permute.xlu0 %707
    %711 = vset.pattern.permute.xlu0 0
    %712 = vperm.xlu0 %711, %v413
    %v713 = vpop.permute.xlu0 %712
    %716 = vset.pattern.permute.xlu0 0
    %717 = vperm.xlu0 %716, %v414
    %v718 = vpop.permute.xlu0 %717
    %721 = vset.pattern.permute.xlu0 0
    %722 = vperm.xlu0 %721, %v415
    %v723 = vpop.permute.xlu0 %722
    %726 = vset.pattern.permute.xlu0 0
    %727 = vperm.xlu0 %726, %v416
    %v728 = vpop.permute.xlu0 %727
    %731 = vset.pattern.permute.xlu0 0
    %732 = vperm.xlu0 %731, %v417
    %v733 = vpop.permute.xlu0 %732
    %736 = vset.pattern.permute.xlu0 0
    %737 = vperm.xlu0 %736, %v418
    %v738 = vpop.permute.xlu0 %737
    %741 = vset.pattern.permute.xlu0 0
    %742 = vperm.xlu0 %741, %v419
    %v743 = vpop.permute.xlu0 %742
    %v745 = vmul.f32 %v693, 0.0
    %v746 = vmul.f32 %v689, %v698
    %v747 = vmul.f32 %v664, %v703
    %v748 = vmul.f32 %v666, %v708
    %v749 = vmul.f32 %v668, %v713
    %v750 = vmul.f32 %v670, %v718
    %v751 = vmul.f32 %v672, %v723
    %v752 = vmul.f32 %v674, %v728
    %v753 = vmul.f32 %v676, %v733
    %v754 = vmul.f32 %v678, %v738
    %v755 = vmul.f32 %v677, %v743
    %vm758 = vcmask 1041408
    %v759 = vrot.slane %v374, 6
    %v760 = vrot.slane %v375, 6
    %v761 = vsel %vm758, %v759, %v760
    %v762 = vrot.slane %v376, 6
    %v763 = vsel %vm758, %v760, %v762
    %v764 = vrot.slane %v377, 6
    %v765 = vsel %vm758, %v762, %v764
    %v766 = vrot.slane %v378, 6
    %v767 = vsel %vm758, %v764, %v766
    %v768 = vrot.slane %v379, 6
    %v769 = vsel %vm758, %v766, %v768
    %v770 = vrot.slane %v380, 6
    %v771 = vsel %vm758, %v768, %v770
    %v772 = vrot.slane %v381, 6
    %v773 = vsel %vm758, %v770, %v772
    %v774 = vrot.slane %v382, 6
    %v775 = vsel %vm758, %v772, %v774
    %v776 = vrot.slane %v383, 6
    %v777 = vsel %vm758, %v774, %v776
    %v778 = vrot.slane %v384, 6
    %v779 = vsel %vm758, %v776, %v778
    %v791 = vsel %vm758, 0.0, %v759
    %793 = vset.pattern.permute.xlu0 0
    %794 = vperm.xlu0 %793, %v421
    %v795 = vpop.permute.xlu0 %794
    %798 = vset.pattern.permute.xlu0 0
    %799 = vperm.xlu0 %798, %v422
    %v800 = vpop.permute.xlu0 %799
    %803 = vset.pattern.permute.xlu0 0
    %804 = vperm.xlu0 %803, %v423
    %v805 = vpop.permute.xlu0 %804
    %808 = vset.pattern.permute.xlu0 0
    %809 = vperm.xlu0 %808, %v424
    %v810 = vpop.permute.xlu0 %809
    %813 = vset.pattern.permute.xlu0 0
    %814 = vperm.xlu0 %813, %v425
    %v815 = vpop.permute.xlu0 %814
    %818 = vset.pattern.permute.xlu0 0
    %819 = vperm.xlu0 %818, %v426
    %v820 = vpop.permute.xlu0 %819
    %823 = vset.pattern.permute.xlu0 0
    %824 = vperm.xlu0 %823, %v427
    %v825 = vpop.permute.xlu0 %824
    %828 = vset.pattern.permute.xlu0 0
    %829 = vperm.xlu0 %828, %v428
    %v830 = vpop.permute.xlu0 %829
    %833 = vset.pattern.permute.xlu0 0
    %834 = vperm.xlu0 %833, %v429
    %v835 = vpop.permute.xlu0 %834
    %838 = vset.pattern.permute.xlu0 0
    %839 = vperm.xlu0 %838, %v430
    %v840 = vpop.permute.xlu0 %839
    %843 = vset.pattern.permute.xlu0 0
    %844 = vperm.xlu0 %843, %v431
    %v845 = vpop.permute.xlu0 %844
    %v847 = vmul.f32 %v791, %v795
    %v848 = vmul.f32 %v761, %v800
    %v849 = vmul.f32 %v763, %v805
    %v850 = vmul.f32 %v765, %v810
    %v851 = vmul.f32 %v767, %v815
    %v852 = vmul.f32 %v769, %v820
    %v853 = vmul.f32 %v771, %v825
    %v854 = vmul.f32 %v773, %v830
    %v855 = vmul.f32 %v775, %v835
    %v856 = vmul.f32 %v777, %v840
    %v857 = vmul.f32 %v779, %v845
    %859 = vset.pattern.permute.xlu0 0
    %860 = vperm.xlu0 %859, %v433
    %v861 = vpop.permute.xlu0 %860
    %864 = vset.pattern.permute.xlu0 0
    %865 = vperm.xlu0 %864, %v434
    %v866 = vpop.permute.xlu0 %865
    %869 = vset.pattern.permute.xlu0 0
    %870 = vperm.xlu0 %869, %v435
    %v871 = vpop.permute.xlu0 %870
    %874 = vset.pattern.permute.xlu0 0
    %875 = vperm.xlu0 %874, %v436
    %v876 = vpop.permute.xlu0 %875
    %879 = vset.pattern.permute.xlu0 0
    %880 = vperm.xlu0 %879, %v437
    %v881 = vpop.permute.xlu0 %880
    %884 = vset.pattern.permute.xlu0 0
    %885 = vperm.xlu0 %884, %v438
    %v886 = vpop.permute.xlu0 %885
    %889 = vset.pattern.permute.xlu0 0
    %890 = vperm.xlu0 %889, %v439
    %v891 = vpop.permute.xlu0 %890
    %894 = vset.pattern.permute.xlu0 0
    %895 = vperm.xlu0 %894, %v440
    %v896 = vpop.permute.xlu0 %895
    %899 = vset.pattern.permute.xlu0 0
    %900 = vperm.xlu0 %899, %v441
    %v901 = vpop.permute.xlu0 %900
    %904 = vset.pattern.permute.xlu0 0
    %905 = vperm.xlu0 %904, %v442
    %v906 = vpop.permute.xlu0 %905
    %909 = vset.pattern.permute.xlu0 0
    %910 = vperm.xlu0 %909, %v443
    %v911 = vpop.permute.xlu0 %910
    %v913 = vmul.f32 %v374, %v861
    %v914 = vmul.f32 %v375, %v866
    %v915 = vmul.f32 %v376, %v871
    %v916 = vmul.f32 %v377, %v876
    %v917 = vmul.f32 %v378, %v881
    %v918 = vmul.f32 %v379, %v886
    %v919 = vmul.f32 %v380, %v891
    %v920 = vmul.f32 %v381, %v896
    %v921 = vmul.f32 %v382, %v901
    %v922 = vmul.f32 %v383, %v906
    %v923 = vmul.f32 %v384, %v911
    %v924 = vrot.slane %v383, 2
    %v925 = vsel %vm567, %v583, %v924
    %v926 = vrot.slane %v384, 2
    %v927 = vsel %vm567, %v924, %v926
    %v931 = vsel %vm758, %v926, 0.0
    %933 = vset.pattern.permute.xlu0 0
    %934 = vperm.xlu0 %933, %v445
    %v935 = vpop.permute.xlu0 %934
    %938 = vset.pattern.permute.xlu0 0
    %939 = vperm.xlu0 %938, %v446
    %v940 = vpop.permute.xlu0 %939
    %943 = vset.pattern.permute.xlu0 0
    %944 = vperm.xlu0 %943, %v447
    %v945 = vpop.permute.xlu0 %944
    %948 = vset.pattern.permute.xlu0 0
    %949 = vperm.xlu0 %948, %v448
    %v950 = vpop.permute.xlu0 %949
    %953 = vset.pattern.permute.xlu0 0
    %954 = vperm.xlu0 %953, %v449
    %v955 = vpop.permute.xlu0 %954
    %958 = vset.pattern.permute.xlu0 0
    %959 = vperm.xlu0 %958, %v450
    %v960 = vpop.permute.xlu0 %959
    %963 = vset.pattern.permute.xlu0 0
    %964 = vperm.xlu0 %963, %v451
    %v965 = vpop.permute.xlu0 %964
    %968 = vset.pattern.permute.xlu0 0
    %969 = vperm.xlu0 %968, %v452
    %v970 = vpop.permute.xlu0 %969
    %973 = vset.pattern.permute.xlu0 0
    %974 = vperm.xlu0 %973, %v453
    %v975 = vpop.permute.xlu0 %974
    %978 = vset.pattern.permute.xlu0 0
    %979 = vperm.xlu0 %978, %v454
    %v980 = vpop.permute.xlu0 %979
    %983 = vset.pattern.permute.xlu0 0
    %984 = vperm.xlu0 %983, %v455
    %v985 = vpop.permute.xlu0 %984
    %v987 = vmul.f32 %v570, %v935
    %v988 = vmul.f32 %v572, %v940
    %v989 = vmul.f32 %v574, %v945
    %v990 = vmul.f32 %v576, %v950
    %v991 = vmul.f32 %v578, %v955
    %v992 = vmul.f32 %v580, %v960
    %v993 = vmul.f32 %v582, %v965
    %v994 = vmul.f32 %v584, %v970
    %v995 = vmul.f32 %v925, %v975
    %v996 = vmul.f32 %v927, %v980
    %v997 = vmul.f32 %v931, %v985
    %v998 = vrot.slane %v383, 4
    %v999 = vsel %vm287, %v677, %v998
    %v1000 = vrot.slane %v384, 4
    %v1001 = vsel %vm287, %v998, %v1000
    %1005 = vset.pattern.permute.xlu0 0
    %1006 = vperm.xlu0 %1005, %v457
    %v1007 = vpop.permute.xlu0 %1006
    %1010 = vset.pattern.permute.xlu0 0
    %1011 = vperm.xlu0 %1010, %v458
    %v1012 = vpop.permute.xlu0 %1011
    %1015 = vset.pattern.permute.xlu0 0
    %1016 = vperm.xlu0 %1015, %v459
    %v1017 = vpop.permute.xlu0 %1016
    %1020 = vset.pattern.permute.xlu0 0
    %1021 = vperm.xlu0 %1020, %v460
    %v1022 = vpop.permute.xlu0 %1021
    %1025 = vset.pattern.permute.xlu0 0
    %1026 = vperm.xlu0 %1025, %v461
    %v1027 = vpop.permute.xlu0 %1026
    %1030 = vset.pattern.permute.xlu0 0
    %1031 = vperm.xlu0 %1030, %v462
    %v1032 = vpop.permute.xlu0 %1031
    %1035 = vset.pattern.permute.xlu0 0
    %1036 = vperm.xlu0 %1035, %v463
    %v1037 = vpop.permute.xlu0 %1036
    %1040 = vset.pattern.permute.xlu0 0
    %1041 = vperm.xlu0 %1040, %v464
    %v1042 = vpop.permute.xlu0 %1041
    %1045 = vset.pattern.permute.xlu0 0
    %1046 = vperm.xlu0 %1045, %v465
    %v1047 = vpop.permute.xlu0 %1046
    %1050 = vset.pattern.permute.xlu0 0
    %1051 = vperm.xlu0 %1050, %v466
    %v1052 = vpop.permute.xlu0 %1051
    %1055 = vset.pattern.permute.xlu0 0
    %1056 = vperm.xlu0 %1055, %v467
    %v1057 = vpop.permute.xlu0 %1056
    %v1059 = vmul.f32 %v666, %v1007
    %v1060 = vmul.f32 %v668, %v1012
    %v1061 = vmul.f32 %v670, %v1017
    %v1062 = vmul.f32 %v672, %v1022
    %v1063 = vmul.f32 %v674, %v1027
    %v1064 = vmul.f32 %v676, %v1032
    %v1065 = vmul.f32 %v678, %v1037
    %v1066 = vmul.f32 %v999, %v1042
    %v1067 = vmul.f32 %v1001, %v1047
    %v1068 = vmul.f32 %v1052, 0.0
    %v1069 = vmul.f32 %v1057, 0.0
    %v1070 = vsel %vm567, %v779, 0.0
    %1072 = vset.pattern.permute.xlu0 0
    %1073 = vperm.xlu0 %1072, %v469
    %v1074 = vpop.permute.xlu0 %1073
    %1077 = vset.pattern.permute.xlu0 0
    %1078 = vperm.xlu0 %1077, %v470
    %v1079 = vpop.permute.xlu0 %1078
    %1082 = vset.pattern.permute.xlu0 0
    %1083 = vperm.xlu0 %1082, %v471
    %v1084 = vpop.permute.xlu0 %1083
    %1087 = vset.pattern.permute.xlu0 0
    %1088 = vperm.xlu0 %1087, %v472
    %v1089 = vpop.permute.xlu0 %1088
    %1092 = vset.pattern.permute.xlu0 0
    %1093 = vperm.xlu0 %1092, %v473
    %v1094 = vpop.permute.xlu0 %1093
    %1097 = vset.pattern.permute.xlu0 0
    %1098 = vperm.xlu0 %1097, %v474
    %v1099 = vpop.permute.xlu0 %1098
    %1102 = vset.pattern.permute.xlu0 0
    %1103 = vperm.xlu0 %1102, %v475
    %v1104 = vpop.permute.xlu0 %1103
    %1107 = vset.pattern.permute.xlu0 0
    %1108 = vperm.xlu0 %1107, %v476
    %v1109 = vpop.permute.xlu0 %1108
    %1112 = vset.pattern.permute.xlu0 0
    %1113 = vperm.xlu0 %1112, %v477
    %v1114 = vpop.permute.xlu0 %1113
    %1117 = vset.pattern.permute.xlu0 0
    %1118 = vperm.xlu0 %1117, %v478
    %v1119 = vpop.permute.xlu0 %1118
    %1122 = vset.pattern.permute.xlu0 0
    %1123 = vperm.xlu0 %1122, %v479
    %v1124 = vpop.permute.xlu0 %1123
    %v1126 = vmul.f32 %v763, %v1074
    %v1127 = vmul.f32 %v765, %v1079
    %v1128 = vmul.f32 %v767, %v1084
    %v1129 = vmul.f32 %v769, %v1089
    %v1130 = vmul.f32 %v771, %v1094
    %v1131 = vmul.f32 %v773, %v1099
    %v1132 = vmul.f32 %v775, %v1104
    %v1133 = vmul.f32 %v777, %v1109
    %v1134 = vmul.f32 %v1070, %v1114
    %v1135 = vmul.f32 %v1119, 0.0
    %v1136 = vmul.f32 %v1124, 0.0
    %v1137 = vsel %vm287, %v384, 0.0
    %1139 = vset.pattern.permute.xlu0 0
    %1140 = vperm.xlu0 %1139, %v481
    %v1141 = vpop.permute.xlu0 %1140
    %1144 = vset.pattern.permute.xlu0 0
    %1145 = vperm.xlu0 %1144, %v482
    %v1146 = vpop.permute.xlu0 %1145
    %1149 = vset.pattern.permute.xlu0 0
    %1150 = vperm.xlu0 %1149, %v483
    %v1151 = vpop.permute.xlu0 %1150
    %1154 = vset.pattern.permute.xlu0 0
    %1155 = vperm.xlu0 %1154, %v484
    %v1156 = vpop.permute.xlu0 %1155
    %1159 = vset.pattern.permute.xlu0 0
    %1160 = vperm.xlu0 %1159, %v485
    %v1161 = vpop.permute.xlu0 %1160
    %1164 = vset.pattern.permute.xlu0 0
    %1165 = vperm.xlu0 %1164, %v486
    %v1166 = vpop.permute.xlu0 %1165
    %1169 = vset.pattern.permute.xlu0 0
    %1170 = vperm.xlu0 %1169, %v487
    %v1171 = vpop.permute.xlu0 %1170
    %1174 = vset.pattern.permute.xlu0 0
    %1175 = vperm.xlu0 %1174, %v488
    %v1176 = vpop.permute.xlu0 %1175
    %1179 = vset.pattern.permute.xlu0 0
    %1180 = vperm.xlu0 %1179, %v489
    %v1181 = vpop.permute.xlu0 %1180
    %1184 = vset.pattern.permute.xlu0 0
    %1185 = vperm.xlu0 %1184, %v490
    %v1186 = vpop.permute.xlu0 %1185
    %1189 = vset.pattern.permute.xlu0 0
    %1190 = vperm.xlu0 %1189, %v491
    %v1191 = vpop.permute.xlu0 %1190
    %v1193 = vmul.f32 %v376, %v1141
    %v1194 = vmul.f32 %v377, %v1146
    %v1195 = vmul.f32 %v378, %v1151
    %v1196 = vmul.f32 %v379, %v1156
    %v1197 = vmul.f32 %v380, %v1161
    %v1198 = vmul.f32 %v381, %v1166
    %v1199 = vmul.f32 %v382, %v1171
    %v1200 = vmul.f32 %v383, %v1176
    %v1201 = vmul.f32 %v1137, %v1181
    %v1202 = vmul.f32 %v1186, 0.0
    %v1203 = vmul.f32 %v1191, 0.0
    %1215 = vrot.lane.b32.xlu0 %v651, 32
    %v1216 = vpop.permute.xlu0 %1215
    %1217 = vrot.lane.b32.xlu0 %v652, 32
    %v1218 = vpop.permute.xlu0 %1217
    %1219 = vrot.lane.b32.xlu0 %v653, 32
    %v1220 = vpop.permute.xlu0 %1219
    %1221 = vrot.lane.b32.xlu0 %v654, 32
    %v1222 = vpop.permute.xlu0 %1221
    %1223 = vrot.lane.b32.xlu0 %v655, 32
    %v1224 = vpop.permute.xlu0 %1223
    %1225 = vrot.lane.b32.xlu0 %v656, 32
    %v1226 = vpop.permute.xlu0 %1225
    %1227 = vrot.lane.b32.xlu0 %v657, 32
    %v1228 = vpop.permute.xlu0 %1227
    %1229 = vrot.lane.b32.xlu0 %v658, 32
    %v1230 = vpop.permute.xlu0 %1229
    %1231 = vrot.lane.b32.xlu0 %v659, 32
    %v1232 = vpop.permute.xlu0 %1231
    %1233 = vrot.lane.b32.xlu0 %v660, 32
    %v1234 = vpop.permute.xlu0 %1233
    %1235 = vrot.lane.b32.xlu0 %v661, 32
    %v1236 = vpop.permute.xlu0 %1235
    %1259 = vrot.lane.b32.xlu0 %v745, 64
    %v1260 = vpop.permute.xlu0 %1259
    %1261 = vrot.lane.b32.xlu0 %v746, 64
    %v1262 = vpop.permute.xlu0 %1261
    %1263 = vrot.lane.b32.xlu0 %v747, 64
    %v1264 = vpop.permute.xlu0 %1263
    %1265 = vrot.lane.b32.xlu0 %v748, 64
    %v1266 = vpop.permute.xlu0 %1265
    %1267 = vrot.lane.b32.xlu0 %v749, 64
    %v1268 = vpop.permute.xlu0 %1267
    %1269 = vrot.lane.b32.xlu0 %v750, 64
    %v1270 = vpop.permute.xlu0 %1269
    %1271 = vrot.lane.b32.xlu0 %v751, 64
    %v1272 = vpop.permute.xlu0 %1271
    %1273 = vrot.lane.b32.xlu0 %v752, 64
    %v1274 = vpop.permute.xlu0 %1273
    %1275 = vrot.lane.b32.xlu0 %v753, 64
    %v1276 = vpop.permute.xlu0 %1275
    %1277 = vrot.lane.b32.xlu0 %v754, 64
    %v1278 = vpop.permute.xlu0 %1277
    %1279 = vrot.lane.b32.xlu0 %v755, 64
    %v1280 = vpop.permute.xlu0 %1279
    %1303 = vrot.lane.b32.xlu0 %v847, 96
    %v1304 = vpop.permute.xlu0 %1303
    %1305 = vrot.lane.b32.xlu0 %v848, 96
    %v1306 = vpop.permute.xlu0 %1305
    %1307 = vrot.lane.b32.xlu0 %v849, 96
    %v1308 = vpop.permute.xlu0 %1307
    %1309 = vrot.lane.b32.xlu0 %v850, 96
    %v1310 = vpop.permute.xlu0 %1309
    %1311 = vrot.lane.b32.xlu0 %v851, 96
    %v1312 = vpop.permute.xlu0 %1311
    %1313 = vrot.lane.b32.xlu0 %v852, 96
    %v1314 = vpop.permute.xlu0 %1313
    %1315 = vrot.lane.b32.xlu0 %v853, 96
    %v1316 = vpop.permute.xlu0 %1315
    %1317 = vrot.lane.b32.xlu0 %v854, 96
    %v1318 = vpop.permute.xlu0 %1317
    %1319 = vrot.lane.b32.xlu0 %v855, 96
    %v1320 = vpop.permute.xlu0 %1319
    %1321 = vrot.lane.b32.xlu0 %v856, 96
    %v1322 = vpop.permute.xlu0 %1321
    %1323 = vrot.lane.b32.xlu0 %v857, 96
    %v1324 = vpop.permute.xlu0 %1323
    %1347 = vrot.lane.b32.xlu0 %v987, 32
    %v1348 = vpop.permute.xlu0 %1347
    %1349 = vrot.lane.b32.xlu0 %v988, 32
    %v1350 = vpop.permute.xlu0 %1349
    %1351 = vrot.lane.b32.xlu0 %v989, 32
    %v1352 = vpop.permute.xlu0 %1351
    %1353 = vrot.lane.b32.xlu0 %v990, 32
    %v1354 = vpop.permute.xlu0 %1353
    %1355 = vrot.lane.b32.xlu0 %v991, 32
    %v1356 = vpop.permute.xlu0 %1355
    %1357 = vrot.lane.b32.xlu0 %v992, 32
    %v1358 = vpop.permute.xlu0 %1357
    %1359 = vrot.lane.b32.xlu0 %v993, 32
    %v1360 = vpop.permute.xlu0 %1359
    %1361 = vrot.lane.b32.xlu0 %v994, 32
    %v1362 = vpop.permute.xlu0 %1361
    %1363 = vrot.lane.b32.xlu0 %v995, 32
    %v1364 = vpop.permute.xlu0 %1363
    %1365 = vrot.lane.b32.xlu0 %v996, 32
    %v1366 = vpop.permute.xlu0 %1365
    %1367 = vrot.lane.b32.xlu0 %v997, 32
    %v1368 = vpop.permute.xlu0 %1367
    %1391 = vrot.lane.b32.xlu0 %v1059, 64
    %v1392 = vpop.permute.xlu0 %1391
    %1393 = vrot.lane.b32.xlu0 %v1060, 64
    %v1394 = vpop.permute.xlu0 %1393
    %1395 = vrot.lane.b32.xlu0 %v1061, 64
    %v1396 = vpop.permute.xlu0 %1395
    %1397 = vrot.lane.b32.xlu0 %v1062, 64
    %v1398 = vpop.permute.xlu0 %1397
    %1399 = vrot.lane.b32.xlu0 %v1063, 64
    %v1400 = vpop.permute.xlu0 %1399
    %1401 = vrot.lane.b32.xlu0 %v1064, 64
    %v1402 = vpop.permute.xlu0 %1401
    %1403 = vrot.lane.b32.xlu0 %v1065, 64
    %v1404 = vpop.permute.xlu0 %1403
    %1405 = vrot.lane.b32.xlu0 %v1066, 64
    %v1406 = vpop.permute.xlu0 %1405
    %1407 = vrot.lane.b32.xlu0 %v1067, 64
    %v1408 = vpop.permute.xlu0 %1407
    %1409 = vrot.lane.b32.xlu0 %v1068, 64
    %v1410 = vpop.permute.xlu0 %1409
    %1411 = vrot.lane.b32.xlu0 %v1069, 64
    %v1412 = vpop.permute.xlu0 %1411
    %1435 = vrot.lane.b32.xlu0 %v1126, 96
    %v1436 = vpop.permute.xlu0 %1435
    %1437 = vrot.lane.b32.xlu0 %v1127, 96
    %v1438 = vpop.permute.xlu0 %1437
    %1439 = vrot.lane.b32.xlu0 %v1128, 96
    %v1440 = vpop.permute.xlu0 %1439
    %1441 = vrot.lane.b32.xlu0 %v1129, 96
    %v1442 = vpop.permute.xlu0 %1441
    %1443 = vrot.lane.b32.xlu0 %v1130, 96
    %v1444 = vpop.permute.xlu0 %1443
    %1445 = vrot.lane.b32.xlu0 %v1131, 96
    %v1446 = vpop.permute.xlu0 %1445
    %1447 = vrot.lane.b32.xlu0 %v1132, 96
    %v1448 = vpop.permute.xlu0 %1447
    %1449 = vrot.lane.b32.xlu0 %v1133, 96
    %v1450 = vpop.permute.xlu0 %1449
    %1451 = vrot.lane.b32.xlu0 %v1134, 96
    %v1452 = vpop.permute.xlu0 %1451
    %1453 = vrot.lane.b32.xlu0 %v1135, 96
    %v1454 = vpop.permute.xlu0 %1453
    %1455 = vrot.lane.b32.xlu0 %v1136, 96
    %v1456 = vpop.permute.xlu0 %1455
    %vm1468 = vcmask 261120
    %v1469 = vsel %vm1468, %v547, %v1216
    %v1470 = vsel %vm1468, %v548, %v1218
    %v1471 = vsel %vm1468, %v549, %v1220
    %v1472 = vsel %vm1468, %v550, %v1222
    %v1473 = vsel %vm1468, %v551, %v1224
    %v1474 = vsel %vm1468, %v552, %v1226
    %v1475 = vsel %vm1468, %v553, %v1228
    %v1476 = vsel %vm1468, %v554, %v1230
    %v1477 = vsel %vm1468, %v555, %v1232
    %v1478 = vsel %vm1468, %v556, %v1234
    %v1479 = vsel %vm1468, %v557, %v1236
    %vm1480 = vcmask 523264
    %v1481 = vsel %vm1480, %v1469, %v1260
    %v1482 = vsel %vm1480, %v1470, %v1262
    %v1483 = vsel %vm1480, %v1471, %v1264
    %v1484 = vsel %vm1480, %v1472, %v1266
    %v1485 = vsel %vm1480, %v1473, %v1268
    %v1486 = vsel %vm1480, %v1474, %v1270
    %v1487 = vsel %vm1480, %v1475, %v1272
    %v1488 = vsel %vm1480, %v1476, %v1274
    %v1489 = vsel %vm1480, %v1477, %v1276
    %v1490 = vsel %vm1480, %v1478, %v1278
    %v1491 = vsel %vm1480, %v1479, %v1280
    %vm1492 = vcmask 785408
    %v1493 = vsel %vm1492, %v1481, %v1304
    %v1494 = vsel %vm1492, %v1482, %v1306
    %v1495 = vsel %vm1492, %v1483, %v1308
    %v1496 = vsel %vm1492, %v1484, %v1310
    %v1497 = vsel %vm1492, %v1485, %v1312
    %v1498 = vsel %vm1492, %v1486, %v1314
    %v1499 = vsel %vm1492, %v1487, %v1316
    %v1500 = vsel %vm1492, %v1488, %v1318
    %v1501 = vsel %vm1492, %v1489, %v1320
    %v1502 = vsel %vm1492, %v1490, %v1322
    %v1503 = vsel %vm1492, %v1491, %v1324
    %v1504 = vsel %vm1468, %v913, %v1348
    %v1505 = vsel %vm1468, %v914, %v1350
    %v1506 = vsel %vm1468, %v915, %v1352
    %v1507 = vsel %vm1468, %v916, %v1354
    %v1508 = vsel %vm1468, %v917, %v1356
    %v1509 = vsel %vm1468, %v918, %v1358
    %v1510 = vsel %vm1468, %v919, %v1360
    %v1511 = vsel %vm1468, %v920, %v1362
    %v1512 = vsel %vm1468, %v921, %v1364
    %v1513 = vsel %vm1468, %v922, %v1366
    %v1514 = vsel %vm1468, %v923, %v1368
    %v1515 = vsel %vm1480, %v1504, %v1392
    %v1516 = vsel %vm1480, %v1505, %v1394
    %v1517 = vsel %vm1480, %v1506, %v1396
    %v1518 = vsel %vm1480, %v1507, %v1398
    %v1519 = vsel %vm1480, %v1508, %v1400
    %v1520 = vsel %vm1480, %v1509, %v1402
    %v1521 = vsel %vm1480, %v1510, %v1404
    %v1522 = vsel %vm1480, %v1511, %v1406
    %v1523 = vsel %vm1480, %v1512, %v1408
    %v1524 = vsel %vm1480, %v1513, %v1410
    %v1525 = vsel %vm1480, %v1514, %v1412
    %v1526 = vsel %vm1492, %v1515, %v1436
    %v1527 = vsel %vm1492, %v1516, %v1438
    %v1528 = vsel %vm1492, %v1517, %v1440
    %v1529 = vsel %vm1492, %v1518, %v1442
    %v1530 = vsel %vm1492, %v1519, %v1444
    %v1531 = vsel %vm1492, %v1520, %v1446
    %v1532 = vsel %vm1492, %v1521, %v1448
    %v1533 = vsel %vm1492, %v1522, %v1450
    %v1534 = vsel %vm1492, %v1523, %v1452
    %v1535 = vsel %vm1492, %v1524, %v1454
    %v1536 = vsel %vm1492, %v1525, %v1456
    %v1537 = vpack.c.bf16 %v1494, %v1493
    %v1538 = vpack.c.bf16 %v1527, %v1526
    %v1539 = vpack.c.bf16 %v1194, %v1193
    %v1540 = vpack.c.bf16 %v1496, %v1495
    %v1541 = vpack.c.bf16 %v1529, %v1528
    %v1542 = vpack.c.bf16 %v1196, %v1195
    %v1543 = vpack.c.bf16 %v1498, %v1497
    %v1544 = vpack.c.bf16 %v1531, %v1530
    %v1545 = vpack.c.bf16 %v1198, %v1197
    %v1546 = vpack.c.bf16 %v1500, %v1499
    %v1547 = vpack.c.bf16 %v1533, %v1532
    %v1548 = vpack.c.bf16 %v1200, %v1199
    %v1549 = vpack.c.bf16 %v1502, %v1501
    %v1550 = vpack.c.bf16 %v1535, %v1534
    %v1551 = vpack.c.bf16 %v1202, %v1201
    %v1552 = vpack.c.bf16 %v1503, %v1503
    %v1553 = vpack.c.bf16 %v1536, %v1536
    %v1554 = vpack.c.bf16 %v1203, %v1203
    %v1555 = vld [vmem:[%s4] sm:$0xf]
    %v1556 = vld [vmem:[%s4 + $0x4] sm:$0xf]
    %v1557 = vld [vmem:[%s4 + $0x8] sm:$0xf]
    %v1558 = vld [vmem:[%s4 + $0xc] sm:$0xf]
    %v1559 = vld [vmem:[%s4 + $0x10] sm:$0xf]
    %v1560 = vld [vmem:[%s4 + $0x14] sm:$0xf]
    %v1561 = vld [vmem:[%s4 + $0x18] sm:$0xf]
    %v1562 = vld [vmem:[%s4 + $0x1c] sm:$0xf]
    %v1563 = vld [vmem:[%s4 + $0x20] sm:$0xf]
    %v1564 = vld [vmem:[%s4 + $0x24] sm:$0xf]
    %v1565 = vld [vmem:[%s4 + $0x28] sm:$0xf]
    %v1566 = vld [vmem:[%s4 + $0x2c] sm:$0xf]
    %v1567 = vld [vmem:[%s4 + $0x30] sm:$0xf]
    %v1568 = vld [vmem:[%s4 + $0x34] sm:$0xf]
    %v1569 = vld [vmem:[%s4 + $0x38] sm:$0xf]
    %v1570 = vld [vmem:[%s4 + $0x3c] sm:$0xf]
    %v1571 = vld [vmem:[%s4 + $0x40] sm:$0xf]
    %v1572 = vld [vmem:[%s4 + $0x44] sm:$0xf]
    %v1573 = vld [vmem:[%s4 + $0x48] sm:$0xf]
    %v1574 = vld [vmem:[%s4 + $0x4c] sm:$0xf]
    %v1575 = vld [vmem:[%s4 + $0x50] sm:$0xf]
    %v1576 = vld [vmem:[%s4 + $0x54] sm:$0xf]
    %v1577 = vld [vmem:[%s4 + $0x58] sm:$0xf]
    %v1578 = vld [vmem:[%s4 + $0x5c] sm:$0xf]
    %v1579 = vld [vmem:[%s4 + $0x60] sm:$0xf]
    %v1580 = vld [vmem:[%s4 + $0x64] sm:$0xf]
    %v1581 = vld [vmem:[%s4 + $0x68] sm:$0xf]
    %v1582 = vld [vmem:[%s4 + $0x6c] sm:$0xf]
    %v1583 = vld [vmem:[%s4 + $0x70] sm:$0xf]
    %v1584 = vld [vmem:[%s4 + $0x74] sm:$0xf]
    %v1585 = vld [vmem:[%s4 + $0x78] sm:$0xf]
    %v1586 = vld [vmem:[%s4 + $0x7c] sm:$0xf]
    %v1587 = vld [vmem:[%s4 + $0x80] sm:$0xf]
    %v1588 = vld [vmem:[%s4 + $0x84] sm:$0xf]
    %v1589 = vld [vmem:[%s4 + $0x88] sm:$0xf]
    %v1590 = vld [vmem:[%s4 + $0x8c] sm:$0xf]
    %v1591 = vld [vmem:[#allocation10] sm:$0x1]
    %v1593 = vlaneseq
    %v1594 = vshrl.u32 %v1593, 7
    %v1595 = vsub.s32 0, %v1594
    %v1596 = vrot.slane %v1591, %v1595
    %v1634 = vunpack.c.l.b16 %v1555
    %v1635 = vunpack.c.l.b16 %v1556
    %v1636 = vunpack.c.l.b16 %v1557
    %v1637 = vunpack.c.l.b16 %v1558
    %v1638 = vunpack.c.l.b16 %v1559
    %v1639 = vunpack.c.l.b16 %v1560
    %v1640 = vunpack.c.l.b16 %v1561
    %v1641 = vunpack.c.l.b16 %v1562
    %v1642 = vunpack.c.l.b16 %v1563
    %v1643 = vunpack.c.l.b16 %v1564
    %v1644 = vunpack.c.l.b16 %v1565
    %v1645 = vunpack.c.l.b16 %v1566
    %v1646 = vunpack.c.l.b16 %v1567
    %v1647 = vunpack.c.l.b16 %v1568
    %v1648 = vunpack.c.l.b16 %v1569
    %v1649 = vunpack.c.l.b16 %v1570
    %v1650 = vunpack.c.l.b16 %v1571
    %v1651 = vunpack.c.l.b16 %v1572
    %v1652 = vunpack.c.l.b16 %v1573
    %v1653 = vunpack.c.l.b16 %v1574
    %v1654 = vunpack.c.l.b16 %v1575
    %v1655 = vunpack.c.l.b16 %v1576
    %v1656 = vunpack.c.l.b16 %v1577
    %v1657 = vunpack.c.l.b16 %v1578
    %v1658 = vunpack.c.l.b16 %v1579
    %v1659 = vunpack.c.l.b16 %v1580
    %v1660 = vunpack.c.l.b16 %v1581
    %v1661 = vunpack.c.l.b16 %v1582
    %v1662 = vunpack.c.l.b16 %v1583
    %v1663 = vunpack.c.l.b16 %v1584
    %v1664 = vunpack.c.l.b16 %v1585
    %v1665 = vunpack.c.l.b16 %v1586
    %v1666 = vunpack.c.l.b16 %v1587
    %v1667 = vunpack.c.l.b16 %v1588
    %v1668 = vunpack.c.l.b16 %v1589
    %v1669 = vunpack.c.l.b16 %v1590
    %v1670 = vpack.c.b16 %v1635, %v1634
    %v1671 = vpack.c.b16 %v1637, %v1636
    %v1672 = vpack.c.b16 %v1639, %v1638
    %v1673 = vpack.c.b16 %v1641, %v1640
    %v1674 = vpack.c.b16 %v1643, %v1642
    %v1675 = vpack.c.b16 %v1645, %v1644
    %v1676 = vpack.c.b16 %v1647, %v1646
    %v1677 = vpack.c.b16 %v1649, %v1648
    %v1678 = vpack.c.b16 %v1651, %v1650
    %v1679 = vpack.c.b16 %v1653, %v1652
    %v1680 = vpack.c.b16 %v1655, %v1654
    %v1681 = vpack.c.b16 %v1657, %v1656
    %v1682 = vpack.c.b16 %v1659, %v1658
    %v1683 = vpack.c.b16 %v1661, %v1660
    %v1684 = vpack.c.b16 %v1663, %v1662
    %v1685 = vpack.c.b16 %v1665, %v1664
    %v1686 = vpack.c.b16 %v1667, %v1666
    %v1687 = vpack.c.b16 %v1669, %v1668
    %v1707 = vsel %vm1468, %v1539, 0
    %v1710 = vsel %vm1468, %v1542, 0
    %v1713 = vsel %vm1468, %v1545, 0
    %v1716 = vsel %vm1468, %v1548, 0
    %v1719 = vsel %vm1468, %v1551, 0
    %v1722 = vsel %vm1468, %v1554, 0
    %1724 = vmatprep.subr.bf16.mxu0 0
    %1725 = vmatpush1.bf16.msra.mxu0 %v1670
    %1726 = vmatprep.subr.bf16.mxu0 0
    %1727 = vmatpush1.bf16.msra.mxu0 %v1671
    %1728 = vmatprep.subr.bf16.mxu0 0
    %1729 = vmatpush1.bf16.msra.mxu0 %v1672
    %1730 = vmatprep.subr.bf16.mxu0 0
    %1731 = vmatpush1.bf16.msra.mxu0 %v1673
    %1732 = vmatprep.subr.bf16.mxu0 0
    %1733 = vmatpush1.bf16.msra.mxu0 %v1674
    %1734 = vmatprep.subr.bf16.mxu0 0
    %1735 = vmatpush1.bf16.msra.mxu0 %v1675
    %1736 = vmatprep.subr.bf16.mxu0 0
    %1737 = vmatpush1.bf16.msra.mxu0 %v1676
    %1738 = vmatprep.subr.bf16.mxu0 0
    %1739 = vmatpush1.bf16.msra.mxu0 %v1677
    %1740 = vmatprep.subr.bf16.mxu0 0
    %1741 = vmatpush1.bf16.msra.mxu0 %v1678
    %1742 = vmatprep.subr.bf16.mxu0 0
    %1743 = vmatpush1.bf16.msra.mxu0 %v1679
    %1744 = vmatprep.subr.bf16.mxu0 0
    %1745 = vmatpush1.bf16.msra.mxu0 %v1680
    %1746 = vmatprep.subr.bf16.mxu0 0
    %1747 = vmatpush1.bf16.msra.mxu0 %v1681
    %1748 = vmatprep.subr.bf16.mxu0 0
    %1749 = vmatpush1.bf16.msra.mxu0 %v1682
    %1750 = vmatprep.subr.bf16.mxu0 0
    %1751 = vmatpush1.bf16.msra.mxu0 %v1683
    %1752 = vmatprep.subr.bf16.mxu0 0
    %1753 = vmatpush1.bf16.msra.mxu0 %v1684
    %1754 = vmatprep.subr.bf16.mxu0 0
    %1755 = vmatpush1.bf16.msra.mxu0 %v1685
    %1756 = vmatprep.mubr.bf16.mxu0 %v1538
    %1757 = vmatmul.mubr.bf16.gmra.mrb[0].mxu0 %v1537
    %v1758 = vpop.f32.mrb[0].mxu0
    %v1759 = vadd.f32 %v1596, %v1758
    %v1760 = vpop.f32.mrb[0].mxu0
    %v1761 = vpop.f32.mrb[0].mxu0
    %v1762 = vadd.f32 %v1596, %v1761
    %v1763 = vpop.f32.mrb[0].mxu0
    %1764 = vmatprep.mubr.bf16.mxu0 %v1541
    %1765 = vmatmul.mubr.bf16.gmra.mrb[0].mxu0 %v1540
    %v1766 = vpop.f32.mrb[0].mxu0
    %v1767 = vadd.f32 %v1596, %v1766
    %v1768 = vpop.f32.mrb[0].mxu0
    %v1769 = vpop.f32.mrb[0].mxu0
    %v1770 = vadd.f32 %v1596, %v1769
    %v1771 = vpop.f32.mrb[0].mxu0
    %1772 = vmatprep.mubr.bf16.mxu0 %v1544
    %1773 = vmatmul.mubr.bf16.gmra.mrb[0].mxu0 %v1543
    %v1774 = vpop.f32.mrb[0].mxu0
    %v1775 = vadd.f32 %v1596, %v1774
    %v1776 = vpop.f32.mrb[0].mxu0
    %v1777 = vpop.f32.mrb[0].mxu0
    %v1778 = vadd.f32 %v1596, %v1777
    %v1779 = vpop.f32.mrb[0].mxu0
    %1780 = vmatprep.mubr.bf16.mxu0 %v1547
    %1781 = vmatmul.mubr.bf16.gmra.mrb[0].mxu0 %v1546
    %v1782 = vpop.f32.mrb[0].mxu0
    %v1783 = vadd.f32 %v1596, %v1782
    %v1784 = vpop.f32.mrb[0].mxu0
    %v1785 = vpop.f32.mrb[0].mxu0
    %v1786 = vadd.f32 %v1596, %v1785
    %v1787 = vpop.f32.mrb[0].mxu0
    %1788 = vmatprep.mubr.bf16.mxu0 %v1550
    %1789 = vmatmul.mubr.bf16.gmra.mrb[0].mxu0 %v1549
    %v1790 = vpop.f32.mrb[0].mxu0
    %v1791 = vadd.f32 %v1596, %v1790
    %v1792 = vpop.f32.mrb[0].mxu0
    %v1793 = vpop.f32.mrb[0].mxu0
    %v1794 = vadd.f32 %v1596, %v1793
    %v1795 = vpop.f32.mrb[0].mxu0
    %1796 = vmatprep.mubr.bf16.mxu0 %v1553
    %1797 = vmatmul.mubr.bf16.gmra.mrb[0].mxu0 %v1552
    %v1798 = vpop.f32.mrb[0].mxu0
    %v1799 = vadd.f32 %v1596, %v1798
    %v1800 = vpop.f32.mrb[0].mxu0
    %v1801 = vpop.f32.mrb[0].mxu0
    %v1802 = vpop.f32.mrb[0].mxu0
    %1803 = vdwg.mxu0
    %1804 = vmatprep.subr.bf16.mxu0 0
    %1805 = vmatpush1.bf16.msra.mxu0 %v1686
    %1806 = vmatprep.subr.bf16.mxu0 0
    %1807 = vmatpush1.bf16.msra.mxu0 %v1687
    %1808 = vmatprep.subr.bf16.mxu0 0
    %1809 = vmatpush1.bf16.msra.mxu0 0
    %1810 = vmatprep.subr.bf16.mxu0 0
    %1811 = vmatpush1.bf16.msra.mxu0 0
    %1812 = vmatprep.subr.bf16.mxu0 0
    %1813 = vmatpush1.bf16.msra.mxu0 0
    %1814 = vmatprep.subr.bf16.mxu0 0
    %1815 = vmatpush1.bf16.msra.mxu0 0
    %1816 = vmatprep.subr.bf16.mxu0 0
    %1817 = vmatpush1.bf16.msra.mxu0 0
    %1818 = vmatprep.subr.bf16.mxu0 0
    %1819 = vmatpush1.bf16.msra.mxu0 0
    %1820 = vmatprep.subr.bf16.mxu0 0
    %1821 = vmatpush1.bf16.msra.mxu0 0
    %1822 = vmatprep.subr.bf16.mxu0 0
    %1823 = vmatpush1.bf16.msra.mxu0 0
    %1824 = vmatprep.subr.bf16.mxu0 0
    %1825 = vmatpush1.bf16.msra.mxu0 0
    %1826 = vmatprep.subr.bf16.mxu0 0
    %1827 = vmatpush1.bf16.msra.mxu0 0
    %1828 = vmatprep.subr.bf16.mxu0 0
    %1829 = vmatpush1.bf16.msra.mxu0 0
    %1830 = vmatprep.subr.bf16.mxu0 0
    %1831 = vmatpush1.bf16.msra.mxu0 0
    %1832 = vmatprep.subr.bf16.mxu0 0
    %1833 = vmatpush1.bf16.msra.mxu0 0
    %1834 = vmatprep.subr.bf16.mxu0 0
    %1835 = vmatpush1.bf16.msra.mxu0 0
    %1836 = vmatprep.mubr.bf16.mxu0 0
    %1837 = vmatmul.mubr.bf16.gmra.mrb[0].mxu0 %v1707
    %v1838 = vpop.f32.mrb[0].mxu0
    %v1839 = vadd.f32 %v1759, %v1838
    %v1840 = vpop.f32.mrb[0].mxu0
    %v1841 = vpop.f32.mrb[0].mxu0
    %v1842 = vadd.f32 %v1762, %v1841
    %v1843 = vpop.f32.mrb[0].mxu0
    %1844 = vmatprep.mubr.bf16.mxu0 0
    %1845 = vmatmul.mubr.bf16.gmra.mrb[0].mxu0 %v1710
    %v1846 = vpop.f32.mrb[0].mxu0
    %v1847 = vadd.f32 %v1767, %v1846
    %v1848 = vpop.f32.mrb[0].mxu0
    %v1849 = vpop.f32.mrb[0].mxu0
    %v1850 = vadd.f32 %v1770, %v1849
    %v1851 = vpop.f32.mrb[0].mxu0
    %1852 = vmatprep.mubr.bf16.mxu0 0
    %1853 = vmatmul.mubr.bf16.gmra.mrb[0].mxu0 %v1713
    %v1854 = vpop.f32.mrb[0].mxu0
    %v1855 = vadd.f32 %v1775, %v1854
    %v1856 = vpop.f32.mrb[0].mxu0
    %v1857 = vpop.f32.mrb[0].mxu0
    %v1858 = vadd.f32 %v1778, %v1857
    %v1859 = vpop.f32.mrb[0].mxu0
    %1860 = vmatprep.mubr.bf16.mxu0 0
    %1861 = vmatmul.mubr.bf16.gmra.mrb[0].mxu0 %v1716
    %v1862 = vpop.f32.mrb[0].mxu0
    %v1863 = vadd.f32 %v1783, %v1862
    %v1864 = vpop.f32.mrb[0].mxu0
    %v1865 = vpop.f32.mrb[0].mxu0
    %v1866 = vadd.f32 %v1786, %v1865
    %v1867 = vpop.f32.mrb[0].mxu0
    %1868 = vmatprep.mubr.bf16.mxu0 0
    %1869 = vmatmul.mubr.bf16.gmra.mrb[0].mxu0 %v1719
    %v1870 = vpop.f32.mrb[0].mxu0
    %v1871 = vadd.f32 %v1791, %v1870
    %v1872 = vpop.f32.mrb[0].mxu0
    %v1873 = vpop.f32.mrb[0].mxu0
    %v1874 = vadd.f32 %v1794, %v1873
    %v1875 = vpop.f32.mrb[0].mxu0
    %1876 = vmatprep.mubr.bf16.mxu0 0
    %1877 = vmatmul.mubr.bf16.gmra.mrb[0].mxu0 %v1722
    %v1878 = vpop.f32.mrb[0].mxu0
    %v1879 = vadd.f32 %v1799, %v1878
    %v1880 = vpop.f32.mrb[0].mxu0
    %v1881 = vpop.f32.mrb[0].mxu0
    %v1882 = vpop.f32.mrb[0].mxu0
    %1883 = vdwg.mxu0
    %v1884 = vmax.f32 %v1839, 0.0
    %v1885 = vmax.f32 %v1842, 0.0
    %v1886 = vmax.f32 %v1847, 0.0
    %v1887 = vmax.f32 %v1850, 0.0
    %v1888 = vmax.f32 %v1855, 0.0
    %v1889 = vmax.f32 %v1858, 0.0
    %v1890 = vmax.f32 %v1863, 0.0
    %v1891 = vmax.f32 %v1866, 0.0
    %v1892 = vmax.f32 %v1871, 0.0
    %v1893 = vmax.f32 %v1874, 0.0
    %v1894 = vmax.f32 %v1879, 0.0
    %v1895 = vmul.f32 %v1884, %v505
    %v1896 = vmul.f32 %v1885, %v510
    %v1897 = vmul.f32 %v1886, %v515
    %v1898 = vmul.f32 %v1887, %v520
    %v1899 = vmul.f32 %v1888, %v525
    %v1900 = vmul.f32 %v1889, %v530
    %v1901 = vmul.f32 %v1890, %v535
    %v1902 = vmul.f32 %v1891, %v540
    %v1903 = vmul.f32 %v1892, %v545
    %v1913 = vrot.slane %v1884, 2
    %v1914 = vrot.slane %v1885, 2
    %v1915 = vsel %vm567, %v1913, %v1914
    %v1916 = vrot.slane %v1886, 2
    %v1917 = vsel %vm567, %v1914, %v1916
    %v1918 = vrot.slane %v1887, 2
    %v1919 = vsel %vm567, %v1916, %v1918
    %v1920 = vrot.slane %v1888, 2
    %v1921 = vsel %vm567, %v1918, %v1920
    %v1922 = vrot.slane %v1889, 2
    %v1923 = vsel %vm567, %v1920, %v1922
    %v1924 = vrot.slane %v1890, 2
    %v1925 = vsel %vm567, %v1922, %v1924
    %v1926 = vrot.slane %v1891, 2
    %v1927 = vsel %vm567, %v1924, %v1926
    %v1928 = vrot.slane %v1892, 2
    %v1929 = vsel %vm567, %v1926, %v1928
    %v1940 = vsel %vm567, 0.0, %v1913
    %v1941 = vmul.f32 %v1940, %v604
    %v1942 = vmul.f32 %v1915, %v609
    %v1943 = vmul.f32 %v1917, %v614
    %v1944 = vmul.f32 %v1919, %v619
    %v1945 = vmul.f32 %v1921, %v624
    %v1946 = vmul.f32 %v1923, %v629
    %v1947 = vmul.f32 %v1925, %v634
    %v1948 = vmul.f32 %v1927, %v639
    %v1949 = vmul.f32 %v1929, %v644
    %v1950 = vmul.f32 %v1928, %v649
    %v1951 = vrot.slane %v1884, 4
    %v1952 = vrot.slane %v1885, 4
    %v1953 = vsel %vm287, %v1951, %v1952
    %v1954 = vrot.slane %v1886, 4
    %v1955 = vsel %vm287, %v1952, %v1954
    %v1956 = vrot.slane %v1887, 4
    %v1957 = vsel %vm287, %v1954, %v1956
    %v1958 = vrot.slane %v1888, 4
    %v1959 = vsel %vm287, %v1956, %v1958
    %v1960 = vrot.slane %v1889, 4
    %v1961 = vsel %vm287, %v1958, %v1960
    %v1962 = vrot.slane %v1890, 4
    %v1963 = vsel %vm287, %v1960, %v1962
    %v1964 = vrot.slane %v1891, 4
    %v1965 = vsel %vm287, %v1962, %v1964
    %v1966 = vrot.slane %v1892, 4
    %v1967 = vsel %vm287, %v1964, %v1966
    %v1978 = vsel %vm287, 0.0, %v1951
    %v1979 = vmul.f32 %v1978, %v698
    %v1980 = vmul.f32 %v1953, %v703
    %v1981 = vmul.f32 %v1955, %v708
    %v1982 = vmul.f32 %v1957, %v713
    %v1983 = vmul.f32 %v1959, %v718
    %v1984 = vmul.f32 %v1961, %v723
    %v1985 = vmul.f32 %v1963, %v728
    %v1986 = vmul.f32 %v1965, %v733
    %v1987 = vmul.f32 %v1967, %v738
    %v1988 = vmul.f32 %v1966, %v743
    %v1991 = vrot.slane %v1884, 6
    %v1992 = vrot.slane %v1885, 6
    %v1993 = vsel %vm758, %v1991, %v1992
    %v1994 = vrot.slane %v1886, 6
    %v1995 = vsel %vm758, %v1992, %v1994
    %v1996 = vrot.slane %v1887, 6
    %v1997 = vsel %vm758, %v1994, %v1996
    %v1998 = vrot.slane %v1888, 6
    %v1999 = vsel %vm758, %v1996, %v1998
    %v2000 = vrot.slane %v1889, 6
    %v2001 = vsel %vm758, %v1998, %v2000
    %v2002 = vrot.slane %v1890, 6
    %v2003 = vsel %vm758, %v2000, %v2002
    %v2004 = vrot.slane %v1891, 6
    %v2005 = vsel %vm758, %v2002, %v2004
    %v2006 = vrot.slane %v1892, 6
    %v2007 = vsel %vm758, %v2004, %v2006
    %v2008 = vrot.slane %v1893, 6
    %v2009 = vsel %vm758, %v2006, %v2008
    %v2010 = vrot.slane %v1894, 6
    %v2011 = vsel %vm758, %v2008, %v2010
    %v2023 = vsel %vm758, 0.0, %v1991
    %v2024 = vmul.f32 %v2023, %v795
    %v2025 = vmul.f32 %v1993, %v800
    %v2026 = vmul.f32 %v1995, %v805
    %v2027 = vmul.f32 %v1997, %v810
    %v2028 = vmul.f32 %v1999, %v815
    %v2029 = vmul.f32 %v2001, %v820
    %v2030 = vmul.f32 %v2003, %v825
    %v2031 = vmul.f32 %v2005, %v830
    %v2032 = vmul.f32 %v2007, %v835
    %v2033 = vmul.f32 %v2009, %v840
    %v2034 = vmul.f32 %v2011, %v845
    %v2035 = vmul.f32 %v1884, %v861
    %v2036 = vmul.f32 %v1885, %v866
    %v2037 = vmul.f32 %v1886, %v871
    %v2038 = vmul.f32 %v1887, %v876
    %v2039 = vmul.f32 %v1888, %v881
    %v2040 = vmul.f32 %v1889, %v886
    %v2041 = vmul.f32 %v1890, %v891
    %v2042 = vmul.f32 %v1891, %v896
    %v2043 = vmul.f32 %v1892, %v901
    %v2044 = vmul.f32 %v1893, %v906
    %v2045 = vmul.f32 %v1894, %v911
    %v2046 = vrot.slane %v1893, 2
    %v2047 = vsel %vm567, %v1928, %v2046
    %v2048 = vrot.slane %v1894, 2
    %v2049 = vsel %vm567, %v2046, %v2048
    %v2053 = vsel %vm758, %v2048, 0.0
    %v2054 = vmul.f32 %v1915, %v935
    %v2055 = vmul.f32 %v1917, %v940
    %v2056 = vmul.f32 %v1919, %v945
    %v2057 = vmul.f32 %v1921, %v950
    %v2058 = vmul.f32 %v1923, %v955
    %v2059 = vmul.f32 %v1925, %v960
    %v2060 = vmul.f32 %v1927, %v965
    %v2061 = vmul.f32 %v1929, %v970
    %v2062 = vmul.f32 %v2047, %v975
    %v2063 = vmul.f32 %v2049, %v980
    %v2064 = vmul.f32 %v2053, %v985
    %v2065 = vrot.slane %v1893, 4
    %v2066 = vsel %vm287, %v1966, %v2065
    %v2067 = vrot.slane %v1894, 4
    %v2068 = vsel %vm287, %v2065, %v2067
    %v2071 = vmul.f32 %v1955, %v1007
    %v2072 = vmul.f32 %v1957, %v1012
    %v2073 = vmul.f32 %v1959, %v1017
    %v2074 = vmul.f32 %v1961, %v1022
    %v2075 = vmul.f32 %v1963, %v1027
    %v2076 = vmul.f32 %v1965, %v1032
    %v2077 = vmul.f32 %v1967, %v1037
    %v2078 = vmul.f32 %v2066, %v1042
    %v2079 = vmul.f32 %v2068, %v1047
    %v2080 = vsel %vm567, %v2011, 0.0
    %v2081 = vmul.f32 %v1995, %v1074
    %v2082 = vmul.f32 %v1997, %v1079
    %v2083 = vmul.f32 %v1999, %v1084
    %v2084 = vmul.f32 %v2001, %v1089
    %v2085 = vmul.f32 %v2003, %v1094
    %v2086 = vmul.f32 %v2005, %v1099
    %v2087 = vmul.f32 %v2007, %v1104
    %v2088 = vmul.f32 %v2009, %v1109
    %v2089 = vmul.f32 %v2080, %v1114
    %v2090 = vsel %vm287, %v1894, 0.0
    %v2091 = vmul.f32 %v1886, %v1141
    %v2092 = vmul.f32 %v1887, %v1146
    %v2093 = vmul.f32 %v1888, %v1151
    %v2094 = vmul.f32 %v1889, %v1156
    %v2095 = vmul.f32 %v1890, %v1161
    %v2096 = vmul.f32 %v1891, %v1166
    %v2097 = vmul.f32 %v1892, %v1171
    %v2098 = vmul.f32 %v1893, %v1176
    %v2099 = vmul.f32 %v2090, %v1181
    %2110 = vrot.lane.b32.xlu0 %v651, 64
    %v2111 = vpop.permute.xlu0 %2110
    %2112 = vrot.lane.b32.xlu0 %v1941, 64
    %v2113 = vpop.permute.xlu0 %2112
    %2114 = vrot.lane.b32.xlu0 %v1942, 64
    %v2115 = vpop.permute.xlu0 %2114
    %2116 = vrot.lane.b32.xlu0 %v1943, 64
    %v2117 = vpop.permute.xlu0 %2116
    %2118 = vrot.lane.b32.xlu0 %v1944, 64
    %v2119 = vpop.permute.xlu0 %2118
    %2120 = vrot.lane.b32.xlu0 %v1945, 64
    %v2121 = vpop.permute.xlu0 %2120
    %2122 = vrot.lane.b32.xlu0 %v1946, 64
    %v2123 = vpop.permute.xlu0 %2122
    %2124 = vrot.lane.b32.xlu0 %v1947, 64
    %v2125 = vpop.permute.xlu0 %2124
    %2126 = vrot.lane.b32.xlu0 %v1948, 64
    %v2127 = vpop.permute.xlu0 %2126
    %2128 = vrot.lane.b32.xlu0 %v1949, 64
    %v2129 = vpop.permute.xlu0 %2128
    %2130 = vrot.lane.b32.xlu0 %v1950, 64
    %v2131 = vpop.permute.xlu0 %2130
    %2154 = vrot.lane.b32.xlu0 %v2024, 64
    %v2155 = vpop.permute.xlu0 %2154
    %2156 = vrot.lane.b32.xlu0 %v2025, 64
    %v2157 = vpop.permute.xlu0 %2156
    %2158 = vrot.lane.b32.xlu0 %v2026, 64
    %v2159 = vpop.permute.xlu0 %2158
    %2160 = vrot.lane.b32.xlu0 %v2027, 64
    %v2161 = vpop.permute.xlu0 %2160
    %2162 = vrot.lane.b32.xlu0 %v2028, 64
    %v2163 = vpop.permute.xlu0 %2162
    %2164 = vrot.lane.b32.xlu0 %v2029, 64
    %v2165 = vpop.permute.xlu0 %2164
    %2166 = vrot.lane.b32.xlu0 %v2030, 64
    %v2167 = vpop.permute.xlu0 %2166
    %2168 = vrot.lane.b32.xlu0 %v2031, 64
    %v2169 = vpop.permute.xlu0 %2168
    %2170 = vrot.lane.b32.xlu0 %v2032, 64
    %v2171 = vpop.permute.xlu0 %2170
    %2172 = vrot.lane.b32.xlu0 %v2033, 64
    %v2173 = vpop.permute.xlu0 %2172
    %2174 = vrot.lane.b32.xlu0 %v2034, 64
    %v2175 = vpop.permute.xlu0 %2174
    %2198 = vrot.lane.b32.xlu0 %v2054, 64
    %v2199 = vpop.permute.xlu0 %2198
    %2200 = vrot.lane.b32.xlu0 %v2055, 64
    %v2201 = vpop.permute.xlu0 %2200
    %2202 = vrot.lane.b32.xlu0 %v2056, 64
    %v2203 = vpop.permute.xlu0 %2202
    %2204 = vrot.lane.b32.xlu0 %v2057, 64
    %v2205 = vpop.permute.xlu0 %2204
    %2206 = vrot.lane.b32.xlu0 %v2058, 64
    %v2207 = vpop.permute.xlu0 %2206
    %2208 = vrot.lane.b32.xlu0 %v2059, 64
    %v2209 = vpop.permute.xlu0 %2208
    %2210 = vrot.lane.b32.xlu0 %v2060, 64
    %v2211 = vpop.permute.xlu0 %2210
    %2212 = vrot.lane.b32.xlu0 %v2061, 64
    %v2213 = vpop.permute.xlu0 %2212
    %2214 = vrot.lane.b32.xlu0 %v2062, 64
    %v2215 = vpop.permute.xlu0 %2214
    %2216 = vrot.lane.b32.xlu0 %v2063, 64
    %v2217 = vpop.permute.xlu0 %2216
    %2218 = vrot.lane.b32.xlu0 %v2064, 64
    %v2219 = vpop.permute.xlu0 %2218
    %2240 = vrot.lane.b32.xlu0 %v2081, 64
    %v2241 = vpop.permute.xlu0 %2240
    %2242 = vrot.lane.b32.xlu0 %v2082, 64
    %v2243 = vpop.permute.xlu0 %2242
    %2244 = vrot.lane.b32.xlu0 %v2083, 64
    %v2245 = vpop.permute.xlu0 %2244
    %2246 = vrot.lane.b32.xlu0 %v2084, 64
    %v2247 = vpop.permute.xlu0 %2246
    %2248 = vrot.lane.b32.xlu0 %v2085, 64
    %v2249 = vpop.permute.xlu0 %2248
    %2250 = vrot.lane.b32.xlu0 %v2086, 64
    %v2251 = vpop.permute.xlu0 %2250
    %2252 = vrot.lane.b32.xlu0 %v2087, 64
    %v2253 = vpop.permute.xlu0 %2252
    %2254 = vrot.lane.b32.xlu0 %v2088, 64
    %v2255 = vpop.permute.xlu0 %2254
    %2256 = vrot.lane.b32.xlu0 %v2089, 64
    %v2257 = vpop.permute.xlu0 %2256
    %2258 = vrot.lane.b32.xlu0 %v1135, 64
    %v2259 = vpop.permute.xlu0 %2258
    %2260 = vrot.lane.b32.xlu0 %v1136, 64
    %v2261 = vpop.permute.xlu0 %2260
    %v2273 = vsel %vm1480, %v547, %v2111
    %v2274 = vsel %vm1480, %v548, %v2113
    %v2275 = vsel %vm1480, %v1895, %v2115
    %v2276 = vsel %vm1480, %v1896, %v2117
    %v2277 = vsel %vm1480, %v1897, %v2119
    %v2278 = vsel %vm1480, %v1898, %v2121
    %v2279 = vsel %vm1480, %v1899, %v2123
    %v2280 = vsel %vm1480, %v1900, %v2125
    %v2281 = vsel %vm1480, %v1901, %v2127
    %v2282 = vsel %vm1480, %v1902, %v2129
    %v2283 = vsel %vm1480, %v1903, %v2131
    %v2284 = vsel %vm1480, %v745, %v2155
    %v2285 = vsel %vm1480, %v1979, %v2157
    %v2286 = vsel %vm1480, %v1980, %v2159
    %v2287 = vsel %vm1480, %v1981, %v2161
    %v2288 = vsel %vm1480, %v1982, %v2163
    %v2289 = vsel %vm1480, %v1983, %v2165
    %v2290 = vsel %vm1480, %v1984, %v2167
    %v2291 = vsel %vm1480, %v1985, %v2169
    %v2292 = vsel %vm1480, %v1986, %v2171
    %v2293 = vsel %vm1480, %v1987, %v2173
    %v2294 = vsel %vm1480, %v1988, %v2175
    %v2295 = vsel %vm1480, %v2035, %v2199
    %v2296 = vsel %vm1480, %v2036, %v2201
    %v2297 = vsel %vm1480, %v2037, %v2203
    %v2298 = vsel %vm1480, %v2038, %v2205
    %v2299 = vsel %vm1480, %v2039, %v2207
    %v2300 = vsel %vm1480, %v2040, %v2209
    %v2301 = vsel %vm1480, %v2041, %v2211
    %v2302 = vsel %vm1480, %v2042, %v2213
    %v2303 = vsel %vm1480, %v2043, %v2215
    %v2304 = vsel %vm1480, %v2044, %v2217
    %v2305 = vsel %vm1480, %v2045, %v2219
    %v2306 = vsel %vm1480, %v2071, %v2241
    %v2307 = vsel %vm1480, %v2072, %v2243
    %v2308 = vsel %vm1480, %v2073, %v2245
    %v2309 = vsel %vm1480, %v2074, %v2247
    %v2310 = vsel %vm1480, %v2075, %v2249
    %v2311 = vsel %vm1480, %v2076, %v2251
    %v2312 = vsel %vm1480, %v2077, %v2253
    %v2313 = vsel %vm1480, %v2078, %v2255
    %v2314 = vsel %vm1480, %v2079, %v2257
    %v2315 = vsel %vm1480, %v1068, %v2259
    %v2316 = vsel %vm1480, %v1069, %v2261
    %v2317 = vpack.c.bf16 %v2274, %v2273
    %v2318 = vpack.c.bf16 %v2285, %v2284
    %v2319 = vpack.c.bf16 %v2296, %v2295
    %v2320 = vpack.c.bf16 %v2307, %v2306
    %v2321 = vpack.c.bf16 %v2092, %v2091
    %v2322 = vpack.c.bf16 %v2276, %v2275
    %v2323 = vpack.c.bf16 %v2287, %v2286
    %v2324 = vpack.c.bf16 %v2298, %v2297
    %v2325 = vpack.c.bf16 %v2309, %v2308
    %v2326 = vpack.c.bf16 %v2094, %v2093
    %v2327 = vpack.c.bf16 %v2278, %v2277
    %v2328 = vpack.c.bf16 %v2289, %v2288
    %v2329 = vpack.c.bf16 %v2300, %v2299
    %v2330 = vpack.c.bf16 %v2311, %v2310
    %v2331 = vpack.c.bf16 %v2096, %v2095
    %v2332 = vpack.c.bf16 %v2280, %v2279
    %v2333 = vpack.c.bf16 %v2291, %v2290
    %v2334 = vpack.c.bf16 %v2302, %v2301
    %v2335 = vpack.c.bf16 %v2313, %v2312
    %v2336 = vpack.c.bf16 %v2098, %v2097
    %v2337 = vpack.c.bf16 %v2282, %v2281
    %v2338 = vpack.c.bf16 %v2293, %v2292
    %v2339 = vpack.c.bf16 %v2304, %v2303
    %v2340 = vpack.c.bf16 %v2315, %v2314
    %v2341 = vpack.c.bf16 %v1202, %v2099
    %v2342 = vpack.c.bf16 %v2283, %v2283
    %v2343 = vpack.c.bf16 %v2294, %v2294
    %v2344 = vpack.c.bf16 %v2305, %v2305
    %v2345 = vpack.c.bf16 %v2316, %v2316
    %v2346 = vld [vmem:[#allocation12] sm:$0xf]
    %v2347 = vld [vmem:[#allocation12 + $0x4] sm:$0xf]
    %v2348 = vld [vmem:[#allocation12 + $0x8] sm:$0xf]
    %v2349 = vld [vmem:[#allocation12 + $0xc] sm:$0xf]
    %v2350 = vld [vmem:[#allocation12 + $0x10] sm:$0xf]
    %v2351 = vld [vmem:[#allocation12 + $0x14] sm:$0xf]
    %v2352 = vld [vmem:[#allocation12 + $0x18] sm:$0xf]
    %v2353 = vld [vmem:[#allocation12 + $0x1c] sm:$0xf]
    %v2354 = vld [vmem:[#allocation12 + $0x20] sm:$0xf]
    %v2355 = vld [vmem:[#allocation12 + $0x24] sm:$0xf]
    %v2356 = vld [vmem:[#allocation12 + $0x28] sm:$0xf]
    %v2357 = vld [vmem:[#allocation12 + $0x2c] sm:$0xf]
    %v2358 = vld [vmem:[#allocation12 + $0x30] sm:$0xf]
    %v2359 = vld [vmem:[#allocation12 + $0x34] sm:$0xf]
    %v2360 = vld [vmem:[#allocation12 + $0x38] sm:$0xf]
    %v2361 = vld [vmem:[#allocation12 + $0x3c] sm:$0xf]
    %v2362 = vld [vmem:[#allocation12 + $0x40] sm:$0xf]
    %v2363 = vld [vmem:[#allocation12 + $0x44] sm:$0xf]
    %v2364 = vld [vmem:[#allocation12 + $0x48] sm:$0xf]
    %v2365 = vld [vmem:[#allocation12 + $0x4c] sm:$0xf]
    %v2366 = vld [vmem:[#allocation12 + $0x50] sm:$0xf]
    %v2367 = vld [vmem:[#allocation12 + $0x54] sm:$0xf]
    %v2368 = vld [vmem:[#allocation12 + $0x58] sm:$0xf]
    %v2369 = vld [vmem:[#allocation12 + $0x5c] sm:$0xf]
    %v2370 = vld [vmem:[#allocation12 + $0x60] sm:$0xf]
    %v2371 = vld [vmem:[#allocation12 + $0x64] sm:$0xf]
    %v2372 = vld [vmem:[#allocation12 + $0x68] sm:$0xf]
    %v2373 = vld [vmem:[#allocation12 + $0x6c] sm:$0xf]
    %v2374 = vld [vmem:[#allocation12 + $0x70] sm:$0xf]
    %v2375 = vld [vmem:[#allocation12 + $0x74] sm:$0xf]
    %v2376 = vld [vmem:[#allocation12 + $0x78] sm:$0xf]
    %v2377 = vld [vmem:[#allocation12 + $0x7c] sm:$0xf]
    %v2378 = vld [vmem:[#allocation12 + $0x80] sm:$0xf]
    %v2379 = vld [vmem:[#allocation12 + $0x84] sm:$0xf]
    %v2380 = vld [vmem:[#allocation12 + $0x88] sm:$0xf]
    %v2381 = vld [vmem:[#allocation12 + $0x8c] sm:$0xf]
    %v2382 = vld [vmem:[#allocation12 + $0x90] sm:$0xf]
    %v2383 = vld [vmem:[#allocation12 + $0x94] sm:$0xf]
    %v2384 = vld [vmem:[#allocation12 + $0x98] sm:$0xf]
    %v2385 = vld [vmem:[#allocation12 + $0x9c] sm:$0xf]
    %v2386 = vld [vmem:[#allocation12 + $0xa0] sm:$0xf]
    %v2387 = vld [vmem:[#allocation12 + $0xa4] sm:$0xf]
    %v2388 = vld [vmem:[#allocation12 + $0xa8] sm:$0xf]
    %v2389 = vld [vmem:[#allocation12 + $0xac] sm:$0xf]
    %v2390 = vld [vmem:[#allocation12 + $0xb0] sm:$0xf]
    %v2391 = vld [vmem:[#allocation12 + $0xb4] sm:$0xf]
    %v2392 = vld [vmem:[#allocation12 + $0xb8] sm:$0xf]
    %v2393 = vld [vmem:[#allocation12 + $0xbc] sm:$0xf]
    %v2394 = vld [vmem:[#allocation12 + $0xc0] sm:$0xf]
    %v2395 = vld [vmem:[#allocation12 + $0xc4] sm:$0xf]
    %v2396 = vld [vmem:[#allocation12 + $0xc8] sm:$0xf]
    %v2397 = vld [vmem:[#allocation12 + $0xcc] sm:$0xf]
    %v2398 = vld [vmem:[#allocation12 + $0xd0] sm:$0xf]
    %v2399 = vld [vmem:[#allocation12 + $0xd4] sm:$0xf]
    %v2400 = vld [vmem:[#allocation12 + $0xd8] sm:$0xf]
    %v2401 = vld [vmem:[#allocation12 + $0xdc] sm:$0xf]
    %v2402 = vld [vmem:[#allocation12 + $0xe0] sm:$0xf]
    %v2403 = vld [vmem:[#allocation12 + $0xe4] sm:$0xf]
    %v2404 = vld [vmem:[#allocation12 + $0xe8] sm:$0xf]
    %v2405 = vld [vmem:[#allocation12 + $0xec] sm:$0xf]
    %v2406 = vld [vmem:[#allocation12 + $0xf0] sm:$0xf]
    %v2407 = vld [vmem:[#allocation12 + $0xf4] sm:$0xf]
    %v2408 = vld [vmem:[#allocation12 + $0xf8] sm:$0xf]
    %v2409 = vld [vmem:[#allocation12 + $0xfc] sm:$0xf]
    %v2410 = vld [vmem:[#allocation12 + $0x100] sm:$0xf]
    %v2411 = vld [vmem:[#allocation12 + $0x104] sm:$0xf]
    %v2412 = vld [vmem:[#allocation12 + $0x108] sm:$0xf]
    %v2413 = vld [vmem:[#allocation12 + $0x10c] sm:$0xf]
    %v2414 = vld [vmem:[#allocation12 + $0x110] sm:$0xf]
    %v2415 = vld [vmem:[#allocation12 + $0x114] sm:$0xf]
    %v2416 = vld [vmem:[#allocation12 + $0x118] sm:$0xf]
    %v2417 = vld [vmem:[#allocation12 + $0x11c] sm:$0xf]
    %v2418 = vld [vmem:[#allocation13] sm:$0x1]
    %v2420 = vlaneseq
    %v2421 = vshrl.u32 %v2420, 7
    %v2422 = vsub.s32 0, %v2421
    %v2423 = vrot.slane %v2418, %v2422
    %v2497 = vunpack.c.l.b16 %v2346
    %v2498 = vunpack.c.l.b16 %v2347
    %v2499 = vunpack.c.l.b16 %v2348
    %v2500 = vunpack.c.l.b16 %v2349
    %v2501 = vunpack.c.l.b16 %v2350
    %v2502 = vunpack.c.l.b16 %v2351
    %v2503 = vunpack.c.l.b16 %v2352
    %v2504 = vunpack.c.l.b16 %v2353
    %v2505 = vunpack.c.l.b16 %v2354
    %v2506 = vunpack.c.l.b16 %v2355
    %v2507 = vunpack.c.l.b16 %v2356
    %v2508 = vunpack.c.l.b16 %v2357
    %v2509 = vunpack.c.l.b16 %v2358
    %v2510 = vunpack.c.l.b16 %v2359
    %v2511 = vunpack.c.l.b16 %v2360
    %v2512 = vunpack.c.l.b16 %v2361
    %v2513 = vunpack.c.l.b16 %v2362
    %v2514 = vunpack.c.l.b16 %v2363
    %v2515 = vunpack.c.l.b16 %v2364
    %v2516 = vunpack.c.l.b16 %v2365
    %v2517 = vunpack.c.l.b16 %v2366
    %v2518 = vunpack.c.l.b16 %v2367
    %v2519 = vunpack.c.l.b16 %v2368
    %v2520 = vunpack.c.l.b16 %v2369
    %v2521 = vunpack.c.l.b16 %v2370
    %v2522 = vunpack.c.l.b16 %v2371
    %v2523 = vunpack.c.l.b16 %v2372
    %v2524 = vunpack.c.l.b16 %v2373
    %v2525 = vunpack.c.l.b16 %v2374
    %v2526 = vunpack.c.l.b16 %v2375
    %v2527 = vunpack.c.l.b16 %v2376
    %v2528 = vunpack.c.l.b16 %v2377
    %v2529 = vunpack.c.l.b16 %v2378
    %v2530 = vunpack.c.l.b16 %v2379
    %v2531 = vunpack.c.l.b16 %v2380
    %v2532 = vunpack.c.l.b16 %v2381
    %v2533 = vunpack.c.l.b16 %v2382
    %v2534 = vunpack.c.l.b16 %v2383
    %v2535 = vunpack.c.l.b16 %v2384
    %v2536 = vunpack.c.l.b16 %v2385
    %v2537 = vunpack.c.l.b16 %v2386
    %v2538 = vunpack.c.l.b16 %v2387
    %v2539 = vunpack.c.l.b16 %v2388
    %v2540 = vunpack.c.l.b16 %v2389
    %v2541 = vunpack.c.l.b16 %v2390
    %v2542 = vunpack.c.l.b16 %v2391
    %v2543 = vunpack.c.l.b16 %v2392
    %v2544 = vunpack.c.l.b16 %v2393
    %v2545 = vunpack.c.l.b16 %v2394
    %v2546 = vunpack.c.l.b16 %v2395
    %v2547 = vunpack.c.l.b16 %v2396
    %v2548 = vunpack.c.l.b16 %v2397
    %v2549 = vunpack.c.l.b16 %v2398
    %v2550 = vunpack.c.l.b16 %v2399
    %v2551 = vunpack.c.l.b16 %v2400
    %v2552 = vunpack.c.l.b16 %v2401
    %v2553 = vunpack.c.l.b16 %v2402
    %v2554 = vunpack.c.l.b16 %v2403
    %v2555 = vunpack.c.l.b16 %v2404
    %v2556 = vunpack.c.l.b16 %v2405
    %v2557 = vunpack.c.l.b16 %v2406
    %v2558 = vunpack.c.l.b16 %v2407
    %v2559 = vunpack.c.l.b16 %v2408
    %v2560 = vunpack.c.l.b16 %v2409
    %v2561 = vunpack.c.l.b16 %v2410
    %v2562 = vunpack.c.l.b16 %v2411
    %v2563 = vunpack.c.l.b16 %v2412
    %v2564 = vunpack.c.l.b16 %v2413
    %v2565 = vunpack.c.l.b16 %v2414
    %v2566 = vunpack.c.l.b16 %v2415
    %v2567 = vunpack.c.l.b16 %v2416
    %v2568 = vunpack.c.l.b16 %v2417
    %v2569 = vpack.c.b16 %v2498, %v2497
    %v2570 = vpack.c.b16 %v2500, %v2499
    %v2571 = vpack.c.b16 %v2502, %v2501
    %v2572 = vpack.c.b16 %v2504, %v2503
    %v2573 = vpack.c.b16 %v2506, %v2505
    %v2574 = vpack.c.b16 %v2508, %v2507
    %v2575 = vpack.c.b16 %v2510, %v2509
    %v2576 = vpack.c.b16 %v2512, %v2511
    %v2577 = vpack.c.b16 %v2514, %v2513
    %v2578 = vpack.c.b16 %v2516, %v2515
    %v2579 = vpack.c.b16 %v2518, %v2517
    %v2580 = vpack.c.b16 %v2520, %v2519
    %v2581 = vpack.c.b16 %v2522, %v2521
    %v2582 = vpack.c.b16 %v2524, %v2523
    %v2583 = vpack.c.b16 %v2526, %v2525
    %v2584 = vpack.c.b16 %v2528, %v2527
    %v2585 = vpack.c.b16 %v2530, %v2529
    %v2586 = vpack.c.b16 %v2532, %v2531
    %v2587 = vpack.c.b16 %v2534, %v2533
    %v2588 = vpack.c.b16 %v2536, %v2535
    %v2589 = vpack.c.b16 %v2538, %v2537
    %v2590 = vpack.c.b16 %v2540, %v2539
    %v2591 = vpack.c.b16 %v2542, %v2541
    %v2592 = vpack.c.b16 %v2544, %v2543
    %v2593 = vpack.c.b16 %v2546, %v2545
    %v2594 = vpack.c.b16 %v2548, %v2547
    %v2595 = vpack.c.b16 %v2550, %v2549
    %v2596 = vpack.c.b16 %v2552, %v2551
    %v2597 = vpack.c.b16 %v2554, %v2553
    %v2598 = vpack.c.b16 %v2556, %v2555
    %v2599 = vpack.c.b16 %v2558, %v2557
    %v2600 = vpack.c.b16 %v2560, %v2559
    %v2601 = vpack.c.b16 %v2562, %v2561
    %v2602 = vpack.c.b16 %v2564, %v2563
    %v2603 = vpack.c.b16 %v2566, %v2565
    %v2604 = vpack.c.b16 %v2568, %v2567
    %v2642 = vsel %vm1480, %v2321, 0
    %v2645 = vsel %vm1480, %v2326, 0
    %v2648 = vsel %vm1480, %v2331, 0
    %v2651 = vsel %vm1480, %v2336, 0
    %v2654 = vsel %vm1480, %v2341, 0
    %v2656 = vsel %vm1480, %v1554, 0
    %2658 = vmatprep.subr.bf16.mxu0 0
    %2659 = vmatpush1.bf16.msra.mxu0 %v2569
    %2660 = vmatprep.subr.bf16.mxu0 0
    %2661 = vmatpush1.bf16.msra.mxu0 %v2570
    %2662 = vmatprep.subr.bf16.mxu0 0
    %2663 = vmatpush1.bf16.msra.mxu0 %v2571
    %2664 = vmatprep.subr.bf16.mxu0 0
    %2665 = vmatpush1.bf16.msra.mxu0 %v2572
    %2666 = vmatprep.subr.bf16.mxu0 0
    %2667 = vmatpush1.bf16.msra.mxu0 %v2573
    %2668 = vmatprep.subr.bf16.mxu0 0
    %2669 = vmatpush1.bf16.msra.mxu0 %v2574
    %2670 = vmatprep.subr.bf16.mxu0 0
    %2671 = vmatpush1.bf16.msra.mxu0 %v2575
    %2672 = vmatprep.subr.bf16.mxu0 0
    %2673 = vmatpush1.bf16.msra.mxu0 %v2576
    %2674 = vmatprep.subr.bf16.mxu0 0
    %2675 = vmatpush1.bf16.msra.mxu0 %v2577
    %2676 = vmatprep.subr.bf16.mxu0 0
    %2677 = vmatpush1.bf16.msra.mxu0 %v2578
    %2678 = vmatprep.subr.bf16.mxu0 0
    %2679 = vmatpush1.bf16.msra.mxu0 %v2579
    %2680 = vmatprep.subr.bf16.mxu0 0
    %2681 = vmatpush1.bf16.msra.mxu0 %v2580
    %2682 = vmatprep.subr.bf16.mxu0 0
    %2683 = vmatpush1.bf16.msra.mxu0 %v2581
    %2684 = vmatprep.subr.bf16.mxu0 0
    %2685 = vmatpush1.bf16.msra.mxu0 %v2582
    %2686 = vmatprep.subr.bf16.mxu0 0
    %2687 = vmatpush1.bf16.msra.mxu0 %v2583
    %2688 = vmatprep.subr.bf16.mxu0 0
    %2689 = vmatpush1.bf16.msra.mxu0 %v2584
    %2690 = vmatprep.mubr.bf16.mxu0 %v2318
    %2691 = vmatmul.mubr.bf16.gmra.mrb[0].mxu0 %v2317
    %v2692 = vpop.f32.mrb[0].mxu0
    %v2693 = vadd.f32 %v2423, %v2692
    %v2694 = vpop.f32.mrb[0].mxu0
    %v2695 = vpop.f32.mrb[0].mxu0
    %v2696 = vadd.f32 %v2423, %v2695
    %v2697 = vpop.f32.mrb[0].mxu0
    %2698 = vmatprep.mubr.bf16.mxu0 %v2323
    %2699 = vmatmul.mubr.bf16.gmra.mrb[0].mxu0 %v2322
    %v2700 = vpop.f32.mrb[0].mxu0
    %v2701 = vadd.f32 %v2423, %v2700
    %v2702 = vpop.f32.mrb[0].mxu0
    %v2703 = vpop.f32.mrb[0].mxu0
    %v2704 = vadd.f32 %v2423, %v2703
    %v2705 = vpop.f32.mrb[0].mxu0
    %2706 = vmatprep.mubr.bf16.mxu0 %v2328
    %2707 = vmatmul.mubr.bf16.gmra.mrb[0].mxu0 %v2327
    %v2708 = vpop.f32.mrb[0].mxu0
    %v2709 = vadd.f32 %v2423, %v2708
    %v2710 = vpop.f32.mrb[0].mxu0
    %v2711 = vpop.f32.mrb[0].mxu0
    %v2712 = vadd.f32 %v2423, %v2711
    %v2713 = vpop.f32.mrb[0].mxu0
    %2714 = vmatprep.mubr.bf16.mxu0 %v2333
    %2715 = vmatmul.mubr.bf16.gmra.mrb[0].mxu0 %v2332
    %v2716 = vpop.f32.mrb[0].mxu0
    %v2717 = vadd.f32 %v2423, %v2716
    %v2718 = vpop.f32.mrb[0].mxu0
    %v2719 = vpop.f32.mrb[0].mxu0
    %v2720 = vadd.f32 %v2423, %v2719
    %v2721 = vpop.f32.mrb[0].mxu0
    %2722 = vmatprep.mubr.bf16.mxu0 %v2338
    %2723 = vmatmul.mubr.bf16.gmra.mrb[0].mxu0 %v2337
    %v2724 = vpop.f32.mrb[0].mxu0
    %v2725 = vadd.f32 %v2423, %v2724
    %v2726 = vpop.f32.mrb[0].mxu0
    %v2727 = vpop.f32.mrb[0].mxu0
    %v2728 = vadd.f32 %v2423, %v2727
    %v2729 = vpop.f32.mrb[0].mxu0
    %2730 = vmatprep.mubr.bf16.mxu0 %v2343
    %2731 = vmatmul.mubr.bf16.gmra.mrb[0].mxu0 %v2342
    %v2732 = vpop.f32.mrb[0].mxu0
    %v2733 = vadd.f32 %v2423, %v2732
    %v2734 = vpop.f32.mrb[0].mxu0
    %v2735 = vpop.f32.mrb[0].mxu0
    %v2736 = vpop.f32.mrb[0].mxu0
    %2737 = vdwg.mxu0
    %2738 = vmatprep.subr.bf16.mxu0 0
    %2739 = vmatpush1.bf16.msra.mxu0 %v2585
    %2740 = vmatprep.subr.bf16.mxu0 0
    %2741 = vmatpush1.bf16.msra.mxu0 %v2586
    %2742 = vmatprep.subr.bf16.mxu0 0
    %2743 = vmatpush1.bf16.msra.mxu0 %v2587
    %2744 = vmatprep.subr.bf16.mxu0 0
    %2745 = vmatpush1.bf16.msra.mxu0 %v2588
    %2746 = vmatprep.subr.bf16.mxu0 0
    %2747 = vmatpush1.bf16.msra.mxu0 %v2589
    %2748 = vmatprep.subr.bf16.mxu0 0
    %2749 = vmatpush1.bf16.msra.mxu0 %v2590
    %2750 = vmatprep.subr.bf16.mxu0 0
    %2751 = vmatpush1.bf16.msra.mxu0 %v2591
    %2752 = vmatprep.subr.bf16.mxu0 0
    %2753 = vmatpush1.bf16.msra.mxu0 %v2592
    %2754 = vmatprep.subr.bf16.mxu0 0
    %2755 = vmatpush1.bf16.msra.mxu0 %v2593
    %2756 = vmatprep.subr.bf16.mxu0 0
    %2757 = vmatpush1.bf16.msra.mxu0 %v2594
    %2758 = vmatprep.subr.bf16.mxu0 0
    %2759 = vmatpush1.bf16.msra.mxu0 %v2595
    %2760 = vmatprep.subr.bf16.mxu0 0
    %2761 = vmatpush1.bf16.msra.mxu0 %v2596
    %2762 = vmatprep.subr.bf16.mxu0 0
    %2763 = vmatpush1.bf16.msra.mxu0 %v2597
    %2764 = vmatprep.subr.bf16.mxu0 0
    %2765 = vmatpush1.bf16.msra.mxu0 %v2598
    %2766 = vmatprep.subr.bf16.mxu0 0
    %2767 = vmatpush1.bf16.msra.mxu0 %v2599
    %2768 = vmatprep.subr.bf16.mxu0 0
    %2769 = vmatpush1.bf16.msra.mxu0 %v2600
    %2770 = vmatprep.mubr.bf16.mxu0 %v2320
    %2771 = vmatmul.mubr.bf16.gmra.mrb[0].mxu0 %v2319
    %v2772 = vpop.f32.mrb[0].mxu0
    %v2773 = vadd.f32 %v2693, %v2772
    %v2774 = vpop.f32.mrb[0].mxu0
    %v2775 = vpop.f32.mrb[0].mxu0
    %v2776 = vadd.f32 %v2696, %v2775
    %v2777 = vpop.f32.mrb[0].mxu0
    %2778 = vmatprep.mubr.bf16.mxu0 %v2325
    %2779 = vmatmul.mubr.bf16.gmra.mrb[0].mxu0 %v2324
    %v2780 = vpop.f32.mrb[0].mxu0
    %v2781 = vadd.f32 %v2701, %v2780
    %v2782 = vpop.f32.mrb[0].mxu0
    %v2783 = vpop.f32.mrb[0].mxu0
    %v2784 = vadd.f32 %v2704, %v2783
    %v2785 = vpop.f32.mrb[0].mxu0
    %2786 = vmatprep.mubr.bf16.mxu0 %v2330
    %2787 = vmatmul.mubr.bf16.gmra.mrb[0].mxu0 %v2329
    %v2788 = vpop.f32.mrb[0].mxu0
    %v2789 = vadd.f32 %v2709, %v2788
    %v2790 = vpop.f32.mrb[0].mxu0
    %v2791 = vpop.f32.mrb[0].mxu0
    %v2792 = vadd.f32 %v2712, %v2791
    %v2793 = vpop.f32.mrb[0].mxu0
    %2794 = vmatprep.mubr.bf16.mxu0 %v2335
    %2795 = vmatmul.mubr.bf16.gmra.mrb[0].mxu0 %v2334
    %v2796 = vpop.f32.mrb[0].mxu0
    %v2797 = vadd.f32 %v2717, %v2796
    %v2798 = vpop.f32.mrb[0].mxu0
    %v2799 = vpop.f32.mrb[0].mxu0
    %v2800 = vadd.f32 %v2720, %v2799
    %v2801 = vpop.f32.mrb[0].mxu0
    %2802 = vmatprep.mubr.bf16.mxu0 %v2340
    %2803 = vmatmul.mubr.bf16.gmra.mrb[0].mxu0 %v2339
    %v2804 = vpop.f32.mrb[0].mxu0
    %v2805 = vadd.f32 %v2725, %v2804
    %v2806 = vpop.f32.mrb[0].mxu0
    %v2807 = vpop.f32.mrb[0].mxu0
    %v2808 = vadd.f32 %v2728, %v2807
    %v2809 = vpop.f32.mrb[0].mxu0
    %2810 = vmatprep.mubr.bf16.mxu0 %v2345
    %2811 = vmatmul.mubr.bf16.gmra.mrb[0].mxu0 %v2344
    %v2812 = vpop.f32.mrb[0].mxu0
    %v2813 = vadd.f32 %v2733, %v2812
    %v2814 = vpop.f32.mrb[0].mxu0
    %v2815 = vpop.f32.mrb[0].mxu0
    %v2816 = vpop.f32.mrb[0].mxu0
    %2817 = vdwg.mxu0
    %2818 = vmatprep.subr.bf16.mxu0 0
    %2819 = vmatpush1.bf16.msra.mxu0 %v2601
    %2820 = vmatprep.subr.bf16.mxu0 0
    %2821 = vmatpush1.bf16.msra.mxu0 %v2602
    %2822 = vmatprep.subr.bf16.mxu0 0
    %2823 = vmatpush1.bf16.msra.mxu0 %v2603
    %2824 = vmatprep.subr.bf16.mxu0 0
    %2825 = vmatpush1.bf16.msra.mxu0 %v2604
    %2826 = vmatprep.subr.bf16.mxu0 0
    %2827 = vmatpush1.bf16.msra.mxu0 0
    %2828 = vmatprep.subr.bf16.mxu0 0
    %2829 = vmatpush1.bf16.msra.mxu0 0
    %2830 = vmatprep.subr.bf16.mxu0 0
    %2831 = vmatpush1.bf16.msra.mxu0 0
    %2832 = vmatprep.subr.bf16.mxu0 0
    %2833 = vmatpush1.bf16.msra.mxu0 0
    %2834 = vmatprep.subr.bf16.mxu0 0
    %2835 = vmatpush1.bf16.msra.mxu0 0
    %2836 = vmatprep.subr.bf16.mxu0 0
    %2837 = vmatpush1.bf16.msra.mxu0 0
    %2838 = vmatprep.subr.bf16.mxu0 0
    %2839 = vmatpush1.bf16.msra.mxu0 0
    %2840 = vmatprep.subr.bf16.mxu0 0
    %2841 = vmatpush1.bf16.msra.mxu0 0
    %2842 = vmatprep.subr.bf16.mxu0 0
    %2843 = vmatpush1.bf16.msra.mxu0 0
    %2844 = vmatprep.subr.bf16.mxu0 0
    %2845 = vmatpush1.bf16.msra.mxu0 0
    %2846 = vmatprep.subr.bf16.mxu0 0
    %2847 = vmatpush1.bf16.msra.mxu0 0
    %2848 = vmatprep.subr.bf16.mxu0 0
    %2849 = vmatpush1.bf16.msra.mxu0 0
    %2850 = vmatprep.mubr.bf16.mxu0 0
    %2851 = vmatmul.mubr.bf16.gmra.mrb[0].mxu0 %v2642
    %v2852 = vpop.f32.mrb[0].mxu0
    %v2853 = vadd.f32 %v2773, %v2852
    %v2854 = vpop.f32.mrb[0].mxu0
    %v2855 = vpop.f32.mrb[0].mxu0
    %v2856 = vadd.f32 %v2776, %v2855
    %v2857 = vpop.f32.mrb[0].mxu0
    %2858 = vmatprep.mubr.bf16.mxu0 0
    %2859 = vmatmul.mubr.bf16.gmra.mrb[0].mxu0 %v2645
    %v2860 = vpop.f32.mrb[0].mxu0
    %v2861 = vadd.f32 %v2781, %v2860
    %v2862 = vpop.f32.mrb[0].mxu0
    %v2863 = vpop.f32.mrb[0].mxu0
    %v2864 = vadd.f32 %v2784, %v2863
    %v2865 = vpop.f32.mrb[0].mxu0
    %2866 = vmatprep.mubr.bf16.mxu0 0
    %2867 = vmatmul.mubr.bf16.gmra.mrb[0].mxu0 %v2648
    %v2868 = vpop.f32.mrb[0].mxu0
    %v2869 = vadd.f32 %v2789, %v2868
    %v2870 = vpop.f32.mrb[0].mxu0
    %v2871 = vpop.f32.mrb[0].mxu0
    %v2872 = vadd.f32 %v2792, %v2871
    %v2873 = vpop.f32.mrb[0].mxu0
    %2874 = vmatprep.mubr.bf16.mxu0 0
    %2875 = vmatmul.mubr.bf16.gmra.mrb[0].mxu0 %v2651
    %v2876 = vpop.f32.mrb[0].mxu0
    %v2877 = vadd.f32 %v2797, %v2876
    %v2878 = vpop.f32.mrb[0].mxu0
    %v2879 = vpop.f32.mrb[0].mxu0
    %v2880 = vadd.f32 %v2800, %v2879
    %v2881 = vpop.f32.mrb[0].mxu0
    %2882 = vmatprep.mubr.bf16.mxu0 0
    %2883 = vmatmul.mubr.bf16.gmra.mrb[0].mxu0 %v2654
    %v2884 = vpop.f32.mrb[0].mxu0
    %v2885 = vadd.f32 %v2805, %v2884
    %v2886 = vpop.f32.mrb[0].mxu0
    %v2887 = vpop.f32.mrb[0].mxu0
    %v2888 = vadd.f32 %v2808, %v2887
    %v2889 = vpop.f32.mrb[0].mxu0
    %2890 = vmatprep.mubr.bf16.mxu0 0
    %2891 = vmatmul.mubr.bf16.gmra.mrb[0].mxu0 %v2656
    %v2892 = vpop.f32.mrb[0].mxu0
    %v2893 = vadd.f32 %v2813, %v2892
    %v2894 = vpop.f32.mrb[0].mxu0
    %v2895 = vpop.f32.mrb[0].mxu0
    %v2896 = vpop.f32.mrb[0].mxu0
    %2897 = vdwg.mxu0
    %v2898 = vmax.f32 %v2853, 0.0
    %v2899 = vmax.f32 %v2856, 0.0
    %v2900 = vmax.f32 %v2861, 0.0
    %v2901 = vmax.f32 %v2864, 0.0
    %v2902 = vmax.f32 %v2869, 0.0
    %v2903 = vmax.f32 %v2872, 0.0
    %v2904 = vmax.f32 %v2877, 0.0
    %v2905 = vmax.f32 %v2880, 0.0
    %v2906 = vmax.f32 %v2885, 0.0
    %v2907 = vmax.f32 %v2888, 0.0
    %v2908 = vmax.f32 %v2893, 0.0
    %v2910 = vrot.slane %v2898, 2
    %v2912 = vrot.slane %v2898, 4
    %v2914 = vrot.slane %v2898, 6
    %v2917 = vrot.slane %v2899, 2
    %v2919 = vrot.slane %v2899, 4
    %v2921 = vrot.slane %v2899, 6
    %v2924 = vrot.slane %v2900, 2
    %v2926 = vrot.slane %v2900, 4
    %v2928 = vrot.slane %v2900, 6
    %v2931 = vrot.slane %v2901, 2
    %v2933 = vrot.slane %v2901, 4
    %v2935 = vrot.slane %v2901, 6
    %v2938 = vrot.slane %v2902, 2
    %v2940 = vrot.slane %v2902, 4
    %v2942 = vrot.slane %v2902, 6
    %v2945 = vrot.slane %v2903, 2
    %v2947 = vrot.slane %v2903, 4
    %v2949 = vrot.slane %v2903, 6
    %v2952 = vrot.slane %v2904, 2
    %v2954 = vrot.slane %v2904, 4
    %v2956 = vrot.slane %v2904, 6
    %v2959 = vrot.slane %v2905, 2
    %v2961 = vrot.slane %v2905, 4
    %v2963 = vrot.slane %v2905, 6
    %v2966 = vrot.slane %v2906, 2
    %v2968 = vrot.slane %v2906, 4
    %v2970 = vrot.slane %v2906, 6
    %v2973 = vrot.slane %v2907, 2
    %v2975 = vrot.slane %v2907, 4
    %v2977 = vrot.slane %v2907, 6
    %v2980 = vrot.slane %v2908, 2
    %v2982 = vpack.c.bf16 %v2898, %v2898
    %v2983 = vpack.c.bf16 %v2910, %v2910
    %v2984 = vpack.c.bf16 %v2912, %v2912
    %v2985 = vpack.c.bf16 %v2914, %v2914
    %v2986 = vpack.c.bf16 %v2899, %v2899
    %v2987 = vpack.c.bf16 %v2917, %v2917
    %v2988 = vpack.c.bf16 %v2919, %v2919
    %v2989 = vpack.c.bf16 %v2921, %v2921
    %v2990 = vpack.c.bf16 %v2900, %v2900
    %v2991 = vpack.c.bf16 %v2924, %v2924
    %v2992 = vpack.c.bf16 %v2926, %v2926
    %v2993 = vpack.c.bf16 %v2928, %v2928
    %v2994 = vpack.c.bf16 %v2901, %v2901
    %v2995 = vpack.c.bf16 %v2931, %v2931
    %v2996 = vpack.c.bf16 %v2933, %v2933
    %v2997 = vpack.c.bf16 %v2935, %v2935
    %v2998 = vpack.c.bf16 %v2902, %v2902
    %v2999 = vpack.c.bf16 %v2938, %v2938
    %v3000 = vpack.c.bf16 %v2940, %v2940
    %v3001 = vpack.c.bf16 %v2942, %v2942
    %v3002 = vpack.c.bf16 %v2903, %v2903
    %v3003 = vpack.c.bf16 %v2945, %v2945
    %v3004 = vpack.c.bf16 %v2947, %v2947
    %v3005 = vpack.c.bf16 %v2949, %v2949
    %v3006 = vpack.c.bf16 %v2904, %v2904
    %v3007 = vpack.c.bf16 %v2952, %v2952
    %v3008 = vpack.c.bf16 %v2954, %v2954
    %v3009 = vpack.c.bf16 %v2956, %v2956
    %v3010 = vpack.c.bf16 %v2905, %v2905
    %v3011 = vpack.c.bf16 %v2959, %v2959
    %v3012 = vpack.c.bf16 %v2961, %v2961
    %v3013 = vpack.c.bf16 %v2963, %v2963
    %v3014 = vpack.c.bf16 %v2906, %v2906
    %v3015 = vpack.c.bf16 %v2966, %v2966
    %v3016 = vpack.c.bf16 %v2968, %v2968
    %v3017 = vpack.c.bf16 %v2970, %v2970
    %v3018 = vpack.c.bf16 %v2907, %v2907
    %v3019 = vpack.c.bf16 %v2973, %v2973
    %v3020 = vpack.c.bf16 %v2975, %v2975
    %v3021 = vpack.c.bf16 %v2977, %v2977
    %v3022 = vpack.c.bf16 %v2908, %v2908
    %v3023 = vpack.c.bf16 %v2980, %v2980
    %s3024 = smul.u32 4, 672
    %s3025 = smul.u32 %s3024, 4
    %s3026 = sshll.u32 %s3025, 4
    %3027 = dma.done [#allocation3], %s3026
    %v3028 = vld [vmem:[#allocation2] sm:$0xff]
    %v3029 = vld [vmem:[#allocation2 + $0x8] sm:$0xff]
    %v3030 = vld [vmem:[#allocation2 + $0x10] sm:$0xff]
    %v3031 = vld [vmem:[#allocation2 + $0x18] sm:$0xff]
    %v3032 = vld [vmem:[#allocation2 + $0x20] sm:$0xff]
    %v3033 = vld [vmem:[#allocation2 + $0x28] sm:$0xff]
    %v3034 = vld [vmem:[#allocation2 + $0x30] sm:$0xff]
    %v3035 = vld [vmem:[#allocation2 + $0x38] sm:$0xff]
    %v3036 = vld [vmem:[#allocation2 + $0x40] sm:$0xff]
    %v3037 = vld [vmem:[#allocation2 + $0x48] sm:$0xff]
    %v3038 = vld [vmem:[#allocation2 + $0x50] sm:$0xff]
    %v3039 = vld [vmem:[#allocation2 + $0x58] sm:$0xff]
    %v3040 = vld [vmem:[#allocation2 + $0x60] sm:$0xff]
    %v3041 = vld [vmem:[#allocation2 + $0x68] sm:$0xff]
    %v3042 = vld [vmem:[#allocation2 + $0x70] sm:$0xff]
    %v3043 = vld [vmem:[#allocation2 + $0x78] sm:$0xff]
    %v3044 = vld [vmem:[#allocation2 + $0x80] sm:$0xff]
    %v3045 = vld [vmem:[#allocation2 + $0x88] sm:$0xff]
    %v3046 = vld [vmem:[#allocation2 + $0x90] sm:$0xff]
    %v3047 = vld [vmem:[#allocation2 + $0x98] sm:$0xff]
    %v3048 = vld [vmem:[#allocation2 + $0xa0] sm:$0xff]
    %v3049 = vld [vmem:[#allocation2 + $0xa8] sm:$0xff]
    %v3050 = vld [vmem:[#allocation2 + $0xb0] sm:$0xff]
    %v3051 = vld [vmem:[#allocation2 + $0xb8] sm:$0xff]
    %v3052 = vld [vmem:[#allocation2 + $0xc0] sm:$0xff]
    %v3053 = vld [vmem:[#allocation2 + $0xc8] sm:$0xff]
    %v3054 = vld [vmem:[#allocation2 + $0xd0] sm:$0xff]
    %v3055 = vld [vmem:[#allocation2 + $0xd8] sm:$0xff]
    %v3056 = vld [vmem:[#allocation2 + $0xe0] sm:$0xff]
    %v3057 = vld [vmem:[#allocation2 + $0xe8] sm:$0xff]
    %v3058 = vld [vmem:[#allocation2 + $0xf0] sm:$0xff]
    %v3059 = vld [vmem:[#allocation2 + $0xf8] sm:$0xff]
    %v3060 = vld [vmem:[#allocation2 + $0x100] sm:$0xff]
    %v3061 = vld [vmem:[#allocation2 + $0x108] sm:$0xff]
    %v3062 = vld [vmem:[#allocation2 + $0x110] sm:$0xff]
    %v3063 = vld [vmem:[#allocation2 + $0x118] sm:$0xff]
    %v3064 = vld [vmem:[#allocation2 + $0x120] sm:$0xff]
    %v3065 = vld [vmem:[#allocation2 + $0x128] sm:$0xff]
    %v3066 = vld [vmem:[#allocation2 + $0x130] sm:$0xff]
    %v3067 = vld [vmem:[#allocation2 + $0x138] sm:$0xff]
    %v3068 = vld [vmem:[#allocation2 + $0x140] sm:$0xff]
    %v3069 = vld [vmem:[#allocation2 + $0x148] sm:$0xff]
    %v3070 = vld [vmem:[#allocation2 + $0x150] sm:$0xff]
    %v3071 = vld [vmem:[#allocation2 + $0x158] sm:$0xff]
    %v3072 = vld [vmem:[#allocation2 + $0x160] sm:$0xff]
    %v3073 = vld [vmem:[#allocation2 + $0x168] sm:$0xff]
    %v3074 = vld [vmem:[#allocation2 + $0x170] sm:$0xff]
    %v3075 = vld [vmem:[#allocation2 + $0x178] sm:$0xff]
    %v3076 = vld [vmem:[#allocation2 + $0x180] sm:$0xff]
    %v3077 = vld [vmem:[#allocation2 + $0x188] sm:$0xff]
    %v3078 = vld [vmem:[#allocation2 + $0x190] sm:$0xff]
    %v3079 = vld [vmem:[#allocation2 + $0x198] sm:$0xff]
    %v3080 = vld [vmem:[#allocation2 + $0x1a0] sm:$0xff]
    %v3081 = vld [vmem:[#allocation2 + $0x1a8] sm:$0xff]
    %v3082 = vld [vmem:[#allocation2 + $0x1b0] sm:$0xff]
    %v3083 = vld [vmem:[#allocation2 + $0x1b8] sm:$0xff]
    %v3084 = vld [vmem:[#allocation2 + $0x1c0] sm:$0xff]
    %v3085 = vld [vmem:[#allocation2 + $0x1c8] sm:$0xff]
    %v3086 = vld [vmem:[#allocation2 + $0x1d0] sm:$0xff]
    %v3087 = vld [vmem:[#allocation2 + $0x1d8] sm:$0xff]
    %v3088 = vld [vmem:[#allocation2 + $0x1e0] sm:$0xff]
    %v3089 = vld [vmem:[#allocation2 + $0x1e8] sm:$0xff]
    %v3090 = vld [vmem:[#allocation2 + $0x1f0] sm:$0xff]
    %v3091 = vld [vmem:[#allocation2 + $0x1f8] sm:$0xff]
    %v3092 = vld [vmem:[#allocation2 + $0x200] sm:$0xff]
    %v3093 = vld [vmem:[#allocation2 + $0x208] sm:$0xff]
    %v3094 = vld [vmem:[#allocation2 + $0x210] sm:$0xff]
    %v3095 = vld [vmem:[#allocation2 + $0x218] sm:$0xff]
    %v3096 = vld [vmem:[#allocation2 + $0x220] sm:$0xff]
    %v3097 = vld [vmem:[#allocation2 + $0x228] sm:$0xff]
    %v3098 = vld [vmem:[#allocation2 + $0x230] sm:$0xff]
    %v3099 = vld [vmem:[#allocation2 + $0x238] sm:$0xff]
    %v3100 = vld [vmem:[#allocation2 + $0x240] sm:$0xff]
    %v3101 = vld [vmem:[#allocation2 + $0x248] sm:$0xff]
    %v3102 = vld [vmem:[#allocation2 + $0x250] sm:$0xff]
    %v3103 = vld [vmem:[#allocation2 + $0x258] sm:$0xff]
    %v3104 = vld [vmem:[#allocation2 + $0x260] sm:$0xff]
    %v3105 = vld [vmem:[#allocation2 + $0x268] sm:$0xff]
    %v3106 = vld [vmem:[#allocation2 + $0x270] sm:$0xff]
    %v3107 = vld [vmem:[#allocation2 + $0x278] sm:$0xff]
    %v3108 = vld [vmem:[#allocation2 + $0x280] sm:$0xff]
    %v3109 = vld [vmem:[#allocation2 + $0x288] sm:$0xff]
    %v3110 = vld [vmem:[#allocation2 + $0x290] sm:$0xff]
    %v3111 = vld [vmem:[#allocation2 + $0x298] sm:$0xff]
    %v3112 = vld [vmem:[#allocation2 + $0x2a0] sm:$0xff]
    %v3113 = vld [vmem:[#allocation2 + $0x2a8] sm:$0xff]
    %v3114 = vld [vmem:[#allocation2 + $0x2b0] sm:$0xff]
    %v3115 = vld [vmem:[#allocation2 + $0x2b8] sm:$0xff]
    %v3116 = vld [vmem:[#allocation2 + $0x2c0] sm:$0xff]
    %v3117 = vld [vmem:[#allocation2 + $0x2c8] sm:$0xff]
    %v3118 = vld [vmem:[#allocation2 + $0x2d0] sm:$0xff]
    %v3119 = vld [vmem:[#allocation2 + $0x2d8] sm:$0xff]
    %v3120 = vld [vmem:[#allocation2 + $0x2e0] sm:$0xff]
    %v3121 = vld [vmem:[#allocation2 + $0x2e8] sm:$0xff]
    %v3122 = vld [vmem:[#allocation2 + $0x2f0] sm:$0xff]
    %v3123 = vld [vmem:[#allocation2 + $0x2f8] sm:$0xff]
    %v3124 = vld [vmem:[#allocation2 + $0x300] sm:$0xff]
    %v3125 = vld [vmem:[#allocation2 + $0x308] sm:$0xff]
    %v3126 = vld [vmem:[#allocation2 + $0x310] sm:$0xff]
    %v3127 = vld [vmem:[#allocation2 + $0x318] sm:$0xff]
    %v3128 = vld [vmem:[#allocation2 + $0x320] sm:$0xff]
    %v3129 = vld [vmem:[#allocation2 + $0x328] sm:$0xff]
    %v3130 = vld [vmem:[#allocation2 + $0x330] sm:$0xff]
    %v3131 = vld [vmem:[#allocation2 + $0x338] sm:$0xff]
    %v3132 = vld [vmem:[#allocation2 + $0x340] sm:$0xff]
    %v3133 = vld [vmem:[#allocation2 + $0x348] sm:$0xff]
    %v3134 = vld [vmem:[#allocation2 + $0x350] sm:$0xff]
    %v3135 = vld [vmem:[#allocation2 + $0x358] sm:$0xff]
    %v3136 = vld [vmem:[#allocation2 + $0x360] sm:$0xff]
    %v3137 = vld [vmem:[#allocation2 + $0x368] sm:$0xff]
    %v3138 = vld [vmem:[#allocation2 + $0x370] sm:$0xff]
    %v3139 = vld [vmem:[#allocation2 + $0x378] sm:$0xff]
    %v3140 = vld [vmem:[#allocation2 + $0x380] sm:$0xff]
    %v3141 = vld [vmem:[#allocation2 + $0x388] sm:$0xff]
    %v3142 = vld [vmem:[#allocation2 + $0x390] sm:$0xff]
    %v3143 = vld [vmem:[#allocation2 + $0x398] sm:$0xff]
    %v3144 = vld [vmem:[#allocation2 + $0x3a0] sm:$0xff]
    %v3145 = vld [vmem:[#allocation2 + $0x3a8] sm:$0xff]
    %v3146 = vld [vmem:[#allocation2 + $0x3b0] sm:$0xff]
    %v3147 = vld [vmem:[#allocation2 + $0x3b8] sm:$0xff]
    %v3148 = vld [vmem:[#allocation2 + $0x3c0] sm:$0xff]
    %v3149 = vld [vmem:[#allocation2 + $0x3c8] sm:$0xff]
    %v3150 = vld [vmem:[#allocation2 + $0x3d0] sm:$0xff]
    %v3151 = vld [vmem:[#allocation2 + $0x3d8] sm:$0xff]
    %v3152 = vld [vmem:[#allocation2 + $0x3e0] sm:$0xff]
    %v3153 = vld [vmem:[#allocation2 + $0x3e8] sm:$0xff]
    %v3154 = vld [vmem:[#allocation2 + $0x3f0] sm:$0xff]
    %v3155 = vld [vmem:[#allocation2 + $0x3f8] sm:$0xff]
    %v3156 = vld [vmem:[#allocation2 + $0x400] sm:$0xff]
    %v3157 = vld [vmem:[#allocation2 + $0x408] sm:$0xff]
    %v3158 = vld [vmem:[#allocation2 + $0x410] sm:$0xff]
    %v3159 = vld [vmem:[#allocation2 + $0x418] sm:$0xff]
    %v3160 = vld [vmem:[#allocation2 + $0x420] sm:$0xff]
    %v3161 = vld [vmem:[#allocation2 + $0x428] sm:$0xff]
    %v3162 = vld [vmem:[#allocation2 + $0x430] sm:$0xff]
    %v3163 = vld [vmem:[#allocation2 + $0x438] sm:$0xff]
    %v3164 = vld [vmem:[#allocation2 + $0x440] sm:$0xff]
    %v3165 = vld [vmem:[#allocation2 + $0x448] sm:$0xff]
    %v3166 = vld [vmem:[#allocation2 + $0x450] sm:$0xff]
    %v3167 = vld [vmem:[#allocation2 + $0x458] sm:$0xff]
    %v3168 = vld [vmem:[#allocation2 + $0x460] sm:$0xff]
    %v3169 = vld [vmem:[#allocation2 + $0x468] sm:$0xff]
    %v3170 = vld [vmem:[#allocation2 + $0x470] sm:$0xff]
    %v3171 = vld [vmem:[#allocation2 + $0x478] sm:$0xff]
    %v3172 = vld [vmem:[#allocation2 + $0x480] sm:$0xff]
    %v3173 = vld [vmem:[#allocation2 + $0x488] sm:$0xff]
    %v3174 = vld [vmem:[#allocation2 + $0x490] sm:$0xff]
    %v3175 = vld [vmem:[#allocation2 + $0x498] sm:$0xff]
    %v3176 = vld [vmem:[#allocation2 + $0x4a0] sm:$0xff]
    %v3177 = vld [vmem:[#allocation2 + $0x4a8] sm:$0xff]
    %v3178 = vld [vmem:[#allocation2 + $0x4b0] sm:$0xff]
    %v3179 = vld [vmem:[#allocation2 + $0x4b8] sm:$0xff]
    %v3180 = vld [vmem:[#allocation2 + $0x4c0] sm:$0xff]
    %v3181 = vld [vmem:[#allocation2 + $0x4c8] sm:$0xff]
    %v3182 = vld [vmem:[#allocation2 + $0x4d0] sm:$0xff]
    %v3183 = vld [vmem:[#allocation2 + $0x4d8] sm:$0xff]
    %v3184 = vld [vmem:[#allocation2 + $0x4e0] sm:$0xff]
    %v3185 = vld [vmem:[#allocation2 + $0x4e8] sm:$0xff]
    %v3186 = vld [vmem:[#allocation2 + $0x4f0] sm:$0xff]
    %v3187 = vld [vmem:[#allocation2 + $0x4f8] sm:$0xff]
    %v3188 = vld [vmem:[#allocation2 + $0x500] sm:$0xff]
    %v3189 = vld [vmem:[#allocation2 + $0x508] sm:$0xff]
    %v3190 = vld [vmem:[#allocation2 + $0x510] sm:$0xff]
    %v3191 = vld [vmem:[#allocation2 + $0x518] sm:$0xff]
    %v3192 = vld [vmem:[#allocation2 + $0x520] sm:$0xff]
    %v3193 = vld [vmem:[#allocation2 + $0x528] sm:$0xff]
    %v3194 = vld [vmem:[#allocation2 + $0x530] sm:$0xff]
    %v3195 = vld [vmem:[#allocation2 + $0x538] sm:$0xff]
    %v3196 = vld [vmem:[#allocation2 + $0x540] sm:$0xff]
    %v3197 = vld [vmem:[#allocation2 + $0x548] sm:$0xff]
    %v3198 = vld [vmem:[#allocation2 + $0x550] sm:$0xff]
    %v3199 = vld [vmem:[#allocation2 + $0x558] sm:$0xff]
    %v3200 = vld [vmem:[#allocation2 + $0x560] sm:$0xff]
    %v3201 = vld [vmem:[#allocation2 + $0x568] sm:$0xff]
    %v3202 = vld [vmem:[#allocation2 + $0x570] sm:$0xff]
    %v3203 = vld [vmem:[#allocation2 + $0x578] sm:$0xff]
    %v3204 = vld [vmem:[#allocation2 + $0x580] sm:$0xff]
    %v3205 = vld [vmem:[#allocation2 + $0x588] sm:$0xff]
    %v3206 = vld [vmem:[#allocation2 + $0x590] sm:$0xff]
    %v3207 = vld [vmem:[#allocation2 + $0x598] sm:$0xff]
    %v3208 = vld [vmem:[#allocation2 + $0x5a0] sm:$0xff]
    %v3209 = vld [vmem:[#allocation2 + $0x5a8] sm:$0xff]
    %v3210 = vld [vmem:[#allocation2 + $0x5b0] sm:$0xff]
    %v3211 = vld [vmem:[#allocation2 + $0x5b8] sm:$0xff]
    %v3212 = vld [vmem:[#allocation2 + $0x5c0] sm:$0xff]
    %v3213 = vld [vmem:[#allocation2 + $0x5c8] sm:$0xff]
    %v3214 = vld [vmem:[#allocation2 + $0x5d0] sm:$0xff]
    %v3215 = vld [vmem:[#allocation2 + $0x5d8] sm:$0xff]
    %v3216 = vld [vmem:[#allocation2 + $0x5e0] sm:$0xff]
    %v3217 = vld [vmem:[#allocation2 + $0x5e8] sm:$0xff]
    %v3218 = vld [vmem:[#allocation2 + $0x5f0] sm:$0xff]
    %v3219 = vld [vmem:[#allocation2 + $0x5f8] sm:$0xff]
    %v3220 = vld [vmem:[#allocation2 + $0x600] sm:$0xff]
    %v3221 = vld [vmem:[#allocation2 + $0x608] sm:$0xff]
    %v3222 = vld [vmem:[#allocation2 + $0x610] sm:$0xff]
    %v3223 = vld [vmem:[#allocation2 + $0x618] sm:$0xff]
    %v3224 = vld [vmem:[#allocation2 + $0x620] sm:$0xff]
    %v3225 = vld [vmem:[#allocation2 + $0x628] sm:$0xff]
    %v3226 = vld [vmem:[#allocation2 + $0x630] sm:$0xff]
    %v3227 = vld [vmem:[#allocation2 + $0x638] sm:$0xff]
    %v3228 = vld [vmem:[#allocation2 + $0x640] sm:$0xff]
    %v3229 = vld [vmem:[#allocation2 + $0x648] sm:$0xff]
    %v3230 = vld [vmem:[#allocation2 + $0x650] sm:$0xff]
    %v3231 = vld [vmem:[#allocation2 + $0x658] sm:$0xff]
    %v3232 = vld [vmem:[#allocation2 + $0x660] sm:$0xff]
    %v3233 = vld [vmem:[#allocation2 + $0x668] sm:$0xff]
    %v3234 = vld [vmem:[#allocation2 + $0x670] sm:$0xff]
    %v3235 = vld [vmem:[#allocation2 + $0x678] sm:$0xff]
    %v3236 = vld [vmem:[#allocation2 + $0x680] sm:$0xff]
    %v3237 = vld [vmem:[#allocation2 + $0x688] sm:$0xff]
    %v3238 = vld [vmem:[#allocation2 + $0x690] sm:$0xff]
    %v3239 = vld [vmem:[#allocation2 + $0x698] sm:$0xff]
    %v3240 = vld [vmem:[#allocation2 + $0x6a0] sm:$0xff]
    %v3241 = vld [vmem:[#allocation2 + $0x6a8] sm:$0xff]
    %v3242 = vld [vmem:[#allocation2 + $0x6b0] sm:$0xff]
    %v3243 = vld [vmem:[#allocation2 + $0x6b8] sm:$0xff]
    %v3244 = vld [vmem:[#allocation2 + $0x6c0] sm:$0xff]
    %v3245 = vld [vmem:[#allocation2 + $0x6c8] sm:$0xff]
    %v3246 = vld [vmem:[#allocation2 + $0x6d0] sm:$0xff]
    %v3247 = vld [vmem:[#allocation2 + $0x6d8] sm:$0xff]
    %v3248 = vld [vmem:[#allocation2 + $0x6e0] sm:$0xff]
    %v3249 = vld [vmem:[#allocation2 + $0x6e8] sm:$0xff]
    %v3250 = vld [vmem:[#allocation2 + $0x6f0] sm:$0xff]
    %v3251 = vld [vmem:[#allocation2 + $0x6f8] sm:$0xff]
    %v3252 = vld [vmem:[#allocation2 + $0x700] sm:$0xff]
    %v3253 = vld [vmem:[#allocation2 + $0x708] sm:$0xff]
    %v3254 = vld [vmem:[#allocation2 + $0x710] sm:$0xff]
    %v3255 = vld [vmem:[#allocation2 + $0x718] sm:$0xff]
    %v3256 = vld [vmem:[#allocation2 + $0x720] sm:$0xff]
    %v3257 = vld [vmem:[#allocation2 + $0x728] sm:$0xff]
    %v3258 = vld [vmem:[#allocation2 + $0x730] sm:$0xff]
    %v3259 = vld [vmem:[#allocation2 + $0x738] sm:$0xff]
    %v3260 = vld [vmem:[#allocation2 + $0x740] sm:$0xff]
    %v3261 = vld [vmem:[#allocation2 + $0x748] sm:$0xff]
    %v3262 = vld [vmem:[#allocation2 + $0x750] sm:$0xff]
    %v3263 = vld [vmem:[#allocation2 + $0x758] sm:$0xff]
    %v3264 = vld [vmem:[#allocation2 + $0x760] sm:$0xff]
    %v3265 = vld [vmem:[#allocation2 + $0x768] sm:$0xff]
    %v3266 = vld [vmem:[#allocation2 + $0x770] sm:$0xff]
    %v3267 = vld [vmem:[#allocation2 + $0x778] sm:$0xff]
    %v3268 = vld [vmem:[#allocation2 + $0x780] sm:$0xff]
    %v3269 = vld [vmem:[#allocation2 + $0x788] sm:$0xff]
    %v3270 = vld [vmem:[#allocation2 + $0x790] sm:$0xff]
    %v3271 = vld [vmem:[#allocation2 + $0x798] sm:$0xff]
    %v3272 = vld [vmem:[#allocation2 + $0x7a0] sm:$0xff]
    %v3273 = vld [vmem:[#allocation2 + $0x7a8] sm:$0xff]
    %v3274 = vld [vmem:[#allocation2 + $0x7b0] sm:$0xff]
    %v3275 = vld [vmem:[#allocation2 + $0x7b8] sm:$0xff]
    %v3276 = vld [vmem:[#allocation2 + $0x7c0] sm:$0xff]
    %v3277 = vld [vmem:[#allocation2 + $0x7c8] sm:$0xff]
    %v3278 = vld [vmem:[#allocation2 + $0x7d0] sm:$0xff]
    %v3279 = vld [vmem:[#allocation2 + $0x7d8] sm:$0xff]
    %v3280 = vld [vmem:[#allocation2 + $0x7e0] sm:$0xff]
    %v3281 = vld [vmem:[#allocation2 + $0x7e8] sm:$0xff]
    %v3282 = vld [vmem:[#allocation2 + $0x7f0] sm:$0xff]
    %v3283 = vld [vmem:[#allocation2 + $0x7f8] sm:$0xff]
    %v3284 = vld [vmem:[#allocation2 + $0x800] sm:$0xff]
    %v3285 = vld [vmem:[#allocation2 + $0x808] sm:$0xff]
    %v3286 = vld [vmem:[#allocation2 + $0x810] sm:$0xff]
    %v3287 = vld [vmem:[#allocation2 + $0x818] sm:$0xff]
    %v3288 = vld [vmem:[#allocation2 + $0x820] sm:$0xff]
    %v3289 = vld [vmem:[#allocation2 + $0x828] sm:$0xff]
    %v3290 = vld [vmem:[#allocation2 + $0x830] sm:$0xff]
    %v3291 = vld [vmem:[#allocation2 + $0x838] sm:$0xff]
    %v3292 = vld [vmem:[#allocation2 + $0x840] sm:$0xff]
    %v3293 = vld [vmem:[#allocation2 + $0x848] sm:$0xff]
    %v3294 = vld [vmem:[#allocation2 + $0x850] sm:$0xff]
    %v3295 = vld [vmem:[#allocation2 + $0x858] sm:$0xff]
    %v3296 = vld [vmem:[#allocation2 + $0x860] sm:$0xff]
    %v3297 = vld [vmem:[#allocation2 + $0x868] sm:$0xff]
    %v3298 = vld [vmem:[#allocation2 + $0x870] sm:$0xff]
    %v3299 = vld [vmem:[#allocation2 + $0x878] sm:$0xff]
    %v3300 = vld [vmem:[#allocation2 + $0x880] sm:$0xff]
    %v3301 = vld [vmem:[#allocation2 + $0x888] sm:$0xff]
    %v3302 = vld [vmem:[#allocation2 + $0x890] sm:$0xff]
    %v3303 = vld [vmem:[#allocation2 + $0x898] sm:$0xff]
    %v3304 = vld [vmem:[#allocation2 + $0x8a0] sm:$0xff]
    %v3305 = vld [vmem:[#allocation2 + $0x8a8] sm:$0xff]
    %v3306 = vld [vmem:[#allocation2 + $0x8b0] sm:$0xff]
    %v3307 = vld [vmem:[#allocation2 + $0x8b8] sm:$0xff]
    %v3308 = vld [vmem:[#allocation2 + $0x8c0] sm:$0xff]
    %v3309 = vld [vmem:[#allocation2 + $0x8c8] sm:$0xff]
    %v3310 = vld [vmem:[#allocation2 + $0x8d0] sm:$0xff]
    %v3311 = vld [vmem:[#allocation2 + $0x8d8] sm:$0xff]
    %v3312 = vld [vmem:[#allocation2 + $0x8e0] sm:$0xff]
    %v3313 = vld [vmem:[#allocation2 + $0x8e8] sm:$0xff]
    %v3314 = vld [vmem:[#allocation2 + $0x8f0] sm:$0xff]
    %v3315 = vld [vmem:[#allocation2 + $0x8f8] sm:$0xff]
    %v3316 = vld [vmem:[#allocation2 + $0x900] sm:$0xff]
    %v3317 = vld [vmem:[#allocation2 + $0x908] sm:$0xff]
    %v3318 = vld [vmem:[#allocation2 + $0x910] sm:$0xff]
    %v3319 = vld [vmem:[#allocation2 + $0x918] sm:$0xff]
    %v3320 = vld [vmem:[#allocation2 + $0x920] sm:$0xff]
    %v3321 = vld [vmem:[#allocation2 + $0x928] sm:$0xff]
    %v3322 = vld [vmem:[#allocation2 + $0x930] sm:$0xff]
    %v3323 = vld [vmem:[#allocation2 + $0x938] sm:$0xff]
    %v3324 = vld [vmem:[#allocation2 + $0x940] sm:$0xff]
    %v3325 = vld [vmem:[#allocation2 + $0x948] sm:$0xff]
    %v3326 = vld [vmem:[#allocation2 + $0x950] sm:$0xff]
    %v3327 = vld [vmem:[#allocation2 + $0x958] sm:$0xff]
    %v3328 = vld [vmem:[#allocation2 + $0x960] sm:$0xff]
    %v3329 = vld [vmem:[#allocation2 + $0x968] sm:$0xff]
    %v3330 = vld [vmem:[#allocation2 + $0x970] sm:$0xff]
    %v3331 = vld [vmem:[#allocation2 + $0x978] sm:$0xff]
    %v3332 = vld [vmem:[#allocation2 + $0x980] sm:$0xff]
    %v3333 = vld [vmem:[#allocation2 + $0x988] sm:$0xff]
    %v3334 = vld [vmem:[#allocation2 + $0x990] sm:$0xff]
    %v3335 = vld [vmem:[#allocation2 + $0x998] sm:$0xff]
    %v3336 = vld [vmem:[#allocation2 + $0x9a0] sm:$0xff]
    %v3337 = vld [vmem:[#allocation2 + $0x9a8] sm:$0xff]
    %v3338 = vld [vmem:[#allocation2 + $0x9b0] sm:$0xff]
    %v3339 = vld [vmem:[#allocation2 + $0x9b8] sm:$0xff]
    %v3340 = vld [vmem:[#allocation2 + $0x9c0] sm:$0xff]
    %v3341 = vld [vmem:[#allocation2 + $0x9c8] sm:$0xff]
    %v3342 = vld [vmem:[#allocation2 + $0x9d0] sm:$0xff]
    %v3343 = vld [vmem:[#allocation2 + $0x9d8] sm:$0xff]
    %v3344 = vld [vmem:[#allocation2 + $0x9e0] sm:$0xff]
    %v3345 = vld [vmem:[#allocation2 + $0x9e8] sm:$0xff]
    %v3346 = vld [vmem:[#allocation2 + $0x9f0] sm:$0xff]
    %v3347 = vld [vmem:[#allocation2 + $0x9f8] sm:$0xff]
    %v3348 = vld [vmem:[#allocation2 + $0xa00] sm:$0xff]
    %v3349 = vld [vmem:[#allocation2 + $0xa08] sm:$0xff]
    %v3350 = vld [vmem:[#allocation2 + $0xa10] sm:$0xff]
    %v3351 = vld [vmem:[#allocation2 + $0xa18] sm:$0xff]
    %v3352 = vld [vmem:[#allocation2 + $0xa20] sm:$0xff]
    %v3353 = vld [vmem:[#allocation2 + $0xa28] sm:$0xff]
    %v3354 = vld [vmem:[#allocation2 + $0xa30] sm:$0xff]
    %v3355 = vld [vmem:[#allocation2 + $0xa38] sm:$0xff]
    %v3356 = vld [vmem:[#allocation2 + $0xa40] sm:$0xff]
    %v3357 = vld [vmem:[#allocation2 + $0xa48] sm:$0xff]
    %v3358 = vld [vmem:[#allocation2 + $0xa50] sm:$0xff]
    %v3359 = vld [vmem:[#allocation2 + $0xa58] sm:$0xff]
    %v3360 = vld [vmem:[#allocation2 + $0xa60] sm:$0xff]
    %v3361 = vld [vmem:[#allocation2 + $0xa68] sm:$0xff]
    %v3362 = vld [vmem:[#allocation2 + $0xa70] sm:$0xff]
    %v3363 = vld [vmem:[#allocation2 + $0xa78] sm:$0xff]
    %v3364 = vld [vmem:[#allocation2 + $0xa80] sm:$0xff]
    %v3365 = vld [vmem:[#allocation2 + $0xa88] sm:$0xff]
    %v3366 = vld [vmem:[#allocation2 + $0xa90] sm:$0xff]
    %v3367 = vld [vmem:[#allocation2 + $0xa98] sm:$0xff]
    %v3368 = vld [vmem:[#allocation2 + $0xaa0] sm:$0xff]
    %v3369 = vld [vmem:[#allocation2 + $0xaa8] sm:$0xff]
    %v3370 = vld [vmem:[#allocation2 + $0xab0] sm:$0xff]
    %v3371 = vld [vmem:[#allocation2 + $0xab8] sm:$0xff]
    %v3372 = vld [vmem:[#allocation2 + $0xac0] sm:$0xff]
    %v3373 = vld [vmem:[#allocation2 + $0xac8] sm:$0xff]
    %v3374 = vld [vmem:[#allocation2 + $0xad0] sm:$0xff]
    %v3375 = vld [vmem:[#allocation2 + $0xad8] sm:$0xff]
    %v3376 = vld [vmem:[#allocation2 + $0xae0] sm:$0xff]
    %v3377 = vld [vmem:[#allocation2 + $0xae8] sm:$0xff]
    %v3378 = vld [vmem:[#allocation2 + $0xaf0] sm:$0xff]
    %v3379 = vld [vmem:[#allocation2 + $0xaf8] sm:$0xff]
    %v3380 = vld [vmem:[#allocation2 + $0xb00] sm:$0xff]
    %v3381 = vld [vmem:[#allocation2 + $0xb08] sm:$0xff]
    %v3382 = vld [vmem:[#allocation2 + $0xb10] sm:$0xff]
    %v3383 = vld [vmem:[#allocation2 + $0xb18] sm:$0xff]
    %v3384 = vld [vmem:[#allocation2 + $0xb20] sm:$0xff]
    %v3385 = vld [vmem:[#allocation2 + $0xb28] sm:$0xff]
    %v3386 = vld [vmem:[#allocation2 + $0xb30] sm:$0xff]
    %v3387 = vld [vmem:[#allocation2 + $0xb38] sm:$0xff]
    %v3388 = vld [vmem:[#allocation2 + $0xb40] sm:$0xff]
    %v3389 = vld [vmem:[#allocation2 + $0xb48] sm:$0xff]
    %v3390 = vld [vmem:[#allocation2 + $0xb50] sm:$0xff]
    %v3391 = vld [vmem:[#allocation2 + $0xb58] sm:$0xff]
    %v3392 = vld [vmem:[#allocation2 + $0xb60] sm:$0xff]
    %v3393 = vld [vmem:[#allocation2 + $0xb68] sm:$0xff]
    %v3394 = vld [vmem:[#allocation2 + $0xb70] sm:$0xff]
    %v3395 = vld [vmem:[#allocation2 + $0xb78] sm:$0xff]
    %v3396 = vld [vmem:[#allocation2 + $0xb80] sm:$0xff]
    %v3397 = vld [vmem:[#allocation2 + $0xb88] sm:$0xff]
    %v3398 = vld [vmem:[#allocation2 + $0xb90] sm:$0xff]
    %v3399 = vld [vmem:[#allocation2 + $0xb98] sm:$0xff]
    %v3400 = vld [vmem:[#allocation2 + $0xba0] sm:$0xff]
    %v3401 = vld [vmem:[#allocation2 + $0xba8] sm:$0xff]
    %v3402 = vld [vmem:[#allocation2 + $0xbb0] sm:$0xff]
    %v3403 = vld [vmem:[#allocation2 + $0xbb8] sm:$0xff]
    %v3404 = vld [vmem:[#allocation2 + $0xbc0] sm:$0xff]
    %v3405 = vld [vmem:[#allocation2 + $0xbc8] sm:$0xff]
    %v3406 = vld [vmem:[#allocation2 + $0xbd0] sm:$0xff]
    %v3407 = vld [vmem:[#allocation2 + $0xbd8] sm:$0xff]
    %v3408 = vld [vmem:[#allocation2 + $0xbe0] sm:$0xff]
    %v3409 = vld [vmem:[#allocation2 + $0xbe8] sm:$0xff]
    %v3410 = vld [vmem:[#allocation2 + $0xbf0] sm:$0xff]
    %v3411 = vld [vmem:[#allocation2 + $0xbf8] sm:$0xff]
    %v3412 = vld [vmem:[#allocation2 + $0xc00] sm:$0xff]
    %v3413 = vld [vmem:[#allocation2 + $0xc08] sm:$0xff]
    %v3414 = vld [vmem:[#allocation2 + $0xc10] sm:$0xff]
    %v3415 = vld [vmem:[#allocation2 + $0xc18] sm:$0xff]
    %v3416 = vld [vmem:[#allocation2 + $0xc20] sm:$0xff]
    %v3417 = vld [vmem:[#allocation2 + $0xc28] sm:$0xff]
    %v3418 = vld [vmem:[#allocation2 + $0xc30] sm:$0xff]
    %v3419 = vld [vmem:[#allocation2 + $0xc38] sm:$0xff]
    %v3420 = vld [vmem:[#allocation2 + $0xc40] sm:$0xff]
    %v3421 = vld [vmem:[#allocation2 + $0xc48] sm:$0xff]
    %v3422 = vld [vmem:[#allocation2 + $0xc50] sm:$0xff]
    %v3423 = vld [vmem:[#allocation2 + $0xc58] sm:$0xff]
    %v3424 = vld [vmem:[#allocation2 + $0xc60] sm:$0xff]
    %v3425 = vld [vmem:[#allocation2 + $0xc68] sm:$0xff]
    %v3426 = vld [vmem:[#allocation2 + $0xc70] sm:$0xff]
    %v3427 = vld [vmem:[#allocation2 + $0xc78] sm:$0xff]
    %v3428 = vld [vmem:[#allocation2 + $0xc80] sm:$0xff]
    %v3429 = vld [vmem:[#allocation2 + $0xc88] sm:$0xff]
    %v3430 = vld [vmem:[#allocation2 + $0xc90] sm:$0xff]
    %v3431 = vld [vmem:[#allocation2 + $0xc98] sm:$0xff]
    %v3432 = vld [vmem:[#allocation2 + $0xca0] sm:$0xff]
    %v3433 = vld [vmem:[#allocation2 + $0xca8] sm:$0xff]
    %v3434 = vld [vmem:[#allocation2 + $0xcb0] sm:$0xff]
    %v3435 = vld [vmem:[#allocation2 + $0xcb8] sm:$0xff]
    %v3436 = vld [vmem:[#allocation2 + $0xcc0] sm:$0xff]
    %v3437 = vld [vmem:[#allocation2 + $0xcc8] sm:$0xff]
    %v3438 = vld [vmem:[#allocation2 + $0xcd0] sm:$0xff]
    %v3439 = vld [vmem:[#allocation2 + $0xcd8] sm:$0xff]
    %v3440 = vld [vmem:[#allocation2 + $0xce0] sm:$0xff]
    %v3441 = vld [vmem:[#allocation2 + $0xce8] sm:$0xff]
    %v3442 = vld [vmem:[#allocation2 + $0xcf0] sm:$0xff]
    %v3443 = vld [vmem:[#allocation2 + $0xcf8] sm:$0xff]
    %v3444 = vld [vmem:[#allocation2 + $0xd00] sm:$0xff]
    %v3445 = vld [vmem:[#allocation2 + $0xd08] sm:$0xff]
    %v3446 = vld [vmem:[#allocation2 + $0xd10] sm:$0xff]
    %v3447 = vld [vmem:[#allocation2 + $0xd18] sm:$0xff]
    %v3448 = vld [vmem:[#allocation2 + $0xd20] sm:$0xff]
    %v3449 = vld [vmem:[#allocation2 + $0xd28] sm:$0xff]
    %v3450 = vld [vmem:[#allocation2 + $0xd30] sm:$0xff]
    %v3451 = vld [vmem:[#allocation2 + $0xd38] sm:$0xff]
    %v3452 = vld [vmem:[#allocation2 + $0xd40] sm:$0xff]
    %v3453 = vld [vmem:[#allocation2 + $0xd48] sm:$0xff]
    %v3454 = vld [vmem:[#allocation2 + $0xd50] sm:$0xff]
    %v3455 = vld [vmem:[#allocation2 + $0xd58] sm:$0xff]
    %v3456 = vld [vmem:[#allocation2 + $0xd60] sm:$0xff]
    %v3457 = vld [vmem:[#allocation2 + $0xd68] sm:$0xff]
    %v3458 = vld [vmem:[#allocation2 + $0xd70] sm:$0xff]
    %v3459 = vld [vmem:[#allocation2 + $0xd78] sm:$0xff]
    %v3460 = vld [vmem:[#allocation2 + $0xd80] sm:$0xff]
    %v3461 = vld [vmem:[#allocation2 + $0xd88] sm:$0xff]
    %v3462 = vld [vmem:[#allocation2 + $0xd90] sm:$0xff]
    %v3463 = vld [vmem:[#allocation2 + $0xd98] sm:$0xff]
    %v3464 = vld [vmem:[#allocation2 + $0xda0] sm:$0xff]
    %v3465 = vld [vmem:[#allocation2 + $0xda8] sm:$0xff]
    %v3466 = vld [vmem:[#allocation2 + $0xdb0] sm:$0xff]
    %v3467 = vld [vmem:[#allocation2 + $0xdb8] sm:$0xff]
    %v3468 = vld [vmem:[#allocation2 + $0xdc0] sm:$0xff]
    %v3469 = vld [vmem:[#allocation2 + $0xdc8] sm:$0xff]
    %v3470 = vld [vmem:[#allocation2 + $0xdd0] sm:$0xff]
    %v3471 = vld [vmem:[#allocation2 + $0xdd8] sm:$0xff]
    %v3472 = vld [vmem:[#allocation2 + $0xde0] sm:$0xff]
    %v3473 = vld [vmem:[#allocation2 + $0xde8] sm:$0xff]
    %v3474 = vld [vmem:[#allocation2 + $0xdf0] sm:$0xff]
    %v3475 = vld [vmem:[#allocation2 + $0xdf8] sm:$0xff]
    %v3476 = vld [vmem:[#allocation2 + $0xe00] sm:$0xff]
    %v3477 = vld [vmem:[#allocation2 + $0xe08] sm:$0xff]
    %v3478 = vld [vmem:[#allocation2 + $0xe10] sm:$0xff]
    %v3479 = vld [vmem:[#allocation2 + $0xe18] sm:$0xff]
    %v3480 = vld [vmem:[#allocation2 + $0xe20] sm:$0xff]
    %v3481 = vld [vmem:[#allocation2 + $0xe28] sm:$0xff]
    %v3482 = vld [vmem:[#allocation2 + $0xe30] sm:$0xff]
    %v3483 = vld [vmem:[#allocation2 + $0xe38] sm:$0xff]
    %v3484 = vld [vmem:[#allocation2 + $0xe40] sm:$0xff]
    %v3485 = vld [vmem:[#allocation2 + $0xe48] sm:$0xff]
    %v3486 = vld [vmem:[#allocation2 + $0xe50] sm:$0xff]
    %v3487 = vld [vmem:[#allocation2 + $0xe58] sm:$0xff]
    %v3488 = vld [vmem:[#allocation2 + $0xe60] sm:$0xff]
    %v3489 = vld [vmem:[#allocation2 + $0xe68] sm:$0xff]
    %v3490 = vld [vmem:[#allocation2 + $0xe70] sm:$0xff]
    %v3491 = vld [vmem:[#allocation2 + $0xe78] sm:$0xff]
    %v3492 = vld [vmem:[#allocation2 + $0xe80] sm:$0xff]
    %v3493 = vld [vmem:[#allocation2 + $0xe88] sm:$0xff]
    %v3494 = vld [vmem:[#allocation2 + $0xe90] sm:$0xff]
    %v3495 = vld [vmem:[#allocation2 + $0xe98] sm:$0xff]
    %v3496 = vld [vmem:[#allocation2 + $0xea0] sm:$0xff]
    %v3497 = vld [vmem:[#allocation2 + $0xea8] sm:$0xff]
    %v3498 = vld [vmem:[#allocation2 + $0xeb0] sm:$0xff]
    %v3499 = vld [vmem:[#allocation2 + $0xeb8] sm:$0xff]
    %v3500 = vld [vmem:[#allocation2 + $0xec0] sm:$0xff]
    %v3501 = vld [vmem:[#allocation2 + $0xec8] sm:$0xff]
    %v3502 = vld [vmem:[#allocation2 + $0xed0] sm:$0xff]
    %v3503 = vld [vmem:[#allocation2 + $0xed8] sm:$0xff]
    %v3504 = vld [vmem:[#allocation2 + $0xee0] sm:$0xff]
    %v3505 = vld [vmem:[#allocation2 + $0xee8] sm:$0xff]
    %v3506 = vld [vmem:[#allocation2 + $0xef0] sm:$0xff]
    %v3507 = vld [vmem:[#allocation2 + $0xef8] sm:$0xff]
    %v3508 = vld [vmem:[#allocation2 + $0xf00] sm:$0xff]
    %v3509 = vld [vmem:[#allocation2 + $0xf08] sm:$0xff]
    %v3510 = vld [vmem:[#allocation2 + $0xf10] sm:$0xff]
    %v3511 = vld [vmem:[#allocation2 + $0xf18] sm:$0xff]
    %v3512 = vld [vmem:[#allocation2 + $0xf20] sm:$0xff]
    %v3513 = vld [vmem:[#allocation2 + $0xf28] sm:$0xff]
    %v3514 = vld [vmem:[#allocation2 + $0xf30] sm:$0xff]
    %v3515 = vld [vmem:[#allocation2 + $0xf38] sm:$0xff]
    %v3516 = vld [vmem:[#allocation2 + $0xf40] sm:$0xff]
    %v3517 = vld [vmem:[#allocation2 + $0xf48] sm:$0xff]
    %v3518 = vld [vmem:[#allocation2 + $0xf50] sm:$0xff]
    %v3519 = vld [vmem:[#allocation2 + $0xf58] sm:$0xff]
    %v3520 = vld [vmem:[#allocation2 + $0xf60] sm:$0xff]
    %v3521 = vld [vmem:[#allocation2 + $0xf68] sm:$0xff]
    %v3522 = vld [vmem:[#allocation2 + $0xf70] sm:$0xff]
    %v3523 = vld [vmem:[#allocation2 + $0xf78] sm:$0xff]
    %v3524 = vld [vmem:[#allocation2 + $0xf80] sm:$0xff]
    %v3525 = vld [vmem:[#allocation2 + $0xf88] sm:$0xff]
    %v3526 = vld [vmem:[#allocation2 + $0xf90] sm:$0xff]
    %v3527 = vld [vmem:[#allocation2 + $0xf98] sm:$0xff]
    %v3528 = vld [vmem:[#allocation2 + $0xfa0] sm:$0xff]
    %v3529 = vld [vmem:[#allocation2 + $0xfa8] sm:$0xff]
    %v3530 = vld [vmem:[#allocation2 + $0xfb0] sm:$0xff]
    %v3531 = vld [vmem:[#allocation2 + $0xfb8] sm:$0xff]
    %v3532 = vld [vmem:[#allocation2 + $0xfc0] sm:$0xff]
    %v3533 = vld [vmem:[#allocation2 + $0xfc8] sm:$0xff]
    %v3534 = vld [vmem:[#allocation2 + $0xfd0] sm:$0xff]
    %v3535 = vld [vmem:[#allocation2 + $0xfd8] sm:$0xff]
    %v3536 = vld [vmem:[#allocation2 + $0xfe0] sm:$0xff]
    %v3537 = vld [vmem:[#allocation2 + $0xfe8] sm:$0xff]
    %v3538 = vld [vmem:[#allocation2 + $0xff0] sm:$0xff]
    %v3539 = vld [vmem:[#allocation2 + $0xff8] sm:$0xff]
    %v3540 = vld [vmem:[#allocation2 + $0x1000] sm:$0xff]
    %v3541 = vld [vmem:[#allocation2 + $0x1008] sm:$0xff]
    %v3542 = vld [vmem:[#allocation2 + $0x1010] sm:$0xff]
    %v3543 = vld [vmem:[#allocation2 + $0x1018] sm:$0xff]
    %v3544 = vld [vmem:[#allocation2 + $0x1020] sm:$0xff]
    %v3545 = vld [vmem:[#allocation2 + $0x1028] sm:$0xff]
    %v3546 = vld [vmem:[#allocation2 + $0x1030] sm:$0xff]
    %v3547 = vld [vmem:[#allocation2 + $0x1038] sm:$0xff]
    %v3548 = vld [vmem:[#allocation2 + $0x1040] sm:$0xff]
    %v3549 = vld [vmem:[#allocation2 + $0x1048] sm:$0xff]
    %v3550 = vld [vmem:[#allocation2 + $0x1050] sm:$0xff]
    %v3551 = vld [vmem:[#allocation2 + $0x1058] sm:$0xff]
    %v3552 = vld [vmem:[#allocation2 + $0x1060] sm:$0xff]
    %v3553 = vld [vmem:[#allocation2 + $0x1068] sm:$0xff]
    %v3554 = vld [vmem:[#allocation2 + $0x1070] sm:$0xff]
    %v3555 = vld [vmem:[#allocation2 + $0x1078] sm:$0xff]
    %v3556 = vld [vmem:[#allocation2 + $0x1080] sm:$0xff]
    %v3557 = vld [vmem:[#allocation2 + $0x1088] sm:$0xff]
    %v3558 = vld [vmem:[#allocation2 + $0x1090] sm:$0xff]
    %v3559 = vld [vmem:[#allocation2 + $0x1098] sm:$0xff]
    %v3560 = vld [vmem:[#allocation2 + $0x10a0] sm:$0xff]
    %v3561 = vld [vmem:[#allocation2 + $0x10a8] sm:$0xff]
    %v3562 = vld [vmem:[#allocation2 + $0x10b0] sm:$0xff]
    %v3563 = vld [vmem:[#allocation2 + $0x10b8] sm:$0xff]
    %v3564 = vld [vmem:[#allocation2 + $0x10c0] sm:$0xff]
    %v3565 = vld [vmem:[#allocation2 + $0x10c8] sm:$0xff]
    %v3566 = vld [vmem:[#allocation2 + $0x10d0] sm:$0xff]
    %v3567 = vld [vmem:[#allocation2 + $0x10d8] sm:$0xff]
    %v3568 = vld [vmem:[#allocation2 + $0x10e0] sm:$0xff]
    %v3569 = vld [vmem:[#allocation2 + $0x10e8] sm:$0xff]
    %v3570 = vld [vmem:[#allocation2 + $0x10f0] sm:$0xff]
    %v3571 = vld [vmem:[#allocation2 + $0x10f8] sm:$0xff]
    %v3572 = vld [vmem:[#allocation2 + $0x1100] sm:$0xff]
    %v3573 = vld [vmem:[#allocation2 + $0x1108] sm:$0xff]
    %v3574 = vld [vmem:[#allocation2 + $0x1110] sm:$0xff]
    %v3575 = vld [vmem:[#allocation2 + $0x1118] sm:$0xff]
    %v3576 = vld [vmem:[#allocation2 + $0x1120] sm:$0xff]
    %v3577 = vld [vmem:[#allocation2 + $0x1128] sm:$0xff]
    %v3578 = vld [vmem:[#allocation2 + $0x1130] sm:$0xff]
    %v3579 = vld [vmem:[#allocation2 + $0x1138] sm:$0xff]
    %v3580 = vld [vmem:[#allocation2 + $0x1140] sm:$0xff]
    %v3581 = vld [vmem:[#allocation2 + $0x1148] sm:$0xff]
    %v3582 = vld [vmem:[#allocation2 + $0x1150] sm:$0xff]
    %v3583 = vld [vmem:[#allocation2 + $0x1158] sm:$0xff]
    %v3584 = vld [vmem:[#allocation2 + $0x1160] sm:$0xff]
    %v3585 = vld [vmem:[#allocation2 + $0x1168] sm:$0xff]
    %v3586 = vld [vmem:[#allocation2 + $0x1170] sm:$0xff]
    %v3587 = vld [vmem:[#allocation2 + $0x1178] sm:$0xff]
    %v3588 = vld [vmem:[#allocation2 + $0x1180] sm:$0xff]
    %v3589 = vld [vmem:[#allocation2 + $0x1188] sm:$0xff]
    %v3590 = vld [vmem:[#allocation2 + $0x1190] sm:$0xff]
    %v3591 = vld [vmem:[#allocation2 + $0x1198] sm:$0xff]
    %v3592 = vld [vmem:[#allocation2 + $0x11a0] sm:$0xff]
    %v3593 = vld [vmem:[#allocation2 + $0x11a8] sm:$0xff]
    %v3594 = vld [vmem:[#allocation2 + $0x11b0] sm:$0xff]
    %v3595 = vld [vmem:[#allocation2 + $0x11b8] sm:$0xff]
    %v3596 = vld [vmem:[#allocation2 + $0x11c0] sm:$0xff]
    %v3597 = vld [vmem:[#allocation2 + $0x11c8] sm:$0xff]
    %v3598 = vld [vmem:[#allocation2 + $0x11d0] sm:$0xff]
    %v3599 = vld [vmem:[#allocation2 + $0x11d8] sm:$0xff]
    %v3600 = vld [vmem:[#allocation2 + $0x11e0] sm:$0xff]
    %v3601 = vld [vmem:[#allocation2 + $0x11e8] sm:$0xff]
    %v3602 = vld [vmem:[#allocation2 + $0x11f0] sm:$0xff]
    %v3603 = vld [vmem:[#allocation2 + $0x11f8] sm:$0xff]
    %v3604 = vld [vmem:[#allocation2 + $0x1200] sm:$0xff]
    %v3605 = vld [vmem:[#allocation2 + $0x1208] sm:$0xff]
    %v3606 = vld [vmem:[#allocation2 + $0x1210] sm:$0xff]
    %v3607 = vld [vmem:[#allocation2 + $0x1218] sm:$0xff]
    %v3608 = vld [vmem:[#allocation2 + $0x1220] sm:$0xff]
    %v3609 = vld [vmem:[#allocation2 + $0x1228] sm:$0xff]
    %v3610 = vld [vmem:[#allocation2 + $0x1230] sm:$0xff]
    %v3611 = vld [vmem:[#allocation2 + $0x1238] sm:$0xff]
    %v3612 = vld [vmem:[#allocation2 + $0x1240] sm:$0xff]
    %v3613 = vld [vmem:[#allocation2 + $0x1248] sm:$0xff]
    %v3614 = vld [vmem:[#allocation2 + $0x1250] sm:$0xff]
    %v3615 = vld [vmem:[#allocation2 + $0x1258] sm:$0xff]
    %v3616 = vld [vmem:[#allocation2 + $0x1260] sm:$0xff]
    %v3617 = vld [vmem:[#allocation2 + $0x1268] sm:$0xff]
    %v3618 = vld [vmem:[#allocation2 + $0x1270] sm:$0xff]
    %v3619 = vld [vmem:[#allocation2 + $0x1278] sm:$0xff]
    %v3620 = vld [vmem:[#allocation2 + $0x1280] sm:$0xff]
    %v3621 = vld [vmem:[#allocation2 + $0x1288] sm:$0xff]
    %v3622 = vld [vmem:[#allocation2 + $0x1290] sm:$0xff]
    %v3623 = vld [vmem:[#allocation2 + $0x1298] sm:$0xff]
    %v3624 = vld [vmem:[#allocation2 + $0x12a0] sm:$0xff]
    %v3625 = vld [vmem:[#allocation2 + $0x12a8] sm:$0xff]
    %v3626 = vld [vmem:[#allocation2 + $0x12b0] sm:$0xff]
    %v3627 = vld [vmem:[#allocation2 + $0x12b8] sm:$0xff]
    %v3628 = vld [vmem:[#allocation2 + $0x12c0] sm:$0xff]
    %v3629 = vld [vmem:[#allocation2 + $0x12c8] sm:$0xff]
    %v3630 = vld [vmem:[#allocation2 + $0x12d0] sm:$0xff]
    %v3631 = vld [vmem:[#allocation2 + $0x12d8] sm:$0xff]
    %v3632 = vld [vmem:[#allocation2 + $0x12e0] sm:$0xff]
    %v3633 = vld [vmem:[#allocation2 + $0x12e8] sm:$0xff]
    %v3634 = vld [vmem:[#allocation2 + $0x12f0] sm:$0xff]
    %v3635 = vld [vmem:[#allocation2 + $0x12f8] sm:$0xff]
    %v3636 = vld [vmem:[#allocation2 + $0x1300] sm:$0xff]
    %v3637 = vld [vmem:[#allocation2 + $0x1308] sm:$0xff]
    %v3638 = vld [vmem:[#allocation2 + $0x1310] sm:$0xff]
    %v3639 = vld [vmem:[#allocation2 + $0x1318] sm:$0xff]
    %v3640 = vld [vmem:[#allocation2 + $0x1320] sm:$0xff]
    %v3641 = vld [vmem:[#allocation2 + $0x1328] sm:$0xff]
    %v3642 = vld [vmem:[#allocation2 + $0x1330] sm:$0xff]
    %v3643 = vld [vmem:[#allocation2 + $0x1338] sm:$0xff]
    %v3644 = vld [vmem:[#allocation2 + $0x1340] sm:$0xff]
    %v3645 = vld [vmem:[#allocation2 + $0x1348] sm:$0xff]
    %v3646 = vld [vmem:[#allocation2 + $0x1350] sm:$0xff]
    %v3647 = vld [vmem:[#allocation2 + $0x1358] sm:$0xff]
    %v3648 = vld [vmem:[#allocation2 + $0x1360] sm:$0xff]
    %v3649 = vld [vmem:[#allocation2 + $0x1368] sm:$0xff]
    %v3650 = vld [vmem:[#allocation2 + $0x1370] sm:$0xff]
    %v3651 = vld [vmem:[#allocation2 + $0x1378] sm:$0xff]
    %v3652 = vld [vmem:[#allocation2 + $0x1380] sm:$0xff]
    %v3653 = vld [vmem:[#allocation2 + $0x1388] sm:$0xff]
    %v3654 = vld [vmem:[#allocation2 + $0x1390] sm:$0xff]
    %v3655 = vld [vmem:[#allocation2 + $0x1398] sm:$0xff]
    %v3656 = vld [vmem:[#allocation2 + $0x13a0] sm:$0xff]
    %v3657 = vld [vmem:[#allocation2 + $0x13a8] sm:$0xff]
    %v3658 = vld [vmem:[#allocation2 + $0x13b0] sm:$0xff]
    %v3659 = vld [vmem:[#allocation2 + $0x13b8] sm:$0xff]
    %v3660 = vld [vmem:[#allocation2 + $0x13c0] sm:$0xff]
    %v3661 = vld [vmem:[#allocation2 + $0x13c8] sm:$0xff]
    %v3662 = vld [vmem:[#allocation2 + $0x13d0] sm:$0xff]
    %v3663 = vld [vmem:[#allocation2 + $0x13d8] sm:$0xff]
    %v3664 = vld [vmem:[#allocation2 + $0x13e0] sm:$0xff]
    %v3665 = vld [vmem:[#allocation2 + $0x13e8] sm:$0xff]
    %v3666 = vld [vmem:[#allocation2 + $0x13f0] sm:$0xff]
    %v3667 = vld [vmem:[#allocation2 + $0x13f8] sm:$0xff]
    %v3668 = vld [vmem:[#allocation2 + $0x1400] sm:$0xff]
    %v3669 = vld [vmem:[#allocation2 + $0x1408] sm:$0xff]
    %v3670 = vld [vmem:[#allocation2 + $0x1410] sm:$0xff]
    %v3671 = vld [vmem:[#allocation2 + $0x1418] sm:$0xff]
    %v3672 = vld [vmem:[#allocation2 + $0x1420] sm:$0xff]
    %v3673 = vld [vmem:[#allocation2 + $0x1428] sm:$0xff]
    %v3674 = vld [vmem:[#allocation2 + $0x1430] sm:$0xff]
    %v3675 = vld [vmem:[#allocation2 + $0x1438] sm:$0xff]
    %v3676 = vld [vmem:[#allocation2 + $0x1440] sm:$0xff]
    %v3677 = vld [vmem:[#allocation2 + $0x1448] sm:$0xff]
    %v3678 = vld [vmem:[#allocation2 + $0x1450] sm:$0xff]
    %v3679 = vld [vmem:[#allocation2 + $0x1458] sm:$0xff]
    %v3680 = vld [vmem:[#allocation2 + $0x1460] sm:$0xff]
    %v3681 = vld [vmem:[#allocation2 + $0x1468] sm:$0xff]
    %v3682 = vld [vmem:[#allocation2 + $0x1470] sm:$0xff]
    %v3683 = vld [vmem:[#allocation2 + $0x1478] sm:$0xff]
    %v3684 = vld [vmem:[#allocation2 + $0x1480] sm:$0xff]
    %v3685 = vld [vmem:[#allocation2 + $0x1488] sm:$0xff]
    %v3686 = vld [vmem:[#allocation2 + $0x1490] sm:$0xff]
    %v3687 = vld [vmem:[#allocation2 + $0x1498] sm:$0xff]
    %v3688 = vld [vmem:[#allocation2 + $0x14a0] sm:$0xff]
    %v3689 = vld [vmem:[#allocation2 + $0x14a8] sm:$0xff]
    %v3690 = vld [vmem:[#allocation2 + $0x14b0] sm:$0xff]
    %v3691 = vld [vmem:[#allocation2 + $0x14b8] sm:$0xff]
    %v3692 = vld [vmem:[#allocation2 + $0x14c0] sm:$0xff]
    %v3693 = vld [vmem:[#allocation2 + $0x14c8] sm:$0xff]
    %v3694 = vld [vmem:[#allocation2 + $0x14d0] sm:$0xff]
    %v3695 = vld [vmem:[#allocation2 + $0x14d8] sm:$0xff]
    %v3696 = vld [vmem:[#allocation2 + $0x14e0] sm:$0xff]
    %v3697 = vld [vmem:[#allocation2 + $0x14e8] sm:$0xff]
    %v3698 = vld [vmem:[#allocation2 + $0x14f0] sm:$0xff]
    %v3699 = vld [vmem:[#allocation2 + $0x14f8] sm:$0xff]
    %v3700 = vld [vmem:[#allocation2 + $0x1500] sm:$0xff]
    %v3701 = vld [vmem:[#allocation2 + $0x1508] sm:$0xff]
    %v3702 = vld [vmem:[#allocation2 + $0x1510] sm:$0xff]
    %v3703 = vld [vmem:[#allocation2 + $0x1518] sm:$0xff]
    %v3704 = vld [vmem:[#allocation2 + $0x1520] sm:$0xff]
    %v3705 = vld [vmem:[#allocation2 + $0x1528] sm:$0xff]
    %v3706 = vld [vmem:[#allocation2 + $0x1530] sm:$0xff]
    %v3707 = vld [vmem:[#allocation2 + $0x1538] sm:$0xff]
    %v3708 = vld [vmem:[#allocation2 + $0x1540] sm:$0xff]
    %v3709 = vld [vmem:[#allocation2 + $0x1548] sm:$0xff]
    %v3710 = vld [vmem:[#allocation2 + $0x1550] sm:$0xff]
    %v3711 = vld [vmem:[#allocation2 + $0x1558] sm:$0xff]
    %v3712 = vld [vmem:[#allocation2 + $0x1560] sm:$0xff]
    %v3713 = vld [vmem:[#allocation2 + $0x1568] sm:$0xff]
    %v3714 = vld [vmem:[#allocation2 + $0x1570] sm:$0xff]
    %v3715 = vld [vmem:[#allocation2 + $0x1578] sm:$0xff]
    %v3716 = vld [vmem:[#allocation2 + $0x1580] sm:$0xff]
    %v3717 = vld [vmem:[#allocation2 + $0x1588] sm:$0xff]
    %v3718 = vld [vmem:[#allocation2 + $0x1590] sm:$0xff]
    %v3719 = vld [vmem:[#allocation2 + $0x1598] sm:$0xff]
    %v3720 = vld [vmem:[#allocation2 + $0x15a0] sm:$0xff]
    %v3721 = vld [vmem:[#allocation2 + $0x15a8] sm:$0xff]
    %v3722 = vld [vmem:[#allocation2 + $0x15b0] sm:$0xff]
    %v3723 = vld [vmem:[#allocation2 + $0x15b8] sm:$0xff]
    %v3724 = vld [vmem:[#allocation2 + $0x15c0] sm:$0xff]
    %v3725 = vld [vmem:[#allocation2 + $0x15c8] sm:$0xff]
    %v3726 = vld [vmem:[#allocation2 + $0x15d0] sm:$0xff]
    %v3727 = vld [vmem:[#allocation2 + $0x15d8] sm:$0xff]
    %v3728 = vld [vmem:[#allocation2 + $0x15e0] sm:$0xff]
    %v3729 = vld [vmem:[#allocation2 + $0x15e8] sm:$0xff]
    %v3730 = vld [vmem:[#allocation2 + $0x15f0] sm:$0xff]
    %v3731 = vld [vmem:[#allocation2 + $0x15f8] sm:$0xff]
    %v3732 = vld [vmem:[#allocation2 + $0x1600] sm:$0xff]
    %v3733 = vld [vmem:[#allocation2 + $0x1608] sm:$0xff]
    %v3734 = vld [vmem:[#allocation2 + $0x1610] sm:$0xff]
    %v3735 = vld [vmem:[#allocation2 + $0x1618] sm:$0xff]
    %v3736 = vld [vmem:[#allocation2 + $0x1620] sm:$0xff]
    %v3737 = vld [vmem:[#allocation2 + $0x1628] sm:$0xff]
    %v3738 = vld [vmem:[#allocation2 + $0x1630] sm:$0xff]
    %v3739 = vld [vmem:[#allocation2 + $0x1638] sm:$0xff]
    %v3740 = vld [vmem:[#allocation2 + $0x1640] sm:$0xff]
    %v3741 = vld [vmem:[#allocation2 + $0x1648] sm:$0xff]
    %v3742 = vld [vmem:[#allocation2 + $0x1650] sm:$0xff]
    %v3743 = vld [vmem:[#allocation2 + $0x1658] sm:$0xff]
    %v3744 = vld [vmem:[#allocation2 + $0x1660] sm:$0xff]
    %v3745 = vld [vmem:[#allocation2 + $0x1668] sm:$0xff]
    %v3746 = vld [vmem:[#allocation2 + $0x1670] sm:$0xff]
    %v3747 = vld [vmem:[#allocation2 + $0x1678] sm:$0xff]
    %v3748 = vld [vmem:[#allocation2 + $0x1680] sm:$0xff]
    %v3749 = vld [vmem:[#allocation2 + $0x1688] sm:$0xff]
    %v3750 = vld [vmem:[#allocation2 + $0x1690] sm:$0xff]
    %v3751 = vld [vmem:[#allocation2 + $0x1698] sm:$0xff]
    %v3752 = vld [vmem:[#allocation2 + $0x16a0] sm:$0xff]
    %v3753 = vld [vmem:[#allocation2 + $0x16a8] sm:$0xff]
    %v3754 = vld [vmem:[#allocation2 + $0x16b0] sm:$0xff]
    %v3755 = vld [vmem:[#allocation2 + $0x16b8] sm:$0xff]
    %v3756 = vld [vmem:[#allocation2 + $0x16c0] sm:$0xff]
    %v3757 = vld [vmem:[#allocation2 + $0x16c8] sm:$0xff]
    %v3758 = vld [vmem:[#allocation2 + $0x16d0] sm:$0xff]
    %v3759 = vld [vmem:[#allocation2 + $0x16d8] sm:$0xff]
    %v3760 = vld [vmem:[#allocation2 + $0x16e0] sm:$0xff]
    %v3761 = vld [vmem:[#allocation2 + $0x16e8] sm:$0xff]
    %v3762 = vld [vmem:[#allocation2 + $0x16f0] sm:$0xff]
    %v3763 = vld [vmem:[#allocation2 + $0x16f8] sm:$0xff]
    %v3764 = vld [vmem:[#allocation2 + $0x1700] sm:$0xff]
    %v3765 = vld [vmem:[#allocation2 + $0x1708] sm:$0xff]
    %v3766 = vld [vmem:[#allocation2 + $0x1710] sm:$0xff]
    %v3767 = vld [vmem:[#allocation2 + $0x1718] sm:$0xff]
    %v3768 = vld [vmem:[#allocation2 + $0x1720] sm:$0xff]
    %v3769 = vld [vmem:[#allocation2 + $0x1728] sm:$0xff]
    %v3770 = vld [vmem:[#allocation2 + $0x1730] sm:$0xff]
    %v3771 = vld [vmem:[#allocation2 + $0x1738] sm:$0xff]
    %v3772 = vld [vmem:[#allocation2 + $0x1740] sm:$0xff]
    %v3773 = vld [vmem:[#allocation2 + $0x1748] sm:$0xff]
    %v3774 = vld [vmem:[#allocation2 + $0x1750] sm:$0xff]
    %v3775 = vld [vmem:[#allocation2 + $0x1758] sm:$0xff]
    %v3776 = vld [vmem:[#allocation2 + $0x1760] sm:$0xff]
    %v3777 = vld [vmem:[#allocation2 + $0x1768] sm:$0xff]
    %v3778 = vld [vmem:[#allocation2 + $0x1770] sm:$0xff]
    %v3779 = vld [vmem:[#allocation2 + $0x1778] sm:$0xff]
    %v3780 = vld [vmem:[#allocation2 + $0x1780] sm:$0xff]
    %v3781 = vld [vmem:[#allocation2 + $0x1788] sm:$0xff]
    %v3782 = vld [vmem:[#allocation2 + $0x1790] sm:$0xff]
    %v3783 = vld [vmem:[#allocation2 + $0x1798] sm:$0xff]
    %v3784 = vld [vmem:[#allocation2 + $0x17a0] sm:$0xff]
    %v3785 = vld [vmem:[#allocation2 + $0x17a8] sm:$0xff]
    %v3786 = vld [vmem:[#allocation2 + $0x17b0] sm:$0xff]
    %v3787 = vld [vmem:[#allocation2 + $0x17b8] sm:$0xff]
    %v3788 = vld [vmem:[#allocation2 + $0x17c0] sm:$0xff]
    %v3789 = vld [vmem:[#allocation2 + $0x17c8] sm:$0xff]
    %v3790 = vld [vmem:[#allocation2 + $0x17d0] sm:$0xff]
    %v3791 = vld [vmem:[#allocation2 + $0x17d8] sm:$0xff]
    %v3792 = vld [vmem:[#allocation2 + $0x17e0] sm:$0xff]
    %v3793 = vld [vmem:[#allocation2 + $0x17e8] sm:$0xff]
    %v3794 = vld [vmem:[#allocation2 + $0x17f0] sm:$0xff]
    %v3795 = vld [vmem:[#allocation2 + $0x17f8] sm:$0xff]
    %v3796 = vld [vmem:[#allocation2 + $0x1800] sm:$0xff]
    %v3797 = vld [vmem:[#allocation2 + $0x1808] sm:$0xff]
    %v3798 = vld [vmem:[#allocation2 + $0x1810] sm:$0xff]
    %v3799 = vld [vmem:[#allocation2 + $0x1818] sm:$0xff]
    %v3800 = vld [vmem:[#allocation2 + $0x1820] sm:$0xff]
    %v3801 = vld [vmem:[#allocation2 + $0x1828] sm:$0xff]
    %v3802 = vld [vmem:[#allocation2 + $0x1830] sm:$0xff]
    %v3803 = vld [vmem:[#allocation2 + $0x1838] sm:$0xff]
    %v3804 = vld [vmem:[#allocation2 + $0x1840] sm:$0xff]
    %v3805 = vld [vmem:[#allocation2 + $0x1848] sm:$0xff]
    %v3806 = vld [vmem:[#allocation2 + $0x1850] sm:$0xff]
    %v3807 = vld [vmem:[#allocation2 + $0x1858] sm:$0xff]
    %v3808 = vld [vmem:[#allocation2 + $0x1860] sm:$0xff]
    %v3809 = vld [vmem:[#allocation2 + $0x1868] sm:$0xff]
    %v3810 = vld [vmem:[#allocation2 + $0x1870] sm:$0xff]
    %v3811 = vld [vmem:[#allocation2 + $0x1878] sm:$0xff]
    %v3812 = vld [vmem:[#allocation2 + $0x1880] sm:$0xff]
    %v3813 = vld [vmem:[#allocation2 + $0x1888] sm:$0xff]
    %v3814 = vld [vmem:[#allocation2 + $0x1890] sm:$0xff]
    %v3815 = vld [vmem:[#allocation2 + $0x1898] sm:$0xff]
    %v3816 = vld [vmem:[#allocation2 + $0x18a0] sm:$0xff]
    %v3817 = vld [vmem:[#allocation2 + $0x18a8] sm:$0xff]
    %v3818 = vld [vmem:[#allocation2 + $0x18b0] sm:$0xff]
    %v3819 = vld [vmem:[#allocation2 + $0x18b8] sm:$0xff]
    %v3820 = vld [vmem:[#allocation2 + $0x18c0] sm:$0xff]
    %v3821 = vld [vmem:[#allocation2 + $0x18c8] sm:$0xff]
    %v3822 = vld [vmem:[#allocation2 + $0x18d0] sm:$0xff]
    %v3823 = vld [vmem:[#allocation2 + $0x18d8] sm:$0xff]
    %v3824 = vld [vmem:[#allocation2 + $0x18e0] sm:$0xff]
    %v3825 = vld [vmem:[#allocation2 + $0x18e8] sm:$0xff]
    %v3826 = vld [vmem:[#allocation2 + $0x18f0] sm:$0xff]
    %v3827 = vld [vmem:[#allocation2 + $0x18f8] sm:$0xff]
    %v3828 = vld [vmem:[#allocation2 + $0x1900] sm:$0xff]
    %v3829 = vld [vmem:[#allocation2 + $0x1908] sm:$0xff]
    %v3830 = vld [vmem:[#allocation2 + $0x1910] sm:$0xff]
    %v3831 = vld [vmem:[#allocation2 + $0x1918] sm:$0xff]
    %v3832 = vld [vmem:[#allocation2 + $0x1920] sm:$0xff]
    %v3833 = vld [vmem:[#allocation2 + $0x1928] sm:$0xff]
    %v3834 = vld [vmem:[#allocation2 + $0x1930] sm:$0xff]
    %v3835 = vld [vmem:[#allocation2 + $0x1938] sm:$0xff]
    %v3836 = vld [vmem:[#allocation2 + $0x1940] sm:$0xff]
    %v3837 = vld [vmem:[#allocation2 + $0x1948] sm:$0xff]
    %v3838 = vld [vmem:[#allocation2 + $0x1950] sm:$0xff]
    %v3839 = vld [vmem:[#allocation2 + $0x1958] sm:$0xff]
    %v3840 = vld [vmem:[#allocation2 + $0x1960] sm:$0xff]
    %v3841 = vld [vmem:[#allocation2 + $0x1968] sm:$0xff]
    %v3842 = vld [vmem:[#allocation2 + $0x1970] sm:$0xff]
    %v3843 = vld [vmem:[#allocation2 + $0x1978] sm:$0xff]
    %v3844 = vld [vmem:[#allocation2 + $0x1980] sm:$0xff]
    %v3845 = vld [vmem:[#allocation2 + $0x1988] sm:$0xff]
    %v3846 = vld [vmem:[#allocation2 + $0x1990] sm:$0xff]
    %v3847 = vld [vmem:[#allocation2 + $0x1998] sm:$0xff]
    %v3848 = vld [vmem:[#allocation2 + $0x19a0] sm:$0xff]
    %v3849 = vld [vmem:[#allocation2 + $0x19a8] sm:$0xff]
    %v3850 = vld [vmem:[#allocation2 + $0x19b0] sm:$0xff]
    %v3851 = vld [vmem:[#allocation2 + $0x19b8] sm:$0xff]
    %v3852 = vld [vmem:[#allocation2 + $0x19c0] sm:$0xff]
    %v3853 = vld [vmem:[#allocation2 + $0x19c8] sm:$0xff]
    %v3854 = vld [vmem:[#allocation2 + $0x19d0] sm:$0xff]
    %v3855 = vld [vmem:[#allocation2 + $0x19d8] sm:$0xff]
    %v3856 = vld [vmem:[#allocation2 + $0x19e0] sm:$0xff]
    %v3857 = vld [vmem:[#allocation2 + $0x19e8] sm:$0xff]
    %v3858 = vld [vmem:[#allocation2 + $0x19f0] sm:$0xff]
    %v3859 = vld [vmem:[#allocation2 + $0x19f8] sm:$0xff]
    %v3860 = vld [vmem:[#allocation2 + $0x1a00] sm:$0xff]
    %v3861 = vld [vmem:[#allocation2 + $0x1a08] sm:$0xff]
    %v3862 = vld [vmem:[#allocation2 + $0x1a10] sm:$0xff]
    %v3863 = vld [vmem:[#allocation2 + $0x1a18] sm:$0xff]
    %v3864 = vld [vmem:[#allocation2 + $0x1a20] sm:$0xff]
    %v3865 = vld [vmem:[#allocation2 + $0x1a28] sm:$0xff]
    %v3866 = vld [vmem:[#allocation2 + $0x1a30] sm:$0xff]
    %v3867 = vld [vmem:[#allocation2 + $0x1a38] sm:$0xff]
    %v3868 = vld [vmem:[#allocation2 + $0x1a40] sm:$0xff]
    %v3869 = vld [vmem:[#allocation2 + $0x1a48] sm:$0xff]
    %v3870 = vld [vmem:[#allocation2 + $0x1a50] sm:$0xff]
    %v3871 = vld [vmem:[#allocation2 + $0x1a58] sm:$0xff]
    %v3872 = vld [vmem:[#allocation2 + $0x1a60] sm:$0xff]
    %v3873 = vld [vmem:[#allocation2 + $0x1a68] sm:$0xff]
    %v3874 = vld [vmem:[#allocation2 + $0x1a70] sm:$0xff]
    %v3875 = vld [vmem:[#allocation2 + $0x1a78] sm:$0xff]
    %v3876 = vld [vmem:[#allocation2 + $0x1a80] sm:$0xff]
    %v3877 = vld [vmem:[#allocation2 + $0x1a88] sm:$0xff]
    %v3878 = vld [vmem:[#allocation2 + $0x1a90] sm:$0xff]
    %v3879 = vld [vmem:[#allocation2 + $0x1a98] sm:$0xff]
    %v3880 = vld [vmem:[#allocation2 + $0x1aa0] sm:$0xff]
    %v3881 = vld [vmem:[#allocation2 + $0x1aa8] sm:$0xff]
    %v3882 = vld [vmem:[#allocation2 + $0x1ab0] sm:$0xff]
    %v3883 = vld [vmem:[#allocation2 + $0x1ab8] sm:$0xff]
    %v3884 = vld [vmem:[#allocation2 + $0x1ac0] sm:$0xff]
    %v3885 = vld [vmem:[#allocation2 + $0x1ac8] sm:$0xff]
    %v3886 = vld [vmem:[#allocation2 + $0x1ad0] sm:$0xff]
    %v3887 = vld [vmem:[#allocation2 + $0x1ad8] sm:$0xff]
    %v3888 = vld [vmem:[#allocation2 + $0x1ae0] sm:$0xff]
    %v3889 = vld [vmem:[#allocation2 + $0x1ae8] sm:$0xff]
    %v3890 = vld [vmem:[#allocation2 + $0x1af0] sm:$0xff]
    %v3891 = vld [vmem:[#allocation2 + $0x1af8] sm:$0xff]
    %v3892 = vld [vmem:[#allocation2 + $0x1b00] sm:$0xff]
    %v3893 = vld [vmem:[#allocation2 + $0x1b08] sm:$0xff]
    %v3894 = vld [vmem:[#allocation2 + $0x1b10] sm:$0xff]
    %v3895 = vld [vmem:[#allocation2 + $0x1b18] sm:$0xff]
    %v3896 = vld [vmem:[#allocation2 + $0x1b20] sm:$0xff]
    %v3897 = vld [vmem:[#allocation2 + $0x1b28] sm:$0xff]
    %v3898 = vld [vmem:[#allocation2 + $0x1b30] sm:$0xff]
    %v3899 = vld [vmem:[#allocation2 + $0x1b38] sm:$0xff]
    %v3900 = vld [vmem:[#allocation2 + $0x1b40] sm:$0xff]
    %v3901 = vld [vmem:[#allocation2 + $0x1b48] sm:$0xff]
    %v3902 = vld [vmem:[#allocation2 + $0x1b50] sm:$0xff]
    %v3903 = vld [vmem:[#allocation2 + $0x1b58] sm:$0xff]
    %v3904 = vld [vmem:[#allocation2 + $0x1b60] sm:$0xff]
    %v3905 = vld [vmem:[#allocation2 + $0x1b68] sm:$0xff]
    %v3906 = vld [vmem:[#allocation2 + $0x1b70] sm:$0xff]
    %v3907 = vld [vmem:[#allocation2 + $0x1b78] sm:$0xff]
    %v3908 = vld [vmem:[#allocation2 + $0x1b80] sm:$0xff]
    %v3909 = vld [vmem:[#allocation2 + $0x1b88] sm:$0xff]
    %v3910 = vld [vmem:[#allocation2 + $0x1b90] sm:$0xff]
    %v3911 = vld [vmem:[#allocation2 + $0x1b98] sm:$0xff]
    %v3912 = vld [vmem:[#allocation2 + $0x1ba0] sm:$0xff]
    %v3913 = vld [vmem:[#allocation2 + $0x1ba8] sm:$0xff]
    %v3914 = vld [vmem:[#allocation2 + $0x1bb0] sm:$0xff]
    %v3915 = vld [vmem:[#allocation2 + $0x1bb8] sm:$0xff]
    %v3916 = vld [vmem:[#allocation2 + $0x1bc0] sm:$0xff]
    %v3917 = vld [vmem:[#allocation2 + $0x1bc8] sm:$0xff]
    %v3918 = vld [vmem:[#allocation2 + $0x1bd0] sm:$0xff]
    %v3919 = vld [vmem:[#allocation2 + $0x1bd8] sm:$0xff]
    %v3920 = vld [vmem:[#allocation2 + $0x1be0] sm:$0xff]
    %v3921 = vld [vmem:[#allocation2 + $0x1be8] sm:$0xff]
    %v3922 = vld [vmem:[#allocation2 + $0x1bf0] sm:$0xff]
    %v3923 = vld [vmem:[#allocation2 + $0x1bf8] sm:$0xff]
    %v3924 = vld [vmem:[#allocation2 + $0x1c00] sm:$0xff]
    %v3925 = vld [vmem:[#allocation2 + $0x1c08] sm:$0xff]
    %v3926 = vld [vmem:[#allocation2 + $0x1c10] sm:$0xff]
    %v3927 = vld [vmem:[#allocation2 + $0x1c18] sm:$0xff]
    %v3928 = vld [vmem:[#allocation2 + $0x1c20] sm:$0xff]
    %v3929 = vld [vmem:[#allocation2 + $0x1c28] sm:$0xff]
    %v3930 = vld [vmem:[#allocation2 + $0x1c30] sm:$0xff]
    %v3931 = vld [vmem:[#allocation2 + $0x1c38] sm:$0xff]
    %v3932 = vld [vmem:[#allocation2 + $0x1c40] sm:$0xff]
    %v3933 = vld [vmem:[#allocation2 + $0x1c48] sm:$0xff]
    %v3934 = vld [vmem:[#allocation2 + $0x1c50] sm:$0xff]
    %v3935 = vld [vmem:[#allocation2 + $0x1c58] sm:$0xff]
    %v3936 = vld [vmem:[#allocation2 + $0x1c60] sm:$0xff]
    %v3937 = vld [vmem:[#allocation2 + $0x1c68] sm:$0xff]
    %v3938 = vld [vmem:[#allocation2 + $0x1c70] sm:$0xff]
    %v3939 = vld [vmem:[#allocation2 + $0x1c78] sm:$0xff]
    %v3940 = vld [vmem:[#allocation2 + $0x1c80] sm:$0xff]
    %v3941 = vld [vmem:[#allocation2 + $0x1c88] sm:$0xff]
    %v3942 = vld [vmem:[#allocation2 + $0x1c90] sm:$0xff]
    %v3943 = vld [vmem:[#allocation2 + $0x1c98] sm:$0xff]
    %v3944 = vld [vmem:[#allocation2 + $0x1ca0] sm:$0xff]
    %v3945 = vld [vmem:[#allocation2 + $0x1ca8] sm:$0xff]
    %v3946 = vld [vmem:[#allocation2 + $0x1cb0] sm:$0xff]
    %v3947 = vld [vmem:[#allocation2 + $0x1cb8] sm:$0xff]
    %v3948 = vld [vmem:[#allocation2 + $0x1cc0] sm:$0xff]
    %v3949 = vld [vmem:[#allocation2 + $0x1cc8] sm:$0xff]
    %v3950 = vld [vmem:[#allocation2 + $0x1cd0] sm:$0xff]
    %v3951 = vld [vmem:[#allocation2 + $0x1cd8] sm:$0xff]
    %v3952 = vld [vmem:[#allocation2 + $0x1ce0] sm:$0xff]
    %v3953 = vld [vmem:[#allocation2 + $0x1ce8] sm:$0xff]
    %v3954 = vld [vmem:[#allocation2 + $0x1cf0] sm:$0xff]
    %v3955 = vld [vmem:[#allocation2 + $0x1cf8] sm:$0xff]
    %v3956 = vld [vmem:[#allocation2 + $0x1d00] sm:$0xff]
    %v3957 = vld [vmem:[#allocation2 + $0x1d08] sm:$0xff]
    %v3958 = vld [vmem:[#allocation2 + $0x1d10] sm:$0xff]
    %v3959 = vld [vmem:[#allocation2 + $0x1d18] sm:$0xff]
    %v3960 = vld [vmem:[#allocation2 + $0x1d20] sm:$0xff]
    %v3961 = vld [vmem:[#allocation2 + $0x1d28] sm:$0xff]
    %v3962 = vld [vmem:[#allocation2 + $0x1d30] sm:$0xff]
    %v3963 = vld [vmem:[#allocation2 + $0x1d38] sm:$0xff]
    %v3964 = vld [vmem:[#allocation2 + $0x1d40] sm:$0xff]
    %v3965 = vld [vmem:[#allocation2 + $0x1d48] sm:$0xff]
    %v3966 = vld [vmem:[#allocation2 + $0x1d50] sm:$0xff]
    %v3967 = vld [vmem:[#allocation2 + $0x1d58] sm:$0xff]
    %v3968 = vld [vmem:[#allocation2 + $0x1d60] sm:$0xff]
    %v3969 = vld [vmem:[#allocation2 + $0x1d68] sm:$0xff]
    %v3970 = vld [vmem:[#allocation2 + $0x1d70] sm:$0xff]
    %v3971 = vld [vmem:[#allocation2 + $0x1d78] sm:$0xff]
    %v3972 = vld [vmem:[#allocation2 + $0x1d80] sm:$0xff]
    %v3973 = vld [vmem:[#allocation2 + $0x1d88] sm:$0xff]
    %v3974 = vld [vmem:[#allocation2 + $0x1d90] sm:$0xff]
    %v3975 = vld [vmem:[#allocation2 + $0x1d98] sm:$0xff]
    %v3976 = vld [vmem:[#allocation2 + $0x1da0] sm:$0xff]
    %v3977 = vld [vmem:[#allocation2 + $0x1da8] sm:$0xff]
    %v3978 = vld [vmem:[#allocation2 + $0x1db0] sm:$0xff]
    %v3979 = vld [vmem:[#allocation2 + $0x1db8] sm:$0xff]
    %v3980 = vld [vmem:[#allocation2 + $0x1dc0] sm:$0xff]
    %v3981 = vld [vmem:[#allocation2 + $0x1dc8] sm:$0xff]
    %v3982 = vld [vmem:[#allocation2 + $0x1dd0] sm:$0xff]
    %v3983 = vld [vmem:[#allocation2 + $0x1dd8] sm:$0xff]
    %v3984 = vld [vmem:[#allocation2 + $0x1de0] sm:$0xff]
    %v3985 = vld [vmem:[#allocation2 + $0x1de8] sm:$0xff]
    %v3986 = vld [vmem:[#allocation2 + $0x1df0] sm:$0xff]
    %v3987 = vld [vmem:[#allocation2 + $0x1df8] sm:$0xff]
    %v3988 = vld [vmem:[#allocation2 + $0x1e00] sm:$0xff]
    %v3989 = vld [vmem:[#allocation2 + $0x1e08] sm:$0xff]
    %v3990 = vld [vmem:[#allocation2 + $0x1e10] sm:$0xff]
    %v3991 = vld [vmem:[#allocation2 + $0x1e18] sm:$0xff]
    %v3992 = vld [vmem:[#allocation2 + $0x1e20] sm:$0xff]
    %v3993 = vld [vmem:[#allocation2 + $0x1e28] sm:$0xff]
    %v3994 = vld [vmem:[#allocation2 + $0x1e30] sm:$0xff]
    %v3995 = vld [vmem:[#allocation2 + $0x1e38] sm:$0xff]
    %v3996 = vld [vmem:[#allocation2 + $0x1e40] sm:$0xff]
    %v3997 = vld [vmem:[#allocation2 + $0x1e48] sm:$0xff]
    %v3998 = vld [vmem:[#allocation2 + $0x1e50] sm:$0xff]
    %v3999 = vld [vmem:[#allocation2 + $0x1e58] sm:$0xff]
    %v4000 = vld [vmem:[#allocation2 + $0x1e60] sm:$0xff]
    %v4001 = vld [vmem:[#allocation2 + $0x1e68] sm:$0xff]
    %v4002 = vld [vmem:[#allocation2 + $0x1e70] sm:$0xff]
    %v4003 = vld [vmem:[#allocation2 + $0x1e78] sm:$0xff]
    %v4004 = vld [vmem:[#allocation2 + $0x1e80] sm:$0xff]
    %v4005 = vld [vmem:[#allocation2 + $0x1e88] sm:$0xff]
    %v4006 = vld [vmem:[#allocation2 + $0x1e90] sm:$0xff]
    %v4007 = vld [vmem:[#allocation2 + $0x1e98] sm:$0xff]
    %v4008 = vld [vmem:[#allocation2 + $0x1ea0] sm:$0xff]
    %v4009 = vld [vmem:[#allocation2 + $0x1ea8] sm:$0xff]
    %v4010 = vld [vmem:[#allocation2 + $0x1eb0] sm:$0xff]
    %v4011 = vld [vmem:[#allocation2 + $0x1eb8] sm:$0xff]
    %v4012 = vld [vmem:[#allocation2 + $0x1ec0] sm:$0xff]
    %v4013 = vld [vmem:[#allocation2 + $0x1ec8] sm:$0xff]
    %v4014 = vld [vmem:[#allocation2 + $0x1ed0] sm:$0xff]
    %v4015 = vld [vmem:[#allocation2 + $0x1ed8] sm:$0xff]
    %v4016 = vld [vmem:[#allocation2 + $0x1ee0] sm:$0xff]
    %v4017 = vld [vmem:[#allocation2 + $0x1ee8] sm:$0xff]
    %v4018 = vld [vmem:[#allocation2 + $0x1ef0] sm:$0xff]
    %v4019 = vld [vmem:[#allocation2 + $0x1ef8] sm:$0xff]
    %v4020 = vld [vmem:[#allocation2 + $0x1f00] sm:$0xff]
    %v4021 = vld [vmem:[#allocation2 + $0x1f08] sm:$0xff]
    %v4022 = vld [vmem:[#allocation2 + $0x1f10] sm:$0xff]
    %v4023 = vld [vmem:[#allocation2 + $0x1f18] sm:$0xff]
    %v4024 = vld [vmem:[#allocation2 + $0x1f20] sm:$0xff]
    %v4025 = vld [vmem:[#allocation2 + $0x1f28] sm:$0xff]
    %v4026 = vld [vmem:[#allocation2 + $0x1f30] sm:$0xff]
    %v4027 = vld [vmem:[#allocation2 + $0x1f38] sm:$0xff]
    %v4028 = vld [vmem:[#allocation2 + $0x1f40] sm:$0xff]
    %v4029 = vld [vmem:[#allocation2 + $0x1f48] sm:$0xff]
    %v4030 = vld [vmem:[#allocation2 + $0x1f50] sm:$0xff]
    %v4031 = vld [vmem:[#allocation2 + $0x1f58] sm:$0xff]
    %v4032 = vld [vmem:[#allocation2 + $0x1f60] sm:$0xff]
    %v4033 = vld [vmem:[#allocation2 + $0x1f68] sm:$0xff]
    %v4034 = vld [vmem:[#allocation2 + $0x1f70] sm:$0xff]
    %v4035 = vld [vmem:[#allocation2 + $0x1f78] sm:$0xff]
    %v4036 = vld [vmem:[#allocation2 + $0x1f80] sm:$0xff]
    %v4037 = vld [vmem:[#allocation2 + $0x1f88] sm:$0xff]
    %v4038 = vld [vmem:[#allocation2 + $0x1f90] sm:$0xff]
    %v4039 = vld [vmem:[#allocation2 + $0x1f98] sm:$0xff]
    %v4040 = vld [vmem:[#allocation2 + $0x1fa0] sm:$0xff]
    %v4041 = vld [vmem:[#allocation2 + $0x1fa8] sm:$0xff]
    %v4042 = vld [vmem:[#allocation2 + $0x1fb0] sm:$0xff]
    %v4043 = vld [vmem:[#allocation2 + $0x1fb8] sm:$0xff]
    %v4044 = vld [vmem:[#allocation2 + $0x1fc0] sm:$0xff]
    %v4045 = vld [vmem:[#allocation2 + $0x1fc8] sm:$0xff]
    %v4046 = vld [vmem:[#allocation2 + $0x1fd0] sm:$0xff]
    %v4047 = vld [vmem:[#allocation2 + $0x1fd8] sm:$0xff]
    %v4048 = vld [vmem:[#allocation2 + $0x1fe0] sm:$0xff]
    %v4049 = vld [vmem:[#allocation2 + $0x1fe8] sm:$0xff]
    %v4050 = vld [vmem:[#allocation2 + $0x1ff0] sm:$0xff]
    %v4051 = vld [vmem:[#allocation2 + $0x1ff8] sm:$0xff]
    %v4052 = vld [vmem:[#allocation2 + $0x2000] sm:$0xff]
    %v4053 = vld [vmem:[#allocation2 + $0x2008] sm:$0xff]
    %v4054 = vld [vmem:[#allocation2 + $0x2010] sm:$0xff]
    %v4055 = vld [vmem:[#allocation2 + $0x2018] sm:$0xff]
    %v4056 = vld [vmem:[#allocation2 + $0x2020] sm:$0xff]
    %v4057 = vld [vmem:[#allocation2 + $0x2028] sm:$0xff]
    %v4058 = vld [vmem:[#allocation2 + $0x2030] sm:$0xff]
    %v4059 = vld [vmem:[#allocation2 + $0x2038] sm:$0xff]
    %v4060 = vld [vmem:[#allocation2 + $0x2040] sm:$0xff]
    %v4061 = vld [vmem:[#allocation2 + $0x2048] sm:$0xff]
    %v4062 = vld [vmem:[#allocation2 + $0x2050] sm:$0xff]
    %v4063 = vld [vmem:[#allocation2 + $0x2058] sm:$0xff]
    %v4064 = vld [vmem:[#allocation2 + $0x2060] sm:$0xff]
    %v4065 = vld [vmem:[#allocation2 + $0x2068] sm:$0xff]
    %v4066 = vld [vmem:[#allocation2 + $0x2070] sm:$0xff]
    %v4067 = vld [vmem:[#allocation2 + $0x2078] sm:$0xff]
    %v4068 = vld [vmem:[#allocation2 + $0x2080] sm:$0xff]
    %v4069 = vld [vmem:[#allocation2 + $0x2088] sm:$0xff]
    %v4070 = vld [vmem:[#allocation2 + $0x2090] sm:$0xff]
    %v4071 = vld [vmem:[#allocation2 + $0x2098] sm:$0xff]
    %v4072 = vld [vmem:[#allocation2 + $0x20a0] sm:$0xff]
    %v4073 = vld [vmem:[#allocation2 + $0x20a8] sm:$0xff]
    %v4074 = vld [vmem:[#allocation2 + $0x20b0] sm:$0xff]
    %v4075 = vld [vmem:[#allocation2 + $0x20b8] sm:$0xff]
    %v4076 = vld [vmem:[#allocation2 + $0x20c0] sm:$0xff]
    %v4077 = vld [vmem:[#allocation2 + $0x20c8] sm:$0xff]
    %v4078 = vld [vmem:[#allocation2 + $0x20d0] sm:$0xff]
    %v4079 = vld [vmem:[#allocation2 + $0x20d8] sm:$0xff]
    %v4080 = vld [vmem:[#allocation2 + $0x20e0] sm:$0xff]
    %v4081 = vld [vmem:[#allocation2 + $0x20e8] sm:$0xff]
    %v4082 = vld [vmem:[#allocation2 + $0x20f0] sm:$0xff]
    %v4083 = vld [vmem:[#allocation2 + $0x20f8] sm:$0xff]
    %v4084 = vld [vmem:[#allocation2 + $0x2100] sm:$0xff]
    %v4085 = vld [vmem:[#allocation2 + $0x2108] sm:$0xff]
    %v4086 = vld [vmem:[#allocation2 + $0x2110] sm:$0xff]
    %v4087 = vld [vmem:[#allocation2 + $0x2118] sm:$0xff]
    %v4088 = vld [vmem:[#allocation2 + $0x2120] sm:$0xff]
    %v4089 = vld [vmem:[#allocation2 + $0x2128] sm:$0xff]
    %v4090 = vld [vmem:[#allocation2 + $0x2130] sm:$0xff]
    %v4091 = vld [vmem:[#allocation2 + $0x2138] sm:$0xff]
    %v4092 = vld [vmem:[#allocation2 + $0x2140] sm:$0xff]
    %v4093 = vld [vmem:[#allocation2 + $0x2148] sm:$0xff]
    %v4094 = vld [vmem:[#allocation2 + $0x2150] sm:$0xff]
    %v4095 = vld [vmem:[#allocation2 + $0x2158] sm:$0xff]
    %v4096 = vld [vmem:[#allocation2 + $0x2160] sm:$0xff]
    %v4097 = vld [vmem:[#allocation2 + $0x2168] sm:$0xff]
    %v4098 = vld [vmem:[#allocation2 + $0x2170] sm:$0xff]
    %v4099 = vld [vmem:[#allocation2 + $0x2178] sm:$0xff]
    %v4100 = vld [vmem:[#allocation2 + $0x2180] sm:$0xff]
    %v4101 = vld [vmem:[#allocation2 + $0x2188] sm:$0xff]
    %v4102 = vld [vmem:[#allocation2 + $0x2190] sm:$0xff]
    %v4103 = vld [vmem:[#allocation2 + $0x2198] sm:$0xff]
    %v4104 = vld [vmem:[#allocation2 + $0x21a0] sm:$0xff]
    %v4105 = vld [vmem:[#allocation2 + $0x21a8] sm:$0xff]
    %v4106 = vld [vmem:[#allocation2 + $0x21b0] sm:$0xff]
    %v4107 = vld [vmem:[#allocation2 + $0x21b8] sm:$0xff]
    %v4108 = vld [vmem:[#allocation2 + $0x21c0] sm:$0xff]
    %v4109 = vld [vmem:[#allocation2 + $0x21c8] sm:$0xff]
    %v4110 = vld [vmem:[#allocation2 + $0x21d0] sm:$0xff]
    %v4111 = vld [vmem:[#allocation2 + $0x21d8] sm:$0xff]
    %v4112 = vld [vmem:[#allocation2 + $0x21e0] sm:$0xff]
    %v4113 = vld [vmem:[#allocation2 + $0x21e8] sm:$0xff]
    %v4114 = vld [vmem:[#allocation2 + $0x21f0] sm:$0xff]
    %v4115 = vld [vmem:[#allocation2 + $0x21f8] sm:$0xff]
    %v4116 = vld [vmem:[#allocation2 + $0x2200] sm:$0xff]
    %v4117 = vld [vmem:[#allocation2 + $0x2208] sm:$0xff]
    %v4118 = vld [vmem:[#allocation2 + $0x2210] sm:$0xff]
    %v4119 = vld [vmem:[#allocation2 + $0x2218] sm:$0xff]
    %v4120 = vld [vmem:[#allocation2 + $0x2220] sm:$0xff]
    %v4121 = vld [vmem:[#allocation2 + $0x2228] sm:$0xff]
    %v4122 = vld [vmem:[#allocation2 + $0x2230] sm:$0xff]
    %v4123 = vld [vmem:[#allocation2 + $0x2238] sm:$0xff]
    %v4124 = vld [vmem:[#allocation2 + $0x2240] sm:$0xff]
    %v4125 = vld [vmem:[#allocation2 + $0x2248] sm:$0xff]
    %v4126 = vld [vmem:[#allocation2 + $0x2250] sm:$0xff]
    %v4127 = vld [vmem:[#allocation2 + $0x2258] sm:$0xff]
    %v4128 = vld [vmem:[#allocation2 + $0x2260] sm:$0xff]
    %v4129 = vld [vmem:[#allocation2 + $0x2268] sm:$0xff]
    %v4130 = vld [vmem:[#allocation2 + $0x2270] sm:$0xff]
    %v4131 = vld [vmem:[#allocation2 + $0x2278] sm:$0xff]
    %v4132 = vld [vmem:[#allocation2 + $0x2280] sm:$0xff]
    %v4133 = vld [vmem:[#allocation2 + $0x2288] sm:$0xff]
    %v4134 = vld [vmem:[#allocation2 + $0x2290] sm:$0xff]
    %v4135 = vld [vmem:[#allocation2 + $0x2298] sm:$0xff]
    %v4136 = vld [vmem:[#allocation2 + $0x22a0] sm:$0xff]
    %v4137 = vld [vmem:[#allocation2 + $0x22a8] sm:$0xff]
    %v4138 = vld [vmem:[#allocation2 + $0x22b0] sm:$0xff]
    %v4139 = vld [vmem:[#allocation2 + $0x22b8] sm:$0xff]
    %v4140 = vld [vmem:[#allocation2 + $0x22c0] sm:$0xff]
    %v4141 = vld [vmem:[#allocation2 + $0x22c8] sm:$0xff]
    %v4142 = vld [vmem:[#allocation2 + $0x22d0] sm:$0xff]
    %v4143 = vld [vmem:[#allocation2 + $0x22d8] sm:$0xff]
    %v4144 = vld [vmem:[#allocation2 + $0x22e0] sm:$0xff]
    %v4145 = vld [vmem:[#allocation2 + $0x22e8] sm:$0xff]
    %v4146 = vld [vmem:[#allocation2 + $0x22f0] sm:$0xff]
    %v4147 = vld [vmem:[#allocation2 + $0x22f8] sm:$0xff]
    %v4148 = vld [vmem:[#allocation2 + $0x2300] sm:$0xff]
    %v4149 = vld [vmem:[#allocation2 + $0x2308] sm:$0xff]
    %v4150 = vld [vmem:[#allocation2 + $0x2310] sm:$0xff]
    %v4151 = vld [vmem:[#allocation2 + $0x2318] sm:$0xff]
    %v4152 = vld [vmem:[#allocation2 + $0x2320] sm:$0xff]
    %v4153 = vld [vmem:[#allocation2 + $0x2328] sm:$0xff]
    %v4154 = vld [vmem:[#allocation2 + $0x2330] sm:$0xff]
    %v4155 = vld [vmem:[#allocation2 + $0x2338] sm:$0xff]
    %v4156 = vld [vmem:[#allocation2 + $0x2340] sm:$0xff]
    %v4157 = vld [vmem:[#allocation2 + $0x2348] sm:$0xff]
    %v4158 = vld [vmem:[#allocation2 + $0x2350] sm:$0xff]
    %v4159 = vld [vmem:[#allocation2 + $0x2358] sm:$0xff]
    %v4160 = vld [vmem:[#allocation2 + $0x2360] sm:$0xff]
    %v4161 = vld [vmem:[#allocation2 + $0x2368] sm:$0xff]
    %v4162 = vld [vmem:[#allocation2 + $0x2370] sm:$0xff]
    %v4163 = vld [vmem:[#allocation2 + $0x2378] sm:$0xff]
    %v4164 = vld [vmem:[#allocation2 + $0x2380] sm:$0xff]
    %v4165 = vld [vmem:[#allocation2 + $0x2388] sm:$0xff]
    %v4166 = vld [vmem:[#allocation2 + $0x2390] sm:$0xff]
    %v4167 = vld [vmem:[#allocation2 + $0x2398] sm:$0xff]
    %v4168 = vld [vmem:[#allocation2 + $0x23a0] sm:$0xff]
    %v4169 = vld [vmem:[#allocation2 + $0x23a8] sm:$0xff]
    %v4170 = vld [vmem:[#allocation2 + $0x23b0] sm:$0xff]
    %v4171 = vld [vmem:[#allocation2 + $0x23b8] sm:$0xff]
    %v4172 = vld [vmem:[#allocation2 + $0x23c0] sm:$0xff]
    %v4173 = vld [vmem:[#allocation2 + $0x23c8] sm:$0xff]
    %v4174 = vld [vmem:[#allocation2 + $0x23d0] sm:$0xff]
    %v4175 = vld [vmem:[#allocation2 + $0x23d8] sm:$0xff]
    %v4176 = vld [vmem:[#allocation2 + $0x23e0] sm:$0xff]
    %v4177 = vld [vmem:[#allocation2 + $0x23e8] sm:$0xff]
    %v4178 = vld [vmem:[#allocation2 + $0x23f0] sm:$0xff]
    %v4179 = vld [vmem:[#allocation2 + $0x23f8] sm:$0xff]
    %v4180 = vld [vmem:[#allocation2 + $0x2400] sm:$0xff]
    %v4181 = vld [vmem:[#allocation2 + $0x2408] sm:$0xff]
    %v4182 = vld [vmem:[#allocation2 + $0x2410] sm:$0xff]
    %v4183 = vld [vmem:[#allocation2 + $0x2418] sm:$0xff]
    %v4184 = vld [vmem:[#allocation2 + $0x2420] sm:$0xff]
    %v4185 = vld [vmem:[#allocation2 + $0x2428] sm:$0xff]
    %v4186 = vld [vmem:[#allocation2 + $0x2430] sm:$0xff]
    %v4187 = vld [vmem:[#allocation2 + $0x2438] sm:$0xff]
    %v4188 = vld [vmem:[#allocation2 + $0x2440] sm:$0xff]
    %v4189 = vld [vmem:[#allocation2 + $0x2448] sm:$0xff]
    %v4190 = vld [vmem:[#allocation2 + $0x2450] sm:$0xff]
    %v4191 = vld [vmem:[#allocation2 + $0x2458] sm:$0xff]
    %v4192 = vld [vmem:[#allocation2 + $0x2460] sm:$0xff]
    %v4193 = vld [vmem:[#allocation2 + $0x2468] sm:$0xff]
    %v4194 = vld [vmem:[#allocation2 + $0x2470] sm:$0xff]
    %v4195 = vld [vmem:[#allocation2 + $0x2478] sm:$0xff]
    %v4196 = vld [vmem:[#allocation2 + $0x2480] sm:$0xff]
    %v4197 = vld [vmem:[#allocation2 + $0x2488] sm:$0xff]
    %v4198 = vld [vmem:[#allocation2 + $0x2490] sm:$0xff]
    %v4199 = vld [vmem:[#allocation2 + $0x2498] sm:$0xff]
    %v4200 = vld [vmem:[#allocation2 + $0x24a0] sm:$0xff]
    %v4201 = vld [vmem:[#allocation2 + $0x24a8] sm:$0xff]
    %v4202 = vld [vmem:[#allocation2 + $0x24b0] sm:$0xff]
    %v4203 = vld [vmem:[#allocation2 + $0x24b8] sm:$0xff]
    %v4204 = vld [vmem:[#allocation2 + $0x24c0] sm:$0xff]
    %v4205 = vld [vmem:[#allocation2 + $0x24c8] sm:$0xff]
    %v4206 = vld [vmem:[#allocation2 + $0x24d0] sm:$0xff]
    %v4207 = vld [vmem:[#allocation2 + $0x24d8] sm:$0xff]
    %v4208 = vld [vmem:[#allocation2 + $0x24e0] sm:$0xff]
    %v4209 = vld [vmem:[#allocation2 + $0x24e8] sm:$0xff]
    %v4210 = vld [vmem:[#allocation2 + $0x24f0] sm:$0xff]
    %v4211 = vld [vmem:[#allocation2 + $0x24f8] sm:$0xff]
    %v4212 = vld [vmem:[#allocation2 + $0x2500] sm:$0xff]
    %v4213 = vld [vmem:[#allocation2 + $0x2508] sm:$0xff]
    %v4214 = vld [vmem:[#allocation2 + $0x2510] sm:$0xff]
    %v4215 = vld [vmem:[#allocation2 + $0x2518] sm:$0xff]
    %v4216 = vld [vmem:[#allocation2 + $0x2520] sm:$0xff]
    %v4217 = vld [vmem:[#allocation2 + $0x2528] sm:$0xff]
    %v4218 = vld [vmem:[#allocation2 + $0x2530] sm:$0xff]
    %v4219 = vld [vmem:[#allocation2 + $0x2538] sm:$0xff]
    %v4220 = vld [vmem:[#allocation2 + $0x2540] sm:$0xff]
    %v4221 = vld [vmem:[#allocation2 + $0x2548] sm:$0xff]
    %v4222 = vld [vmem:[#allocation2 + $0x2550] sm:$0xff]
    %v4223 = vld [vmem:[#allocation2 + $0x2558] sm:$0xff]
    %v4224 = vld [vmem:[#allocation2 + $0x2560] sm:$0xff]
    %v4225 = vld [vmem:[#allocation2 + $0x2568] sm:$0xff]
    %v4226 = vld [vmem:[#allocation2 + $0x2570] sm:$0xff]
    %v4227 = vld [vmem:[#allocation2 + $0x2578] sm:$0xff]
    %v4228 = vld [vmem:[#allocation2 + $0x2580] sm:$0xff]
    %v4229 = vld [vmem:[#allocation2 + $0x2588] sm:$0xff]
    %v4230 = vld [vmem:[#allocation2 + $0x2590] sm:$0xff]
    %v4231 = vld [vmem:[#allocation2 + $0x2598] sm:$0xff]
    %v4232 = vld [vmem:[#allocation2 + $0x25a0] sm:$0xff]
    %v4233 = vld [vmem:[#allocation2 + $0x25a8] sm:$0xff]
    %v4234 = vld [vmem:[#allocation2 + $0x25b0] sm:$0xff]
    %v4235 = vld [vmem:[#allocation2 + $0x25b8] sm:$0xff]
    %v4236 = vld [vmem:[#allocation2 + $0x25c0] sm:$0xff]
    %v4237 = vld [vmem:[#allocation2 + $0x25c8] sm:$0xff]
    %v4238 = vld [vmem:[#allocation2 + $0x25d0] sm:$0xff]
    %v4239 = vld [vmem:[#allocation2 + $0x25d8] sm:$0xff]
    %v4240 = vld [vmem:[#allocation2 + $0x25e0] sm:$0xff]
    %v4241 = vld [vmem:[#allocation2 + $0x25e8] sm:$0xff]
    %v4242 = vld [vmem:[#allocation2 + $0x25f0] sm:$0xff]
    %v4243 = vld [vmem:[#allocation2 + $0x25f8] sm:$0xff]
    %v4244 = vld [vmem:[#allocation2 + $0x2600] sm:$0xff]
    %v4245 = vld [vmem:[#allocation2 + $0x2608] sm:$0xff]
    %v4246 = vld [vmem:[#allocation2 + $0x2610] sm:$0xff]
    %v4247 = vld [vmem:[#allocation2 + $0x2618] sm:$0xff]
    %v4248 = vld [vmem:[#allocation2 + $0x2620] sm:$0xff]
    %v4249 = vld [vmem:[#allocation2 + $0x2628] sm:$0xff]
    %v4250 = vld [vmem:[#allocation2 + $0x2630] sm:$0xff]
    %v4251 = vld [vmem:[#allocation2 + $0x2638] sm:$0xff]
    %v4252 = vld [vmem:[#allocation2 + $0x2640] sm:$0xff]
    %v4253 = vld [vmem:[#allocation2 + $0x2648] sm:$0xff]
    %v4254 = vld [vmem:[#allocation2 + $0x2650] sm:$0xff]
    %v4255 = vld [vmem:[#allocation2 + $0x2658] sm:$0xff]
    %v4256 = vld [vmem:[#allocation2 + $0x2660] sm:$0xff]
    %v4257 = vld [vmem:[#allocation2 + $0x2668] sm:$0xff]
    %v4258 = vld [vmem:[#allocation2 + $0x2670] sm:$0xff]
    %v4259 = vld [vmem:[#allocation2 + $0x2678] sm:$0xff]
    %v4260 = vld [vmem:[#allocation2 + $0x2680] sm:$0xff]
    %v4261 = vld [vmem:[#allocation2 + $0x2688] sm:$0xff]
    %v4262 = vld [vmem:[#allocation2 + $0x2690] sm:$0xff]
    %v4263 = vld [vmem:[#allocation2 + $0x2698] sm:$0xff]
    %v4264 = vld [vmem:[#allocation2 + $0x26a0] sm:$0xff]
    %v4265 = vld [vmem:[#allocation2 + $0x26a8] sm:$0xff]
    %v4266 = vld [vmem:[#allocation2 + $0x26b0] sm:$0xff]
    %v4267 = vld [vmem:[#allocation2 + $0x26b8] sm:$0xff]
    %v4268 = vld [vmem:[#allocation2 + $0x26c0] sm:$0xff]
    %v4269 = vld [vmem:[#allocation2 + $0x26c8] sm:$0xff]
    %v4270 = vld [vmem:[#allocation2 + $0x26d0] sm:$0xff]
    %v4271 = vld [vmem:[#allocation2 + $0x26d8] sm:$0xff]
    %v4272 = vld [vmem:[#allocation2 + $0x26e0] sm:$0xff]
    %v4273 = vld [vmem:[#allocation2 + $0x26e8] sm:$0xff]
    %v4274 = vld [vmem:[#allocation2 + $0x26f0] sm:$0xff]
    %v4275 = vld [vmem:[#allocation2 + $0x26f8] sm:$0xff]
    %v4276 = vld [vmem:[#allocation2 + $0x2700] sm:$0xff]
    %v4277 = vld [vmem:[#allocation2 + $0x2708] sm:$0xff]
    %v4278 = vld [vmem:[#allocation2 + $0x2710] sm:$0xff]
    %v4279 = vld [vmem:[#allocation2 + $0x2718] sm:$0xff]
    %v4280 = vld [vmem:[#allocation2 + $0x2720] sm:$0xff]
    %v4281 = vld [vmem:[#allocation2 + $0x2728] sm:$0xff]
    %v4282 = vld [vmem:[#allocation2 + $0x2730] sm:$0xff]
    %v4283 = vld [vmem:[#allocation2 + $0x2738] sm:$0xff]
    %v4284 = vld [vmem:[#allocation2 + $0x2740] sm:$0xff]
    %v4285 = vld [vmem:[#allocation2 + $0x2748] sm:$0xff]
    %v4286 = vld [vmem:[#allocation2 + $0x2750] sm:$0xff]
    %v4287 = vld [vmem:[#allocation2 + $0x2758] sm:$0xff]
    %v4288 = vld [vmem:[#allocation2 + $0x2760] sm:$0xff]
    %v4289 = vld [vmem:[#allocation2 + $0x2768] sm:$0xff]
    %v4290 = vld [vmem:[#allocation2 + $0x2770] sm:$0xff]
    %v4291 = vld [vmem:[#allocation2 + $0x2778] sm:$0xff]
    %v4292 = vld [vmem:[#allocation2 + $0x2780] sm:$0xff]
    %v4293 = vld [vmem:[#allocation2 + $0x2788] sm:$0xff]
    %v4294 = vld [vmem:[#allocation2 + $0x2790] sm:$0xff]
    %v4295 = vld [vmem:[#allocation2 + $0x2798] sm:$0xff]
    %v4296 = vld [vmem:[#allocation2 + $0x27a0] sm:$0xff]
    %v4297 = vld [vmem:[#allocation2 + $0x27a8] sm:$0xff]
    %v4298 = vld [vmem:[#allocation2 + $0x27b0] sm:$0xff]
    %v4299 = vld [vmem:[#allocation2 + $0x27b8] sm:$0xff]
    %v4300 = vld [vmem:[#allocation2 + $0x27c0] sm:$0xff]
    %v4301 = vld [vmem:[#allocation2 + $0x27c8] sm:$0xff]
    %v4302 = vld [vmem:[#allocation2 + $0x27d0] sm:$0xff]
    %v4303 = vld [vmem:[#allocation2 + $0x27d8] sm:$0xff]
    %v4304 = vld [vmem:[#allocation2 + $0x27e0] sm:$0xff]
    %v4305 = vld [vmem:[#allocation2 + $0x27e8] sm:$0xff]
    %v4306 = vld [vmem:[#allocation2 + $0x27f0] sm:$0xff]
    %v4307 = vld [vmem:[#allocation2 + $0x27f8] sm:$0xff]
    %v4308 = vld [vmem:[#allocation2 + $0x2800] sm:$0xff]
    %v4309 = vld [vmem:[#allocation2 + $0x2808] sm:$0xff]
    %v4310 = vld [vmem:[#allocation2 + $0x2810] sm:$0xff]
    %v4311 = vld [vmem:[#allocation2 + $0x2818] sm:$0xff]
    %v4312 = vld [vmem:[#allocation2 + $0x2820] sm:$0xff]
    %v4313 = vld [vmem:[#allocation2 + $0x2828] sm:$0xff]
    %v4314 = vld [vmem:[#allocation2 + $0x2830] sm:$0xff]
    %v4315 = vld [vmem:[#allocation2 + $0x2838] sm:$0xff]
    %v4316 = vld [vmem:[#allocation2 + $0x2840] sm:$0xff]
    %v4317 = vld [vmem:[#allocation2 + $0x2848] sm:$0xff]
    %v4318 = vld [vmem:[#allocation2 + $0x2850] sm:$0xff]
    %v4319 = vld [vmem:[#allocation2 + $0x2858] sm:$0xff]
    %v4320 = vld [vmem:[#allocation2 + $0x2860] sm:$0xff]
    %v4321 = vld [vmem:[#allocation2 + $0x2868] sm:$0xff]
    %v4322 = vld [vmem:[#allocation2 + $0x2870] sm:$0xff]
    %v4323 = vld [vmem:[#allocation2 + $0x2878] sm:$0xff]
    %v4324 = vld [vmem:[#allocation2 + $0x2880] sm:$0xff]
    %v4325 = vld [vmem:[#allocation2 + $0x2888] sm:$0xff]
    %v4326 = vld [vmem:[#allocation2 + $0x2890] sm:$0xff]
    %v4327 = vld [vmem:[#allocation2 + $0x2898] sm:$0xff]
    %v4328 = vld [vmem:[#allocation2 + $0x28a0] sm:$0xff]
    %v4329 = vld [vmem:[#allocation2 + $0x28a8] sm:$0xff]
    %v4330 = vld [vmem:[#allocation2 + $0x28b0] sm:$0xff]
    %v4331 = vld [vmem:[#allocation2 + $0x28b8] sm:$0xff]
    %v4332 = vld [vmem:[#allocation2 + $0x28c0] sm:$0xff]
    %v4333 = vld [vmem:[#allocation2 + $0x28c8] sm:$0xff]
    %v4334 = vld [vmem:[#allocation2 + $0x28d0] sm:$0xff]
    %v4335 = vld [vmem:[#allocation2 + $0x28d8] sm:$0xff]
    %v4336 = vld [vmem:[#allocation2 + $0x28e0] sm:$0xff]
    %v4337 = vld [vmem:[#allocation2 + $0x28e8] sm:$0xff]
    %v4338 = vld [vmem:[#allocation2 + $0x28f0] sm:$0xff]
    %v4339 = vld [vmem:[#allocation2 + $0x28f8] sm:$0xff]
    %v4340 = vld [vmem:[#allocation2 + $0x2900] sm:$0xff]
    %v4341 = vld [vmem:[#allocation2 + $0x2908] sm:$0xff]
    %v4342 = vld [vmem:[#allocation2 + $0x2910] sm:$0xff]
    %v4343 = vld [vmem:[#allocation2 + $0x2918] sm:$0xff]
    %v4344 = vld [vmem:[#allocation2 + $0x2920] sm:$0xff]
    %v4345 = vld [vmem:[#allocation2 + $0x2928] sm:$0xff]
    %v4346 = vld [vmem:[#allocation2 + $0x2930] sm:$0xff]
    %v4347 = vld [vmem:[#allocation2 + $0x2938] sm:$0xff]
    %v4348 = vld [vmem:[#allocation2 + $0x2940] sm:$0xff]
    %v4349 = vld [vmem:[#allocation2 + $0x2948] sm:$0xff]
    %v4350 = vld [vmem:[#allocation2 + $0x2950] sm:$0xff]
    %v4351 = vld [vmem:[#allocation2 + $0x2958] sm:$0xff]
    %v4352 = vld [vmem:[#allocation2 + $0x2960] sm:$0xff]
    %v4353 = vld [vmem:[#allocation2 + $0x2968] sm:$0xff]
    %v4354 = vld [vmem:[#allocation2 + $0x2970] sm:$0xff]
    %v4355 = vld [vmem:[#allocation2 + $0x2978] sm:$0xff]
    %v4356 = vld [vmem:[#allocation2 + $0x2980] sm:$0xff]
    %v4357 = vld [vmem:[#allocation2 + $0x2988] sm:$0xff]
    %v4358 = vld [vmem:[#allocation2 + $0x2990] sm:$0xff]
    %v4359 = vld [vmem:[#allocation2 + $0x2998] sm:$0xff]
    %v4360 = vld [vmem:[#allocation2 + $0x29a0] sm:$0xff]
    %v4361 = vld [vmem:[#allocation2 + $0x29a8] sm:$0xff]
    %v4362 = vld [vmem:[#allocation2 + $0x29b0] sm:$0xff]
    %v4363 = vld [vmem:[#allocation2 + $0x29b8] sm:$0xff]
    %v4364 = vld [vmem:[#allocation2 + $0x29c0] sm:$0xff]
    %v4365 = vld [vmem:[#allocation2 + $0x29c8] sm:$0xff]
    %v4366 = vld [vmem:[#allocation2 + $0x29d0] sm:$0xff]
    %v4367 = vld [vmem:[#allocation2 + $0x29d8] sm:$0xff]
    %v4368 = vld [vmem:[#allocation2 + $0x29e0] sm:$0xff]
    %v4369 = vld [vmem:[#allocation2 + $0x29e8] sm:$0xff]
    %v4370 = vld [vmem:[#allocation2 + $0x29f0] sm:$0xff]
    %v4371 = vld [vmem:[#allocation2 + $0x29f8] sm:$0xff]
    %v4372 = vld [vmem:[#allocation15] sm:$0xf]
    %v4374 = vlaneseq
    %v4375 = vshrl.u32 %v4374, 7
    %v4376 = vsub.s32 0, %v4375
    %v4377 = vrot.slane %v4372, %v4376
    %v4378 = vlaneseq
    %v4379 = vshrl.u32 %v4378, 7
    %v4380 = vsub.s32 1, %v4379
    %v4381 = vrot.slane %v4372, %v4380
    %v4382 = vlaneseq
    %v4383 = vshrl.u32 %v4382, 7
    %v4384 = vsub.s32 2, %v4383
    %v4385 = vrot.slane %v4372, %v4384
    %v4386 = vlaneseq
    %v4387 = vshrl.u32 %v4386, 7
    %v4388 = vsub.s32 3, %v4387
    %v4389 = vrot.slane %v4372, %v4388
    %4394 = vmatprep.subr.bf16.mxu0 %v3029
    %4395 = vmatpush1.bf16.msra.mxu0 %v3028
    %4396 = vmatprep.subr.bf16.mxu0 %v3033
    %4397 = vmatpush1.bf16.msra.mxu0 %v3032
    %4398 = vmatprep.subr.bf16.mxu0 %v3037
    %4399 = vmatpush1.bf16.msra.mxu0 %v3036
    %4400 = vmatprep.subr.bf16.mxu0 %v3041
    %4401 = vmatpush1.bf16.msra.mxu0 %v3040
    %4402 = vmatprep.subr.bf16.mxu0 %v3045
    %4403 = vmatpush1.bf16.msra.mxu0 %v3044
    %4404 = vmatprep.subr.bf16.mxu0 %v3049
    %4405 = vmatpush1.bf16.msra.mxu0 %v3048
    %4406 = vmatprep.subr.bf16.mxu0 %v3053
    %4407 = vmatpush1.bf16.msra.mxu0 %v3052
    %4408 = vmatprep.subr.bf16.mxu0 %v3057
    %4409 = vmatpush1.bf16.msra.mxu0 %v3056
    %4410 = vmatprep.subr.bf16.mxu0 %v3061
    %4411 = vmatpush1.bf16.msra.mxu0 %v3060
    %4412 = vmatprep.subr.bf16.mxu0 %v3065
    %4413 = vmatpush1.bf16.msra.mxu0 %v3064
    %4414 = vmatprep.subr.bf16.mxu0 %v3069
    %4415 = vmatpush1.bf16.msra.mxu0 %v3068
    %4416 = vmatprep.subr.bf16.mxu0 %v3073
    %4417 = vmatpush1.bf16.msra.mxu0 %v3072
    %4418 = vmatprep.subr.bf16.mxu0 %v3077
    %4419 = vmatpush1.bf16.msra.mxu0 %v3076
    %4420 = vmatprep.subr.bf16.mxu0 %v3081
    %4421 = vmatpush1.bf16.msra.mxu0 %v3080
    %4422 = vmatprep.subr.bf16.mxu0 %v3085
    %4423 = vmatpush1.bf16.msra.mxu0 %v3084
    %4424 = vmatprep.subr.bf16.mxu0 %v3089
    %4425 = vmatpush1.bf16.msra.mxu0 %v3088
    %4426 = vmatprep.mubr.bf16.mxu0 %v2983
    %4427 = vmatmul.mubr.bf16.gmra.mrb[0].mxu0 %v2982
    %v4428 = vpop.f32.mrb[0].mxu0
    %v4429 = vadd.f32 %v4377, %v4428
    %v4430 = vpop.f32.mrb[0].mxu0
    %v4431 = vadd.f32 %v4381, %v4430
    %v4432 = vpop.f32.mrb[0].mxu0
    %v4433 = vpop.f32.mrb[0].mxu0
    %4434 = vdwg.mxu0
    %4435 = vmatprep.subr.bf16.mxu0 %v3093
    %4436 = vmatpush1.bf16.msra.mxu0 %v3092
    %4437 = vmatprep.subr.bf16.mxu0 %v3097
    %4438 = vmatpush1.bf16.msra.mxu0 %v3096
    %4439 = vmatprep.subr.bf16.mxu0 %v3101
    %4440 = vmatpush1.bf16.msra.mxu0 %v3100
    %4441 = vmatprep.subr.bf16.mxu0 %v3105
    %4442 = vmatpush1.bf16.msra.mxu0 %v3104
    %4443 = vmatprep.subr.bf16.mxu0 %v3109
    %4444 = vmatpush1.bf16.msra.mxu0 %v3108
    %4445 = vmatprep.subr.bf16.mxu0 %v3113
    %4446 = vmatpush1.bf16.msra.mxu0 %v3112
    %4447 = vmatprep.subr.bf16.mxu0 %v3117
    %4448 = vmatpush1.bf16.msra.mxu0 %v3116
    %4449 = vmatprep.subr.bf16.mxu0 %v3121
    %4450 = vmatpush1.bf16.msra.mxu0 %v3120
    %4451 = vmatprep.subr.bf16.mxu0 %v3125
    %4452 = vmatpush1.bf16.msra.mxu0 %v3124
    %4453 = vmatprep.subr.bf16.mxu0 %v3129
    %4454 = vmatpush1.bf16.msra.mxu0 %v3128
    %4455 = vmatprep.subr.bf16.mxu0 %v3133
    %4456 = vmatpush1.bf16.msra.mxu0 %v3132
    %4457 = vmatprep.subr.bf16.mxu0 %v3137
    %4458 = vmatpush1.bf16.msra.mxu0 %v3136
    %4459 = vmatprep.subr.bf16.mxu0 %v3141
    %4460 = vmatpush1.bf16.msra.mxu0 %v3140
    %4461 = vmatprep.subr.bf16.mxu0 %v3145
    %4462 = vmatpush1.bf16.msra.mxu0 %v3144
    %4463 = vmatprep.subr.bf16.mxu0 %v3149
    %4464 = vmatpush1.bf16.msra.mxu0 %v3148
    %4465 = vmatprep.subr.bf16.mxu0 %v3153
    %4466 = vmatpush1.bf16.msra.mxu0 %v3152
    %4467 = vmatprep.mubr.bf16.mxu0 %v2985
    %4468 = vmatmul.mubr.bf16.gmra.mrb[0].mxu0 %v2984
    %v4469 = vpop.f32.mrb[0].mxu0
    %v4470 = vadd.f32 %v4429, %v4469
    %v4471 = vpop.f32.mrb[0].mxu0
    %v4472 = vadd.f32 %v4431, %v4471
    %v4473 = vpop.f32.mrb[0].mxu0
    %v4474 = vpop.f32.mrb[0].mxu0
    %4475 = vdwg.mxu0
    %4476 = vmatprep.subr.bf16.mxu0 %v3157
    %4477 = vmatpush1.bf16.msra.mxu0 %v3156
    %4478 = vmatprep.subr.bf16.mxu0 %v3161
    %4479 = vmatpush1.bf16.msra.mxu0 %v3160
    %4480 = vmatprep.subr.bf16.mxu0 %v3165
    %4481 = vmatpush1.bf16.msra.mxu0 %v3164
    %4482 = vmatprep.subr.bf16.mxu0 %v3169
    %4483 = vmatpush1.bf16.msra.mxu0 %v3168
    %4484 = vmatprep.subr.bf16.mxu0 %v3173
    %4485 = vmatpush1.bf16.msra.mxu0 %v3172
    %4486 = vmatprep.subr.bf16.mxu0 %v3177
    %4487 = vmatpush1.bf16.msra.mxu0 %v3176
    %4488 = vmatprep.subr.bf16.mxu0 %v3181
    %4489 = vmatpush1.bf16.msra.mxu0 %v3180
    %4490 = vmatprep.subr.bf16.mxu0 %v3185
    %4491 = vmatpush1.bf16.msra.mxu0 %v3184
    %4492 = vmatprep.subr.bf16.mxu0 %v3189
    %4493 = vmatpush1.bf16.msra.mxu0 %v3188
    %4494 = vmatprep.subr.bf16.mxu0 %v3193
    %4495 = vmatpush1.bf16.msra.mxu0 %v3192
    %4496 = vmatprep.subr.bf16.mxu0 %v3197
    %4497 = vmatpush1.bf16.msra.mxu0 %v3196
    %4498 = vmatprep.subr.bf16.mxu0 %v3201
    %4499 = vmatpush1.bf16.msra.mxu0 %v3200
    %4500 = vmatprep.subr.bf16.mxu0 %v3205
    %4501 = vmatpush1.bf16.msra.mxu0 %v3204
    %4502 = vmatprep.subr.bf16.mxu0 %v3209
    %4503 = vmatpush1.bf16.msra.mxu0 %v3208
    %4504 = vmatprep.subr.bf16.mxu0 %v3213
    %4505 = vmatpush1.bf16.msra.mxu0 %v3212
    %4506 = vmatprep.subr.bf16.mxu0 %v3217
    %4507 = vmatpush1.bf16.msra.mxu0 %v3216
    %4508 = vmatprep.mubr.bf16.mxu0 %v2987
    %4509 = vmatmul.mubr.bf16.gmra.mrb[0].mxu0 %v2986
    %v4510 = vpop.f32.mrb[0].mxu0
    %v4511 = vadd.f32 %v4470, %v4510
    %v4512 = vpop.f32.mrb[0].mxu0
    %v4513 = vadd.f32 %v4472, %v4512
    %v4514 = vpop.f32.mrb[0].mxu0
    %v4515 = vpop.f32.mrb[0].mxu0
    %4516 = vdwg.mxu0
    %4517 = vmatprep.subr.bf16.mxu0 %v3221
    %4518 = vmatpush1.bf16.msra.mxu0 %v3220
    %4519 = vmatprep.subr.bf16.mxu0 %v3225
    %4520 = vmatpush1.bf16.msra.mxu0 %v3224
    %4521 = vmatprep.subr.bf16.mxu0 %v3229
    %4522 = vmatpush1.bf16.msra.mxu0 %v3228
    %4523 = vmatprep.subr.bf16.mxu0 %v3233
    %4524 = vmatpush1.bf16.msra.mxu0 %v3232
    %4525 = vmatprep.subr.bf16.mxu0 %v3237
    %4526 = vmatpush1.bf16.msra.mxu0 %v3236
    %4527 = vmatprep.subr.bf16.mxu0 %v3241
    %4528 = vmatpush1.bf16.msra.mxu0 %v3240
    %4529 = vmatprep.subr.bf16.mxu0 %v3245
    %4530 = vmatpush1.bf16.msra.mxu0 %v3244
    %4531 = vmatprep.subr.bf16.mxu0 %v3249
    %4532 = vmatpush1.bf16.msra.mxu0 %v3248
    %4533 = vmatprep.subr.bf16.mxu0 %v3253
    %4534 = vmatpush1.bf16.msra.mxu0 %v3252
    %4535 = vmatprep.subr.bf16.mxu0 %v3257
    %4536 = vmatpush1.bf16.msra.mxu0 %v3256
    %4537 = vmatprep.subr.bf16.mxu0 %v3261
    %4538 = vmatpush1.bf16.msra.mxu0 %v3260
    %4539 = vmatprep.subr.bf16.mxu0 %v3265
    %4540 = vmatpush1.bf16.msra.mxu0 %v3264
    %4541 = vmatprep.subr.bf16.mxu0 %v3269
    %4542 = vmatpush1.bf16.msra.mxu0 %v3268
    %4543 = vmatprep.subr.bf16.mxu0 %v3273
    %4544 = vmatpush1.bf16.msra.mxu0 %v3272
    %4545 = vmatprep.subr.bf16.mxu0 %v3277
    %4546 = vmatpush1.bf16.msra.mxu0 %v3276
    %4547 = vmatprep.subr.bf16.mxu0 %v3281
    %4548 = vmatpush1.bf16.msra.mxu0 %v3280
    %4549 = vmatprep.mubr.bf16.mxu0 %v2989
    %4550 = vmatmul.mubr.bf16.gmra.mrb[0].mxu0 %v2988
    %v4551 = vpop.f32.mrb[0].mxu0
    %v4552 = vadd.f32 %v4511, %v4551
    %v4553 = vpop.f32.mrb[0].mxu0
    %v4554 = vadd.f32 %v4513, %v4553
    %v4555 = vpop.f32.mrb[0].mxu0
    %v4556 = vpop.f32.mrb[0].mxu0
    %4557 = vdwg.mxu0
    %4558 = vmatprep.subr.bf16.mxu0 %v3285
    %4559 = vmatpush1.bf16.msra.mxu0 %v3284
    %4560 = vmatprep.subr.bf16.mxu0 %v3289
    %4561 = vmatpush1.bf16.msra.mxu0 %v3288
    %4562 = vmatprep.subr.bf16.mxu0 %v3293
    %4563 = vmatpush1.bf16.msra.mxu0 %v3292
    %4564 = vmatprep.subr.bf16.mxu0 %v3297
    %4565 = vmatpush1.bf16.msra.mxu0 %v3296
    %4566 = vmatprep.subr.bf16.mxu0 %v3301
    %4567 = vmatpush1.bf16.msra.mxu0 %v3300
    %4568 = vmatprep.subr.bf16.mxu0 %v3305
    %4569 = vmatpush1.bf16.msra.mxu0 %v3304
    %4570 = vmatprep.subr.bf16.mxu0 %v3309
    %4571 = vmatpush1.bf16.msra.mxu0 %v3308
    %4572 = vmatprep.subr.bf16.mxu0 %v3313
    %4573 = vmatpush1.bf16.msra.mxu0 %v3312
    %4574 = vmatprep.subr.bf16.mxu0 %v3317
    %4575 = vmatpush1.bf16.msra.mxu0 %v3316
    %4576 = vmatprep.subr.bf16.mxu0 %v3321
    %4577 = vmatpush1.bf16.msra.mxu0 %v3320
    %4578 = vmatprep.subr.bf16.mxu0 %v3325
    %4579 = vmatpush1.bf16.msra.mxu0 %v3324
    %4580 = vmatprep.subr.bf16.mxu0 %v3329
    %4581 = vmatpush1.bf16.msra.mxu0 %v3328
    %4582 = vmatprep.subr.bf16.mxu0 %v3333
    %4583 = vmatpush1.bf16.msra.mxu0 %v3332
    %4584 = vmatprep.subr.bf16.mxu0 %v3337
    %4585 = vmatpush1.bf16.msra.mxu0 %v3336
    %4586 = vmatprep.subr.bf16.mxu0 %v3341
    %4587 = vmatpush1.bf16.msra.mxu0 %v3340
    %4588 = vmatprep.subr.bf16.mxu0 %v3345
    %4589 = vmatpush1.bf16.msra.mxu0 %v3344
    %4590 = vmatprep.mubr.bf16.mxu0 %v2991
    %4591 = vmatmul.mubr.bf16.gmra.mrb[0].mxu0 %v2990
    %v4592 = vpop.f32.mrb[0].mxu0
    %v4593 = vadd.f32 %v4552, %v4592
    %v4594 = vpop.f32.mrb[0].mxu0
    %v4595 = vadd.f32 %v4554, %v4594
    %v4596 = vpop.f32.mrb[0].mxu0
    %v4597 = vpop.f32.mrb[0].mxu0
    %4598 = vdwg.mxu0
    %4599 = vmatprep.subr.bf16.mxu0 %v3349
    %4600 = vmatpush1.bf16.msra.mxu0 %v3348
    %4601 = vmatprep.subr.bf16.mxu0 %v3353
    %4602 = vmatpush1.bf16.msra.mxu0 %v3352
    %4603 = vmatprep.subr.bf16.mxu0 %v3357
    %4604 = vmatpush1.bf16.msra.mxu0 %v3356
    %4605 = vmatprep.subr.bf16.mxu0 %v3361
    %4606 = vmatpush1.bf16.msra.mxu0 %v3360
    %4607 = vmatprep.subr.bf16.mxu0 %v3365
    %4608 = vmatpush1.bf16.msra.mxu0 %v3364
    %4609 = vmatprep.subr.bf16.mxu0 %v3369
    %4610 = vmatpush1.bf16.msra.mxu0 %v3368
    %4611 = vmatprep.subr.bf16.mxu0 %v3373
    %4612 = vmatpush1.bf16.msra.mxu0 %v3372
    %4613 = vmatprep.subr.bf16.mxu0 %v3377
    %4614 = vmatpush1.bf16.msra.mxu0 %v3376
    %4615 = vmatprep.subr.bf16.mxu0 %v3381
    %4616 = vmatpush1.bf16.msra.mxu0 %v3380
    %4617 = vmatprep.subr.bf16.mxu0 %v3385
    %4618 = vmatpush1.bf16.msra.mxu0 %v3384
    %4619 = vmatprep.subr.bf16.mxu0 %v3389
    %4620 = vmatpush1.bf16.msra.mxu0 %v3388
    %4621 = vmatprep.subr.bf16.mxu0 %v3393
    %4622 = vmatpush1.bf16.msra.mxu0 %v3392
    %4623 = vmatprep.subr.bf16.mxu0 %v3397
    %4624 = vmatpush1.bf16.msra.mxu0 %v3396
    %4625 = vmatprep.subr.bf16.mxu0 %v3401
    %4626 = vmatpush1.bf16.msra.mxu0 %v3400
    %4627 = vmatprep.subr.bf16.mxu0 %v3405
    %4628 = vmatpush1.bf16.msra.mxu0 %v3404
    %4629 = vmatprep.subr.bf16.mxu0 %v3409
    %4630 = vmatpush1.bf16.msra.mxu0 %v3408
    %4631 = vmatprep.mubr.bf16.mxu0 %v2993
    %4632 = vmatmul.mubr.bf16.gmra.mrb[0].mxu0 %v2992
    %v4633 = vpop.f32.mrb[0].mxu0
    %v4634 = vadd.f32 %v4593, %v4633
    %v4635 = vpop.f32.mrb[0].mxu0
    %v4636 = vadd.f32 %v4595, %v4635
    %v4637 = vpop.f32.mrb[0].mxu0
    %v4638 = vpop.f32.mrb[0].mxu0
    %4639 = vdwg.mxu0
    %4640 = vmatprep.subr.bf16.mxu0 %v3413
    %4641 = vmatpush1.bf16.msra.mxu0 %v3412
    %4642 = vmatprep.subr.bf16.mxu0 %v3417
    %4643 = vmatpush1.bf16.msra.mxu0 %v3416
    %4644 = vmatprep.subr.bf16.mxu0 %v3421
    %4645 = vmatpush1.bf16.msra.mxu0 %v3420
    %4646 = vmatprep.subr.bf16.mxu0 %v3425
    %4647 = vmatpush1.bf16.msra.mxu0 %v3424
    %4648 = vmatprep.subr.bf16.mxu0 %v3429
    %4649 = vmatpush1.bf16.msra.mxu0 %v3428
    %4650 = vmatprep.subr.bf16.mxu0 %v3433
    %4651 = vmatpush1.bf16.msra.mxu0 %v3432
    %4652 = vmatprep.subr.bf16.mxu0 %v3437
    %4653 = vmatpush1.bf16.msra.mxu0 %v3436
    %4654 = vmatprep.subr.bf16.mxu0 %v3441
    %4655 = vmatpush1.bf16.msra.mxu0 %v3440
    %4656 = vmatprep.subr.bf16.mxu0 %v3445
    %4657 = vmatpush1.bf16.msra.mxu0 %v3444
    %4658 = vmatprep.subr.bf16.mxu0 %v3449
    %4659 = vmatpush1.bf16.msra.mxu0 %v3448
    %4660 = vmatprep.subr.bf16.mxu0 %v3453
    %4661 = vmatpush1.bf16.msra.mxu0 %v3452
    %4662 = vmatprep.subr.bf16.mxu0 %v3457
    %4663 = vmatpush1.bf16.msra.mxu0 %v3456
    %4664 = vmatprep.subr.bf16.mxu0 %v3461
    %4665 = vmatpush1.bf16.msra.mxu0 %v3460
    %4666 = vmatprep.subr.bf16.mxu0 %v3465
    %4667 = vmatpush1.bf16.msra.mxu0 %v3464
    %4668 = vmatprep.subr.bf16.mxu0 %v3469
    %4669 = vmatpush1.bf16.msra.mxu0 %v3468
    %4670 = vmatprep.subr.bf16.mxu0 %v3473
    %4671 = vmatpush1.bf16.msra.mxu0 %v3472
    %4672 = vmatprep.mubr.bf16.mxu0 %v2995
    %4673 = vmatmul.mubr.bf16.gmra.mrb[0].mxu0 %v2994
    %v4674 = vpop.f32.mrb[0].mxu0
    %v4675 = vadd.f32 %v4634, %v4674
    %v4676 = vpop.f32.mrb[0].mxu0
    %v4677 = vadd.f32 %v4636, %v4676
    %v4678 = vpop.f32.mrb[0].mxu0
    %v4679 = vpop.f32.mrb[0].mxu0
    %4680 = vdwg.mxu0
    %4681 = vmatprep.subr.bf16.mxu0 %v3477
    %4682 = vmatpush1.bf16.msra.mxu0 %v3476
    %4683 = vmatprep.subr.bf16.mxu0 %v3481
    %4684 = vmatpush1.bf16.msra.mxu0 %v3480
    %4685 = vmatprep.subr.bf16.mxu0 %v3485
    %4686 = vmatpush1.bf16.msra.mxu0 %v3484
    %4687 = vmatprep.subr.bf16.mxu0 %v3489
    %4688 = vmatpush1.bf16.msra.mxu0 %v3488
    %4689 = vmatprep.subr.bf16.mxu0 %v3493
    %4690 = vmatpush1.bf16.msra.mxu0 %v3492
    %4691 = vmatprep.subr.bf16.mxu0 %v3497
    %4692 = vmatpush1.bf16.msra.mxu0 %v3496
    %4693 = vmatprep.subr.bf16.mxu0 %v3501
    %4694 = vmatpush1.bf16.msra.mxu0 %v3500
    %4695 = vmatprep.subr.bf16.mxu0 %v3505
    %4696 = vmatpush1.bf16.msra.mxu0 %v3504
    %4697 = vmatprep.subr.bf16.mxu0 %v3509
    %4698 = vmatpush1.bf16.msra.mxu0 %v3508
    %4699 = vmatprep.subr.bf16.mxu0 %v3513
    %4700 = vmatpush1.bf16.msra.mxu0 %v3512
    %4701 = vmatprep.subr.bf16.mxu0 %v3517
    %4702 = vmatpush1.bf16.msra.mxu0 %v3516
    %4703 = vmatprep.subr.bf16.mxu0 %v3521
    %4704 = vmatpush1.bf16.msra.mxu0 %v3520
    %4705 = vmatprep.subr.bf16.mxu0 %v3525
    %4706 = vmatpush1.bf16.msra.mxu0 %v3524
    %4707 = vmatprep.subr.bf16.mxu0 %v3529
    %4708 = vmatpush1.bf16.msra.mxu0 %v3528
    %4709 = vmatprep.subr.bf16.mxu0 %v3533
    %4710 = vmatpush1.bf16.msra.mxu0 %v3532
    %4711 = vmatprep.subr.bf16.mxu0 %v3537
    %4712 = vmatpush1.bf16.msra.mxu0 %v3536
    %4713 = vmatprep.mubr.bf16.mxu0 %v2997
    %4714 = vmatmul.mubr.bf16.gmra.mrb[0].mxu0 %v2996
    %v4715 = vpop.f32.mrb[0].mxu0
    %v4716 = vadd.f32 %v4675, %v4715
    %v4717 = vpop.f32.mrb[0].mxu0
    %v4718 = vadd.f32 %v4677, %v4717
    %v4719 = vpop.f32.mrb[0].mxu0
    %v4720 = vpop.f32.mrb[0].mxu0
    %4721 = vdwg.mxu0
    %4722 = vmatprep.subr.bf16.mxu0 %v3541
    %4723 = vmatpush1.bf16.msra.mxu0 %v3540
    %4724 = vmatprep.subr.bf16.mxu0 %v3545
    %4725 = vmatpush1.bf16.msra.mxu0 %v3544
    %4726 = vmatprep.subr.bf16.mxu0 %v3549
    %4727 = vmatpush1.bf16.msra.mxu0 %v3548
    %4728 = vmatprep.subr.bf16.mxu0 %v3553
    %4729 = vmatpush1.bf16.msra.mxu0 %v3552
    %4730 = vmatprep.subr.bf16.mxu0 %v3557
    %4731 = vmatpush1.bf16.msra.mxu0 %v3556
    %4732 = vmatprep.subr.bf16.mxu0 %v3561
    %4733 = vmatpush1.bf16.msra.mxu0 %v3560
    %4734 = vmatprep.subr.bf16.mxu0 %v3565
    %4735 = vmatpush1.bf16.msra.mxu0 %v3564
    %4736 = vmatprep.subr.bf16.mxu0 %v3569
    %4737 = vmatpush1.bf16.msra.mxu0 %v3568
    %4738 = vmatprep.subr.bf16.mxu0 %v3573
    %4739 = vmatpush1.bf16.msra.mxu0 %v3572
    %4740 = vmatprep.subr.bf16.mxu0 %v3577
    %4741 = vmatpush1.bf16.msra.mxu0 %v3576
    %4742 = vmatprep.subr.bf16.mxu0 %v3581
    %4743 = vmatpush1.bf16.msra.mxu0 %v3580
    %4744 = vmatprep.subr.bf16.mxu0 %v3585
    %4745 = vmatpush1.bf16.msra.mxu0 %v3584
    %4746 = vmatprep.subr.bf16.mxu0 %v3589
    %4747 = vmatpush1.bf16.msra.mxu0 %v3588
    %4748 = vmatprep.subr.bf16.mxu0 %v3593
    %4749 = vmatpush1.bf16.msra.mxu0 %v3592
    %4750 = vmatprep.subr.bf16.mxu0 %v3597
    %4751 = vmatpush1.bf16.msra.mxu0 %v3596
    %4752 = vmatprep.subr.bf16.mxu0 %v3601
    %4753 = vmatpush1.bf16.msra.mxu0 %v3600
    %4754 = vmatprep.mubr.bf16.mxu0 %v2999
    %4755 = vmatmul.mubr.bf16.gmra.mrb[0].mxu0 %v2998
    %v4756 = vpop.f32.mrb[0].mxu0
    %v4757 = vadd.f32 %v4716, %v4756
    %v4758 = vpop.f32.mrb[0].mxu0
    %v4759 = vadd.f32 %v4718, %v4758
    %v4760 = vpop.f32.mrb[0].mxu0
    %v4761 = vpop.f32.mrb[0].mxu0
    %4762 = vdwg.mxu0
    %4763 = vmatprep.subr.bf16.mxu0 %v3605
    %4764 = vmatpush1.bf16.msra.mxu0 %v3604
    %4765 = vmatprep.subr.bf16.mxu0 %v3609
    %4766 = vmatpush1.bf16.msra.mxu0 %v3608
    %4767 = vmatprep.subr.bf16.mxu0 %v3613
    %4768 = vmatpush1.bf16.msra.mxu0 %v3612
    %4769 = vmatprep.subr.bf16.mxu0 %v3617
    %4770 = vmatpush1.bf16.msra.mxu0 %v3616
    %4771 = vmatprep.subr.bf16.mxu0 %v3621
    %4772 = vmatpush1.bf16.msra.mxu0 %v3620
    %4773 = vmatprep.subr.bf16.mxu0 %v3625
    %4774 = vmatpush1.bf16.msra.mxu0 %v3624
    %4775 = vmatprep.subr.bf16.mxu0 %v3629
    %4776 = vmatpush1.bf16.msra.mxu0 %v3628
    %4777 = vmatprep.subr.bf16.mxu0 %v3633
    %4778 = vmatpush1.bf16.msra.mxu0 %v3632
    %4779 = vmatprep.subr.bf16.mxu0 %v3637
    %4780 = vmatpush1.bf16.msra.mxu0 %v3636
    %4781 = vmatprep.subr.bf16.mxu0 %v3641
    %4782 = vmatpush1.bf16.msra.mxu0 %v3640
    %4783 = vmatprep.subr.bf16.mxu0 %v3645
    %4784 = vmatpush1.bf16.msra.mxu0 %v3644
    %4785 = vmatprep.subr.bf16.mxu0 %v3649
    %4786 = vmatpush1.bf16.msra.mxu0 %v3648
    %4787 = vmatprep.subr.bf16.mxu0 %v3653
    %4788 = vmatpush1.bf16.msra.mxu0 %v3652
    %4789 = vmatprep.subr.bf16.mxu0 %v3657
    %4790 = vmatpush1.bf16.msra.mxu0 %v3656
    %4791 = vmatprep.subr.bf16.mxu0 %v3661
    %4792 = vmatpush1.bf16.msra.mxu0 %v3660
    %4793 = vmatprep.subr.bf16.mxu0 %v3665
    %4794 = vmatpush1.bf16.msra.mxu0 %v3664
    %4795 = vmatprep.mubr.bf16.mxu0 %v3001
    %4796 = vmatmul.mubr.bf16.gmra.mrb[0].mxu0 %v3000
    %v4797 = vpop.f32.mrb[0].mxu0
    %v4798 = vadd.f32 %v4757, %v4797
    %v4799 = vpop.f32.mrb[0].mxu0
    %v4800 = vadd.f32 %v4759, %v4799
    %v4801 = vpop.f32.mrb[0].mxu0
    %v4802 = vpop.f32.mrb[0].mxu0
    %4803 = vdwg.mxu0
    %4804 = vmatprep.subr.bf16.mxu0 %v3669
    %4805 = vmatpush1.bf16.msra.mxu0 %v3668
    %4806 = vmatprep.subr.bf16.mxu0 %v3673
    %4807 = vmatpush1.bf16.msra.mxu0 %v3672
    %4808 = vmatprep.subr.bf16.mxu0 %v3677
    %4809 = vmatpush1.bf16.msra.mxu0 %v3676
    %4810 = vmatprep.subr.bf16.mxu0 %v3681
    %4811 = vmatpush1.bf16.msra.mxu0 %v3680
    %4812 = vmatprep.subr.bf16.mxu0 %v3685
    %4813 = vmatpush1.bf16.msra.mxu0 %v3684
    %4814 = vmatprep.subr.bf16.mxu0 %v3689
    %4815 = vmatpush1.bf16.msra.mxu0 %v3688
    %4816 = vmatprep.subr.bf16.mxu0 %v3693
    %4817 = vmatpush1.bf16.msra.mxu0 %v3692
    %4818 = vmatprep.subr.bf16.mxu0 %v3697
    %4819 = vmatpush1.bf16.msra.mxu0 %v3696
    %4820 = vmatprep.subr.bf16.mxu0 %v3701
    %4821 = vmatpush1.bf16.msra.mxu0 %v3700
    %4822 = vmatprep.subr.bf16.mxu0 %v3705
    %4823 = vmatpush1.bf16.msra.mxu0 %v3704
    %4824 = vmatprep.subr.bf16.mxu0 %v3709
    %4825 = vmatpush1.bf16.msra.mxu0 %v3708
    %4826 = vmatprep.subr.bf16.mxu0 %v3713
    %4827 = vmatpush1.bf16.msra.mxu0 %v3712
    %4828 = vmatprep.subr.bf16.mxu0 %v3717
    %4829 = vmatpush1.bf16.msra.mxu0 %v3716
    %4830 = vmatprep.subr.bf16.mxu0 %v3721
    %4831 = vmatpush1.bf16.msra.mxu0 %v3720
    %4832 = vmatprep.subr.bf16.mxu0 %v3725
    %4833 = vmatpush1.bf16.msra.mxu0 %v3724
    %4834 = vmatprep.subr.bf16.mxu0 %v3729
    %4835 = vmatpush1.bf16.msra.mxu0 %v3728
    %4836 = vmatprep.mubr.bf16.mxu0 %v3003
    %4837 = vmatmul.mubr.bf16.gmra.mrb[0].mxu0 %v3002
    %v4838 = vpop.f32.mrb[0].mxu0
    %v4839 = vadd.f32 %v4798, %v4838
    %v4840 = vpop.f32.mrb[0].mxu0
    %v4841 = vadd.f32 %v4800, %v4840
    %v4842 = vpop.f32.mrb[0].mxu0
    %v4843 = vpop.f32.mrb[0].mxu0
    %4844 = vdwg.mxu0
    %4845 = vmatprep.subr.bf16.mxu0 %v3733
    %4846 = vmatpush1.bf16.msra.mxu0 %v3732
    %4847 = vmatprep.subr.bf16.mxu0 %v3737
    %4848 = vmatpush1.bf16.msra.mxu0 %v3736
    %4849 = vmatprep.subr.bf16.mxu0 %v3741
    %4850 = vmatpush1.bf16.msra.mxu0 %v3740
    %4851 = vmatprep.subr.bf16.mxu0 %v3745
    %4852 = vmatpush1.bf16.msra.mxu0 %v3744
    %4853 = vmatprep.subr.bf16.mxu0 %v3749
    %4854 = vmatpush1.bf16.msra.mxu0 %v3748
    %4855 = vmatprep.subr.bf16.mxu0 %v3753
    %4856 = vmatpush1.bf16.msra.mxu0 %v3752
    %4857 = vmatprep.subr.bf16.mxu0 %v3757
    %4858 = vmatpush1.bf16.msra.mxu0 %v3756
    %4859 = vmatprep.subr.bf16.mxu0 %v3761
    %4860 = vmatpush1.bf16.msra.mxu0 %v3760
    %4861 = vmatprep.subr.bf16.mxu0 %v3765
    %4862 = vmatpush1.bf16.msra.mxu0 %v3764
    %4863 = vmatprep.subr.bf16.mxu0 %v3769
    %4864 = vmatpush1.bf16.msra.mxu0 %v3768
    %4865 = vmatprep.subr.bf16.mxu0 %v3773
    %4866 = vmatpush1.bf16.msra.mxu0 %v3772
    %4867 = vmatprep.subr.bf16.mxu0 %v3777
    %4868 = vmatpush1.bf16.msra.mxu0 %v3776
    %4869 = vmatprep.subr.bf16.mxu0 %v3781
    %4870 = vmatpush1.bf16.msra.mxu0 %v3780
    %4871 = vmatprep.subr.bf16.mxu0 %v3785
    %4872 = vmatpush1.bf16.msra.mxu0 %v3784
    %4873 = vmatprep.subr.bf16.mxu0 %v3789
    %4874 = vmatpush1.bf16.msra.mxu0 %v3788
    %4875 = vmatprep.subr.bf16.mxu0 %v3793
    %4876 = vmatpush1.bf16.msra.mxu0 %v3792
    %4877 = vmatprep.mubr.bf16.mxu0 %v3005
    %4878 = vmatmul.mubr.bf16.gmra.mrb[0].mxu0 %v3004
    %v4879 = vpop.f32.mrb[0].mxu0
    %v4880 = vadd.f32 %v4839, %v4879
    %v4881 = vpop.f32.mrb[0].mxu0
    %v4882 = vadd.f32 %v4841, %v4881
    %v4883 = vpop.f32.mrb[0].mxu0
    %v4884 = vpop.f32.mrb[0].mxu0
    %4885 = vdwg.mxu0
    %4886 = vmatprep.subr.bf16.mxu0 %v3797
    %4887 = vmatpush1.bf16.msra.mxu0 %v3796
    %4888 = vmatprep.subr.bf16.mxu0 %v3801
    %4889 = vmatpush1.bf16.msra.mxu0 %v3800
    %4890 = vmatprep.subr.bf16.mxu0 %v3805
    %4891 = vmatpush1.bf16.msra.mxu0 %v3804
    %4892 = vmatprep.subr.bf16.mxu0 %v3809
    %4893 = vmatpush1.bf16.msra.mxu0 %v3808
    %4894 = vmatprep.subr.bf16.mxu0 %v3813
    %4895 = vmatpush1.bf16.msra.mxu0 %v3812
    %4896 = vmatprep.subr.bf16.mxu0 %v3817
    %4897 = vmatpush1.bf16.msra.mxu0 %v3816
    %4898 = vmatprep.subr.bf16.mxu0 %v3821
    %4899 = vmatpush1.bf16.msra.mxu0 %v3820
    %4900 = vmatprep.subr.bf16.mxu0 %v3825
    %4901 = vmatpush1.bf16.msra.mxu0 %v3824
    %4902 = vmatprep.subr.bf16.mxu0 %v3829
    %4903 = vmatpush1.bf16.msra.mxu0 %v3828
    %4904 = vmatprep.subr.bf16.mxu0 %v3833
    %4905 = vmatpush1.bf16.msra.mxu0 %v3832
    %4906 = vmatprep.subr.bf16.mxu0 %v3837
    %4907 = vmatpush1.bf16.msra.mxu0 %v3836
    %4908 = vmatprep.subr.bf16.mxu0 %v3841
    %4909 = vmatpush1.bf16.msra.mxu0 %v3840
    %4910 = vmatprep.subr.bf16.mxu0 %v3845
    %4911 = vmatpush1.bf16.msra.mxu0 %v3844
    %4912 = vmatprep.subr.bf16.mxu0 %v3849
    %4913 = vmatpush1.bf16.msra.mxu0 %v3848
    %4914 = vmatprep.subr.bf16.mxu0 %v3853
    %4915 = vmatpush1.bf16.msra.mxu0 %v3852
    %4916 = vmatprep.subr.bf16.mxu0 %v3857
    %4917 = vmatpush1.bf16.msra.mxu0 %v3856
    %4918 = vmatprep.mubr.bf16.mxu0 %v3007
    %4919 = vmatmul.mubr.bf16.gmra.mrb[0].mxu0 %v3006
    %v4920 = vpop.f32.mrb[0].mxu0
    %v4921 = vadd.f32 %v4880, %v4920
    %v4922 = vpop.f32.mrb[0].mxu0
    %v4923 = vadd.f32 %v4882, %v4922
    %v4924 = vpop.f32.mrb[0].mxu0
    %v4925 = vpop.f32.mrb[0].mxu0
    %4926 = vdwg.mxu0
    %4927 = vmatprep.subr.bf16.mxu0 %v3861
    %4928 = vmatpush1.bf16.msra.mxu0 %v3860
    %4929 = vmatprep.subr.bf16.mxu0 %v3865
    %4930 = vmatpush1.bf16.msra.mxu0 %v3864
    %4931 = vmatprep.subr.bf16.mxu0 %v3869
    %4932 = vmatpush1.bf16.msra.mxu0 %v3868
    %4933 = vmatprep.subr.bf16.mxu0 %v3873
    %4934 = vmatpush1.bf16.msra.mxu0 %v3872
    %4935 = vmatprep.subr.bf16.mxu0 %v3877
    %4936 = vmatpush1.bf16.msra.mxu0 %v3876
    %4937 = vmatprep.subr.bf16.mxu0 %v3881
    %4938 = vmatpush1.bf16.msra.mxu0 %v3880
    %4939 = vmatprep.subr.bf16.mxu0 %v3885
    %4940 = vmatpush1.bf16.msra.mxu0 %v3884
    %4941 = vmatprep.subr.bf16.mxu0 %v3889
    %4942 = vmatpush1.bf16.msra.mxu0 %v3888
    %4943 = vmatprep.subr.bf16.mxu0 %v3893
    %4944 = vmatpush1.bf16.msra.mxu0 %v3892
    %4945 = vmatprep.subr.bf16.mxu0 %v3897
    %4946 = vmatpush1.bf16.msra.mxu0 %v3896
    %4947 = vmatprep.subr.bf16.mxu0 %v3901
    %4948 = vmatpush1.bf16.msra.mxu0 %v3900
    %4949 = vmatprep.subr.bf16.mxu0 %v3905
    %4950 = vmatpush1.bf16.msra.mxu0 %v3904
    %4951 = vmatprep.subr.bf16.mxu0 %v3909
    %4952 = vmatpush1.bf16.msra.mxu0 %v3908
    %4953 = vmatprep.subr.bf16.mxu0 %v3913
    %4954 = vmatpush1.bf16.msra.mxu0 %v3912
    %4955 = vmatprep.subr.bf16.mxu0 %v3917
    %4956 = vmatpush1.bf16.msra.mxu0 %v3916
    %4957 = vmatprep.subr.bf16.mxu0 %v3921
    %4958 = vmatpush1.bf16.msra.mxu0 %v3920
    %4959 = vmatprep.mubr.bf16.mxu0 %v3009
    %4960 = vmatmul.mubr.bf16.gmra.mrb[0].mxu0 %v3008
    %v4961 = vpop.f32.mrb[0].mxu0
    %v4962 = vadd.f32 %v4921, %v4961
    %v4963 = vpop.f32.mrb[0].mxu0
    %v4964 = vadd.f32 %v4923, %v4963
    %v4965 = vpop.f32.mrb[0].mxu0
    %v4966 = vpop.f32.mrb[0].mxu0
    %4967 = vdwg.mxu0
    %4968 = vmatprep.subr.bf16.mxu0 %v3925
    %4969 = vmatpush1.bf16.msra.mxu0 %v3924
    %4970 = vmatprep.subr.bf16.mxu0 %v3929
    %4971 = vmatpush1.bf16.msra.mxu0 %v3928
    %4972 = vmatprep.subr.bf16.mxu0 %v3933
    %4973 = vmatpush1.bf16.msra.mxu0 %v3932
    %4974 = vmatprep.subr.bf16.mxu0 %v3937
    %4975 = vmatpush1.bf16.msra.mxu0 %v3936
    %4976 = vmatprep.subr.bf16.mxu0 %v3941
    %4977 = vmatpush1.bf16.msra.mxu0 %v3940
    %4978 = vmatprep.subr.bf16.mxu0 %v3945
    %4979 = vmatpush1.bf16.msra.mxu0 %v3944
    %4980 = vmatprep.subr.bf16.mxu0 %v3949
    %4981 = vmatpush1.bf16.msra.mxu0 %v3948
    %4982 = vmatprep.subr.bf16.mxu0 %v3953
    %4983 = vmatpush1.bf16.msra.mxu0 %v3952
    %4984 = vmatprep.subr.bf16.mxu0 %v3957
    %4985 = vmatpush1.bf16.msra.mxu0 %v3956
    %4986 = vmatprep.subr.bf16.mxu0 %v3961
    %4987 = vmatpush1.bf16.msra.mxu0 %v3960
    %4988 = vmatprep.subr.bf16.mxu0 %v3965
    %4989 = vmatpush1.bf16.msra.mxu0 %v3964
    %4990 = vmatprep.subr.bf16.mxu0 %v3969
    %4991 = vmatpush1.bf16.msra.mxu0 %v3968
    %4992 = vmatprep.subr.bf16.mxu0 %v3973
    %4993 = vmatpush1.bf16.msra.mxu0 %v3972
    %4994 = vmatprep.subr.bf16.mxu0 %v3977
    %4995 = vmatpush1.bf16.msra.mxu0 %v3976
    %4996 = vmatprep.subr.bf16.mxu0 %v3981
    %4997 = vmatpush1.bf16.msra.mxu0 %v3980
    %4998 = vmatprep.subr.bf16.mxu0 %v3985
    %4999 = vmatpush1.bf16.msra.mxu0 %v3984
    %5000 = vmatprep.mubr.bf16.mxu0 %v3011
    %5001 = vmatmul.mubr.bf16.gmra.mrb[0].mxu0 %v3010
    %v5002 = vpop.f32.mrb[0].mxu0
    %v5003 = vadd.f32 %v4962, %v5002
    %v5004 = vpop.f32.mrb[0].mxu0
    %v5005 = vadd.f32 %v4964, %v5004
    %v5006 = vpop.f32.mrb[0].mxu0
    %v5007 = vpop.f32.mrb[0].mxu0
    %5008 = vdwg.mxu0
    %5009 = vmatprep.subr.bf16.mxu0 %v3989
    %5010 = vmatpush1.bf16.msra.mxu0 %v3988
    %5011 = vmatprep.subr.bf16.mxu0 %v3993
    %5012 = vmatpush1.bf16.msra.mxu0 %v3992
    %5013 = vmatprep.subr.bf16.mxu0 %v3997
    %5014 = vmatpush1.bf16.msra.mxu0 %v3996
    %5015 = vmatprep.subr.bf16.mxu0 %v4001
    %5016 = vmatpush1.bf16.msra.mxu0 %v4000
    %5017 = vmatprep.subr.bf16.mxu0 %v4005
    %5018 = vmatpush1.bf16.msra.mxu0 %v4004
    %5019 = vmatprep.subr.bf16.mxu0 %v4009
    %5020 = vmatpush1.bf16.msra.mxu0 %v4008
    %5021 = vmatprep.subr.bf16.mxu0 %v4013
    %5022 = vmatpush1.bf16.msra.mxu0 %v4012
    %5023 = vmatprep.subr.bf16.mxu0 %v4017
    %5024 = vmatpush1.bf16.msra.mxu0 %v4016
    %5025 = vmatprep.subr.bf16.mxu0 %v4021
    %5026 = vmatpush1.bf16.msra.mxu0 %v4020
    %5027 = vmatprep.subr.bf16.mxu0 %v4025
    %5028 = vmatpush1.bf16.msra.mxu0 %v4024
    %5029 = vmatprep.subr.bf16.mxu0 %v4029
    %5030 = vmatpush1.bf16.msra.mxu0 %v4028
    %5031 = vmatprep.subr.bf16.mxu0 %v4033
    %5032 = vmatpush1.bf16.msra.mxu0 %v4032
    %5033 = vmatprep.subr.bf16.mxu0 %v4037
    %5034 = vmatpush1.bf16.msra.mxu0 %v4036
    %5035 = vmatprep.subr.bf16.mxu0 %v4041
    %5036 = vmatpush1.bf16.msra.mxu0 %v4040
    %5037 = vmatprep.subr.bf16.mxu0 %v4045
    %5038 = vmatpush1.bf16.msra.mxu0 %v4044
    %5039 = vmatprep.subr.bf16.mxu0 %v4049
    %5040 = vmatpush1.bf16.msra.mxu0 %v4048
    %5041 = vmatprep.mubr.bf16.mxu0 %v3013
    %5042 = vmatmul.mubr.bf16.gmra.mrb[0].mxu0 %v3012
    %v5043 = vpop.f32.mrb[0].mxu0
    %v5044 = vadd.f32 %v5003, %v5043
    %v5045 = vpop.f32.mrb[0].mxu0
    %v5046 = vadd.f32 %v5005, %v5045
    %v5047 = vpop.f32.mrb[0].mxu0
    %v5048 = vpop.f32.mrb[0].mxu0
    %5049 = vdwg.mxu0
    %5050 = vmatprep.subr.bf16.mxu0 %v4053
    %5051 = vmatpush1.bf16.msra.mxu0 %v4052
    %5052 = vmatprep.subr.bf16.mxu0 %v4057
    %5053 = vmatpush1.bf16.msra.mxu0 %v4056
    %5054 = vmatprep.subr.bf16.mxu0 %v4061
    %5055 = vmatpush1.bf16.msra.mxu0 %v4060
    %5056 = vmatprep.subr.bf16.mxu0 %v4065
    %5057 = vmatpush1.bf16.msra.mxu0 %v4064
    %5058 = vmatprep.subr.bf16.mxu0 %v4069
    %5059 = vmatpush1.bf16.msra.mxu0 %v4068
    %5060 = vmatprep.subr.bf16.mxu0 %v4073
    %5061 = vmatpush1.bf16.msra.mxu0 %v4072
    %5062 = vmatprep.subr.bf16.mxu0 %v4077
    %5063 = vmatpush1.bf16.msra.mxu0 %v4076
    %5064 = vmatprep.subr.bf16.mxu0 %v4081
    %5065 = vmatpush1.bf16.msra.mxu0 %v4080
    %5066 = vmatprep.subr.bf16.mxu0 %v4085
    %5067 = vmatpush1.bf16.msra.mxu0 %v4084
    %5068 = vmatprep.subr.bf16.mxu0 %v4089
    %5069 = vmatpush1.bf16.msra.mxu0 %v4088
    %5070 = vmatprep.subr.bf16.mxu0 %v4093
    %5071 = vmatpush1.bf16.msra.mxu0 %v4092
    %5072 = vmatprep.subr.bf16.mxu0 %v4097
    %5073 = vmatpush1.bf16.msra.mxu0 %v4096
    %5074 = vmatprep.subr.bf16.mxu0 %v4101
    %5075 = vmatpush1.bf16.msra.mxu0 %v4100
    %5076 = vmatprep.subr.bf16.mxu0 %v4105
    %5077 = vmatpush1.bf16.msra.mxu0 %v4104
    %5078 = vmatprep.subr.bf16.mxu0 %v4109
    %5079 = vmatpush1.bf16.msra.mxu0 %v4108
    %5080 = vmatprep.subr.bf16.mxu0 %v4113
    %5081 = vmatpush1.bf16.msra.mxu0 %v4112
    %5082 = vmatprep.mubr.bf16.mxu0 %v3015
    %5083 = vmatmul.mubr.bf16.gmra.mrb[0].mxu0 %v3014
    %v5084 = vpop.f32.mrb[0].mxu0
    %v5085 = vadd.f32 %v5044, %v5084
    %v5086 = vpop.f32.mrb[0].mxu0
    %v5087 = vadd.f32 %v5046, %v5086
    %v5088 = vpop.f32.mrb[0].mxu0
    %v5089 = vpop.f32.mrb[0].mxu0
    %5090 = vdwg.mxu0
    %5091 = vmatprep.subr.bf16.mxu0 %v4117
    %5092 = vmatpush1.bf16.msra.mxu0 %v4116
    %5093 = vmatprep.subr.bf16.mxu0 %v4121
    %5094 = vmatpush1.bf16.msra.mxu0 %v4120
    %5095 = vmatprep.subr.bf16.mxu0 %v4125
    %5096 = vmatpush1.bf16.msra.mxu0 %v4124
    %5097 = vmatprep.subr.bf16.mxu0 %v4129
    %5098 = vmatpush1.bf16.msra.mxu0 %v4128
    %5099 = vmatprep.subr.bf16.mxu0 %v4133
    %5100 = vmatpush1.bf16.msra.mxu0 %v4132
    %5101 = vmatprep.subr.bf16.mxu0 %v4137
    %5102 = vmatpush1.bf16.msra.mxu0 %v4136
    %5103 = vmatprep.subr.bf16.mxu0 %v4141
    %5104 = vmatpush1.bf16.msra.mxu0 %v4140
    %5105 = vmatprep.subr.bf16.mxu0 %v4145
    %5106 = vmatpush1.bf16.msra.mxu0 %v4144
    %5107 = vmatprep.subr.bf16.mxu0 %v4149
    %5108 = vmatpush1.bf16.msra.mxu0 %v4148
    %5109 = vmatprep.subr.bf16.mxu0 %v4153
    %5110 = vmatpush1.bf16.msra.mxu0 %v4152
    %5111 = vmatprep.subr.bf16.mxu0 %v4157
    %5112 = vmatpush1.bf16.msra.mxu0 %v4156
    %5113 = vmatprep.subr.bf16.mxu0 %v4161
    %5114 = vmatpush1.bf16.msra.mxu0 %v4160
    %5115 = vmatprep.subr.bf16.mxu0 %v4165
    %5116 = vmatpush1.bf16.msra.mxu0 %v4164
    %5117 = vmatprep.subr.bf16.mxu0 %v4169
    %5118 = vmatpush1.bf16.msra.mxu0 %v4168
    %5119 = vmatprep.subr.bf16.mxu0 %v4173
    %5120 = vmatpush1.bf16.msra.mxu0 %v4172
    %5121 = vmatprep.subr.bf16.mxu0 %v4177
    %5122 = vmatpush1.bf16.msra.mxu0 %v4176
    %5123 = vmatprep.mubr.bf16.mxu0 %v3017
    %5124 = vmatmul.mubr.bf16.gmra.mrb[0].mxu0 %v3016
    %v5125 = vpop.f32.mrb[0].mxu0
    %v5126 = vadd.f32 %v5085, %v5125
    %v5127 = vpop.f32.mrb[0].mxu0
    %v5128 = vadd.f32 %v5087, %v5127
    %v5129 = vpop.f32.mrb[0].mxu0
    %v5130 = vpop.f32.mrb[0].mxu0
    %5131 = vdwg.mxu0
    %5132 = vmatprep.subr.bf16.mxu0 %v4181
    %5133 = vmatpush1.bf16.msra.mxu0 %v4180
    %5134 = vmatprep.subr.bf16.mxu0 %v4185
    %5135 = vmatpush1.bf16.msra.mxu0 %v4184
    %5136 = vmatprep.subr.bf16.mxu0 %v4189
    %5137 = vmatpush1.bf16.msra.mxu0 %v4188
    %5138 = vmatprep.subr.bf16.mxu0 %v4193
    %5139 = vmatpush1.bf16.msra.mxu0 %v4192
    %5140 = vmatprep.subr.bf16.mxu0 %v4197
    %5141 = vmatpush1.bf16.msra.mxu0 %v4196
    %5142 = vmatprep.subr.bf16.mxu0 %v4201
    %5143 = vmatpush1.bf16.msra.mxu0 %v4200
    %5144 = vmatprep.subr.bf16.mxu0 %v4205
    %5145 = vmatpush1.bf16.msra.mxu0 %v4204
    %5146 = vmatprep.subr.bf16.mxu0 %v4209
    %5147 = vmatpush1.bf16.msra.mxu0 %v4208
    %5148 = vmatprep.subr.bf16.mxu0 %v4213
    %5149 = vmatpush1.bf16.msra.mxu0 %v4212
    %5150 = vmatprep.subr.bf16.mxu0 %v4217
    %5151 = vmatpush1.bf16.msra.mxu0 %v4216
    %5152 = vmatprep.subr.bf16.mxu0 %v4221
    %5153 = vmatpush1.bf16.msra.mxu0 %v4220
    %5154 = vmatprep.subr.bf16.mxu0 %v4225
    %5155 = vmatpush1.bf16.msra.mxu0 %v4224
    %5156 = vmatprep.subr.bf16.mxu0 %v4229
    %5157 = vmatpush1.bf16.msra.mxu0 %v4228
    %5158 = vmatprep.subr.bf16.mxu0 %v4233
    %5159 = vmatpush1.bf16.msra.mxu0 %v4232
    %5160 = vmatprep.subr.bf16.mxu0 %v4237
    %5161 = vmatpush1.bf16.msra.mxu0 %v4236
    %5162 = vmatprep.subr.bf16.mxu0 %v4241
    %5163 = vmatpush1.bf16.msra.mxu0 %v4240
    %5164 = vmatprep.mubr.bf16.mxu0 %v3019
    %5165 = vmatmul.mubr.bf16.gmra.mrb[0].mxu0 %v3018
    %v5166 = vpop.f32.mrb[0].mxu0
    %v5167 = vadd.f32 %v5126, %v5166
    %v5168 = vpop.f32.mrb[0].mxu0
    %v5169 = vadd.f32 %v5128, %v5168
    %v5170 = vpop.f32.mrb[0].mxu0
    %v5171 = vpop.f32.mrb[0].mxu0
    %5172 = vdwg.mxu0
    %5173 = vmatprep.subr.bf16.mxu0 %v4245
    %5174 = vmatpush1.bf16.msra.mxu0 %v4244
    %5175 = vmatprep.subr.bf16.mxu0 %v4249
    %5176 = vmatpush1.bf16.msra.mxu0 %v4248
    %5177 = vmatprep.subr.bf16.mxu0 %v4253
    %5178 = vmatpush1.bf16.msra.mxu0 %v4252
    %5179 = vmatprep.subr.bf16.mxu0 %v4257
    %5180 = vmatpush1.bf16.msra.mxu0 %v4256
    %5181 = vmatprep.subr.bf16.mxu0 %v4261
    %5182 = vmatpush1.bf16.msra.mxu0 %v4260
    %5183 = vmatprep.subr.bf16.mxu0 %v4265
    %5184 = vmatpush1.bf16.msra.mxu0 %v4264
    %5185 = vmatprep.subr.bf16.mxu0 %v4269
    %5186 = vmatpush1.bf16.msra.mxu0 %v4268
    %5187 = vmatprep.subr.bf16.mxu0 %v4273
    %5188 = vmatpush1.bf16.msra.mxu0 %v4272
    %5189 = vmatprep.subr.bf16.mxu0 %v4277
    %5190 = vmatpush1.bf16.msra.mxu0 %v4276
    %5191 = vmatprep.subr.bf16.mxu0 %v4281
    %5192 = vmatpush1.bf16.msra.mxu0 %v4280
    %5193 = vmatprep.subr.bf16.mxu0 %v4285
    %5194 = vmatpush1.bf16.msra.mxu0 %v4284
    %5195 = vmatprep.subr.bf16.mxu0 %v4289
    %5196 = vmatpush1.bf16.msra.mxu0 %v4288
    %5197 = vmatprep.subr.bf16.mxu0 %v4293
    %5198 = vmatpush1.bf16.msra.mxu0 %v4292
    %5199 = vmatprep.subr.bf16.mxu0 %v4297
    %5200 = vmatpush1.bf16.msra.mxu0 %v4296
    %5201 = vmatprep.subr.bf16.mxu0 %v4301
    %5202 = vmatpush1.bf16.msra.mxu0 %v4300
    %5203 = vmatprep.subr.bf16.mxu0 %v4305
    %5204 = vmatpush1.bf16.msra.mxu0 %v4304
    %5205 = vmatprep.mubr.bf16.mxu0 %v3021
    %5206 = vmatmul.mubr.bf16.gmra.mrb[0].mxu0 %v3020
    %v5207 = vpop.f32.mrb[0].mxu0
    %v5208 = vadd.f32 %v5167, %v5207
    %v5209 = vpop.f32.mrb[0].mxu0
    %v5210 = vadd.f32 %v5169, %v5209
    %v5211 = vpop.f32.mrb[0].mxu0
    %v5212 = vpop.f32.mrb[0].mxu0
    %5213 = vdwg.mxu0
    %5214 = vmatprep.subr.bf16.mxu0 %v4309
    %5215 = vmatpush1.bf16.msra.mxu0 %v4308
    %5216 = vmatprep.subr.bf16.mxu0 %v4313
    %5217 = vmatpush1.bf16.msra.mxu0 %v4312
    %5218 = vmatprep.subr.bf16.mxu0 %v4317
    %5219 = vmatpush1.bf16.msra.mxu0 %v4316
    %5220 = vmatprep.subr.bf16.mxu0 %v4321
    %5221 = vmatpush1.bf16.msra.mxu0 %v4320
    %5222 = vmatprep.subr.bf16.mxu0 %v4325
    %5223 = vmatpush1.bf16.msra.mxu0 %v4324
    %5224 = vmatprep.subr.bf16.mxu0 %v4329
    %5225 = vmatpush1.bf16.msra.mxu0 %v4328
    %5226 = vmatprep.subr.bf16.mxu0 %v4333
    %5227 = vmatpush1.bf16.msra.mxu0 %v4332
    %5228 = vmatprep.subr.bf16.mxu0 %v4337
    %5229 = vmatpush1.bf16.msra.mxu0 %v4336
    %5230 = vmatprep.subr.bf16.mxu0 %v4341
    %5231 = vmatpush1.bf16.msra.mxu0 %v4340
    %5232 = vmatprep.subr.bf16.mxu0 %v4345
    %5233 = vmatpush1.bf16.msra.mxu0 %v4344
    %5234 = vmatprep.subr.bf16.mxu0 %v4349
    %5235 = vmatpush1.bf16.msra.mxu0 %v4348
    %5236 = vmatprep.subr.bf16.mxu0 %v4353
    %5237 = vmatpush1.bf16.msra.mxu0 %v4352
    %5238 = vmatprep.subr.bf16.mxu0 %v4357
    %5239 = vmatpush1.bf16.msra.mxu0 %v4356
    %5240 = vmatprep.subr.bf16.mxu0 %v4361
    %5241 = vmatpush1.bf16.msra.mxu0 %v4360
    %5242 = vmatprep.subr.bf16.mxu0 %v4365
    %5243 = vmatpush1.bf16.msra.mxu0 %v4364
    %5244 = vmatprep.subr.bf16.mxu0 %v4369
    %5245 = vmatpush1.bf16.msra.mxu0 %v4368
    %5246 = vmatprep.mubr.bf16.mxu0 %v3023
    %5247 = vmatmul.mubr.bf16.gmra.mrb[0].mxu0 %v3022
    %v5248 = vpop.f32.mrb[0].mxu0
    %v5249 = vadd.f32 %v5208, %v5248
    %v5250 = vpop.f32.mrb[0].mxu0
    %v5251 = vadd.f32 %v5210, %v5250
    %v5252 = vpop.f32.mrb[0].mxu0
    %v5253 = vpop.f32.mrb[0].mxu0
    %5254 = vdwg.mxu0
    %5255 = vmatprep.subr.bf16.mxu0 %v3031
    %5256 = vmatpush1.bf16.msra.mxu0 %v3030
    %5257 = vmatprep.subr.bf16.mxu0 %v3035
    %5258 = vmatpush1.bf16.msra.mxu0 %v3034
    %5259 = vmatprep.subr.bf16.mxu0 %v3039
    %5260 = vmatpush1.bf16.msra.mxu0 %v3038
    %5261 = vmatprep.subr.bf16.mxu0 %v3043
    %5262 = vmatpush1.bf16.msra.mxu0 %v3042
    %5263 = vmatprep.subr.bf16.mxu0 %v3047
    %5264 = vmatpush1.bf16.msra.mxu0 %v3046
    %5265 = vmatprep.subr.bf16.mxu0 %v3051
    %5266 = vmatpush1.bf16.msra.mxu0 %v3050
    %5267 = vmatprep.subr.bf16.mxu0 %v3055
    %5268 = vmatpush1.bf16.msra.mxu0 %v3054
    %5269 = vmatprep.subr.bf16.mxu0 %v3059
    %5270 = vmatpush1.bf16.msra.mxu0 %v3058
    %5271 = vmatprep.subr.bf16.mxu0 %v3063
    %5272 = vmatpush1.bf16.msra.mxu0 %v3062
    %5273 = vmatprep.subr.bf16.mxu0 %v3067
    %5274 = vmatpush1.bf16.msra.mxu0 %v3066
    %5275 = vmatprep.subr.bf16.mxu0 %v3071
    %5276 = vmatpush1.bf16.msra.mxu0 %v3070
    %5277 = vmatprep.subr.bf16.mxu0 %v3075
    %5278 = vmatpush1.bf16.msra.mxu0 %v3074
    %5279 = vmatprep.subr.bf16.mxu0 %v3079
    %5280 = vmatpush1.bf16.msra.mxu0 %v3078
    %5281 = vmatprep.subr.bf16.mxu0 %v3083
    %5282 = vmatpush1.bf16.msra.mxu0 %v3082
    %5283 = vmatprep.subr.bf16.mxu0 %v3087
    %5284 = vmatpush1.bf16.msra.mxu0 %v3086
    %5285 = vmatprep.subr.bf16.mxu0 %v3091
    %5286 = vmatpush1.bf16.msra.mxu0 %v3090
    %5287 = vmatprep.mubr.bf16.mxu0 %v2983
    %5288 = vmatmul.mubr.bf16.gmra.mrb[0].mxu0 %v2982
    %v5289 = vpop.f32.mrb[0].mxu0
    %v5290 = vadd.f32 %v4385, %v5289
    %v5291 = vpop.f32.mrb[0].mxu0
    %v5292 = vadd.f32 %v4389, %v5291
    %v5293 = vpop.f32.mrb[0].mxu0
    %v5294 = vpop.f32.mrb[0].mxu0
    %5295 = vdwg.mxu0
    %5296 = vmatprep.subr.bf16.mxu0 %v3095
    %5297 = vmatpush1.bf16.msra.mxu0 %v3094
    %5298 = vmatprep.subr.bf16.mxu0 %v3099
    %5299 = vmatpush1.bf16.msra.mxu0 %v3098
    %5300 = vmatprep.subr.bf16.mxu0 %v3103
    %5301 = vmatpush1.bf16.msra.mxu0 %v3102
    %5302 = vmatprep.subr.bf16.mxu0 %v3107
    %5303 = vmatpush1.bf16.msra.mxu0 %v3106
    %5304 = vmatprep.subr.bf16.mxu0 %v3111
    %5305 = vmatpush1.bf16.msra.mxu0 %v3110
    %5306 = vmatprep.subr.bf16.mxu0 %v3115
    %5307 = vmatpush1.bf16.msra.mxu0 %v3114
    %5308 = vmatprep.subr.bf16.mxu0 %v3119
    %5309 = vmatpush1.bf16.msra.mxu0 %v3118
    %5310 = vmatprep.subr.bf16.mxu0 %v3123
    %5311 = vmatpush1.bf16.msra.mxu0 %v3122
    %5312 = vmatprep.subr.bf16.mxu0 %v3127
    %5313 = vmatpush1.bf16.msra.mxu0 %v3126
    %5314 = vmatprep.subr.bf16.mxu0 %v3131
    %5315 = vmatpush1.bf16.msra.mxu0 %v3130
    %5316 = vmatprep.subr.bf16.mxu0 %v3135
    %5317 = vmatpush1.bf16.msra.mxu0 %v3134
    %5318 = vmatprep.subr.bf16.mxu0 %v3139
    %5319 = vmatpush1.bf16.msra.mxu0 %v3138
    %5320 = vmatprep.subr.bf16.mxu0 %v3143
    %5321 = vmatpush1.bf16.msra.mxu0 %v3142
    %5322 = vmatprep.subr.bf16.mxu0 %v3147
    %5323 = vmatpush1.bf16.msra.mxu0 %v3146
    %5324 = vmatprep.subr.bf16.mxu0 %v3151
    %5325 = vmatpush1.bf16.msra.mxu0 %v3150
    %5326 = vmatprep.subr.bf16.mxu0 %v3155
    %5327 = vmatpush1.bf16.msra.mxu0 %v3154
    %5328 = vmatprep.mubr.bf16.mxu0 %v2985
    %5329 = vmatmul.mubr.bf16.gmra.mrb[0].mxu0 %v2984
    %v5330 = vpop.f32.mrb[0].mxu0
    %v5331 = vadd.f32 %v5290, %v5330
    %v5332 = vpop.f32.mrb[0].mxu0
    %v5333 = vadd.f32 %v5292, %v5332
    %v5334 = vpop.f32.mrb[0].mxu0
    %v5335 = vpop.f32.mrb[0].mxu0
    %5336 = vdwg.mxu0
    %5337 = vmatprep.subr.bf16.mxu0 %v3159
    %5338 = vmatpush1.bf16.msra.mxu0 %v3158
    %5339 = vmatprep.subr.bf16.mxu0 %v3163
    %5340 = vmatpush1.bf16.msra.mxu0 %v3162
    %5341 = vmatprep.subr.bf16.mxu0 %v3167
    %5342 = vmatpush1.bf16.msra.mxu0 %v3166
    %5343 = vmatprep.subr.bf16.mxu0 %v3171
    %5344 = vmatpush1.bf16.msra.mxu0 %v3170
    %5345 = vmatprep.subr.bf16.mxu0 %v3175
    %5346 = vmatpush1.bf16.msra.mxu0 %v3174
    %5347 = vmatprep.subr.bf16.mxu0 %v3179
    %5348 = vmatpush1.bf16.msra.mxu0 %v3178
    %5349 = vmatprep.subr.bf16.mxu0 %v3183
    %5350 = vmatpush1.bf16.msra.mxu0 %v3182
    %5351 = vmatprep.subr.bf16.mxu0 %v3187
    %5352 = vmatpush1.bf16.msra.mxu0 %v3186
    %5353 = vmatprep.subr.bf16.mxu0 %v3191
    %5354 = vmatpush1.bf16.msra.mxu0 %v3190
    %5355 = vmatprep.subr.bf16.mxu0 %v3195
    %5356 = vmatpush1.bf16.msra.mxu0 %v3194
    %5357 = vmatprep.subr.bf16.mxu0 %v3199
    %5358 = vmatpush1.bf16.msra.mxu0 %v3198
    %5359 = vmatprep.subr.bf16.mxu0 %v3203
    %5360 = vmatpush1.bf16.msra.mxu0 %v3202
    %5361 = vmatprep.subr.bf16.mxu0 %v3207
    %5362 = vmatpush1.bf16.msra.mxu0 %v3206
    %5363 = vmatprep.subr.bf16.mxu0 %v3211
    %5364 = vmatpush1.bf16.msra.mxu0 %v3210
    %5365 = vmatprep.subr.bf16.mxu0 %v3215
    %5366 = vmatpush1.bf16.msra.mxu0 %v3214
    %5367 = vmatprep.subr.bf16.mxu0 %v3219
    %5368 = vmatpush1.bf16.msra.mxu0 %v3218
    %5369 = vmatprep.mubr.bf16.mxu0 %v2987
    %5370 = vmatmul.mubr.bf16.gmra.mrb[0].mxu0 %v2986
    %v5371 = vpop.f32.mrb[0].mxu0
    %v5372 = vadd.f32 %v5331, %v5371
    %v5373 = vpop.f32.mrb[0].mxu0
    %v5374 = vadd.f32 %v5333, %v5373
    %v5375 = vpop.f32.mrb[0].mxu0
    %v5376 = vpop.f32.mrb[0].mxu0
    %5377 = vdwg.mxu0
    %5378 = vmatprep.subr.bf16.mxu0 %v3223
    %5379 = vmatpush1.bf16.msra.mxu0 %v3222
    %5380 = vmatprep.subr.bf16.mxu0 %v3227
    %5381 = vmatpush1.bf16.msra.mxu0 %v3226
    %5382 = vmatprep.subr.bf16.mxu0 %v3231
    %5383 = vmatpush1.bf16.msra.mxu0 %v3230
    %5384 = vmatprep.subr.bf16.mxu0 %v3235
    %5385 = vmatpush1.bf16.msra.mxu0 %v3234
    %5386 = vmatprep.subr.bf16.mxu0 %v3239
    %5387 = vmatpush1.bf16.msra.mxu0 %v3238
    %5388 = vmatprep.subr.bf16.mxu0 %v3243
    %5389 = vmatpush1.bf16.msra.mxu0 %v3242
    %5390 = vmatprep.subr.bf16.mxu0 %v3247
    %5391 = vmatpush1.bf16.msra.mxu0 %v3246
    %5392 = vmatprep.subr.bf16.mxu0 %v3251
    %5393 = vmatpush1.bf16.msra.mxu0 %v3250
    %5394 = vmatprep.subr.bf16.mxu0 %v3255
    %5395 = vmatpush1.bf16.msra.mxu0 %v3254
    %5396 = vmatprep.subr.bf16.mxu0 %v3259
    %5397 = vmatpush1.bf16.msra.mxu0 %v3258
    %5398 = vmatprep.subr.bf16.mxu0 %v3263
    %5399 = vmatpush1.bf16.msra.mxu0 %v3262
    %5400 = vmatprep.subr.bf16.mxu0 %v3267
    %5401 = vmatpush1.bf16.msra.mxu0 %v3266
    %5402 = vmatprep.subr.bf16.mxu0 %v3271
    %5403 = vmatpush1.bf16.msra.mxu0 %v3270
    %5404 = vmatprep.subr.bf16.mxu0 %v3275
    %5405 = vmatpush1.bf16.msra.mxu0 %v3274
    %5406 = vmatprep.subr.bf16.mxu0 %v3279
    %5407 = vmatpush1.bf16.msra.mxu0 %v3278
    %5408 = vmatprep.subr.bf16.mxu0 %v3283
    %5409 = vmatpush1.bf16.msra.mxu0 %v3282
    %5410 = vmatprep.mubr.bf16.mxu0 %v2989
    %5411 = vmatmul.mubr.bf16.gmra.mrb[0].mxu0 %v2988
    %v5412 = vpop.f32.mrb[0].mxu0
    %v5413 = vadd.f32 %v5372, %v5412
    %v5414 = vpop.f32.mrb[0].mxu0
    %v5415 = vadd.f32 %v5374, %v5414
    %v5416 = vpop.f32.mrb[0].mxu0
    %v5417 = vpop.f32.mrb[0].mxu0
    %5418 = vdwg.mxu0
    %5419 = vmatprep.subr.bf16.mxu0 %v3287
    %5420 = vmatpush1.bf16.msra.mxu0 %v3286
    %5421 = vmatprep.subr.bf16.mxu0 %v3291
    %5422 = vmatpush1.bf16.msra.mxu0 %v3290
    %5423 = vmatprep.subr.bf16.mxu0 %v3295
    %5424 = vmatpush1.bf16.msra.mxu0 %v3294
    %5425 = vmatprep.subr.bf16.mxu0 %v3299
    %5426 = vmatpush1.bf16.msra.mxu0 %v3298
    %5427 = vmatprep.subr.bf16.mxu0 %v3303
    %5428 = vmatpush1.bf16.msra.mxu0 %v3302
    %5429 = vmatprep.subr.bf16.mxu0 %v3307
    %5430 = vmatpush1.bf16.msra.mxu0 %v3306
    %5431 = vmatprep.subr.bf16.mxu0 %v3311
    %5432 = vmatpush1.bf16.msra.mxu0 %v3310
    %5433 = vmatprep.subr.bf16.mxu0 %v3315
    %5434 = vmatpush1.bf16.msra.mxu0 %v3314
    %5435 = vmatprep.subr.bf16.mxu0 %v3319
    %5436 = vmatpush1.bf16.msra.mxu0 %v3318
    %5437 = vmatprep.subr.bf16.mxu0 %v3323
    %5438 = vmatpush1.bf16.msra.mxu0 %v3322
    %5439 = vmatprep.subr.bf16.mxu0 %v3327
    %5440 = vmatpush1.bf16.msra.mxu0 %v3326
    %5441 = vmatprep.subr.bf16.mxu0 %v3331
    %5442 = vmatpush1.bf16.msra.mxu0 %v3330
    %5443 = vmatprep.subr.bf16.mxu0 %v3335
    %5444 = vmatpush1.bf16.msra.mxu0 %v3334
    %5445 = vmatprep.subr.bf16.mxu0 %v3339
    %5446 = vmatpush1.bf16.msra.mxu0 %v3338
    %5447 = vmatprep.subr.bf16.mxu0 %v3343
    %5448 = vmatpush1.bf16.msra.mxu0 %v3342
    %5449 = vmatprep.subr.bf16.mxu0 %v3347
    %5450 = vmatpush1.bf16.msra.mxu0 %v3346
    %5451 = vmatprep.mubr.bf16.mxu0 %v2991
    %5452 = vmatmul.mubr.bf16.gmra.mrb[0].mxu0 %v2990
    %v5453 = vpop.f32.mrb[0].mxu0
    %v5454 = vadd.f32 %v5413, %v5453
    %v5455 = vpop.f32.mrb[0].mxu0
    %v5456 = vadd.f32 %v5415, %v5455
    %v5457 = vpop.f32.mrb[0].mxu0
    %v5458 = vpop.f32.mrb[0].mxu0
    %5459 = vdwg.mxu0
    %5460 = vmatprep.subr.bf16.mxu0 %v3351
    %5461 = vmatpush1.bf16.msra.mxu0 %v3350
    %5462 = vmatprep.subr.bf16.mxu0 %v3355
    %5463 = vmatpush1.bf16.msra.mxu0 %v3354
    %5464 = vmatprep.subr.bf16.mxu0 %v3359
    %5465 = vmatpush1.bf16.msra.mxu0 %v3358
    %5466 = vmatprep.subr.bf16.mxu0 %v3363
    %5467 = vmatpush1.bf16.msra.mxu0 %v3362
    %5468 = vmatprep.subr.bf16.mxu0 %v3367
    %5469 = vmatpush1.bf16.msra.mxu0 %v3366
    %5470 = vmatprep.subr.bf16.mxu0 %v3371
    %5471 = vmatpush1.bf16.msra.mxu0 %v3370
    %5472 = vmatprep.subr.bf16.mxu0 %v3375
    %5473 = vmatpush1.bf16.msra.mxu0 %v3374
    %5474 = vmatprep.subr.bf16.mxu0 %v3379
    %5475 = vmatpush1.bf16.msra.mxu0 %v3378
    %5476 = vmatprep.subr.bf16.mxu0 %v3383
    %5477 = vmatpush1.bf16.msra.mxu0 %v3382
    %5478 = vmatprep.subr.bf16.mxu0 %v3387
    %5479 = vmatpush1.bf16.msra.mxu0 %v3386
    %5480 = vmatprep.subr.bf16.mxu0 %v3391
    %5481 = vmatpush1.bf16.msra.mxu0 %v3390
    %5482 = vmatprep.subr.bf16.mxu0 %v3395
    %5483 = vmatpush1.bf16.msra.mxu0 %v3394
    %5484 = vmatprep.subr.bf16.mxu0 %v3399
    %5485 = vmatpush1.bf16.msra.mxu0 %v3398
    %5486 = vmatprep.subr.bf16.mxu0 %v3403
    %5487 = vmatpush1.bf16.msra.mxu0 %v3402
    %5488 = vmatprep.subr.bf16.mxu0 %v3407
    %5489 = vmatpush1.bf16.msra.mxu0 %v3406
    %5490 = vmatprep.subr.bf16.mxu0 %v3411
    %5491 = vmatpush1.bf16.msra.mxu0 %v3410
    %5492 = vmatprep.mubr.bf16.mxu0 %v2993
    %5493 = vmatmul.mubr.bf16.gmra.mrb[0].mxu0 %v2992
    %v5494 = vpop.f32.mrb[0].mxu0
    %v5495 = vadd.f32 %v5454, %v5494
    %v5496 = vpop.f32.mrb[0].mxu0
    %v5497 = vadd.f32 %v5456, %v5496
    %v5498 = vpop.f32.mrb[0].mxu0
    %v5499 = vpop.f32.mrb[0].mxu0
    %5500 = vdwg.mxu0
    %5501 = vmatprep.subr.bf16.mxu0 %v3415
    %5502 = vmatpush1.bf16.msra.mxu0 %v3414
    %5503 = vmatprep.subr.bf16.mxu0 %v3419
    %5504 = vmatpush1.bf16.msra.mxu0 %v3418
    %5505 = vmatprep.subr.bf16.mxu0 %v3423
    %5506 = vmatpush1.bf16.msra.mxu0 %v3422
    %5507 = vmatprep.subr.bf16.mxu0 %v3427
    %5508 = vmatpush1.bf16.msra.mxu0 %v3426
    %5509 = vmatprep.subr.bf16.mxu0 %v3431
    %5510 = vmatpush1.bf16.msra.mxu0 %v3430
    %5511 = vmatprep.subr.bf16.mxu0 %v3435
    %5512 = vmatpush1.bf16.msra.mxu0 %v3434
    %5513 = vmatprep.subr.bf16.mxu0 %v3439
    %5514 = vmatpush1.bf16.msra.mxu0 %v3438
    %5515 = vmatprep.subr.bf16.mxu0 %v3443
    %5516 = vmatpush1.bf16.msra.mxu0 %v3442
    %5517 = vmatprep.subr.bf16.mxu0 %v3447
    %5518 = vmatpush1.bf16.msra.mxu0 %v3446
    %5519 = vmatprep.subr.bf16.mxu0 %v3451
    %5520 = vmatpush1.bf16.msra.mxu0 %v3450
    %5521 = vmatprep.subr.bf16.mxu0 %v3455
    %5522 = vmatpush1.bf16.msra.mxu0 %v3454
    %5523 = vmatprep.subr.bf16.mxu0 %v3459
    %5524 = vmatpush1.bf16.msra.mxu0 %v3458
    %5525 = vmatprep.subr.bf16.mxu0 %v3463
    %5526 = vmatpush1.bf16.msra.mxu0 %v3462
    %5527 = vmatprep.subr.bf16.mxu0 %v3467
    %5528 = vmatpush1.bf16.msra.mxu0 %v3466
    %5529 = vmatprep.subr.bf16.mxu0 %v3471
    %5530 = vmatpush1.bf16.msra.mxu0 %v3470
    %5531 = vmatprep.subr.bf16.mxu0 %v3475
    %5532 = vmatpush1.bf16.msra.mxu0 %v3474
    %5533 = vmatprep.mubr.bf16.mxu0 %v2995
    %5534 = vmatmul.mubr.bf16.gmra.mrb[0].mxu0 %v2994
    %v5535 = vpop.f32.mrb[0].mxu0
    %v5536 = vadd.f32 %v5495, %v5535
    %v5537 = vpop.f32.mrb[0].mxu0
    %v5538 = vadd.f32 %v5497, %v5537
    %v5539 = vpop.f32.mrb[0].mxu0
    %v5540 = vpop.f32.mrb[0].mxu0
    %5541 = vdwg.mxu0
    %5542 = vmatprep.subr.bf16.mxu0 %v3479
    %5543 = vmatpush1.bf16.msra.mxu0 %v3478
    %5544 = vmatprep.subr.bf16.mxu0 %v3483
    %5545 = vmatpush1.bf16.msra.mxu0 %v3482
    %5546 = vmatprep.subr.bf16.mxu0 %v3487
    %5547 = vmatpush1.bf16.msra.mxu0 %v3486
    %5548 = vmatprep.subr.bf16.mxu0 %v3491
    %5549 = vmatpush1.bf16.msra.mxu0 %v3490
    %5550 = vmatprep.subr.bf16.mxu0 %v3495
    %5551 = vmatpush1.bf16.msra.mxu0 %v3494
    %5552 = vmatprep.subr.bf16.mxu0 %v3499
    %5553 = vmatpush1.bf16.msra.mxu0 %v3498
    %5554 = vmatprep.subr.bf16.mxu0 %v3503
    %5555 = vmatpush1.bf16.msra.mxu0 %v3502
    %5556 = vmatprep.subr.bf16.mxu0 %v3507
    %5557 = vmatpush1.bf16.msra.mxu0 %v3506
    %5558 = vmatprep.subr.bf16.mxu0 %v3511
    %5559 = vmatpush1.bf16.msra.mxu0 %v3510
    %5560 = vmatprep.subr.bf16.mxu0 %v3515
    %5561 = vmatpush1.bf16.msra.mxu0 %v3514
    %5562 = vmatprep.subr.bf16.mxu0 %v3519
    %5563 = vmatpush1.bf16.msra.mxu0 %v3518
    %5564 = vmatprep.subr.bf16.mxu0 %v3523
    %5565 = vmatpush1.bf16.msra.mxu0 %v3522
    %5566 = vmatprep.subr.bf16.mxu0 %v3527
    %5567 = vmatpush1.bf16.msra.mxu0 %v3526
    %5568 = vmatprep.subr.bf16.mxu0 %v3531
    %5569 = vmatpush1.bf16.msra.mxu0 %v3530
    %5570 = vmatprep.subr.bf16.mxu0 %v3535
    %5571 = vmatpush1.bf16.msra.mxu0 %v3534
    %5572 = vmatprep.subr.bf16.mxu0 %v3539
    %5573 = vmatpush1.bf16.msra.mxu0 %v3538
    %5574 = vmatprep.mubr.bf16.mxu0 %v2997
    %5575 = vmatmul.mubr.bf16.gmra.mrb[0].mxu0 %v2996
    %v5576 = vpop.f32.mrb[0].mxu0
    %v5577 = vadd.f32 %v5536, %v5576
    %v5578 = vpop.f32.mrb[0].mxu0
    %v5579 = vadd.f32 %v5538, %v5578
    %v5580 = vpop.f32.mrb[0].mxu0
    %v5581 = vpop.f32.mrb[0].mxu0
    %5582 = vdwg.mxu0
    %5583 = vmatprep.subr.bf16.mxu0 %v3543
    %5584 = vmatpush1.bf16.msra.mxu0 %v3542
    %5585 = vmatprep.subr.bf16.mxu0 %v3547
    %5586 = vmatpush1.bf16.msra.mxu0 %v3546
    %5587 = vmatprep.subr.bf16.mxu0 %v3551
    %5588 = vmatpush1.bf16.msra.mxu0 %v3550
    %5589 = vmatprep.subr.bf16.mxu0 %v3555
    %5590 = vmatpush1.bf16.msra.mxu0 %v3554
    %5591 = vmatprep.subr.bf16.mxu0 %v3559
    %5592 = vmatpush1.bf16.msra.mxu0 %v3558
    %5593 = vmatprep.subr.bf16.mxu0 %v3563
    %5594 = vmatpush1.bf16.msra.mxu0 %v3562
    %5595 = vmatprep.subr.bf16.mxu0 %v3567
    %5596 = vmatpush1.bf16.msra.mxu0 %v3566
    %5597 = vmatprep.subr.bf16.mxu0 %v3571
    %5598 = vmatpush1.bf16.msra.mxu0 %v3570
    %5599 = vmatprep.subr.bf16.mxu0 %v3575
    %5600 = vmatpush1.bf16.msra.mxu0 %v3574
    %5601 = vmatprep.subr.bf16.mxu0 %v3579
    %5602 = vmatpush1.bf16.msra.mxu0 %v3578
    %5603 = vmatprep.subr.bf16.mxu0 %v3583
    %5604 = vmatpush1.bf16.msra.mxu0 %v3582
    %5605 = vmatprep.subr.bf16.mxu0 %v3587
    %5606 = vmatpush1.bf16.msra.mxu0 %v3586
    %5607 = vmatprep.subr.bf16.mxu0 %v3591
    %5608 = vmatpush1.bf16.msra.mxu0 %v3590
    %5609 = vmatprep.subr.bf16.mxu0 %v3595
    %5610 = vmatpush1.bf16.msra.mxu0 %v3594
    %5611 = vmatprep.subr.bf16.mxu0 %v3599
    %5612 = vmatpush1.bf16.msra.mxu0 %v3598
    %5613 = vmatprep.subr.bf16.mxu0 %v3603
    %5614 = vmatpush1.bf16.msra.mxu0 %v3602
    %5615 = vmatprep.mubr.bf16.mxu0 %v2999
    %5616 = vmatmul.mubr.bf16.gmra.mrb[0].mxu0 %v2998
    %v5617 = vpop.f32.mrb[0].mxu0
    %v5618 = vadd.f32 %v5577, %v5617
    %v5619 = vpop.f32.mrb[0].mxu0
    %v5620 = vadd.f32 %v5579, %v5619
    %v5621 = vpop.f32.mrb[0].mxu0
    %v5622 = vpop.f32.mrb[0].mxu0
    %5623 = vdwg.mxu0
    %5624 = vmatprep.subr.bf16.mxu0 %v3607
    %5625 = vmatpush1.bf16.msra.mxu0 %v3606
    %5626 = vmatprep.subr.bf16.mxu0 %v3611
    %5627 = vmatpush1.bf16.msra.mxu0 %v3610
    %5628 = vmatprep.subr.bf16.mxu0 %v3615
    %5629 = vmatpush1.bf16.msra.mxu0 %v3614
    %5630 = vmatprep.subr.bf16.mxu0 %v3619
    %5631 = vmatpush1.bf16.msra.mxu0 %v3618
    %5632 = vmatprep.subr.bf16.mxu0 %v3623
    %5633 = vmatpush1.bf16.msra.mxu0 %v3622
    %5634 = vmatprep.subr.bf16.mxu0 %v3627
    %5635 = vmatpush1.bf16.msra.mxu0 %v3626
    %5636 = vmatprep.subr.bf16.mxu0 %v3631
    %5637 = vmatpush1.bf16.msra.mxu0 %v3630
    %5638 = vmatprep.subr.bf16.mxu0 %v3635
    %5639 = vmatpush1.bf16.msra.mxu0 %v3634
    %5640 = vmatprep.subr.bf16.mxu0 %v3639
    %5641 = vmatpush1.bf16.msra.mxu0 %v3638
    %5642 = vmatprep.subr.bf16.mxu0 %v3643
    %5643 = vmatpush1.bf16.msra.mxu0 %v3642
    %5644 = vmatprep.subr.bf16.mxu0 %v3647
    %5645 = vmatpush1.bf16.msra.mxu0 %v3646
    %5646 = vmatprep.subr.bf16.mxu0 %v3651
    %5647 = vmatpush1.bf16.msra.mxu0 %v3650
    %5648 = vmatprep.subr.bf16.mxu0 %v3655
    %5649 = vmatpush1.bf16.msra.mxu0 %v3654
    %5650 = vmatprep.subr.bf16.mxu0 %v3659
    %5651 = vmatpush1.bf16.msra.mxu0 %v3658
    %5652 = vmatprep.subr.bf16.mxu0 %v3663
    %5653 = vmatpush1.bf16.msra.mxu0 %v3662
    %5654 = vmatprep.subr.bf16.mxu0 %v3667
    %5655 = vmatpush1.bf16.msra.mxu0 %v3666
    %5656 = vmatprep.mubr.bf16.mxu0 %v3001
    %5657 = vmatmul.mubr.bf16.gmra.mrb[0].mxu0 %v3000
    %v5658 = vpop.f32.mrb[0].mxu0
    %v5659 = vadd.f32 %v5618, %v5658
    %v5660 = vpop.f32.mrb[0].mxu0
    %v5661 = vadd.f32 %v5620, %v5660
    %v5662 = vpop.f32.mrb[0].mxu0
    %v5663 = vpop.f32.mrb[0].mxu0
    %5664 = vdwg.mxu0
    %5665 = vmatprep.subr.bf16.mxu0 %v3671
    %5666 = vmatpush1.bf16.msra.mxu0 %v3670
    %5667 = vmatprep.subr.bf16.mxu0 %v3675
    %5668 = vmatpush1.bf16.msra.mxu0 %v3674
    %5669 = vmatprep.subr.bf16.mxu0 %v3679
    %5670 = vmatpush1.bf16.msra.mxu0 %v3678
    %5671 = vmatprep.subr.bf16.mxu0 %v3683
    %5672 = vmatpush1.bf16.msra.mxu0 %v3682
    %5673 = vmatprep.subr.bf16.mxu0 %v3687
    %5674 = vmatpush1.bf16.msra.mxu0 %v3686
    %5675 = vmatprep.subr.bf16.mxu0 %v3691
    %5676 = vmatpush1.bf16.msra.mxu0 %v3690
    %5677 = vmatprep.subr.bf16.mxu0 %v3695
    %5678 = vmatpush1.bf16.msra.mxu0 %v3694
    %5679 = vmatprep.subr.bf16.mxu0 %v3699
    %5680 = vmatpush1.bf16.msra.mxu0 %v3698
    %5681 = vmatprep.subr.bf16.mxu0 %v3703
    %5682 = vmatpush1.bf16.msra.mxu0 %v3702
    %5683 = vmatprep.subr.bf16.mxu0 %v3707
    %5684 = vmatpush1.bf16.msra.mxu0 %v3706
    %5685 = vmatprep.subr.bf16.mxu0 %v3711
    %5686 = vmatpush1.bf16.msra.mxu0 %v3710
    %5687 = vmatprep.subr.bf16.mxu0 %v3715
    %5688 = vmatpush1.bf16.msra.mxu0 %v3714
    %5689 = vmatprep.subr.bf16.mxu0 %v3719
    %5690 = vmatpush1.bf16.msra.mxu0 %v3718
    %5691 = vmatprep.subr.bf16.mxu0 %v3723
    %5692 = vmatpush1.bf16.msra.mxu0 %v3722
    %5693 = vmatprep.subr.bf16.mxu0 %v3727
    %5694 = vmatpush1.bf16.msra.mxu0 %v3726
    %5695 = vmatprep.subr.bf16.mxu0 %v3731
    %5696 = vmatpush1.bf16.msra.mxu0 %v3730
    %5697 = vmatprep.mubr.bf16.mxu0 %v3003
    %5698 = vmatmul.mubr.bf16.gmra.mrb[0].mxu0 %v3002
    %v5699 = vpop.f32.mrb[0].mxu0
    %v5700 = vadd.f32 %v5659, %v5699
    %v5701 = vpop.f32.mrb[0].mxu0
    %v5702 = vadd.f32 %v5661, %v5701
    %v5703 = vpop.f32.mrb[0].mxu0
    %v5704 = vpop.f32.mrb[0].mxu0
    %5705 = vdwg.mxu0
    %5706 = vmatprep.subr.bf16.mxu0 %v3735
    %5707 = vmatpush1.bf16.msra.mxu0 %v3734
    %5708 = vmatprep.subr.bf16.mxu0 %v3739
    %5709 = vmatpush1.bf16.msra.mxu0 %v3738
    %5710 = vmatprep.subr.bf16.mxu0 %v3743
    %5711 = vmatpush1.bf16.msra.mxu0 %v3742
    %5712 = vmatprep.subr.bf16.mxu0 %v3747
    %5713 = vmatpush1.bf16.msra.mxu0 %v3746
    %5714 = vmatprep.subr.bf16.mxu0 %v3751
    %5715 = vmatpush1.bf16.msra.mxu0 %v3750
    %5716 = vmatprep.subr.bf16.mxu0 %v3755
    %5717 = vmatpush1.bf16.msra.mxu0 %v3754
    %5718 = vmatprep.subr.bf16.mxu0 %v3759
    %5719 = vmatpush1.bf16.msra.mxu0 %v3758
    %5720 = vmatprep.subr.bf16.mxu0 %v3763
    %5721 = vmatpush1.bf16.msra.mxu0 %v3762
    %5722 = vmatprep.subr.bf16.mxu0 %v3767
    %5723 = vmatpush1.bf16.msra.mxu0 %v3766
    %5724 = vmatprep.subr.bf16.mxu0 %v3771
    %5725 = vmatpush1.bf16.msra.mxu0 %v3770
    %5726 = vmatprep.subr.bf16.mxu0 %v3775
    %5727 = vmatpush1.bf16.msra.mxu0 %v3774
    %5728 = vmatprep.subr.bf16.mxu0 %v3779
    %5729 = vmatpush1.bf16.msra.mxu0 %v3778
    %5730 = vmatprep.subr.bf16.mxu0 %v3783
    %5731 = vmatpush1.bf16.msra.mxu0 %v3782
    %5732 = vmatprep.subr.bf16.mxu0 %v3787
    %5733 = vmatpush1.bf16.msra.mxu0 %v3786
    %5734 = vmatprep.subr.bf16.mxu0 %v3791
    %5735 = vmatpush1.bf16.msra.mxu0 %v3790
    %5736 = vmatprep.subr.bf16.mxu0 %v3795
    %5737 = vmatpush1.bf16.msra.mxu0 %v3794
    %5738 = vmatprep.mubr.bf16.mxu0 %v3005
    %5739 = vmatmul.mubr.bf16.gmra.mrb[0].mxu0 %v3004
    %v5740 = vpop.f32.mrb[0].mxu0
    %v5741 = vadd.f32 %v5700, %v5740
    %v5742 = vpop.f32.mrb[0].mxu0
    %v5743 = vadd.f32 %v5702, %v5742
    %v5744 = vpop.f32.mrb[0].mxu0
    %v5745 = vpop.f32.mrb[0].mxu0
    %5746 = vdwg.mxu0
    %5747 = vmatprep.subr.bf16.mxu0 %v3799
    %5748 = vmatpush1.bf16.msra.mxu0 %v3798
    %5749 = vmatprep.subr.bf16.mxu0 %v3803
    %5750 = vmatpush1.bf16.msra.mxu0 %v3802
    %5751 = vmatprep.subr.bf16.mxu0 %v3807
    %5752 = vmatpush1.bf16.msra.mxu0 %v3806
    %5753 = vmatprep.subr.bf16.mxu0 %v3811
    %5754 = vmatpush1.bf16.msra.mxu0 %v3810
    %5755 = vmatprep.subr.bf16.mxu0 %v3815
    %5756 = vmatpush1.bf16.msra.mxu0 %v3814
    %5757 = vmatprep.subr.bf16.mxu0 %v3819
    %5758 = vmatpush1.bf16.msra.mxu0 %v3818
    %5759 = vmatprep.subr.bf16.mxu0 %v3823
    %5760 = vmatpush1.bf16.msra.mxu0 %v3822
    %5761 = vmatprep.subr.bf16.mxu0 %v3827
    %5762 = vmatpush1.bf16.msra.mxu0 %v3826
    %5763 = vmatprep.subr.bf16.mxu0 %v3831
    %5764 = vmatpush1.bf16.msra.mxu0 %v3830
    %5765 = vmatprep.subr.bf16.mxu0 %v3835
    %5766 = vmatpush1.bf16.msra.mxu0 %v3834
    %5767 = vmatprep.subr.bf16.mxu0 %v3839
    %5768 = vmatpush1.bf16.msra.mxu0 %v3838
    %5769 = vmatprep.subr.bf16.mxu0 %v3843
    %5770 = vmatpush1.bf16.msra.mxu0 %v3842
    %5771 = vmatprep.subr.bf16.mxu0 %v3847
    %5772 = vmatpush1.bf16.msra.mxu0 %v3846
    %5773 = vmatprep.subr.bf16.mxu0 %v3851
    %5774 = vmatpush1.bf16.msra.mxu0 %v3850
    %5775 = vmatprep.subr.bf16.mxu0 %v3855
    %5776 = vmatpush1.bf16.msra.mxu0 %v3854
    %5777 = vmatprep.subr.bf16.mxu0 %v3859
    %5778 = vmatpush1.bf16.msra.mxu0 %v3858
    %5779 = vmatprep.mubr.bf16.mxu0 %v3007
    %5780 = vmatmul.mubr.bf16.gmra.mrb[0].mxu0 %v3006
    %v5781 = vpop.f32.mrb[0].mxu0
    %v5782 = vadd.f32 %v5741, %v5781
    %v5783 = vpop.f32.mrb[0].mxu0
    %v5784 = vadd.f32 %v5743, %v5783
    %v5785 = vpop.f32.mrb[0].mxu0
    %v5786 = vpop.f32.mrb[0].mxu0
    %5787 = vdwg.mxu0
    %5788 = vmatprep.subr.bf16.mxu0 %v3863
    %5789 = vmatpush1.bf16.msra.mxu0 %v3862
    %5790 = vmatprep.subr.bf16.mxu0 %v3867
    %5791 = vmatpush1.bf16.msra.mxu0 %v3866
    %5792 = vmatprep.subr.bf16.mxu0 %v3871
    %5793 = vmatpush1.bf16.msra.mxu0 %v3870
    %5794 = vmatprep.subr.bf16.mxu0 %v3875
    %5795 = vmatpush1.bf16.msra.mxu0 %v3874
    %5796 = vmatprep.subr.bf16.mxu0 %v3879
    %5797 = vmatpush1.bf16.msra.mxu0 %v3878
    %5798 = vmatprep.subr.bf16.mxu0 %v3883
    %5799 = vmatpush1.bf16.msra.mxu0 %v3882
    %5800 = vmatprep.subr.bf16.mxu0 %v3887
    %5801 = vmatpush1.bf16.msra.mxu0 %v3886
    %5802 = vmatprep.subr.bf16.mxu0 %v3891
    %5803 = vmatpush1.bf16.msra.mxu0 %v3890
    %5804 = vmatprep.subr.bf16.mxu0 %v3895
    %5805 = vmatpush1.bf16.msra.mxu0 %v3894
    %5806 = vmatprep.subr.bf16.mxu0 %v3899
    %5807 = vmatpush1.bf16.msra.mxu0 %v3898
    %5808 = vmatprep.subr.bf16.mxu0 %v3903
    %5809 = vmatpush1.bf16.msra.mxu0 %v3902
    %5810 = vmatprep.subr.bf16.mxu0 %v3907
    %5811 = vmatpush1.bf16.msra.mxu0 %v3906
    %5812 = vmatprep.subr.bf16.mxu0 %v3911
    %5813 = vmatpush1.bf16.msra.mxu0 %v3910
    %5814 = vmatprep.subr.bf16.mxu0 %v3915
    %5815 = vmatpush1.bf16.msra.mxu0 %v3914
    %5816 = vmatprep.subr.bf16.mxu0 %v3919
    %5817 = vmatpush1.bf16.msra.mxu0 %v3918
    %5818 = vmatprep.subr.bf16.mxu0 %v3923
    %5819 = vmatpush1.bf16.msra.mxu0 %v3922
    %5820 = vmatprep.mubr.bf16.mxu0 %v3009
    %5821 = vmatmul.mubr.bf16.gmra.mrb[0].mxu0 %v3008
    %v5822 = vpop.f32.mrb[0].mxu0
    %v5823 = vadd.f32 %v5782, %v5822
    %v5824 = vpop.f32.mrb[0].mxu0
    %v5825 = vadd.f32 %v5784, %v5824
    %v5826 = vpop.f32.mrb[0].mxu0
    %v5827 = vpop.f32.mrb[0].mxu0
    %5828 = vdwg.mxu0
    %5829 = vmatprep.subr.bf16.mxu0 %v3927
    %5830 = vmatpush1.bf16.msra.mxu0 %v3926
    %5831 = vmatprep.subr.bf16.mxu0 %v3931
    %5832 = vmatpush1.bf16.msra.mxu0 %v3930
    %5833 = vmatprep.subr.bf16.mxu0 %v3935
    %5834 = vmatpush1.bf16.msra.mxu0 %v3934
    %5835 = vmatprep.subr.bf16.mxu0 %v3939
    %5836 = vmatpush1.bf16.msra.mxu0 %v3938
    %5837 = vmatprep.subr.bf16.mxu0 %v3943
    %5838 = vmatpush1.bf16.msra.mxu0 %v3942
    %5839 = vmatprep.subr.bf16.mxu0 %v3947
    %5840 = vmatpush1.bf16.msra.mxu0 %v3946
    %5841 = vmatprep.subr.bf16.mxu0 %v3951
    %5842 = vmatpush1.bf16.msra.mxu0 %v3950
    %5843 = vmatprep.subr.bf16.mxu0 %v3955
    %5844 = vmatpush1.bf16.msra.mxu0 %v3954
    %5845 = vmatprep.subr.bf16.mxu0 %v3959
    %5846 = vmatpush1.bf16.msra.mxu0 %v3958
    %5847 = vmatprep.subr.bf16.mxu0 %v3963
    %5848 = vmatpush1.bf16.msra.mxu0 %v3962
    %5849 = vmatprep.subr.bf16.mxu0 %v3967
    %5850 = vmatpush1.bf16.msra.mxu0 %v3966
    %5851 = vmatprep.subr.bf16.mxu0 %v3971
    %5852 = vmatpush1.bf16.msra.mxu0 %v3970
    %5853 = vmatprep.subr.bf16.mxu0 %v3975
    %5854 = vmatpush1.bf16.msra.mxu0 %v3974
    %5855 = vmatprep.subr.bf16.mxu0 %v3979
    %5856 = vmatpush1.bf16.msra.mxu0 %v3978
    %5857 = vmatprep.subr.bf16.mxu0 %v3983
    %5858 = vmatpush1.bf16.msra.mxu0 %v3982
    %5859 = vmatprep.subr.bf16.mxu0 %v3987
    %5860 = vmatpush1.bf16.msra.mxu0 %v3986
    %5861 = vmatprep.mubr.bf16.mxu0 %v3011
    %5862 = vmatmul.mubr.bf16.gmra.mrb[0].mxu0 %v3010
    %v5863 = vpop.f32.mrb[0].mxu0
    %v5864 = vadd.f32 %v5823, %v5863
    %v5865 = vpop.f32.mrb[0].mxu0
    %v5866 = vadd.f32 %v5825, %v5865
    %v5867 = vpop.f32.mrb[0].mxu0
    %v5868 = vpop.f32.mrb[0].mxu0
    %5869 = vdwg.mxu0
    %5870 = vmatprep.subr.bf16.mxu0 %v3991
    %5871 = vmatpush1.bf16.msra.mxu0 %v3990
    %5872 = vmatprep.subr.bf16.mxu0 %v3995
    %5873 = vmatpush1.bf16.msra.mxu0 %v3994
    %5874 = vmatprep.subr.bf16.mxu0 %v3999
    %5875 = vmatpush1.bf16.msra.mxu0 %v3998
    %5876 = vmatprep.subr.bf16.mxu0 %v4003
    %5877 = vmatpush1.bf16.msra.mxu0 %v4002
    %5878 = vmatprep.subr.bf16.mxu0 %v4007
    %5879 = vmatpush1.bf16.msra.mxu0 %v4006
    %5880 = vmatprep.subr.bf16.mxu0 %v4011
    %5881 = vmatpush1.bf16.msra.mxu0 %v4010
    %5882 = vmatprep.subr.bf16.mxu0 %v4015
    %5883 = vmatpush1.bf16.msra.mxu0 %v4014
    %5884 = vmatprep.subr.bf16.mxu0 %v4019
    %5885 = vmatpush1.bf16.msra.mxu0 %v4018
    %5886 = vmatprep.subr.bf16.mxu0 %v4023
    %5887 = vmatpush1.bf16.msra.mxu0 %v4022
    %5888 = vmatprep.subr.bf16.mxu0 %v4027
    %5889 = vmatpush1.bf16.msra.mxu0 %v4026
    %5890 = vmatprep.subr.bf16.mxu0 %v4031
    %5891 = vmatpush1.bf16.msra.mxu0 %v4030
    %5892 = vmatprep.subr.bf16.mxu0 %v4035
    %5893 = vmatpush1.bf16.msra.mxu0 %v4034
    %5894 = vmatprep.subr.bf16.mxu0 %v4039
    %5895 = vmatpush1.bf16.msra.mxu0 %v4038
    %5896 = vmatprep.subr.bf16.mxu0 %v4043
    %5897 = vmatpush1.bf16.msra.mxu0 %v4042
    %5898 = vmatprep.subr.bf16.mxu0 %v4047
    %5899 = vmatpush1.bf16.msra.mxu0 %v4046
    %5900 = vmatprep.subr.bf16.mxu0 %v4051
    %5901 = vmatpush1.bf16.msra.mxu0 %v4050
    %5902 = vmatprep.mubr.bf16.mxu0 %v3013
    %5903 = vmatmul.mubr.bf16.gmra.mrb[0].mxu0 %v3012
    %v5904 = vpop.f32.mrb[0].mxu0
    %v5905 = vadd.f32 %v5864, %v5904
    %v5906 = vpop.f32.mrb[0].mxu0
    %v5907 = vadd.f32 %v5866, %v5906
    %v5908 = vpop.f32.mrb[0].mxu0
    %v5909 = vpop.f32.mrb[0].mxu0
    %5910 = vdwg.mxu0
    %5911 = vmatprep.subr.bf16.mxu0 %v4055
    %5912 = vmatpush1.bf16.msra.mxu0 %v4054
    %5913 = vmatprep.subr.bf16.mxu0 %v4059
    %5914 = vmatpush1.bf16.msra.mxu0 %v4058
    %5915 = vmatprep.subr.bf16.mxu0 %v4063
    %5916 = vmatpush1.bf16.msra.mxu0 %v4062
    %5917 = vmatprep.subr.bf16.mxu0 %v4067
    %5918 = vmatpush1.bf16.msra.mxu0 %v4066
    %5919 = vmatprep.subr.bf16.mxu0 %v4071
    %5920 = vmatpush1.bf16.msra.mxu0 %v4070
    %5921 = vmatprep.subr.bf16.mxu0 %v4075
    %5922 = vmatpush1.bf16.msra.mxu0 %v4074
    %5923 = vmatprep.subr.bf16.mxu0 %v4079
    %5924 = vmatpush1.bf16.msra.mxu0 %v4078
    %5925 = vmatprep.subr.bf16.mxu0 %v4083
    %5926 = vmatpush1.bf16.msra.mxu0 %v4082
    %5927 = vmatprep.subr.bf16.mxu0 %v4087
    %5928 = vmatpush1.bf16.msra.mxu0 %v4086
    %5929 = vmatprep.subr.bf16.mxu0 %v4091
    %5930 = vmatpush1.bf16.msra.mxu0 %v4090
    %5931 = vmatprep.subr.bf16.mxu0 %v4095
    %5932 = vmatpush1.bf16.msra.mxu0 %v4094
    %5933 = vmatprep.subr.bf16.mxu0 %v4099
    %5934 = vmatpush1.bf16.msra.mxu0 %v4098
    %5935 = vmatprep.subr.bf16.mxu0 %v4103
    %5936 = vmatpush1.bf16.msra.mxu0 %v4102
    %5937 = vmatprep.subr.bf16.mxu0 %v4107
    %5938 = vmatpush1.bf16.msra.mxu0 %v4106
    %5939 = vmatprep.subr.bf16.mxu0 %v4111
    %5940 = vmatpush1.bf16.msra.mxu0 %v4110
    %5941 = vmatprep.subr.bf16.mxu0 %v4115
    %5942 = vmatpush1.bf16.msra.mxu0 %v4114
    %5943 = vmatprep.mubr.bf16.mxu0 %v3015
    %5944 = vmatmul.mubr.bf16.gmra.mrb[0].mxu0 %v3014
    %v5945 = vpop.f32.mrb[0].mxu0
    %v5946 = vadd.f32 %v5905, %v5945
    %v5947 = vpop.f32.mrb[0].mxu0
    %v5948 = vadd.f32 %v5907, %v5947
    %v5949 = vpop.f32.mrb[0].mxu0
    %v5950 = vpop.f32.mrb[0].mxu0
    %5951 = vdwg.mxu0
    %5952 = vmatprep.subr.bf16.mxu0 %v4119
    %5953 = vmatpush1.bf16.msra.mxu0 %v4118
    %5954 = vmatprep.subr.bf16.mxu0 %v4123
    %5955 = vmatpush1.bf16.msra.mxu0 %v4122
    %5956 = vmatprep.subr.bf16.mxu0 %v4127
    %5957 = vmatpush1.bf16.msra.mxu0 %v4126
    %5958 = vmatprep.subr.bf16.mxu0 %v4131
    %5959 = vmatpush1.bf16.msra.mxu0 %v4130
    %5960 = vmatprep.subr.bf16.mxu0 %v4135
    %5961 = vmatpush1.bf16.msra.mxu0 %v4134
    %5962 = vmatprep.subr.bf16.mxu0 %v4139
    %5963 = vmatpush1.bf16.msra.mxu0 %v4138
    %5964 = vmatprep.subr.bf16.mxu0 %v4143
    %5965 = vmatpush1.bf16.msra.mxu0 %v4142
    %5966 = vmatprep.subr.bf16.mxu0 %v4147
    %5967 = vmatpush1.bf16.msra.mxu0 %v4146
    %5968 = vmatprep.subr.bf16.mxu0 %v4151
    %5969 = vmatpush1.bf16.msra.mxu0 %v4150
    %5970 = vmatprep.subr.bf16.mxu0 %v4155
    %5971 = vmatpush1.bf16.msra.mxu0 %v4154
    %5972 = vmatprep.subr.bf16.mxu0 %v4159
    %5973 = vmatpush1.bf16.msra.mxu0 %v4158
    %5974 = vmatprep.subr.bf16.mxu0 %v4163
    %5975 = vmatpush1.bf16.msra.mxu0 %v4162
    %5976 = vmatprep.subr.bf16.mxu0 %v4167
    %5977 = vmatpush1.bf16.msra.mxu0 %v4166
    %5978 = vmatprep.subr.bf16.mxu0 %v4171
    %5979 = vmatpush1.bf16.msra.mxu0 %v4170
    %5980 = vmatprep.subr.bf16.mxu0 %v4175
    %5981 = vmatpush1.bf16.msra.mxu0 %v4174
    %5982 = vmatprep.subr.bf16.mxu0 %v4179
    %5983 = vmatpush1.bf16.msra.mxu0 %v4178
    %5984 = vmatprep.mubr.bf16.mxu0 %v3017
    %5985 = vmatmul.mubr.bf16.gmra.mrb[0].mxu0 %v3016
    %v5986 = vpop.f32.mrb[0].mxu0
    %v5987 = vadd.f32 %v5946, %v5986
    %v5988 = vpop.f32.mrb[0].mxu0
    %v5989 = vadd.f32 %v5948, %v5988
    %v5990 = vpop.f32.mrb[0].mxu0
    %v5991 = vpop.f32.mrb[0].mxu0
    %5992 = vdwg.mxu0
    %5993 = vmatprep.subr.bf16.mxu0 %v4183
    %5994 = vmatpush1.bf16.msra.mxu0 %v4182
    %5995 = vmatprep.subr.bf16.mxu0 %v4187
    %5996 = vmatpush1.bf16.msra.mxu0 %v4186
    %5997 = vmatprep.subr.bf16.mxu0 %v4191
    %5998 = vmatpush1.bf16.msra.mxu0 %v4190
    %5999 = vmatprep.subr.bf16.mxu0 %v4195
    %6000 = vmatpush1.bf16.msra.mxu0 %v4194
    %6001 = vmatprep.subr.bf16.mxu0 %v4199
    %6002 = vmatpush1.bf16.msra.mxu0 %v4198
    %6003 = vmatprep.subr.bf16.mxu0 %v4203
    %6004 = vmatpush1.bf16.msra.mxu0 %v4202
    %6005 = vmatprep.subr.bf16.mxu0 %v4207
    %6006 = vmatpush1.bf16.msra.mxu0 %v4206
    %6007 = vmatprep.subr.bf16.mxu0 %v4211
    %6008 = vmatpush1.bf16.msra.mxu0 %v4210
    %6009 = vmatprep.subr.bf16.mxu0 %v4215
    %6010 = vmatpush1.bf16.msra.mxu0 %v4214
    %6011 = vmatprep.subr.bf16.mxu0 %v4219
    %6012 = vmatpush1.bf16.msra.mxu0 %v4218
    %6013 = vmatprep.subr.bf16.mxu0 %v4223
    %6014 = vmatpush1.bf16.msra.mxu0 %v4222
    %6015 = vmatprep.subr.bf16.mxu0 %v4227
    %6016 = vmatpush1.bf16.msra.mxu0 %v4226
    %6017 = vmatprep.subr.bf16.mxu0 %v4231
    %6018 = vmatpush1.bf16.msra.mxu0 %v4230
    %6019 = vmatprep.subr.bf16.mxu0 %v4235
    %6020 = vmatpush1.bf16.msra.mxu0 %v4234
    %6021 = vmatprep.subr.bf16.mxu0 %v4239
    %6022 = vmatpush1.bf16.msra.mxu0 %v4238
    %6023 = vmatprep.subr.bf16.mxu0 %v4243
    %6024 = vmatpush1.bf16.msra.mxu0 %v4242
    %6025 = vmatprep.mubr.bf16.mxu0 %v3019
    %6026 = vmatmul.mubr.bf16.gmra.mrb[0].mxu0 %v3018
    %v6027 = vpop.f32.mrb[0].mxu0
    %v6028 = vadd.f32 %v5987, %v6027
    %v6029 = vpop.f32.mrb[0].mxu0
    %v6030 = vadd.f32 %v5989, %v6029
    %v6031 = vpop.f32.mrb[0].mxu0
    %v6032 = vpop.f32.mrb[0].mxu0
    %6033 = vdwg.mxu0
    %6034 = vmatprep.subr.bf16.mxu0 %v4247
    %6035 = vmatpush1.bf16.msra.mxu0 %v4246
    %6036 = vmatprep.subr.bf16.mxu0 %v4251
    %6037 = vmatpush1.bf16.msra.mxu0 %v4250
    %6038 = vmatprep.subr.bf16.mxu0 %v4255
    %6039 = vmatpush1.bf16.msra.mxu0 %v4254
    %6040 = vmatprep.subr.bf16.mxu0 %v4259
    %6041 = vmatpush1.bf16.msra.mxu0 %v4258
    %6042 = vmatprep.subr.bf16.mxu0 %v4263
    %6043 = vmatpush1.bf16.msra.mxu0 %v4262
    %6044 = vmatprep.subr.bf16.mxu0 %v4267
    %6045 = vmatpush1.bf16.msra.mxu0 %v4266
    %6046 = vmatprep.subr.bf16.mxu0 %v4271
    %6047 = vmatpush1.bf16.msra.mxu0 %v4270
    %6048 = vmatprep.subr.bf16.mxu0 %v4275
    %6049 = vmatpush1.bf16.msra.mxu0 %v4274
    %6050 = vmatprep.subr.bf16.mxu0 %v4279
    %6051 = vmatpush1.bf16.msra.mxu0 %v4278
    %6052 = vmatprep.subr.bf16.mxu0 %v4283
    %6053 = vmatpush1.bf16.msra.mxu0 %v4282
    %6054 = vmatprep.subr.bf16.mxu0 %v4287
    %6055 = vmatpush1.bf16.msra.mxu0 %v4286
    %6056 = vmatprep.subr.bf16.mxu0 %v4291
    %6057 = vmatpush1.bf16.msra.mxu0 %v4290
    %6058 = vmatprep.subr.bf16.mxu0 %v4295
    %6059 = vmatpush1.bf16.msra.mxu0 %v4294
    %6060 = vmatprep.subr.bf16.mxu0 %v4299
    %6061 = vmatpush1.bf16.msra.mxu0 %v4298
    %6062 = vmatprep.subr.bf16.mxu0 %v4303
    %6063 = vmatpush1.bf16.msra.mxu0 %v4302
    %6064 = vmatprep.subr.bf16.mxu0 %v4307
    %6065 = vmatpush1.bf16.msra.mxu0 %v4306
    %6066 = vmatprep.mubr.bf16.mxu0 %v3021
    %6067 = vmatmul.mubr.bf16.gmra.mrb[0].mxu0 %v3020
    %v6068 = vpop.f32.mrb[0].mxu0
    %v6069 = vadd.f32 %v6028, %v6068
    %v6070 = vpop.f32.mrb[0].mxu0
    %v6071 = vadd.f32 %v6030, %v6070
    %v6072 = vpop.f32.mrb[0].mxu0
    %v6073 = vpop.f32.mrb[0].mxu0
    %6074 = vdwg.mxu0
    %6075 = vmatprep.subr.bf16.mxu0 %v4311
    %6076 = vmatpush1.bf16.msra.mxu0 %v4310
    %6077 = vmatprep.subr.bf16.mxu0 %v4315
    %6078 = vmatpush1.bf16.msra.mxu0 %v4314
    %6079 = vmatprep.subr.bf16.mxu0 %v4319
    %6080 = vmatpush1.bf16.msra.mxu0 %v4318
    %6081 = vmatprep.subr.bf16.mxu0 %v4323
    %6082 = vmatpush1.bf16.msra.mxu0 %v4322
    %6083 = vmatprep.subr.bf16.mxu0 %v4327
    %6084 = vmatpush1.bf16.msra.mxu0 %v4326
    %6085 = vmatprep.subr.bf16.mxu0 %v4331
    %6086 = vmatpush1.bf16.msra.mxu0 %v4330
    %6087 = vmatprep.subr.bf16.mxu0 %v4335
    %6088 = vmatpush1.bf16.msra.mxu0 %v4334
    %6089 = vmatprep.subr.bf16.mxu0 %v4339
    %6090 = vmatpush1.bf16.msra.mxu0 %v4338
    %6091 = vmatprep.subr.bf16.mxu0 %v4343
    %6092 = vmatpush1.bf16.msra.mxu0 %v4342
    %6093 = vmatprep.subr.bf16.mxu0 %v4347
    %6094 = vmatpush1.bf16.msra.mxu0 %v4346
    %6095 = vmatprep.subr.bf16.mxu0 %v4351
    %6096 = vmatpush1.bf16.msra.mxu0 %v4350
    %6097 = vmatprep.subr.bf16.mxu0 %v4355
    %6098 = vmatpush1.bf16.msra.mxu0 %v4354
    %6099 = vmatprep.subr.bf16.mxu0 %v4359
    %6100 = vmatpush1.bf16.msra.mxu0 %v4358
    %6101 = vmatprep.subr.bf16.mxu0 %v4363
    %6102 = vmatpush1.bf16.msra.mxu0 %v4362
    %6103 = vmatprep.subr.bf16.mxu0 %v4367
    %6104 = vmatpush1.bf16.msra.mxu0 %v4366
    %6105 = vmatprep.subr.bf16.mxu0 %v4371
    %6106 = vmatpush1.bf16.msra.mxu0 %v4370
    %6107 = vmatprep.mubr.bf16.mxu0 %v3023
    %6108 = vmatmul.mubr.bf16.gmra.mrb[0].mxu0 %v3022
    %v6109 = vpop.f32.mrb[0].mxu0
    %v6110 = vadd.f32 %v6069, %v6109
    %v6111 = vpop.f32.mrb[0].mxu0
    %v6112 = vadd.f32 %v6071, %v6111
    %v6113 = vpop.f32.mrb[0].mxu0
    %v6114 = vpop.f32.mrb[0].mxu0
    %6115 = vdwg.mxu0
    %v6116 = vmax.f32 %v5249, 0.0
    %v6117 = vmax.f32 %v5251, 0.0
    %v6118 = vmax.f32 %v6110, 0.0
    %v6119 = vmax.f32 %v6112, 0.0
    %v6120 = vpack.c.bf16 %v6116, %v6116
    %v6121 = vpack.c.bf16 %v6117, %v6117
    %v6122 = vpack.c.bf16 %v6118, %v6118
    %v6123 = vpack.c.bf16 %v6119, %v6119
    %v6124 = vld [vmem:[#allocation16] sm:$0xff]
    %v6125 = vld [vmem:[#allocation16 + $0x8] sm:$0xff]
    %v6126 = vld [vmem:[#allocation16 + $0x10] sm:$0xff]
    %v6127 = vld [vmem:[#allocation16 + $0x18] sm:$0xff]
    %v6128 = vld [vmem:[#allocation16 + $0x20] sm:$0xff]
    %v6129 = vld [vmem:[#allocation16 + $0x28] sm:$0xff]
    %v6130 = vld [vmem:[#allocation16 + $0x30] sm:$0xff]
    %v6131 = vld [vmem:[#allocation16 + $0x38] sm:$0xff]
    %v6132 = vld [vmem:[#allocation16 + $0x40] sm:$0xff]
    %v6133 = vld [vmem:[#allocation16 + $0x48] sm:$0xff]
    %v6134 = vld [vmem:[#allocation16 + $0x50] sm:$0xff]
    %v6135 = vld [vmem:[#allocation16 + $0x58] sm:$0xff]
    %v6136 = vld [vmem:[#allocation16 + $0x60] sm:$0xff]
    %v6137 = vld [vmem:[#allocation16 + $0x68] sm:$0xff]
    %v6138 = vld [vmem:[#allocation16 + $0x70] sm:$0xff]
    %v6139 = vld [vmem:[#allocation16 + $0x78] sm:$0xff]
    %v6140 = vld [vmem:[#allocation16 + $0x80] sm:$0xff]
    %v6141 = vld [vmem:[#allocation16 + $0x88] sm:$0xff]
    %v6142 = vld [vmem:[#allocation16 + $0x90] sm:$0xff]
    %v6143 = vld [vmem:[#allocation16 + $0x98] sm:$0xff]
    %v6144 = vld [vmem:[#allocation16 + $0xa0] sm:$0xff]
    %v6145 = vld [vmem:[#allocation16 + $0xa8] sm:$0xff]
    %v6146 = vld [vmem:[#allocation16 + $0xb0] sm:$0xff]
    %v6147 = vld [vmem:[#allocation16 + $0xb8] sm:$0xff]
    %v6148 = vld [vmem:[#allocation16 + $0xc0] sm:$0xff]
    %v6149 = vld [vmem:[#allocation16 + $0xc8] sm:$0xff]
    %v6150 = vld [vmem:[#allocation16 + $0xd0] sm:$0xff]
    %v6151 = vld [vmem:[#allocation16 + $0xd8] sm:$0xff]
    %v6152 = vld [vmem:[#allocation16 + $0xe0] sm:$0xff]
    %v6153 = vld [vmem:[#allocation16 + $0xe8] sm:$0xff]
    %v6154 = vld [vmem:[#allocation16 + $0xf0] sm:$0xff]
    %v6155 = vld [vmem:[#allocation16 + $0xf8] sm:$0xff]
    %v6156 = vld [vmem:[#allocation16 + $0x100] sm:$0xff]
    %v6157 = vld [vmem:[#allocation16 + $0x108] sm:$0xff]
    %v6158 = vld [vmem:[#allocation16 + $0x110] sm:$0xff]
    %v6159 = vld [vmem:[#allocation16 + $0x118] sm:$0xff]
    %v6160 = vld [vmem:[#allocation16 + $0x120] sm:$0xff]
    %v6161 = vld [vmem:[#allocation16 + $0x128] sm:$0xff]
    %v6162 = vld [vmem:[#allocation16 + $0x130] sm:$0xff]
    %v6163 = vld [vmem:[#allocation16 + $0x138] sm:$0xff]
    %v6164 = vld [vmem:[#allocation16 + $0x140] sm:$0xff]
    %v6165 = vld [vmem:[#allocation16 + $0x148] sm:$0xff]
    %v6166 = vld [vmem:[#allocation16 + $0x150] sm:$0xff]
    %v6167 = vld [vmem:[#allocation16 + $0x158] sm:$0xff]
    %v6168 = vld [vmem:[#allocation16 + $0x160] sm:$0xff]
    %v6169 = vld [vmem:[#allocation16 + $0x168] sm:$0xff]
    %v6170 = vld [vmem:[#allocation16 + $0x170] sm:$0xff]
    %v6171 = vld [vmem:[#allocation16 + $0x178] sm:$0xff]
    %v6172 = vld [vmem:[#allocation16 + $0x180] sm:$0xff]
    %v6173 = vld [vmem:[#allocation16 + $0x188] sm:$0xff]
    %v6174 = vld [vmem:[#allocation16 + $0x190] sm:$0xff]
    %v6175 = vld [vmem:[#allocation16 + $0x198] sm:$0xff]
    %v6176 = vld [vmem:[#allocation16 + $0x1a0] sm:$0xff]
    %v6177 = vld [vmem:[#allocation16 + $0x1a8] sm:$0xff]
    %v6178 = vld [vmem:[#allocation16 + $0x1b0] sm:$0xff]
    %v6179 = vld [vmem:[#allocation16 + $0x1b8] sm:$0xff]
    %v6180 = vld [vmem:[#allocation16 + $0x1c0] sm:$0xff]
    %v6181 = vld [vmem:[#allocation16 + $0x1c8] sm:$0xff]
    %v6182 = vld [vmem:[#allocation16 + $0x1d0] sm:$0xff]
    %v6183 = vld [vmem:[#allocation16 + $0x1d8] sm:$0xff]
    %v6184 = vld [vmem:[#allocation16 + $0x1e0] sm:$0xff]
    %v6185 = vld [vmem:[#allocation16 + $0x1e8] sm:$0xff]
    %v6186 = vld [vmem:[#allocation16 + $0x1f0] sm:$0xff]
    %v6187 = vld [vmem:[#allocation16 + $0x1f8] sm:$0xff]
    %v6188 = vld [vmem:[#allocation18] sm:$0x3]
    %v6190 = vlaneseq
    %v6191 = vshrl.u32 %v6190, 7
    %v6192 = vsub.s32 0, %v6191
    %v6193 = vrot.slane %v6188, %v6192
    %v6194 = vlaneseq
    %v6195 = vshrl.u32 %v6194, 7
    %v6196 = vsub.s32 1, %v6195
    %v6197 = vrot.slane %v6188, %v6196
    %v6264 = vunpack.c.l.b16 %v6124
    %v6265 = vunpack.c.h.b16 %v6124
    %v6266 = vunpack.c.l.b16 %v6125
    %v6267 = vunpack.c.h.b16 %v6125
    %v6268 = vunpack.c.l.b16 %v6126
    %v6269 = vunpack.c.h.b16 %v6126
    %v6270 = vunpack.c.l.b16 %v6127
    %v6271 = vunpack.c.h.b16 %v6127
    %v6272 = vunpack.c.l.b16 %v6128
    %v6273 = vunpack.c.h.b16 %v6128
    %v6274 = vunpack.c.l.b16 %v6129
    %v6275 = vunpack.c.h.b16 %v6129
    %v6276 = vunpack.c.l.b16 %v6130
    %v6277 = vunpack.c.h.b16 %v6130
    %v6278 = vunpack.c.l.b16 %v6131
    %v6279 = vunpack.c.h.b16 %v6131
    %v6280 = vunpack.c.l.b16 %v6132
    %v6281 = vunpack.c.h.b16 %v6132
    %v6282 = vunpack.c.l.b16 %v6133
    %v6283 = vunpack.c.h.b16 %v6133
    %v6284 = vunpack.c.l.b16 %v6134
    %v6285 = vunpack.c.h.b16 %v6134
    %v6286 = vunpack.c.l.b16 %v6135
    %v6287 = vunpack.c.h.b16 %v6135
    %v6288 = vunpack.c.l.b16 %v6136
    %v6289 = vunpack.c.h.b16 %v6136
    %v6290 = vunpack.c.l.b16 %v6137
    %v6291 = vunpack.c.h.b16 %v6137
    %v6292 = vunpack.c.l.b16 %v6138
    %v6293 = vunpack.c.h.b16 %v6138
    %v6294 = vunpack.c.l.b16 %v6139
    %v6295 = vunpack.c.h.b16 %v6139
    %v6296 = vunpack.c.l.b16 %v6140
    %v6297 = vunpack.c.h.b16 %v6140
    %v6298 = vunpack.c.l.b16 %v6141
    %v6299 = vunpack.c.h.b16 %v6141
    %v6300 = vunpack.c.l.b16 %v6142
    %v6301 = vunpack.c.h.b16 %v6142
    %v6302 = vunpack.c.l.b16 %v6143
    %v6303 = vunpack.c.h.b16 %v6143
    %v6304 = vunpack.c.l.b16 %v6144
    %v6305 = vunpack.c.h.b16 %v6144
    %v6306 = vunpack.c.l.b16 %v6145
    %v6307 = vunpack.c.h.b16 %v6145
    %v6308 = vunpack.c.l.b16 %v6146
    %v6309 = vunpack.c.h.b16 %v6146
    %v6310 = vunpack.c.l.b16 %v6147
    %v6311 = vunpack.c.h.b16 %v6147
    %v6312 = vunpack.c.l.b16 %v6148
    %v6313 = vunpack.c.h.b16 %v6148
    %v6314 = vunpack.c.l.b16 %v6149
    %v6315 = vunpack.c.h.b16 %v6149
    %v6316 = vunpack.c.l.b16 %v6150
    %v6317 = vunpack.c.h.b16 %v6150
    %v6318 = vunpack.c.l.b16 %v6151
    %v6319 = vunpack.c.h.b16 %v6151
    %v6320 = vunpack.c.l.b16 %v6152
    %v6321 = vunpack.c.h.b16 %v6152
    %v6322 = vunpack.c.l.b16 %v6153
    %v6323 = vunpack.c.h.b16 %v6153
    %v6324 = vunpack.c.l.b16 %v6154
    %v6325 = vunpack.c.h.b16 %v6154
    %v6326 = vunpack.c.l.b16 %v6155
    %v6327 = vunpack.c.h.b16 %v6155
    %v6328 = vunpack.c.l.b16 %v6156
    %v6329 = vunpack.c.h.b16 %v6156
    %v6330 = vunpack.c.l.b16 %v6157
    %v6331 = vunpack.c.h.b16 %v6157
    %v6332 = vunpack.c.l.b16 %v6158
    %v6333 = vunpack.c.h.b16 %v6158
    %v6334 = vunpack.c.l.b16 %v6159
    %v6335 = vunpack.c.h.b16 %v6159
    %v6336 = vunpack.c.l.b16 %v6160
    %v6337 = vunpack.c.h.b16 %v6160
    %v6338 = vunpack.c.l.b16 %v6161
    %v6339 = vunpack.c.h.b16 %v6161
    %v6340 = vunpack.c.l.b16 %v6162
    %v6341 = vunpack.c.h.b16 %v6162
    %v6342 = vunpack.c.l.b16 %v6163
    %v6343 = vunpack.c.h.b16 %v6163
    %v6344 = vunpack.c.l.b16 %v6164
    %v6345 = vunpack.c.h.b16 %v6164
    %v6346 = vunpack.c.l.b16 %v6165
    %v6347 = vunpack.c.h.b16 %v6165
    %v6348 = vunpack.c.l.b16 %v6166
    %v6349 = vunpack.c.h.b16 %v6166
    %v6350 = vunpack.c.l.b16 %v6167
    %v6351 = vunpack.c.h.b16 %v6167
    %v6352 = vunpack.c.l.b16 %v6168
    %v6353 = vunpack.c.h.b16 %v6168
    %v6354 = vunpack.c.l.b16 %v6169
    %v6355 = vunpack.c.h.b16 %v6169
    %v6356 = vunpack.c.l.b16 %v6170
    %v6357 = vunpack.c.h.b16 %v6170
    %v6358 = vunpack.c.l.b16 %v6171
    %v6359 = vunpack.c.h.b16 %v6171
    %v6360 = vunpack.c.l.b16 %v6172
    %v6361 = vunpack.c.h.b16 %v6172
    %v6362 = vunpack.c.l.b16 %v6173
    %v6363 = vunpack.c.h.b16 %v6173
    %v6364 = vunpack.c.l.b16 %v6174
    %v6365 = vunpack.c.h.b16 %v6174
    %v6366 = vunpack.c.l.b16 %v6175
    %v6367 = vunpack.c.h.b16 %v6175
    %v6368 = vunpack.c.l.b16 %v6176
    %v6369 = vunpack.c.h.b16 %v6176
    %v6370 = vunpack.c.l.b16 %v6177
    %v6371 = vunpack.c.h.b16 %v6177
    %v6372 = vunpack.c.l.b16 %v6178
    %v6373 = vunpack.c.h.b16 %v6178
    %v6374 = vunpack.c.l.b16 %v6179
    %v6375 = vunpack.c.h.b16 %v6179
    %v6376 = vunpack.c.l.b16 %v6180
    %v6377 = vunpack.c.h.b16 %v6180
    %v6378 = vunpack.c.l.b16 %v6181
    %v6379 = vunpack.c.h.b16 %v6181
    %v6380 = vunpack.c.l.b16 %v6182
    %v6381 = vunpack.c.h.b16 %v6182
    %v6382 = vunpack.c.l.b16 %v6183
    %v6383 = vunpack.c.h.b16 %v6183
    %v6384 = vunpack.c.l.b16 %v6184
    %v6385 = vunpack.c.h.b16 %v6184
    %v6386 = vunpack.c.l.b16 %v6185
    %v6387 = vunpack.c.h.b16 %v6185
    %v6388 = vunpack.c.l.b16 %v6186
    %v6389 = vunpack.c.h.b16 %v6186
    %v6390 = vunpack.c.l.b16 %v6187
    %v6391 = vunpack.c.h.b16 %v6187
    %v6392 = vpack.c.b16 %v6266, %v6264
    %v6393 = vpack.c.b16 %v6267, %v6265
    %v6394 = vpack.c.b16 %v6270, %v6268
    %v6395 = vpack.c.b16 %v6271, %v6269
    %v6396 = vpack.c.b16 %v6274, %v6272
    %v6397 = vpack.c.b16 %v6275, %v6273
    %v6398 = vpack.c.b16 %v6278, %v6276
    %v6399 = vpack.c.b16 %v6279, %v6277
    %v6400 = vpack.c.b16 %v6282, %v6280
    %v6401 = vpack.c.b16 %v6283, %v6281
    %v6402 = vpack.c.b16 %v6286, %v6284
    %v6403 = vpack.c.b16 %v6287, %v6285
    %v6404 = vpack.c.b16 %v6290, %v6288
    %v6405 = vpack.c.b16 %v6291, %v6289
    %v6406 = vpack.c.b16 %v6294, %v6292
    %v6407 = vpack.c.b16 %v6295, %v6293
    %v6408 = vpack.c.b16 %v6298, %v6296
    %v6409 = vpack.c.b16 %v6299, %v6297
    %v6410 = vpack.c.b16 %v6302, %v6300
    %v6411 = vpack.c.b16 %v6303, %v6301
    %v6412 = vpack.c.b16 %v6306, %v6304
    %v6413 = vpack.c.b16 %v6307, %v6305
    %v6414 = vpack.c.b16 %v6310, %v6308
    %v6415 = vpack.c.b16 %v6311, %v6309
    %v6416 = vpack.c.b16 %v6314, %v6312
    %v6417 = vpack.c.b16 %v6315, %v6313
    %v6418 = vpack.c.b16 %v6318, %v6316
    %v6419 = vpack.c.b16 %v6319, %v6317
    %v6420 = vpack.c.b16 %v6322, %v6320
    %v6421 = vpack.c.b16 %v6323, %v6321
    %v6422 = vpack.c.b16 %v6326, %v6324
    %v6423 = vpack.c.b16 %v6327, %v6325
    %v6424 = vpack.c.b16 %v6330, %v6328
    %v6425 = vpack.c.b16 %v6331, %v6329
    %v6426 = vpack.c.b16 %v6334, %v6332
    %v6427 = vpack.c.b16 %v6335, %v6333
    %v6428 = vpack.c.b16 %v6338, %v6336
    %v6429 = vpack.c.b16 %v6339, %v6337
    %v6430 = vpack.c.b16 %v6342, %v6340
    %v6431 = vpack.c.b16 %v6343, %v6341
    %v6432 = vpack.c.b16 %v6346, %v6344
    %v6433 = vpack.c.b16 %v6347, %v6345
    %v6434 = vpack.c.b16 %v6350, %v6348
    %v6435 = vpack.c.b16 %v6351, %v6349
    %v6436 = vpack.c.b16 %v6354, %v6352
    %v6437 = vpack.c.b16 %v6355, %v6353
    %v6438 = vpack.c.b16 %v6358, %v6356
    %v6439 = vpack.c.b16 %v6359, %v6357
    %v6440 = vpack.c.b16 %v6362, %v6360
    %v6441 = vpack.c.b16 %v6363, %v6361
    %v6442 = vpack.c.b16 %v6366, %v6364
    %v6443 = vpack.c.b16 %v6367, %v6365
    %v6444 = vpack.c.b16 %v6370, %v6368
    %v6445 = vpack.c.b16 %v6371, %v6369
    %v6446 = vpack.c.b16 %v6374, %v6372
    %v6447 = vpack.c.b16 %v6375, %v6373
    %v6448 = vpack.c.b16 %v6378, %v6376
    %v6449 = vpack.c.b16 %v6379, %v6377
    %v6450 = vpack.c.b16 %v6382, %v6380
    %v6451 = vpack.c.b16 %v6383, %v6381
    %v6452 = vpack.c.b16 %v6386, %v6384
    %v6453 = vpack.c.b16 %v6387, %v6385
    %v6454 = vpack.c.b16 %v6390, %v6388
    %v6455 = vpack.c.b16 %v6391, %v6389
    %6520 = vmatprep.subr.bf16.mxu0 %v6393
    %6521 = vmatpush1.bf16.msra.mxu0 %v6392
    %6522 = vmatprep.subr.bf16.mxu0 %v6395
    %6523 = vmatpush1.bf16.msra.mxu0 %v6394
    %6524 = vmatprep.subr.bf16.mxu0 %v6397
    %6525 = vmatpush1.bf16.msra.mxu0 %v6396
    %6526 = vmatprep.subr.bf16.mxu0 %v6399
    %6527 = vmatpush1.bf16.msra.mxu0 %v6398
    %6528 = vmatprep.subr.bf16.mxu0 %v6401
    %6529 = vmatpush1.bf16.msra.mxu0 %v6400
    %6530 = vmatprep.subr.bf16.mxu0 %v6403
    %6531 = vmatpush1.bf16.msra.mxu0 %v6402
    %6532 = vmatprep.subr.bf16.mxu0 %v6405
    %6533 = vmatpush1.bf16.msra.mxu0 %v6404
    %6534 = vmatprep.subr.bf16.mxu0 %v6407
    %6535 = vmatpush1.bf16.msra.mxu0 %v6406
    %6536 = vmatprep.subr.bf16.mxu0 %v6409
    %6537 = vmatpush1.bf16.msra.mxu0 %v6408
    %6538 = vmatprep.subr.bf16.mxu0 %v6411
    %6539 = vmatpush1.bf16.msra.mxu0 %v6410
    %6540 = vmatprep.subr.bf16.mxu0 %v6413
    %6541 = vmatpush1.bf16.msra.mxu0 %v6412
    %6542 = vmatprep.subr.bf16.mxu0 %v6415
    %6543 = vmatpush1.bf16.msra.mxu0 %v6414
    %6544 = vmatprep.subr.bf16.mxu0 %v6417
    %6545 = vmatpush1.bf16.msra.mxu0 %v6416
    %6546 = vmatprep.subr.bf16.mxu0 %v6419
    %6547 = vmatpush1.bf16.msra.mxu0 %v6418
    %6548 = vmatprep.subr.bf16.mxu0 %v6421
    %6549 = vmatpush1.bf16.msra.mxu0 %v6420
    %6550 = vmatprep.subr.bf16.mxu0 %v6423
    %6551 = vmatpush1.bf16.msra.mxu0 %v6422
    %6552 = vmatprep.mubr.bf16.mxu0 %v6121
    %6553 = vmatmul.mubr.bf16.gmra.mrb[0].mxu0 %v6120
    %v6554 = vpop.f32.mrb[0].mxu0
    %v6555 = vadd.f32 %v6193, %v6554
    %v6556 = vpop.f32.mrb[0].mxu0
    %v6557 = vadd.f32 %v6197, %v6556
    %v6558 = vpop.f32.mrb[0].mxu0
    %v6559 = vpop.f32.mrb[0].mxu0
    %6560 = vdwg.mxu0
    %6561 = vmatprep.subr.bf16.mxu0 %v6425
    %6562 = vmatpush1.bf16.msra.mxu0 %v6424
    %6563 = vmatprep.subr.bf16.mxu0 %v6427
    %6564 = vmatpush1.bf16.msra.mxu0 %v6426
    %6565 = vmatprep.subr.bf16.mxu0 %v6429
    %6566 = vmatpush1.bf16.msra.mxu0 %v6428
    %6567 = vmatprep.subr.bf16.mxu0 %v6431
    %6568 = vmatpush1.bf16.msra.mxu0 %v6430
    %6569 = vmatprep.subr.bf16.mxu0 %v6433
    %6570 = vmatpush1.bf16.msra.mxu0 %v6432
    %6571 = vmatprep.subr.bf16.mxu0 %v6435
    %6572 = vmatpush1.bf16.msra.mxu0 %v6434
    %6573 = vmatprep.subr.bf16.mxu0 %v6437
    %6574 = vmatpush1.bf16.msra.mxu0 %v6436
    %6575 = vmatprep.subr.bf16.mxu0 %v6439
    %6576 = vmatpush1.bf16.msra.mxu0 %v6438
    %6577 = vmatprep.subr.bf16.mxu0 %v6441
    %6578 = vmatpush1.bf16.msra.mxu0 %v6440
    %6579 = vmatprep.subr.bf16.mxu0 %v6443
    %6580 = vmatpush1.bf16.msra.mxu0 %v6442
    %6581 = vmatprep.subr.bf16.mxu0 %v6445
    %6582 = vmatpush1.bf16.msra.mxu0 %v6444
    %6583 = vmatprep.subr.bf16.mxu0 %v6447
    %6584 = vmatpush1.bf16.msra.mxu0 %v6446
    %6585 = vmatprep.subr.bf16.mxu0 %v6449
    %6586 = vmatpush1.bf16.msra.mxu0 %v6448
    %6587 = vmatprep.subr.bf16.mxu0 %v6451
    %6588 = vmatpush1.bf16.msra.mxu0 %v6450
    %6589 = vmatprep.subr.bf16.mxu0 %v6453
    %6590 = vmatpush1.bf16.msra.mxu0 %v6452
    %6591 = vmatprep.subr.bf16.mxu0 %v6455
    %6592 = vmatpush1.bf16.msra.mxu0 %v6454
    %6593 = vmatprep.mubr.bf16.mxu0 %v6123
    %6594 = vmatmul.mubr.bf16.gmra.mrb[0].mxu0 %v6122
    %v6595 = vpop.f32.mrb[0].mxu0
    %v6596 = vadd.f32 %v6555, %v6595
    %v6597 = vpop.f32.mrb[0].mxu0
    %v6598 = vadd.f32 %v6557, %v6597
    %v6599 = vpop.f32.mrb[0].mxu0
    %v6600 = vpop.f32.mrb[0].mxu0
    %6601 = vdwg.mxu0
    %v6602 = vmax.f32 %v6596, 0.0
    %v6603 = vmax.f32 %v6598, 0.0
    %v6604 = vpack.c.bf16 %v6602, %v6602
    %v6605 = vpack.c.bf16 %v6603, %v6603
    %v6606 = vld [vmem:[#allocation19] sm:$0xf]
    %v6607 = vld [vmem:[#allocation19 + $0x4] sm:$0xf]
    %v6608 = vld [vmem:[#allocation19 + $0x8] sm:$0xf]
    %v6609 = vld [vmem:[#allocation19 + $0xc] sm:$0xf]
    %v6610 = vld [vmem:[#allocation19 + $0x10] sm:$0xf]
    %v6611 = vld [vmem:[#allocation19 + $0x14] sm:$0xf]
    %v6612 = vld [vmem:[#allocation19 + $0x18] sm:$0xf]
    %v6613 = vld [vmem:[#allocation19 + $0x1c] sm:$0xf]
    %v6614 = vld [vmem:[#allocation19 + $0x20] sm:$0xf]
    %v6615 = vld [vmem:[#allocation19 + $0x24] sm:$0xf]
    %v6616 = vld [vmem:[#allocation19 + $0x28] sm:$0xf]
    %v6617 = vld [vmem:[#allocation19 + $0x2c] sm:$0xf]
    %v6618 = vld [vmem:[#allocation19 + $0x30] sm:$0xf]
    %v6619 = vld [vmem:[#allocation19 + $0x34] sm:$0xf]
    %v6620 = vld [vmem:[#allocation19 + $0x38] sm:$0xf]
    %v6621 = vld [vmem:[#allocation19 + $0x3c] sm:$0xf]
    %v6622 = vld [vmem:[#allocation19 + $0x40] sm:$0xf]
    %v6623 = vld [vmem:[#allocation19 + $0x44] sm:$0xf]
    %v6624 = vld [vmem:[#allocation19 + $0x48] sm:$0xf]
    %v6625 = vld [vmem:[#allocation19 + $0x4c] sm:$0xf]
    %v6626 = vld [vmem:[#allocation19 + $0x50] sm:$0xf]
    %v6627 = vld [vmem:[#allocation19 + $0x54] sm:$0xf]
    %v6628 = vld [vmem:[#allocation19 + $0x58] sm:$0xf]
    %v6629 = vld [vmem:[#allocation19 + $0x5c] sm:$0xf]
    %v6630 = vld [vmem:[#allocation19 + $0x60] sm:$0xf]
    %v6631 = vld [vmem:[#allocation19 + $0x64] sm:$0xf]
    %v6632 = vld [vmem:[#allocation19 + $0x68] sm:$0xf]
    %v6633 = vld [vmem:[#allocation19 + $0x6c] sm:$0xf]
    %v6634 = vld [vmem:[#allocation19 + $0x70] sm:$0xf]
    %v6635 = vld [vmem:[#allocation19 + $0x74] sm:$0xf]
    %v6636 = vld [vmem:[#allocation19 + $0x78] sm:$0xf]
    %v6637 = vld [vmem:[#allocation19 + $0x7c] sm:$0xf]
    %v6638 = vld [vmem:[#allocation21] sm:$0x1]
    %v6640 = vlaneseq
    %v6641 = vshrl.u32 %v6640, 7
    %v6642 = vsub.s32 0, %v6641
    %v6643 = vrot.slane %v6638, %v6642
    %v6677 = vunpack.c.l.b16 %v6606
    %v6678 = vunpack.c.l.b16 %v6607
    %v6679 = vunpack.c.l.b16 %v6608
    %v6680 = vunpack.c.l.b16 %v6609
    %v6681 = vunpack.c.l.b16 %v6610
    %v6682 = vunpack.c.l.b16 %v6611
    %v6683 = vunpack.c.l.b16 %v6612
    %v6684 = vunpack.c.l.b16 %v6613
    %v6685 = vunpack.c.l.b16 %v6614
    %v6686 = vunpack.c.l.b16 %v6615
    %v6687 = vunpack.c.l.b16 %v6616
    %v6688 = vunpack.c.l.b16 %v6617
    %v6689 = vunpack.c.l.b16 %v6618
    %v6690 = vunpack.c.l.b16 %v6619
    %v6691 = vunpack.c.l.b16 %v6620
    %v6692 = vunpack.c.l.b16 %v6621
    %v6693 = vunpack.c.l.b16 %v6622
    %v6694 = vunpack.c.l.b16 %v6623
    %v6695 = vunpack.c.l.b16 %v6624
    %v6696 = vunpack.c.l.b16 %v6625
    %v6697 = vunpack.c.l.b16 %v6626
    %v6698 = vunpack.c.l.b16 %v6627
    %v6699 = vunpack.c.l.b16 %v6628
    %v6700 = vunpack.c.l.b16 %v6629
    %v6701 = vunpack.c.l.b16 %v6630
    %v6702 = vunpack.c.l.b16 %v6631
    %v6703 = vunpack.c.l.b16 %v6632
    %v6704 = vunpack.c.l.b16 %v6633
    %v6705 = vunpack.c.l.b16 %v6634
    %v6706 = vunpack.c.l.b16 %v6635
    %v6707 = vunpack.c.l.b16 %v6636
    %v6708 = vunpack.c.l.b16 %v6637
    %v6709 = vpack.c.b16 %v6678, %v6677
    %v6710 = vpack.c.b16 %v6680, %v6679
    %v6711 = vpack.c.b16 %v6682, %v6681
    %v6712 = vpack.c.b16 %v6684, %v6683
    %v6713 = vpack.c.b16 %v6686, %v6685
    %v6714 = vpack.c.b16 %v6688, %v6687
    %v6715 = vpack.c.b16 %v6690, %v6689
    %v6716 = vpack.c.b16 %v6692, %v6691
    %v6717 = vpack.c.b16 %v6694, %v6693
    %v6718 = vpack.c.b16 %v6696, %v6695
    %v6719 = vpack.c.b16 %v6698, %v6697
    %v6720 = vpack.c.b16 %v6700, %v6699
    %v6721 = vpack.c.b16 %v6702, %v6701
    %v6722 = vpack.c.b16 %v6704, %v6703
    %v6723 = vpack.c.b16 %v6706, %v6705
    %v6724 = vpack.c.b16 %v6708, %v6707
    %6741 = vmatprep.subr.bf16.mxu0 0
    %6742 = vmatpush1.bf16.msra.mxu0 %v6709
    %6743 = vmatprep.subr.bf16.mxu0 0
    %6744 = vmatpush1.bf16.msra.mxu0 %v6710
    %6745 = vmatprep.subr.bf16.mxu0 0
    %6746 = vmatpush1.bf16.msra.mxu0 %v6711
    %6747 = vmatprep.subr.bf16.mxu0 0
    %6748 = vmatpush1.bf16.msra.mxu0 %v6712
    %6749 = vmatprep.subr.bf16.mxu0 0
    %6750 = vmatpush1.bf16.msra.mxu0 %v6713
    %6751 = vmatprep.subr.bf16.mxu0 0
    %6752 = vmatpush1.bf16.msra.mxu0 %v6714
    %6753 = vmatprep.subr.bf16.mxu0 0
    %6754 = vmatpush1.bf16.msra.mxu0 %v6715
    %6755 = vmatprep.subr.bf16.mxu0 0
    %6756 = vmatpush1.bf16.msra.mxu0 %v6716
    %6757 = vmatprep.subr.bf16.mxu0 0
    %6758 = vmatpush1.bf16.msra.mxu0 %v6717
    %6759 = vmatprep.subr.bf16.mxu0 0
    %6760 = vmatpush1.bf16.msra.mxu0 %v6718
    %6761 = vmatprep.subr.bf16.mxu0 0
    %6762 = vmatpush1.bf16.msra.mxu0 %v6719
    %6763 = vmatprep.subr.bf16.mxu0 0
    %6764 = vmatpush1.bf16.msra.mxu0 %v6720
    %6765 = vmatprep.subr.bf16.mxu0 0
    %6766 = vmatpush1.bf16.msra.mxu0 %v6721
    %6767 = vmatprep.subr.bf16.mxu0 0
    %6768 = vmatpush1.bf16.msra.mxu0 %v6722
    %6769 = vmatprep.subr.bf16.mxu0 0
    %6770 = vmatpush1.bf16.msra.mxu0 %v6723
    %6771 = vmatprep.subr.bf16.mxu0 0
    %6772 = vmatpush1.bf16.msra.mxu0 %v6724
    %6773 = vmatprep.mubr.bf16.mxu0 %v6605
    %6774 = vmatmul.mubr.bf16.gmra.mrb[0].mxu0 %v6604
    %v6775 = vpop.f32.mrb[0].mxu0
    %v6776 = vadd.f32 %v6643, %v6775
    %v6777 = vpop.f32.mrb[0].mxu0
    %v6778 = vpop.f32.mrb[0].mxu0
    %v6779 = vpop.f32.mrb[0].mxu0
    %6780 = vdwg.mxu0
    %v6781 = vmax.f32 %v6776, 0.0
    %v6782 = vpack.c.bf16 %v6781, %v6781
    %v6783 = vld [vmem:[%s14] sm:$0xf]
    %v6784 = vld [vmem:[%s14 + $0x4] sm:$0xf]
    %v6785 = vld [vmem:[%s14 + $0x8] sm:$0xf]
    %v6786 = vld [vmem:[%s14 + $0xc] sm:$0xf]
    %v6787 = vld [vmem:[%s14 + $0x10] sm:$0xf]
    %v6788 = vld [vmem:[%s14 + $0x14] sm:$0xf]
    %v6789 = vld [vmem:[%s14 + $0x18] sm:$0xf]
    %v6790 = vld [vmem:[%s14 + $0x1c] sm:$0xf]
    %v6791 = vld [vmem:[%s14 + $0x20] sm:$0xf]
    %v6792 = vld [vmem:[%s14 + $0x24] sm:$0xf]
    %v6793 = vld [vmem:[%s14 + $0x28] sm:$0xf]
    %v6794 = vld [vmem:[%s14 + $0x2c] sm:$0xf]
    %v6795 = vld [vmem:[%s14 + $0x30] sm:$0xf]
    %v6796 = vld [vmem:[%s14 + $0x34] sm:$0xf]
    %v6797 = vld [vmem:[%s14 + $0x38] sm:$0xf]
    %v6798 = vld [vmem:[%s14 + $0x3c] sm:$0xf]
    %v6799 = vld [vmem:[#allocation22] sm:$0x1]
    %v6801 = vlaneseq
    %v6802 = vshrl.u32 %v6801, 7
    %v6803 = vsub.s32 0, %v6802
    %v6804 = vrot.slane %v6799, %v6803
    %v6822 = vunpack.c.l.b16 %v6783
    %v6823 = vunpack.c.l.b16 %v6784
    %v6824 = vunpack.c.l.b16 %v6785
    %v6825 = vunpack.c.l.b16 %v6786
    %v6826 = vunpack.c.l.b16 %v6787
    %v6827 = vunpack.c.l.b16 %v6788
    %v6828 = vunpack.c.l.b16 %v6789
    %v6829 = vunpack.c.l.b16 %v6790
    %v6830 = vunpack.c.l.b16 %v6791
    %v6831 = vunpack.c.l.b16 %v6792
    %v6832 = vunpack.c.l.b16 %v6793
    %v6833 = vunpack.c.l.b16 %v6794
    %v6834 = vunpack.c.l.b16 %v6795
    %v6835 = vunpack.c.l.b16 %v6796
    %v6836 = vunpack.c.l.b16 %v6797
    %v6837 = vunpack.c.l.b16 %v6798
    %v6838 = vpack.c.b16 %v6823, %v6822
    %v6839 = vpack.c.b16 %v6825, %v6824
    %v6840 = vpack.c.b16 %v6827, %v6826
    %v6841 = vpack.c.b16 %v6829, %v6828
    %v6842 = vpack.c.b16 %v6831, %v6830
    %v6843 = vpack.c.b16 %v6833, %v6832
    %v6844 = vpack.c.b16 %v6835, %v6834
    %v6845 = vpack.c.b16 %v6837, %v6836
    %6854 = vmatprep.subr.bf16.mxu0 0
    %6855 = vmatpush1.bf16.msra.mxu0 %v6838
    %6856 = vmatprep.subr.bf16.mxu0 0
    %6857 = vmatpush1.bf16.msra.mxu0 %v6839
    %6858 = vmatprep.subr.bf16.mxu0 0
    %6859 = vmatpush1.bf16.msra.mxu0 %v6840
    %6860 = vmatprep.subr.bf16.mxu0 0
    %6861 = vmatpush1.bf16.msra.mxu0 %v6841
    %6862 = vmatprep.subr.bf16.mxu0 0
    %6863 = vmatpush1.bf16.msra.mxu0 %v6842
    %6864 = vmatprep.subr.bf16.mxu0 0
    %6865 = vmatpush1.bf16.msra.mxu0 %v6843
    %6866 = vmatprep.subr.bf16.mxu0 0
    %6867 = vmatpush1.bf16.msra.mxu0 %v6844
    %6868 = vmatprep.subr.bf16.mxu0 0
    %6869 = vmatpush1.bf16.msra.mxu0 %v6845
    %6870 = vmatprep.subr.bf16.mxu0 0
    %6871 = vmatpush1.bf16.msra.mxu0 0
    %6872 = vmatprep.subr.bf16.mxu0 0
    %6873 = vmatpush1.bf16.msra.mxu0 0
    %6874 = vmatprep.subr.bf16.mxu0 0
    %6875 = vmatpush1.bf16.msra.mxu0 0
    %6876 = vmatprep.subr.bf16.mxu0 0
    %6877 = vmatpush1.bf16.msra.mxu0 0
    %6878 = vmatprep.subr.bf16.mxu0 0
    %6879 = vmatpush1.bf16.msra.mxu0 0
    %6880 = vmatprep.subr.bf16.mxu0 0
    %6881 = vmatpush1.bf16.msra.mxu0 0
    %6882 = vmatprep.subr.bf16.mxu0 0
    %6883 = vmatpush1.bf16.msra.mxu0 0
    %6884 = vmatprep.subr.bf16.mxu0 0
    %6885 = vmatpush1.bf16.msra.mxu0 0
    %6886 = vmatprep.mubr.bf16.mxu0 0
    %6887 = vmatmul.mubr.bf16.gmra.mrb[0].mxu0 %v6782
    %v6888 = vpop.f32.mrb[0].mxu0
    %v6889 = vadd.f32 %v6804, %v6888
    %v6890 = vpop.f32.mrb[0].mxu0
    %v6891 = vpop.f32.mrb[0].mxu0
    %v6892 = vpop.f32.mrb[0].mxu0
    %6893 = vdwg.mxu0
    %vm6894 = vcmask 50176
    %6895 = vst.msk [vmem:[#allocation24] sm:$0x3] %vm6894, %v6889
    // Predicated region
    $region110: #{dqn_forward.1} parent=1 // pred_check
      _
    $region111: #{dqn_forward.1} parent=1 // pred_check_branch
      %6897 = sbr.rel (0) target = $region113
    $region112: #{dqn_forward.1} parent=1 // pred_region
      %s6899 = ssub.s32 32, 32
      %6900 = vsyncadd [#allocation6], %s6899
      %s6902 = sshll.u32 [#allocation24], 4
      %s6903 = int_to_ptr.vmem [resolvable:$true] %s6902
      %6905 = dma.vmem_to_hbm [thread:$0]  %s6903, 32, %s16, [#allocation6]
    $region113: #{dqn_forward.1} parent=1 // pred_fallthru
      _
    // Predicated region
    $region114: #{dqn_forward.1} parent=1 // pred_check
      _
    $region115: #{dqn_forward.1} parent=1 // pred_check_branch
      %6907 = sbr.rel (0) target = $region117
    $region116: #{dqn_forward.1} parent=1 // pred_region
      %6908 = dma.done [#allocation6], 32
    $region117: #{dqn_forward.1} parent=1 // pred_fallthru
      _
    %6909 = vsyncpa [#allocation5], 1
    %6910 = vsyncpa [#allocation8], 1
    %6911 = vsyncpa [#allocation11], 1
    %6912 = vsyncpa [#allocation14], 1
    %6913 = vsyncpa [#allocation17], 1
    %6914 = vsyncpa [#allocation20], 1
    %6915 = vsyncpa [#allocation23], 1
    %6916 = vsyncpa [#allocation6], 1
  %6917 = vsyncmov [#allocation3]
  %s6918 = vpop.sfrf %6917
  %p6919 = scmp.eq.s32.totalorder %s6918, 0
  %p6920 = pneg %p6919
  %6922 = shalt.err (%p6920)

</llo_original>
